<compile_context>
chip_gen: v5e
topology: v5e:2x2
jax: 0.10.0
libtpu: 0.0.40
codegen_flags: <defaults>
</compile_context>

<pallas_src>
import functools

import jax
import jax.numpy as jnp
from jax.experimental import pallas as pl
from jax.experimental.pallas import tpu as pltpu


def _default_tm_max():
    # v7x has 2 TensorCores/chip: cap tm so the M=512 layers give >=2
    # 'parallel' grid steps (one per TC).  Single-TC chips keep one big tile
    # (lowest per-step pipeline overhead).
    try:
        kind = jax.devices()[0].device_kind.lower()
    except Exception:  # pragma: no cover - backend not initialised
        kind = ""
    return 256 if "v7" in kind else 512


TM_MAX = _default_tm_max()


def _round_up(x, m):
    return ((x + m - 1) // m) * m


def _apply_act(r, activation):
    if activation == "relu":
        return jnp.maximum(r, 0.0)
    if activation == "sigmoid":
        return jax.nn.sigmoid(r)
    return r


# ----------------------------------------------------------------------------
# Pallas kernels: matmul (full-extent K and N) + bias + activation,
# optionally with a fused per-row 1x1 (second matmul) epilogue.
# ----------------------------------------------------------------------------
def _matmul_kernel(a_ref, b_ref, bias_ref, o_ref, *, activation):
    r = jnp.dot(a_ref[...], b_ref[...], preferred_element_type=jnp.float32)
    r = r + bias_ref[...]                       # (TM, N) + (1, N) broadcast
    r = _apply_act(r, activation)
    o_ref[...] = r.astype(o_ref.dtype)


def _matmul_fused_kernel(a_ref, b1_ref, bias1_ref, b2_ref, bias2_ref,
                         *out_refs, act1, act2, keep_first):
    r1 = jnp.dot(a_ref[...], b1_ref[...], preferred_element_type=jnp.float32)
    r1 = r1 + bias1_ref[...]
    r1 = _apply_act(r1, act1)
    # Epilogue 1x1 "conv": r1 stays in vregs/VMEM, second matmul is K<=64,N<=16.
    r2 = jnp.dot(r1.astype(b2_ref.dtype), b2_ref[...],
                 preferred_element_type=jnp.float32)
    r2 = r2 + bias2_ref[...]
    r2 = _apply_act(r2, act2)
    if keep_first:
        o1_ref, o2_ref = out_refs
        o1_ref[...] = r1.astype(o1_ref.dtype)
    else:
        (o2_ref,) = out_refs
    o2_ref[...] = r2.astype(o2_ref.dtype)


def _resize_kernel(y_ref, ah_ref, awT_ref, o_ref):
    # Separable bilinear: out = Ah @ Y @ Aw^T   (one (n,c) image per grid step)
    t = jnp.dot(y_ref[0], awT_ref[...], preferred_element_type=jnp.float32)
    o_ref[0] = jnp.dot(ah_ref[...], t, preferred_element_type=jnp.float32)


# ----------------------------------------------------------------------------
# Wrappers around pallas_call
# ----------------------------------------------------------------------------
def _tm_and_pad(a, M):
    tm = min(TM_MAX, _round_up(M, 8))
    Mp = _round_up(M, tm)
    if Mp != M:
        # Padded rows pass through bias+activation and are sliced off below.
        a = jnp.pad(a, ((0, Mp - M), (0, 0)))
    return a, tm, Mp


def pallas_matmul(a, b, bias=None, activation="none", out_dtype=jnp.bfloat16):
    """out = act(a @ b + bias); a:(M,K) b:(K,N) bias:(N,).  bf16 in, f32 acc."""
    M, K = a.shape
    Kb, N = b.shape
    assert K == Kb
    if bias is None:
        bias = jnp.zeros((N,), jnp.float32)
    bias2d = bias.reshape(1, N).astype(jnp.float32)
    if a.dtype != jnp.bfloat16:
        a = a.astype(jnp.bfloat16)
    if b.dtype != jnp.bfloat16:
        b = b.astype(jnp.bfloat16)

    a, tm, Mp = _tm_and_pad(a, M)
    out = pl.pallas_call(
        functools.partial(_matmul_kernel, activation=activation),
        out_shape=jax.ShapeDtypeStruct((Mp, N), out_dtype),
        grid_spec=pltpu.PrefetchScalarGridSpec(
            num_scalar_prefetch=0,
            grid=(Mp // tm,),
            in_specs=[
                pl.BlockSpec((tm, K), lambda i: (i, 0)),   # activations
                pl.BlockSpec((K, N), lambda i: (0, 0)),    # weights: resident
                pl.BlockSpec((1, N), lambda i: (0, 0)),    # bias:    resident
            ],
            out_specs=pl.BlockSpec((tm, N), lambda i: (i, 0)),
        ),
        compiler_params=pltpu.CompilerParams(
            dimension_semantics=("parallel",)),
    )(a, b, bias2d)
    return out[:M] if Mp != M else out


def pallas_matmul_fused(a, w1, b1, act1, w2, b2, act2, *, keep_first=True,
                        out_dtype1=jnp.bfloat16, out_dtype2=jnp.bfloat16):
    """r1 = act1(a@w1+b1); r2 = act2(r1@w2+b2); returns (r1, r2) or r2 only."""
    M, K = a.shape
    K1, N1 = w1.shape
    N1b, N2 = w2.shape
    assert K == K1 and N1 == N1b
    b1_2d = b1.reshape(1, N1).astype(jnp.float32)
    b2_2d = b2.reshape(1, N2).astype(jnp.float32)
    if a.dtype != jnp.bfloat16:
        a = a.astype(jnp.bfloat16)
    w1 = w1.astype(jnp.bfloat16)
    w2 = w2.astype(jnp.bfloat16)

    a, tm, Mp = _tm_and_pad(a, M)
    if keep_first:
        out_shape = (jax.ShapeDtypeStruct((Mp, N1), out_dtype1),
                     jax.ShapeDtypeStruct((Mp, N2), out_dtype2))
        out_specs = [pl.BlockSpec((tm, N1), lambda i: (i, 0)),
                     pl.BlockSpec((tm, N2), lambda i: (i, 0))]
    else:
        out_shape = jax.ShapeDtypeStruct((Mp, N2), out_dtype2)
        out_specs = pl.BlockSpec((tm, N2), lambda i: (i, 0))

    res = pl.pallas_call(
        functools.partial(_matmul_fused_kernel, act1=act1, act2=act2,
                          keep_first=keep_first),
        out_shape=out_shape,
        grid_spec=pltpu.PrefetchScalarGridSpec(
            num_scalar_prefetch=0,
            grid=(Mp // tm,),
            in_specs=[
                pl.BlockSpec((tm, K), lambda i: (i, 0)),    # activations
                pl.BlockSpec((K, N1), lambda i: (0, 0)),    # conv weights
                pl.BlockSpec((1, N1), lambda i: (0, 0)),    # conv bias
                pl.BlockSpec((N1, N2), lambda i: (0, 0)),   # 1x1 weights
                pl.BlockSpec((1, N2), lambda i: (0, 0)),    # 1x1 bias
            ],
            out_specs=out_specs,
        ),
        compiler_params=pltpu.CompilerParams(
            dimension_semantics=("parallel",)),
    )(a, w1, b1_2d, w2, b2_2d)

    if keep_first:
        o1, o2 = res
        if Mp != M:
            o1, o2 = o1[:M], o2[:M]
        return o1, o2
    return res[:M] if Mp != M else res


# ----------------------------------------------------------------------------
# Conv2d (NHWC) = im2col (glue) + Pallas matmul (hot path)
# ----------------------------------------------------------------------------
def _im2col_nhwc(x, kh, kw, stride, pad):
    N, H, W, C = x.shape
    xp = jnp.pad(x, ((0, 0), (pad, pad), (pad, pad), (0, 0)))
    Ho = (H + 2 * pad - kh) // stride + 1
    Wo = (W + 2 * pad - kw) // stride + 1
    cols = []
    for i in range(kh):
        for j in range(kw):
            cols.append(xp[:,
                           i: i + stride * (Ho - 1) + 1: stride,
                           j: j + stride * (Wo - 1) + 1: stride, :])
    patches = cols[0] if len(cols) == 1 else jnp.concatenate(cols, axis=-1)
    # (N, Ho, Wo, kh*kw*C) with K index order (tap_i, tap_j, c)
    return patches.reshape(N * Ho * Wo, kh * kw * C), Ho, Wo


def conv2d(x, wb, k=1, stride=1, padding=0, activation="none",
           out_dtype=jnp.bfloat16):
    """x:(N,H,W,C) NHWC; wb = (bmat:(k*k*C, Cout) bf16, bias:(Cout,) f32)."""
    bmat, bias = wb
    a, Ho, Wo = _im2col_nhwc(x, k, k, stride, padding)
    out = pallas_matmul(a, bmat, bias, activation, out_dtype=out_dtype)
    return out.reshape(x.shape[0], Ho, Wo, -1)


def conv2d_fused_1x1(x, wb1, wb2, k=3, stride=1, padding=1,
                     act1="relu", act2="none", keep_first=True,
                     out_dtype1=jnp.bfloat16, out_dtype2=jnp.bfloat16):
    """conv(k, act1) followed by a per-pixel 1x1 conv (act2) in ONE kernel."""
    a, Ho, Wo = _im2col_nhwc(x, k, k, stride, padding)
    res = pallas_matmul_fused(a, wb1[0], wb1[1], act1, wb2[0], wb2[1], act2,
                              keep_first=keep_first,
                              out_dtype1=out_dtype1, out_dtype2=out_dtype2)
    n = x.shape[0]
    if keep_first:
        o1, o2 = res
        return o1.reshape(n, Ho, Wo, -1), o2.reshape(n, Ho, Wo, -1)
    return res.reshape(n, Ho, Wo, -1)


def _nearest_up(x, factor):  # NHWC
    return jnp.repeat(jnp.repeat(x, factor, axis=1), factor, axis=2)


# ----------------------------------------------------------------------------
# Bilinear resize (align_corners=True), separable form out = Ah @ Y @ Aw^T
# ----------------------------------------------------------------------------
def _interp_matrix(out_size, in_size):
    if in_size == 1:
        return jnp.ones((out_size, 1), jnp.float32)
    if out_size == 1:
        return jnp.zeros((1, in_size), jnp.float32).at[0, 0].set(1.0)
    src = jnp.arange(out_size, dtype=jnp.float32) * (in_size - 1) / (out_size - 1)
    lo = jnp.clip(jnp.floor(src).astype(jnp.int32), 0, in_size - 2)
    frac = src - lo.astype(jnp.float32)
    rows = jnp.arange(out_size)
    m = jnp.zeros((out_size, in_size), jnp.float32)
    m = m.at[rows, lo].set(1.0 - frac)
    m = m.at[rows, lo + 1].add(frac)
    return m


def bilinear_resize_to_nchw(y_nhwc, H, W):
    """(N, h, w, C) f32 -> (N, C, H, W) f32, align_corners=True, one kernel."""
    n, hh, ww, cc = y_nhwc.shape
    ah = _interp_matrix(H, hh)              # (H, h)  f32 (keep f32 for accuracy)
    awT = _interp_matrix(W, ww).T           # (w, W)  f32
    yb = jnp.transpose(y_nhwc, (0, 3, 1, 2)).reshape(n * cc, hh, ww)
    yb = yb.astype(jnp.float32)
    out = pl.pallas_call(
        _resize_kernel,
        out_shape=jax.ShapeDtypeStruct((n * cc, H, W), jnp.float32),
        grid_spec=pltpu.PrefetchScalarGridSpec(
            num_scalar_prefetch=0,
            grid=(n * cc,),
            in_specs=[
                pl.BlockSpec((1, hh, ww), lambda b: (b, 0, 0)),
                pl.BlockSpec((H, hh), lambda b: (0, 0)),    # Ah   resident
                pl.BlockSpec((ww, W), lambda b: (0, 0)),    # Aw^T resident
            ],
            out_specs=pl.BlockSpec((1, H, W), lambda b: (b, 0, 0)),
        ),
        compiler_params=pltpu.CompilerParams(
            dimension_semantics=("parallel",)),
    )(yb, ah, awT)
    return out.reshape(n, cc, H, W)


# ----------------------------------------------------------------------------
# Deterministic parameter init (synthetic weights, matmul-ready layout)
# ----------------------------------------------------------------------------
BACKBONE_CH = [8, 16, 32, 64]
INNER_CH = 16
HEAD_HIDDEN = 16


def _raw_conv_w(key, cout, cin, k):
    return jax.random.normal(key, (cout, cin, k, k), jnp.float32) * jnp.sqrt(
        2.0 / (cin * k * k))


def _to_mat(w):
    """(Cout,Cin,kh,kw) PyTorch layout -> (kh*kw*Cin, Cout), tap-major/chan-minor."""
    cout, cin, kh, kw = w.shape
    return w.transpose(2, 3, 1, 0).reshape(kh * kw * cin, cout).astype(jnp.bfloat16)


def _conv_mat(key, cout, cin, k):
    w = _raw_conv_w(key, cout, cin, k)
    return _to_mat(w), jnp.zeros((cout,), jnp.float32)


def init_params(in_ch=3):
    keys = iter(jax.random.split(jax.random.PRNGKey(0), 32))
    p = {}
    c_prev = in_ch
    for i, c in enumerate(BACKBONE_CH):
        p[f"backbone{i}"] = _conv_mat(next(keys), c, c_prev, 3)
        c_prev = c
    for i, c in enumerate(BACKBONE_CH):
        p[f"reduce{i}"] = _conv_mat(next(keys), INNER_CH, c, 1)
        p[f"smooth{i}"] = _conv_mat(next(keys), INNER_CH, INNER_CH, 3)

    # Head: two branches fused into one conv1 (Cout=32) + block-diag conv2 (Cout=2).
    fuse_ch = INNER_CH * 4
    w1_even = _raw_conv_w(next(keys), HEAD_HIDDEN, fuse_ch, 3)
    w1_odd = _raw_conv_w(next(keys), HEAD_HIDDEN, fuse_ch, 3)
    w2_even = _raw_conv_w(next(keys), 1, HEAD_HIDDEN, 1)
    w2_odd = _raw_conv_w(next(keys), 1, HEAD_HIDDEN, 1)

    w1 = jnp.concatenate([w1_even, w1_odd], axis=0)             # (32, 64, 3, 3)
    b1 = jnp.zeros((2 * HEAD_HIDDEN,), jnp.float32)
    w2 = jnp.zeros((2, 2 * HEAD_HIDDEN, 1, 1), jnp.float32)
    w2 = w2.at[0, :HEAD_HIDDEN].set(w2_even[0])                 # even uses ch 0..15
    w2 = w2.at[1, HEAD_HIDDEN:].set(w2_odd[0])                  # odd  uses ch 16..31
    b2 = jnp.zeros((2,), jnp.float32)
    p["head_conv1"] = (_to_mat(w1), b1)
    p["head_conv2"] = (_to_mat(w2), b2)
    return p


# ----------------------------------------------------------------------------
# DBCism forward
# ----------------------------------------------------------------------------
def dbcism_forward(params, x):
    N, C, H, W = x.shape
    h = jnp.transpose(x, (0, 2, 3, 1)).astype(jnp.bfloat16)   # NCHW -> NHWC

    # --- backbone + fused FPN 1x1 reduce (one kernel per level) ---
    c2, r2 = conv2d_fused_1x1(h, params["backbone0"], params["reduce0"],
                              k=3, stride=2, padding=1, act1="relu")
    c3, r3 = conv2d_fused_1x1(c2, params["backbone1"], params["reduce1"],
                              k=3, stride=2, padding=1, act1="relu")
    c4, r4 = conv2d_fused_1x1(c3, params["backbone2"], params["reduce2"],
                              k=3, stride=2, padding=1, act1="relu")
    r5 = conv2d_fused_1x1(c4, params["backbone3"], params["reduce3"],
                          k=3, stride=2, padding=1, act1="relu",
                          keep_first=False)                    # c5 not needed

    # --- neck (FPN top-down + smooth) ---
    p5 = r5
    p4 = r4 + _nearest_up(p5, 2)
    p3 = r3 + _nearest_up(p4, 2)
    p2 = r2 + _nearest_up(p3, 2)
    p5 = conv2d(p5, params["smooth3"], k=3, padding=1)
    p4 = conv2d(p4, params["smooth2"], k=3, padding=1)
    p3 = conv2d(p3, params["smooth1"], k=3, padding=1)
    p2 = conv2d(p2, params["smooth0"], k=3, padding=1)
    fuse = jnp.concatenate(
        [p2, _nearest_up(p3, 2), _nearest_up(p4, 4), _nearest_up(p5, 8)], axis=-1)

    # --- head (even || odd): conv1 relu + conv2 sigmoid fused in one kernel ---
    y = conv2d_fused_1x1(fuse, params["head_conv1"], params["head_conv2"],
                         k=3, stride=1, padding=1, act1="relu", act2="sigmoid",
                         keep_first=False, out_dtype2=jnp.float32)
    # y: (N, h, w, 2) f32

    # --- separable bilinear resize to (H, W), align_corners=True ---
    out = bilinear_resize_to_nchw(y, H, W)                     # (N, 2, H, W)
    return out[:, 0:1], out[:, 1:2]                            # (y_even, y_odd)


if __name__ == "__main__":
    key = jax.random.PRNGKey(0)
    x = jax.random.normal(key, (2, 3, 32, 32), jnp.float32)    # NCHW

    params = init_params(in_ch=3)
    fwd = jax.jit(dbcism_forward)
    y_even, y_odd = fwd(params, x)
    jax.block_until_ready((y_even, y_odd))

    assert y_even.shape == (2, 1, 32, 32), y_even.shape
    assert y_odd.shape == (2, 1, 32, 32), y_odd.shape
    assert y_even.dtype == jnp.float32 and y_odd.dtype == jnp.float32
    assert bool(jnp.isfinite(y_even).all()) and bool(jnp.isfinite(y_odd).all())
    # sigmoid + convex interpolation keeps values in [0, 1]
    assert bool((y_even >= 0).all()) and bool((y_even <= 1).all())
    assert bool((y_odd >= 0).all()) and bool((y_odd <= 1).all())
    print("KERNEL_OK")
</pallas_src>

<mosaic_0001>
module attributes {stable_mosaic.version = 11 : i64} {
  func.func @_matmul_fused_kernel(%arg0: i32, %arg1: memref<512x27xbf16, #tpu.memory_space<vmem>>, %arg2: memref<27x8xbf16, #tpu.memory_space<vmem>>, %arg3: memref<1x8xf32, #tpu.memory_space<vmem>>, %arg4: memref<8x16xbf16, #tpu.memory_space<vmem>>, %arg5: memref<1x16xf32, #tpu.memory_space<vmem>>, %arg6: memref<512x8xbf16, #tpu.memory_space<vmem>>, %arg7: memref<512x16xbf16, #tpu.memory_space<vmem>>) attributes {dimension_semantics = [#tpu.dimension_semantics<parallel>], iteration_bounds = array<i64: 1>, scalar_prefetch = 0 : i64, scratch_operands = 0 : i64, tpu.core_type = #tpu.core_type<tc>, window_params = [{transform_indices = @transform_0, window_bounds = array<i64: 512, 27>}, {pipeline_mode = #tpu.pipeline_mode<synchronous>, transform_indices = @transform_1, window_bounds = array<i64: 27, 8>}, {pipeline_mode = #tpu.pipeline_mode<synchronous>, transform_indices = @transform_2, window_bounds = array<i64: 1, 8>}, {pipeline_mode = #tpu.pipeline_mode<synchronous>, transform_indices = @transform_3, window_bounds = array<i64: 8, 16>}, {pipeline_mode = #tpu.pipeline_mode<synchronous>, transform_indices = @transform_4, window_bounds = array<i64: 1, 16>}, {transform_indices = @transform_5, window_bounds = array<i64: 512, 8>}, {transform_indices = @transform_6, window_bounds = array<i64: 512, 16>}]} {
    %c0 = arith.constant 0 : index
    %c0_0 = arith.constant 0 : index
    %0 = vector.load %arg1[%c0, %c0_0] : memref<512x27xbf16, #tpu.memory_space<vmem>>, vector<512x27xbf16>
    %c0_1 = arith.constant 0 : index
    %c0_2 = arith.constant 0 : index
    %1 = vector.load %arg2[%c0_1, %c0_2] : memref<27x8xbf16, #tpu.memory_space<vmem>>, vector<27x8xbf16>
    %cst = arith.constant dense<0.000000e+00> : vector<512x8xf32>
    %2 = tpu.matmul %0, %1, %cst {dimension_numbers = #tpu.dot_dimension_numbers<[1], [0], [0], [1], [0, 0, 1, 1], [], []>} : vector<512x27xbf16>, vector<27x8xbf16>, vector<512x8xf32> -> vector<512x8xf32>
    %c0_3 = arith.constant 0 : index
    %c0_4 = arith.constant 0 : index
    %3 = vector.load %arg3[%c0_3, %c0_4] : memref<1x8xf32, #tpu.memory_space<vmem>>, vector<1x8xf32>
    %4 = vector.broadcast %3 : vector<1x8xf32> to vector<512x8xf32>
    %5 = arith.addf %2, %4 : vector<512x8xf32>
    %cst_5 = arith.constant 0.000000e+00 : f32
    %6 = vector.broadcast %cst_5 : f32 to vector<512x8xf32>
    %7 = arith.maximumf %5, %6 : vector<512x8xf32>
    %8 = arith.truncf %7 : vector<512x8xf32> to vector<512x8xbf16>
    %c0_6 = arith.constant 0 : index
    %c0_7 = arith.constant 0 : index
    %9 = vector.load %arg4[%c0_6, %c0_7] : memref<8x16xbf16, #tpu.memory_space<vmem>>, vector<8x16xbf16>
    %cst_8 = arith.constant dense<0.000000e+00> : vector<512x16xf32>
    %10 = tpu.matmul %8, %9, %cst_8 {dimension_numbers = #tpu.dot_dimension_numbers<[1], [0], [0], [1], [0, 0, 1, 1], [], []>} : vector<512x8xbf16>, vector<8x16xbf16>, vector<512x16xf32> -> vector<512x16xf32>
    %c0_9 = arith.constant 0 : index
    %c0_10 = arith.constant 0 : index
    %11 = vector.load %arg5[%c0_9, %c0_10] : memref<1x16xf32, #tpu.memory_space<vmem>>, vector<1x16xf32>
    %12 = vector.broadcast %11 : vector<1x16xf32> to vector<512x16xf32>
    %13 = arith.addf %10, %12 : vector<512x16xf32>
    %14 = arith.truncf %7 : vector<512x8xf32> to vector<512x8xbf16>
    %c0_11 = arith.constant 0 : index
    %c0_12 = arith.constant 0 : index
    %15 = vector.load %arg6[%c0_11, %c0_12] : memref<512x8xbf16, #tpu.memory_space<vmem>>, vector<512x8xbf16>
    tpu.vector_store %arg6[%c0_11, %c0_12], %14 {strides = array<i32>} : memref<512x8xbf16, #tpu.memory_space<vmem>>, vector<512x8xbf16>,
    %16 = arith.truncf %13 : vector<512x16xf32> to vector<512x16xbf16>
    %c0_13 = arith.constant 0 : index
    %c0_14 = arith.constant 0 : index
    %17 = vector.load %arg7[%c0_13, %c0_14] : memref<512x16xbf16, #tpu.memory_space<vmem>>, vector<512x16xbf16>
    tpu.vector_store %arg7[%c0_13, %c0_14], %16 {strides = array<i32>} : memref<512x16xbf16, #tpu.memory_space<vmem>>, vector<512x16xbf16>,
    return
  }
  func.func @transform_0(%arg0: i32) -> (i32, i32) {
    %c0_i32 = arith.constant 0 : i32
    %c0_i32_0 = arith.constant 0 : i32
    return %arg0, %c0_i32 : i32, i32
  }
  func.func @transform_1(%arg0: i32) -> (i32, i32) {
    %c0_i32 = arith.constant 0 : i32
    %c0_i32_0 = arith.constant 0 : i32
    %c0_i32_1 = arith.constant 0 : i32
    return %c0_i32, %c0_i32_0 : i32, i32
  }
  func.func @transform_2(%arg0: i32) -> (i32, i32) {
    %c0_i32 = arith.constant 0 : i32
    %c0_i32_0 = arith.constant 0 : i32
    %c0_i32_1 = arith.constant 0 : i32
    return %c0_i32, %c0_i32_0 : i32, i32
  }
  func.func @transform_3(%arg0: i32) -> (i32, i32) {
    %c0_i32 = arith.constant 0 : i32
    %c0_i32_0 = arith.constant 0 : i32
    %c0_i32_1 = arith.constant 0 : i32
    return %c0_i32, %c0_i32_0 : i32, i32
  }
  func.func @transform_4(%arg0: i32) -> (i32, i32) {
    %c0_i32 = arith.constant 0 : i32
    %c0_i32_0 = arith.constant 0 : i32
    %c0_i32_1 = arith.constant 0 : i32
    return %c0_i32, %c0_i32_0 : i32, i32
  }
  func.func @transform_5(%arg0: i32) -> (i32, i32) {
    %c0_i32 = arith.constant 0 : i32
    %c0_i32_0 = arith.constant 0 : i32
    return %arg0, %c0_i32 : i32, i32
  }
  func.func @transform_6(%arg0: i32) -> (i32, i32) {
    %c0_i32 = arith.constant 0 : i32
    %c0_i32_0 = arith.constant 0 : i32
    return %arg0, %c0_i32 : i32, i32
  }
}

module attributes {stable_mosaic.version = 11 : i64} {
  func.func @_matmul_fused_kernel(%arg0: i32, %arg1: memref<128x72xbf16, #tpu.memory_space<vmem>>, %arg2: memref<72x16xbf16, #tpu.memory_space<vmem>>, %arg3: memref<1x16xf32, #tpu.memory_space<vmem>>, %arg4: memref<16x16xbf16, #tpu.memory_space<vmem>>, %arg5: memref<1x16xf32, #tpu.memory_space<vmem>>, %arg6: memref<128x16xbf16, #tpu.memory_space<vmem>>, %arg7: memref<128x16xbf16, #tpu.memory_space<vmem>>) attributes {dimension_semantics = [#tpu.dimension_semantics<parallel>], iteration_bounds = array<i64: 1>, scalar_prefetch = 0 : i64, scratch_operands = 0 : i64, tpu.core_type = #tpu.core_type<tc>, window_params = [{transform_indices = @transform_0, window_bounds = array<i64: 128, 72>}, {pipeline_mode = #tpu.pipeline_mode<synchronous>, transform_indices = @transform_1, window_bounds = array<i64: 72, 16>}, {pipeline_mode = #tpu.pipeline_mode<synchronous>, transform_indices = @transform_2, window_bounds = array<i64: 1, 16>}, {pipeline_mode = #tpu.pipeline_mode<synchronous>, transform_indices = @transform_3, window_bounds = array<i64: 16, 16>}, {pipeline_mode = #tpu.pipeline_mode<synchronous>, transform_indices = @transform_4, window_bounds = array<i64: 1, 16>}, {transform_indices = @transform_5, window_bounds = array<i64: 128, 16>}, {transform_indices = @transform_6, window_bounds = array<i64: 128, 16>}]} {
    %c0 = arith.constant 0 : index
    %c0_0 = arith.constant 0 : index
    %0 = vector.load %arg1[%c0, %c0_0] : memref<128x72xbf16, #tpu.memory_space<vmem>>, vector<128x72xbf16>
    %c0_1 = arith.constant 0 : index
    %c0_2 = arith.constant 0 : index
    %1 = vector.load %arg2[%c0_1, %c0_2] : memref<72x16xbf16, #tpu.memory_space<vmem>>, vector<72x16xbf16>
    %cst = arith.constant dense<0.000000e+00> : vector<128x16xf32>
    %2 = tpu.matmul %0, %1, %cst {dimension_numbers = #tpu.dot_dimension_numbers<[1], [0], [0], [1], [0, 0, 1, 1], [], []>} : vector<128x72xbf16>, vector<72x16xbf16>, vector<128x16xf32> -> vector<128x16xf32>
    %c0_3 = arith.constant 0 : index
    %c0_4 = arith.constant 0 : index
    %3 = vector.load %arg3[%c0_3, %c0_4] : memref<1x16xf32, #tpu.memory_space<vmem>>, vector<1x16xf32>
    %4 = vector.broadcast %3 : vector<1x16xf32> to vector<128x16xf32>
    %5 = arith.addf %2, %4 : vector<128x16xf32>
    %cst_5 = arith.constant 0.000000e+00 : f32
    %6 = vector.broadcast %cst_5 : f32 to vector<128x16xf32>
    %7 = arith.maximumf %5, %6 : vector<128x16xf32>
    %8 = arith.truncf %7 : vector<128x16xf32> to vector<128x16xbf16>
    %c0_6 = arith.constant 0 : index
    %c0_7 = arith.constant 0 : index
    %9 = vector.load %arg4[%c0_6, %c0_7] : memref<16x16xbf16, #tpu.memory_space<vmem>>, vector<16x16xbf16>
    %cst_8 = arith.constant dense<0.000000e+00> : vector<128x16xf32>
    %10 = tpu.matmul %8, %9, %cst_8 {dimension_numbers = #tpu.dot_dimension_numbers<[1], [0], [0], [1], [0, 0, 1, 1], [], []>} : vector<128x16xbf16>, vector<16x16xbf16>, vector<128x16xf32> -> vector<128x16xf32>
    %c0_9 = arith.constant 0 : index
    %c0_10 = arith.constant 0 : index
    %11 = vector.load %arg5[%c0_9, %c0_10] : memref<1x16xf32, #tpu.memory_space<vmem>>, vector<1x16xf32>
    %12 = vector.broadcast %11 : vector<1x16xf32> to vector<128x16xf32>
    %13 = arith.addf %10, %12 : vector<128x16xf32>
    %14 = arith.truncf %7 : vector<128x16xf32> to vector<128x16xbf16>
    %c0_11 = arith.constant 0 : index
    %c0_12 = arith.constant 0 : index
    %15 = vector.load %arg6[%c0_11, %c0_12] : memref<128x16xbf16, #tpu.memory_space<vmem>>, vector<128x16xbf16>
    tpu.vector_store %arg6[%c0_11, %c0_12], %14 {strides = array<i32>} : memref<128x16xbf16, #tpu.memory_space<vmem>>, vector<128x16xbf16>,
    %16 = arith.truncf %13 : vector<128x16xf32> to vector<128x16xbf16>
    %c0_13 = arith.constant 0 : index
    %c0_14 = arith.constant 0 : index
    %17 = vector.load %arg7[%c0_13, %c0_14] : memref<128x16xbf16, #tpu.memory_space<vmem>>, vector<128x16xbf16>
    tpu.vector_store %arg7[%c0_13, %c0_14], %16 {strides = array<i32>} : memref<128x16xbf16, #tpu.memory_space<vmem>>, vector<128x16xbf16>,
    return
  }
  func.func @transform_0(%arg0: i32) -> (i32, i32) {
    %c0_i32 = arith.constant 0 : i32
    %c0_i32_0 = arith.constant 0 : i32
    return %arg0, %c0_i32 : i32, i32
  }
  func.func @transform_1(%arg0: i32) -> (i32, i32) {
    %c0_i32 = arith.constant 0 : i32
    %c0_i32_0 = arith.constant 0 : i32
    %c0_i32_1 = arith.constant 0 : i32
    return %c0_i32, %c0_i32_0 : i32, i32
  }
  func.func @transform_2(%arg0: i32) -> (i32, i32) {
    %c0_i32 = arith.constant 0 : i32
    %c0_i32_0 = arith.constant 0 : i32
    %c0_i32_1 = arith.constant 0 : i32
    return %c0_i32, %c0_i32_0 : i32, i32
  }
  func.func @transform_3(%arg0: i32) -> (i32, i32) {
    %c0_i32 = arith.constant 0 : i32
    %c0_i32_0 = arith.constant 0 : i32
    %c0_i32_1 = arith.constant 0 : i32
    return %c0_i32, %c0_i32_0 : i32, i32
  }
  func.func @transform_4(%arg0: i32) -> (i32, i32) {
    %c0_i32 = arith.constant 0 : i32
    %c0_i32_0 = arith.constant 0 : i32
    %c0_i32_1 = arith.constant 0 : i32
    return %c0_i32, %c0_i32_0 : i32, i32
  }
  func.func @transform_5(%arg0: i32) -> (i32, i32) {
    %c0_i32 = arith.constant 0 : i32
    %c0_i32_0 = arith.constant 0 : i32
    return %arg0, %c0_i32 : i32, i32
  }
  func.func @transform_6(%arg0: i32) -> (i32, i32) {
    %c0_i32 = arith.constant 0 : i32
    %c0_i32_0 = arith.constant 0 : i32
    return %arg0, %c0_i32 : i32, i32
  }
}

module attributes {stable_mosaic.version = 11 : i64} {
  func.func @_matmul_fused_kernel(%arg0: i32, %arg1: memref<32x144xbf16, #tpu.memory_space<vmem>>, %arg2: memref<144x32xbf16, #tpu.memory_space<vmem>>, %arg3: memref<1x32xf32, #tpu.memory_space<vmem>>, %arg4: memref<32x16xbf16, #tpu.memory_space<vmem>>, %arg5: memref<1x16xf32, #tpu.memory_space<vmem>>, %arg6: memref<32x32xbf16, #tpu.memory_space<vmem>>, %arg7: memref<32x16xbf16, #tpu.memory_space<vmem>>) attributes {dimension_semantics = [#tpu.dimension_semantics<parallel>], iteration_bounds = array<i64: 1>, scalar_prefetch = 0 : i64, scratch_operands = 0 : i64, tpu.core_type = #tpu.core_type<tc>, window_params = [{transform_indices = @transform_0, window_bounds = array<i64: 32, 144>}, {pipeline_mode = #tpu.pipeline_mode<synchronous>, transform_indices = @transform_1, window_bounds = array<i64: 144, 32>}, {pipeline_mode = #tpu.pipeline_mode<synchronous>, transform_indices = @transform_2, window_bounds = array<i64: 1, 32>}, {pipeline_mode = #tpu.pipeline_mode<synchronous>, transform_indices = @transform_3, window_bounds = array<i64: 32, 16>}, {pipeline_mode = #tpu.pipeline_mode<synchronous>, transform_indices = @transform_4, window_bounds = array<i64: 1, 16>}, {transform_indices = @transform_5, window_bounds = array<i64: 32, 32>}, {transform_indices = @transform_6, window_bounds = array<i64: 32, 16>}]} {
    %c0 = arith.constant 0 : index
    %c0_0 = arith.constant 0 : index
    %0 = vector.load %arg1[%c0, %c0_0] : memref<32x144xbf16, #tpu.memory_space<vmem>>, vector<32x144xbf16>
    %c0_1 = arith.constant 0 : index
    %c0_2 = arith.constant 0 : index
    %1 = vector.load %arg2[%c0_1, %c0_2] : memref<144x32xbf16, #tpu.memory_space<vmem>>, vector<144x32xbf16>
    %cst = arith.constant dense<0.000000e+00> : vector<32x32xf32>
    %2 = tpu.matmul %0, %1, %cst {dimension_numbers = #tpu.dot_dimension_numbers<[1], [0], [0], [1], [0, 0, 1, 1], [], []>} : vector<32x144xbf16>, vector<144x32xbf16>, vector<32x32xf32> -> vector<32x32xf32>
    %c0_3 = arith.constant 0 : index
    %c0_4 = arith.constant 0 : index
    %3 = vector.load %arg3[%c0_3, %c0_4] : memref<1x32xf32, #tpu.memory_space<vmem>>, vector<1x32xf32>
    %4 = vector.broadcast %3 : vector<1x32xf32> to vector<32x32xf32>
    %5 = arith.addf %2, %4 : vector<32x32xf32>
    %cst_5 = arith.constant 0.000000e+00 : f32
    %6 = vector.broadcast %cst_5 : f32 to vector<32x32xf32>
    %7 = arith.maximumf %5, %6 : vector<32x32xf32>
    %8 = arith.truncf %7 : vector<32x32xf32> to vector<32x32xbf16>
    %c0_6 = arith.constant 0 : index
    %c0_7 = arith.constant 0 : index
    %9 = vector.load %arg4[%c0_6, %c0_7] : memref<32x16xbf16, #tpu.memory_space<vmem>>, vector<32x16xbf16>
    %cst_8 = arith.constant dense<0.000000e+00> : vector<32x16xf32>
    %10 = tpu.matmul %8, %9, %cst_8 {dimension_numbers = #tpu.dot_dimension_numbers<[1], [0], [0], [1], [0, 0, 1, 1], [], []>} : vector<32x32xbf16>, vector<32x16xbf16>, vector<32x16xf32> -> vector<32x16xf32>
    %c0_9 = arith.constant 0 : index
    %c0_10 = arith.constant 0 : index
    %11 = vector.load %arg5[%c0_9, %c0_10] : memref<1x16xf32, #tpu.memory_space<vmem>>, vector<1x16xf32>
    %12 = vector.broadcast %11 : vector<1x16xf32> to vector<32x16xf32>
    %13 = arith.addf %10, %12 : vector<32x16xf32>
    %14 = arith.truncf %7 : vector<32x32xf32> to vector<32x32xbf16>
    %c0_11 = arith.constant 0 : index
    %c0_12 = arith.constant 0 : index
    %15 = vector.load %arg6[%c0_11, %c0_12] : memref<32x32xbf16, #tpu.memory_space<vmem>>, vector<32x32xbf16>
    tpu.vector_store %arg6[%c0_11, %c0_12], %14 {strides = array<i32>} : memref<32x32xbf16, #tpu.memory_space<vmem>>, vector<32x32xbf16>,
    %16 = arith.truncf %13 : vector<32x16xf32> to vector<32x16xbf16>
    %c0_13 = arith.constant 0 : index
    %c0_14 = arith.constant 0 : index
    %17 = vector.load %arg7[%c0_13, %c0_14] : memref<32x16xbf16, #tpu.memory_space<vmem>>, vector<32x16xbf16>
    tpu.vector_store %arg7[%c0_13, %c0_14], %16 {strides = array<i32>} : memref<32x16xbf16, #tpu.memory_space<vmem>>, vector<32x16xbf16>,
    return
  }
  func.func @transform_0(%arg0: i32) -> (i32, i32) {
    %c0_i32 = arith.constant 0 : i32
    %c0_i32_0 = arith.constant 0 : i32
    return %arg0, %c0_i32 : i32, i32
  }
  func.func @transform_1(%arg0: i32) -> (i32, i32) {
    %c0_i32 = arith.constant 0 : i32
    %c0_i32_0 = arith.constant 0 : i32
    %c0_i32_1 = arith.constant 0 : i32
    return %c0_i32, %c0_i32_0 : i32, i32
  }
  func.func @transform_2(%arg0: i32) -> (i32, i32) {
    %c0_i32 = arith.constant 0 : i32
    %c0_i32_0 = arith.constant 0 : i32
    %c0_i32_1 = arith.constant 0 : i32
    return %c0_i32, %c0_i32_0 : i32, i32
  }
  func.func @transform_3(%arg0: i32) -> (i32, i32) {
    %c0_i32 = arith.constant 0 : i32
    %c0_i32_0 = arith.constant 0 : i32
    %c0_i32_1 = arith.constant 0 : i32
    return %c0_i32, %c0_i32_0 : i32, i32
  }
  func.func @transform_4(%arg0: i32) -> (i32, i32) {
    %c0_i32 = arith.constant 0 : i32
    %c0_i32_0 = arith.constant 0 : i32
    %c0_i32_1 = arith.constant 0 : i32
    return %c0_i32, %c0_i32_0 : i32, i32
  }
  func.func @transform_5(%arg0: i32) -> (i32, i32) {
    %c0_i32 = arith.constant 0 : i32
    %c0_i32_0 = arith.constant 0 : i32
    return %arg0, %c0_i32 : i32, i32
  }
  func.func @transform_6(%arg0: i32) -> (i32, i32) {
    %c0_i32 = arith.constant 0 : i32
    %c0_i32_0 = arith.constant 0 : i32
    return %arg0, %c0_i32 : i32, i32
  }
}

module attributes {stable_mosaic.version = 11 : i64} {
  func.func @_matmul_fused_kernel(%arg0: i32, %arg1: memref<8x288xbf16, #tpu.memory_space<vmem>>, %arg2: memref<288x64xbf16, #tpu.memory_space<vmem>>, %arg3: memref<1x64xf32, #tpu.memory_space<vmem>>, %arg4: memref<64x16xbf16, #tpu.memory_space<vmem>>, %arg5: memref<1x16xf32, #tpu.memory_space<vmem>>, %arg6: memref<8x16xbf16, #tpu.memory_space<vmem>>) attributes {dimension_semantics = [#tpu.dimension_semantics<parallel>], iteration_bounds = array<i64: 1>, scalar_prefetch = 0 : i64, scratch_operands = 0 : i64, tpu.core_type = #tpu.core_type<tc>, window_params = [{transform_indices = @transform_0, window_bounds = array<i64: 8, 288>}, {pipeline_mode = #tpu.pipeline_mode<synchronous>, transform_indices = @transform_1, window_bounds = array<i64: 288, 64>}, {pipeline_mode = #tpu.pipeline_mode<synchronous>, transform_indices = @transform_2, window_bounds = array<i64: 1, 64>}, {pipeline_mode = #tpu.pipeline_mode<synchronous>, transform_indices = @transform_3, window_bounds = array<i64: 64, 16>}, {pipeline_mode = #tpu.pipeline_mode<synchronous>, transform_indices = @transform_4, window_bounds = array<i64: 1, 16>}, {transform_indices = @transform_5, window_bounds = array<i64: 8, 16>}]} {
    %c0 = arith.constant 0 : index
    %c0_0 = arith.constant 0 : index
    %0 = vector.load %arg1[%c0, %c0_0] : memref<8x288xbf16, #tpu.memory_space<vmem>>, vector<8x288xbf16>
    %c0_1 = arith.constant 0 : index
    %c0_2 = arith.constant 0 : index
    %1 = vector.load %arg2[%c0_1, %c0_2] : memref<288x64xbf16, #tpu.memory_space<vmem>>, vector<288x64xbf16>
    %cst = arith.constant dense<0.000000e+00> : vector<8x64xf32>
    %2 = tpu.matmul %0, %1, %cst {dimension_numbers = #tpu.dot_dimension_numbers<[1], [0], [0], [1], [0, 0, 1, 1], [], []>} : vector<8x288xbf16>, vector<288x64xbf16>, vector<8x64xf32> -> vector<8x64xf32>
    %c0_3 = arith.constant 0 : index
    %c0_4 = arith.constant 0 : index
    %3 = vector.load %arg3[%c0_3, %c0_4] : memref<1x64xf32, #tpu.memory_space<vmem>>, vector<1x64xf32>
    %4 = vector.broadcast %3 : vector<1x64xf32> to vector<8x64xf32>
    %5 = arith.addf %2, %4 : vector<8x64xf32>
    %cst_5 = arith.constant 0.000000e+00 : f32
    %6 = vector.broadcast %cst_5 : f32 to vector<8x64xf32>
    %7 = arith.maximumf %5, %6 : vector<8x64xf32>
    %8 = arith.truncf %7 : vector<8x64xf32> to vector<8x64xbf16>
    %c0_6 = arith.constant 0 : index
    %c0_7 = arith.constant 0 : index
    %9 = vector.load %arg4[%c0_6, %c0_7] : memref<64x16xbf16, #tpu.memory_space<vmem>>, vector<64x16xbf16>
    %cst_8 = arith.constant dense<0.000000e+00> : vector<8x16xf32>
    %10 = tpu.matmul %8, %9, %cst_8 {dimension_numbers = #tpu.dot_dimension_numbers<[1], [0], [0], [1], [0, 0, 1, 1], [], []>} : vector<8x64xbf16>, vector<64x16xbf16>, vector<8x16xf32> -> vector<8x16xf32>
    %c0_9 = arith.constant 0 : index
    %c0_10 = arith.constant 0 : index
    %11 = vector.load %arg5[%c0_9, %c0_10] : memref<1x16xf32, #tpu.memory_space<vmem>>, vector<1x16xf32>
    %12 = vector.broadcast %11 : vector<1x16xf32> to vector<8x16xf32>
    %13 = arith.addf %10, %12 : vector<8x16xf32>
    %14 = arith.truncf %13 : vector<8x16xf32> to vector<8x16xbf16>
    %c0_11 = arith.constant 0 : index
    %c0_12 = arith.constant 0 : index
    %15 = vector.load %arg6[%c0_11, %c0_12] : memref<8x16xbf16, #tpu.memory_space<vmem>>, vector<8x16xbf16>
    tpu.vector_store %arg6[%c0_11, %c0_12], %14 {strides = array<i32>} : memref<8x16xbf16, #tpu.memory_space<vmem>>, vector<8x16xbf16>,
    return
  }
  func.func @transform_0(%arg0: i32) -> (i32, i32) {
    %c0_i32 = arith.constant 0 : i32
    %c0_i32_0 = arith.constant 0 : i32
    return %arg0, %c0_i32 : i32, i32
  }
  func.func @transform_1(%arg0: i32) -> (i32, i32) {
    %c0_i32 = arith.constant 0 : i32
    %c0_i32_0 = arith.constant 0 : i32
    %c0_i32_1 = arith.constant 0 : i32
    return %c0_i32, %c0_i32_0 : i32, i32
  }
  func.func @transform_2(%arg0: i32) -> (i32, i32) {
    %c0_i32 = arith.constant 0 : i32
    %c0_i32_0 = arith.constant 0 : i32
    %c0_i32_1 = arith.constant 0 : i32
    return %c0_i32, %c0_i32_0 : i32, i32
  }
  func.func @transform_3(%arg0: i32) -> (i32, i32) {
    %c0_i32 = arith.constant 0 : i32
    %c0_i32_0 = arith.constant 0 : i32
    %c0_i32_1 = arith.constant 0 : i32
    return %c0_i32, %c0_i32_0 : i32, i32
  }
  func.func @transform_4(%arg0: i32) -> (i32, i32) {
    %c0_i32 = arith.constant 0 : i32
    %c0_i32_0 = arith.constant 0 : i32
    %c0_i32_1 = arith.constant 0 : i32
    return %c0_i32, %c0_i32_0 : i32, i32
  }
  func.func @transform_5(%arg0: i32) -> (i32, i32) {
    %c0_i32 = arith.constant 0 : i32
    %c0_i32_0 = arith.constant 0 : i32
    return %arg0, %c0_i32 : i32, i32
  }
}

module attributes {stable_mosaic.version = 11 : i64} {
  func.func @_matmul_kernel(%arg0: i32, %arg1: memref<512x144xbf16, #tpu.memory_space<vmem>>, %arg2: memref<144x16xbf16, #tpu.memory_space<vmem>>, %arg3: memref<1x16xf32, #tpu.memory_space<vmem>>, %arg4: memref<512x16xbf16, #tpu.memory_space<vmem>>) attributes {dimension_semantics = [#tpu.dimension_semantics<parallel>], iteration_bounds = array<i64: 1>, scalar_prefetch = 0 : i64, scratch_operands = 0 : i64, tpu.core_type = #tpu.core_type<tc>, window_params = [{transform_indices = @transform_0, window_bounds = array<i64: 512, 144>}, {pipeline_mode = #tpu.pipeline_mode<synchronous>, transform_indices = @transform_1, window_bounds = array<i64: 144, 16>}, {pipeline_mode = #tpu.pipeline_mode<synchronous>, transform_indices = @transform_2, window_bounds = array<i64: 1, 16>}, {transform_indices = @transform_3, window_bounds = array<i64: 512, 16>}]} {
    %c0 = arith.constant 0 : index
    %c0_0 = arith.constant 0 : index
    %0 = vector.load %arg1[%c0, %c0_0] : memref<512x144xbf16, #tpu.memory_space<vmem>>, vector<512x144xbf16>
    %c0_1 = arith.constant 0 : index
    %c0_2 = arith.constant 0 : index
    %1 = vector.load %arg2[%c0_1, %c0_2] : memref<144x16xbf16, #tpu.memory_space<vmem>>, vector<144x16xbf16>
    %cst = arith.constant dense<0.000000e+00> : vector<512x16xf32>
    %2 = tpu.matmul %0, %1, %cst {dimension_numbers = #tpu.dot_dimension_numbers<[1], [0], [0], [1], [0, 0, 1, 1], [], []>} : vector<512x144xbf16>, vector<144x16xbf16>, vector<512x16xf32> -> vector<512x16xf32>
    %c0_3 = arith.constant 0 : index
    %c0_4 = arith.constant 0 : index
    %3 = vector.load %arg3[%c0_3, %c0_4] : memref<1x16xf32, #tpu.memory_space<vmem>>, vector<1x16xf32>
    %4 = vector.broadcast %3 : vector<1x16xf32> to vector<512x16xf32>
    %5 = arith.addf %2, %4 : vector<512x16xf32>
    %6 = arith.truncf %5 : vector<512x16xf32> to vector<512x16xbf16>
    %c0_5 = arith.constant 0 : index
    %c0_6 = arith.constant 0 : index
    %7 = vector.load %arg4[%c0_5, %c0_6] : memref<512x16xbf16, #tpu.memory_space<vmem>>, vector<512x16xbf16>
    tpu.vector_store %arg4[%c0_5, %c0_6], %6 {strides = array<i32>} : memref<512x16xbf16, #tpu.memory_space<vmem>>, vector<512x16xbf16>,
    return
  }
  func.func @transform_0(%arg0: i32) -> (i32, i32) {
    %c0_i32 = arith.constant 0 : i32
    %c0_i32_0 = arith.constant 0 : i32
    return %arg0, %c0_i32 : i32, i32
  }
  func.func @transform_1(%arg0: i32) -> (i32, i32) {
    %c0_i32 = arith.constant 0 : i32
    %c0_i32_0 = arith.constant 0 : i32
    %c0_i32_1 = arith.constant 0 : i32
    return %c0_i32, %c0_i32_0 : i32, i32
  }
  func.func @transform_2(%arg0: i32) -> (i32, i32) {
    %c0_i32 = arith.constant 0 : i32
    %c0_i32_0 = arith.constant 0 : i32
    %c0_i32_1 = arith.constant 0 : i32
    return %c0_i32, %c0_i32_0 : i32, i32
  }
  func.func @transform_3(%arg0: i32) -> (i32, i32) {
    %c0_i32 = arith.constant 0 : i32
    %c0_i32_0 = arith.constant 0 : i32
    return %arg0, %c0_i32 : i32, i32
  }
}

module attributes {stable_mosaic.version = 11 : i64} {
  func.func @_matmul_kernel(%arg0: i32, %arg1: memref<128x144xbf16, #tpu.memory_space<vmem>>, %arg2: memref<144x16xbf16, #tpu.memory_space<vmem>>, %arg3: memref<1x16xf32, #tpu.memory_space<vmem>>, %arg4: memref<128x16xbf16, #tpu.memory_space<vmem>>) attributes {dimension_semantics = [#tpu.dimension_semantics<parallel>], iteration_bounds = array<i64: 1>, scalar_prefetch = 0 : i64, scratch_operands = 0 : i64, tpu.core_type = #tpu.core_type<tc>, window_params = [{transform_indices = @transform_0, window_bounds = array<i64: 128, 144>}, {pipeline_mode = #tpu.pipeline_mode<synchronous>, transform_indices = @transform_1, window_bounds = array<i64: 144, 16>}, {pipeline_mode = #tpu.pipeline_mode<synchronous>, transform_indices = @transform_2, window_bounds = array<i64: 1, 16>}, {transform_indices = @transform_3, window_bounds = array<i64: 128, 16>}]} {
    %c0 = arith.constant 0 : index
    %c0_0 = arith.constant 0 : index
    %0 = vector.load %arg1[%c0, %c0_0] : memref<128x144xbf16, #tpu.memory_space<vmem>>, vector<128x144xbf16>
    %c0_1 = arith.constant 0 : index
    %c0_2 = arith.constant 0 : index
    %1 = vector.load %arg2[%c0_1, %c0_2] : memref<144x16xbf16, #tpu.memory_space<vmem>>, vector<144x16xbf16>
    %cst = arith.constant dense<0.000000e+00> : vector<128x16xf32>
    %2 = tpu.matmul %0, %1, %cst {dimension_numbers = #tpu.dot_dimension_numbers<[1], [0], [0], [1], [0, 0, 1, 1], [], []>} : vector<128x144xbf16>, vector<144x16xbf16>, vector<128x16xf32> -> vector<128x16xf32>
    %c0_3 = arith.constant 0 : index
    %c0_4 = arith.constant 0 : index
    %3 = vector.load %arg3[%c0_3, %c0_4] : memref<1x16xf32, #tpu.memory_space<vmem>>, vector<1x16xf32>
    %4 = vector.broadcast %3 : vector<1x16xf32> to vector<128x16xf32>
    %5 = arith.addf %2, %4 : vector<128x16xf32>
    %6 = arith.truncf %5 : vector<128x16xf32> to vector<128x16xbf16>
    %c0_5 = arith.constant 0 : index
    %c0_6 = arith.constant 0 : index
    %7 = vector.load %arg4[%c0_5, %c0_6] : memref<128x16xbf16, #tpu.memory_space<vmem>>, vector<128x16xbf16>
    tpu.vector_store %arg4[%c0_5, %c0_6], %6 {strides = array<i32>} : memref<128x16xbf16, #tpu.memory_space<vmem>>, vector<128x16xbf16>,
    return
  }
  func.func @transform_0(%arg0: i32) -> (i32, i32) {
    %c0_i32 = arith.constant 0 : i32
    %c0_i32_0 = arith.constant 0 : i32
    return %arg0, %c0_i32 : i32, i32
  }
  func.func @transform_1(%arg0: i32) -> (i32, i32) {
    %c0_i32 = arith.constant 0 : i32
    %c0_i32_0 = arith.constant 0 : i32
    %c0_i32_1 = arith.constant 0 : i32
    return %c0_i32, %c0_i32_0 : i32, i32
  }
  func.func @transform_2(%arg0: i32) -> (i32, i32) {
    %c0_i32 = arith.constant 0 : i32
    %c0_i32_0 = arith.constant 0 : i32
    %c0_i32_1 = arith.constant 0 : i32
    return %c0_i32, %c0_i32_0 : i32, i32
  }
  func.func @transform_3(%arg0: i32) -> (i32, i32) {
    %c0_i32 = arith.constant 0 : i32
    %c0_i32_0 = arith.constant 0 : i32
    return %arg0, %c0_i32 : i32, i32
  }
}

module attributes {stable_mosaic.version = 11 : i64} {
  func.func @_matmul_kernel(%arg0: i32, %arg1: memref<32x144xbf16, #tpu.memory_space<vmem>>, %arg2: memref<144x16xbf16, #tpu.memory_space<vmem>>, %arg3: memref<1x16xf32, #tpu.memory_space<vmem>>, %arg4: memref<32x16xbf16, #tpu.memory_space<vmem>>) attributes {dimension_semantics = [#tpu.dimension_semantics<parallel>], iteration_bounds = array<i64: 1>, scalar_prefetch = 0 : i64, scratch_operands = 0 : i64, tpu.core_type = #tpu.core_type<tc>, window_params = [{transform_indices = @transform_0, window_bounds = array<i64: 32, 144>}, {pipeline_mode = #tpu.pipeline_mode<synchronous>, transform_indices = @transform_1, window_bounds = array<i64: 144, 16>}, {pipeline_mode = #tpu.pipeline_mode<synchronous>, transform_indices = @transform_2, window_bounds = array<i64: 1, 16>}, {transform_indices = @transform_3, window_bounds = array<i64: 32, 16>}]} {
    %c0 = arith.constant 0 : index
    %c0_0 = arith.constant 0 : index
    %0 = vector.load %arg1[%c0, %c0_0] : memref<32x144xbf16, #tpu.memory_space<vmem>>, vector<32x144xbf16>
    %c0_1 = arith.constant 0 : index
    %c0_2 = arith.constant 0 : index
    %1 = vector.load %arg2[%c0_1, %c0_2] : memref<144x16xbf16, #tpu.memory_space<vmem>>, vector<144x16xbf16>
    %cst = arith.constant dense<0.000000e+00> : vector<32x16xf32>
    %2 = tpu.matmul %0, %1, %cst {dimension_numbers = #tpu.dot_dimension_numbers<[1], [0], [0], [1], [0, 0, 1, 1], [], []>} : vector<32x144xbf16>, vector<144x16xbf16>, vector<32x16xf32> -> vector<32x16xf32>
    %c0_3 = arith.constant 0 : index
    %c0_4 = arith.constant 0 : index
    %3 = vector.load %arg3[%c0_3, %c0_4] : memref<1x16xf32, #tpu.memory_space<vmem>>, vector<1x16xf32>
    %4 = vector.broadcast %3 : vector<1x16xf32> to vector<32x16xf32>
    %5 = arith.addf %2, %4 : vector<32x16xf32>
    %6 = arith.truncf %5 : vector<32x16xf32> to vector<32x16xbf16>
    %c0_5 = arith.constant 0 : index
    %c0_6 = arith.constant 0 : index
    %7 = vector.load %arg4[%c0_5, %c0_6] : memref<32x16xbf16, #tpu.memory_space<vmem>>, vector<32x16xbf16>
    tpu.vector_store %arg4[%c0_5, %c0_6], %6 {strides = array<i32>} : memref<32x16xbf16, #tpu.memory_space<vmem>>, vector<32x16xbf16>,
    return
  }
  func.func @transform_0(%arg0: i32) -> (i32, i32) {
    %c0_i32 = arith.constant 0 : i32
    %c0_i32_0 = arith.constant 0 : i32
    return %arg0, %c0_i32 : i32, i32
  }
  func.func @transform_1(%arg0: i32) -> (i32, i32) {
    %c0_i32 = arith.constant 0 : i32
    %c0_i32_0 = arith.constant 0 : i32
    %c0_i32_1 = arith.constant 0 : i32
    return %c0_i32, %c0_i32_0 : i32, i32
  }
  func.func @transform_2(%arg0: i32) -> (i32, i32) {
    %c0_i32 = arith.constant 0 : i32
    %c0_i32_0 = arith.constant 0 : i32
    %c0_i32_1 = arith.constant 0 : i32
    return %c0_i32, %c0_i32_0 : i32, i32
  }
  func.func @transform_3(%arg0: i32) -> (i32, i32) {
    %c0_i32 = arith.constant 0 : i32
    %c0_i32_0 = arith.constant 0 : i32
    return %arg0, %c0_i32 : i32, i32
  }
}

module attributes {stable_mosaic.version = 11 : i64} {
  func.func @_matmul_kernel(%arg0: i32, %arg1: memref<8x144xbf16, #tpu.memory_space<vmem>>, %arg2: memref<144x16xbf16, #tpu.memory_space<vmem>>, %arg3: memref<1x16xf32, #tpu.memory_space<vmem>>, %arg4: memref<8x16xbf16, #tpu.memory_space<vmem>>) attributes {dimension_semantics = [#tpu.dimension_semantics<parallel>], iteration_bounds = array<i64: 1>, scalar_prefetch = 0 : i64, scratch_operands = 0 : i64, tpu.core_type = #tpu.core_type<tc>, window_params = [{transform_indices = @transform_0, window_bounds = array<i64: 8, 144>}, {pipeline_mode = #tpu.pipeline_mode<synchronous>, transform_indices = @transform_1, window_bounds = array<i64: 144, 16>}, {pipeline_mode = #tpu.pipeline_mode<synchronous>, transform_indices = @transform_2, window_bounds = array<i64: 1, 16>}, {transform_indices = @transform_3, window_bounds = array<i64: 8, 16>}]} {
    %c0 = arith.constant 0 : index
    %c0_0 = arith.constant 0 : index
    %0 = vector.load %arg1[%c0, %c0_0] : memref<8x144xbf16, #tpu.memory_space<vmem>>, vector<8x144xbf16>
    %c0_1 = arith.constant 0 : index
    %c0_2 = arith.constant 0 : index
    %1 = vector.load %arg2[%c0_1, %c0_2] : memref<144x16xbf16, #tpu.memory_space<vmem>>, vector<144x16xbf16>
    %cst = arith.constant dense<0.000000e+00> : vector<8x16xf32>
    %2 = tpu.matmul %0, %1, %cst {dimension_numbers = #tpu.dot_dimension_numbers<[1], [0], [0], [1], [0, 0, 1, 1], [], []>} : vector<8x144xbf16>, vector<144x16xbf16>, vector<8x16xf32> -> vector<8x16xf32>
    %c0_3 = arith.constant 0 : index
    %c0_4 = arith.constant 0 : index
    %3 = vector.load %arg3[%c0_3, %c0_4] : memref<1x16xf32, #tpu.memory_space<vmem>>, vector<1x16xf32>
    %4 = vector.broadcast %3 : vector<1x16xf32> to vector<8x16xf32>
    %5 = arith.addf %2, %4 : vector<8x16xf32>
    %6 = arith.truncf %5 : vector<8x16xf32> to vector<8x16xbf16>
    %c0_5 = arith.constant 0 : index
    %c0_6 = arith.constant 0 : index
    %7 = vector.load %arg4[%c0_5, %c0_6] : memref<8x16xbf16, #tpu.memory_space<vmem>>, vector<8x16xbf16>
    tpu.vector_store %arg4[%c0_5, %c0_6], %6 {strides = array<i32>} : memref<8x16xbf16, #tpu.memory_space<vmem>>, vector<8x16xbf16>,
    return
  }
  func.func @transform_0(%arg0: i32) -> (i32, i32) {
    %c0_i32 = arith.constant 0 : i32
    %c0_i32_0 = arith.constant 0 : i32
    return %arg0, %c0_i32 : i32, i32
  }
  func.func @transform_1(%arg0: i32) -> (i32, i32) {
    %c0_i32 = arith.constant 0 : i32
    %c0_i32_0 = arith.constant 0 : i32
    %c0_i32_1 = arith.constant 0 : i32
    return %c0_i32, %c0_i32_0 : i32, i32
  }
  func.func @transform_2(%arg0: i32) -> (i32, i32) {
    %c0_i32 = arith.constant 0 : i32
    %c0_i32_0 = arith.constant 0 : i32
    %c0_i32_1 = arith.constant 0 : i32
    return %c0_i32, %c0_i32_0 : i32, i32
  }
  func.func @transform_3(%arg0: i32) -> (i32, i32) {
    %c0_i32 = arith.constant 0 : i32
    %c0_i32_0 = arith.constant 0 : i32
    return %arg0, %c0_i32 : i32, i32
  }
}

module attributes {stable_mosaic.version = 11 : i64} {
  func.func @_matmul_fused_kernel(%arg0: i32, %arg1: memref<512x576xbf16, #tpu.memory_space<vmem>>, %arg2: memref<576x32xbf16, #tpu.memory_space<vmem>>, %arg3: memref<1x32xf32, #tpu.memory_space<vmem>>, %arg4: memref<32x2xbf16, #tpu.memory_space<vmem>>, %arg5: memref<1x2xf32, #tpu.memory_space<vmem>>, %arg6: memref<512x2xf32, #tpu.memory_space<vmem>>) attributes {dimension_semantics = [#tpu.dimension_semantics<parallel>], iteration_bounds = array<i64: 1>, scalar_prefetch = 0 : i64, scratch_operands = 0 : i64, tpu.core_type = #tpu.core_type<tc>, window_params = [{transform_indices = @transform_0, window_bounds = array<i64: 512, 576>}, {pipeline_mode = #tpu.pipeline_mode<synchronous>, transform_indices = @transform_1, window_bounds = array<i64: 576, 32>}, {pipeline_mode = #tpu.pipeline_mode<synchronous>, transform_indices = @transform_2, window_bounds = array<i64: 1, 32>}, {pipeline_mode = #tpu.pipeline_mode<synchronous>, transform_indices = @transform_3, window_bounds = array<i64: 32, 2>}, {pipeline_mode = #tpu.pipeline_mode<synchronous>, transform_indices = @transform_4, window_bounds = array<i64: 1, 2>}, {transform_indices = @transform_5, window_bounds = array<i64: 512, 2>}]} {
    %c0 = arith.constant 0 : index
    %c0_0 = arith.constant 0 : index
    %0 = vector.load %arg1[%c0, %c0_0] : memref<512x576xbf16, #tpu.memory_space<vmem>>, vector<512x576xbf16>
    %c0_1 = arith.constant 0 : index
    %c0_2 = arith.constant 0 : index
    %1 = vector.load %arg2[%c0_1, %c0_2] : memref<576x32xbf16, #tpu.memory_space<vmem>>, vector<576x32xbf16>
    %cst = arith.constant dense<0.000000e+00> : vector<512x32xf32>
    %2 = tpu.matmul %0, %1, %cst {dimension_numbers = #tpu.dot_dimension_numbers<[1], [0], [0], [1], [0, 0, 1, 1], [], []>} : vector<512x576xbf16>, vector<576x32xbf16>, vector<512x32xf32> -> vector<512x32xf32>
    %c0_3 = arith.constant 0 : index
    %c0_4 = arith.constant 0 : index
    %3 = vector.load %arg3[%c0_3, %c0_4] : memref<1x32xf32, #tpu.memory_space<vmem>>, vector<1x32xf32>
    %4 = vector.broadcast %3 : vector<1x32xf32> to vector<512x32xf32>
    %5 = arith.addf %2, %4 : vector<512x32xf32>
    %cst_5 = arith.constant 0.000000e+00 : f32
    %6 = vector.broadcast %cst_5 : f32 to vector<512x32xf32>
    %7 = arith.maximumf %5, %6 : vector<512x32xf32>
    %8 = arith.truncf %7 : vector<512x32xf32> to vector<512x32xbf16>
    %c0_6 = arith.constant 0 : index
    %c0_7 = arith.constant 0 : index
    %9 = vector.load %arg4[%c0_6, %c0_7] : memref<32x2xbf16, #tpu.memory_space<vmem>>, vector<32x2xbf16>
    %cst_8 = arith.constant dense<0.000000e+00> : vector<512x2xf32>
    %10 = tpu.matmul %8, %9, %cst_8 {dimension_numbers = #tpu.dot_dimension_numbers<[1], [0], [0], [1], [0, 0, 1, 1], [], []>} : vector<512x32xbf16>, vector<32x2xbf16>, vector<512x2xf32> -> vector<512x2xf32>
    %c0_9 = arith.constant 0 : index
    %c0_10 = arith.constant 0 : index
    %11 = vector.load %arg5[%c0_9, %c0_10] : memref<1x2xf32, #tpu.memory_space<vmem>>, vector<1x2xf32>
    %12 = vector.broadcast %11 : vector<1x2xf32> to vector<512x2xf32>
    %13 = arith.addf %10, %12 : vector<512x2xf32>
    %14 = arith.negf %13 : vector<512x2xf32>
    %15 = math.exp %14 : vector<512x2xf32>
    %cst_11 = arith.constant 1.000000e+00 : f32
    %16 = vector.broadcast %cst_11 : f32 to vector<512x2xf32>
    %17 = arith.addf %16, %15 : vector<512x2xf32>
    %18 = arith.divf %16, %17 : vector<512x2xf32>
    %c0_12 = arith.constant 0 : index
    %c0_13 = arith.constant 0 : index
    %19 = vector.load %arg6[%c0_12, %c0_13] : memref<512x2xf32, #tpu.memory_space<vmem>>, vector<512x2xf32>
    tpu.vector_store %arg6[%c0_12, %c0_13], %18 {strides = array<i32>} : memref<512x2xf32, #tpu.memory_space<vmem>>, vector<512x2xf32>,
    return
  }
  func.func @transform_0(%arg0: i32) -> (i32, i32) {
    %c0_i32 = arith.constant 0 : i32
    %c0_i32_0 = arith.constant 0 : i32
    return %arg0, %c0_i32 : i32, i32
  }
  func.func @transform_1(%arg0: i32) -> (i32, i32) {
    %c0_i32 = arith.constant 0 : i32
    %c0_i32_0 = arith.constant 0 : i32
    %c0_i32_1 = arith.constant 0 : i32
    return %c0_i32, %c0_i32_0 : i32, i32
  }
  func.func @transform_2(%arg0: i32) -> (i32, i32) {
    %c0_i32 = arith.constant 0 : i32
    %c0_i32_0 = arith.constant 0 : i32
    %c0_i32_1 = arith.constant 0 : i32
    return %c0_i32, %c0_i32_0 : i32, i32
  }
  func.func @transform_3(%arg0: i32) -> (i32, i32) {
    %c0_i32 = arith.constant 0 : i32
    %c0_i32_0 = arith.constant 0 : i32
    %c0_i32_1 = arith.constant 0 : i32
    return %c0_i32, %c0_i32_0 : i32, i32
  }
  func.func @transform_4(%arg0: i32) -> (i32, i32) {
    %c0_i32 = arith.constant 0 : i32
    %c0_i32_0 = arith.constant 0 : i32
    %c0_i32_1 = arith.constant 0 : i32
    return %c0_i32, %c0_i32_0 : i32, i32
  }
  func.func @transform_5(%arg0: i32) -> (i32, i32) {
    %c0_i32 = arith.constant 0 : i32
    %c0_i32_0 = arith.constant 0 : i32
    return %arg0, %c0_i32 : i32, i32
  }
}

module attributes {stable_mosaic.version = 11 : i64} {
  func.func @_resize_kernel(%arg0: i32, %arg1: memref<1x16x16xf32, #tpu.memory_space<vmem>>, %arg2: memref<32x16xf32, #tpu.memory_space<vmem>>, %arg3: memref<16x32xf32, #tpu.memory_space<vmem>>, %arg4: memref<1x32x32xf32, #tpu.memory_space<vmem>>) attributes {dimension_semantics = [#tpu.dimension_semantics<parallel>], iteration_bounds = array<i64: 4>, scalar_prefetch = 0 : i64, scratch_operands = 0 : i64, tpu.core_type = #tpu.core_type<tc>, window_params = [{transform_indices = @transform_0, window_bounds = array<i64: 1, 16, 16>}, {pipeline_mode = #tpu.pipeline_mode<synchronous>, transform_indices = @transform_1, window_bounds = array<i64: 32, 16>}, {pipeline_mode = #tpu.pipeline_mode<synchronous>, transform_indices = @transform_2, window_bounds = array<i64: 16, 32>}, {transform_indices = @transform_3, window_bounds = array<i64: 1, 32, 32>}]} {
    %c0 = arith.constant 0 : index
    %c0_0 = arith.constant 0 : index
    %c0_1 = arith.constant 0 : index
    %0 = vector.load %arg1[%c0, %c0_0, %c0_1] : memref<1x16x16xf32, #tpu.memory_space<vmem>>, vector<1x16x16xf32>
    %1 = vector.shape_cast %0 : vector<1x16x16xf32> to vector<16x16xf32>
    %c0_2 = arith.constant 0 : index
    %c0_3 = arith.constant 0 : index
    %2 = vector.load %arg3[%c0_2, %c0_3] : memref<16x32xf32, #tpu.memory_space<vmem>>, vector<16x32xf32>
    %cst = arith.constant dense<0.000000e+00> : vector<16x32xf32>
    %3 = tpu.matmul %1, %2, %cst {dimension_numbers = #tpu.dot_dimension_numbers<[1], [0], [0], [1], [0, 0, 1, 1], [], []>} : vector<16x16xf32>, vector<16x32xf32>, vector<16x32xf32> -> vector<16x32xf32>
    %c0_4 = arith.constant 0 : index
    %c0_5 = arith.constant 0 : index
    %4 = vector.load %arg2[%c0_4, %c0_5] : memref<32x16xf32, #tpu.memory_space<vmem>>, vector<32x16xf32>
    %cst_6 = arith.constant dense<0.000000e+00> : vector<32x32xf32>
    %5 = tpu.matmul %4, %3, %cst_6 {dimension_numbers = #tpu.dot_dimension_numbers<[1], [0], [0], [1], [0, 0, 1, 1], [], []>} : vector<32x16xf32>, vector<16x32xf32>, vector<32x32xf32> -> vector<32x32xf32>
    %c0_7 = arith.constant 0 : index
    %c0_8 = arith.constant 0 : index
    %c0_9 = arith.constant 0 : index
    %6 = vector.load %arg4[%c0_7, %c0_8, %c0_9] : memref<1x32x32xf32, #tpu.memory_space<vmem>>, vector<1x32x32xf32>
    %7 = vector.shape_cast %6 : vector<1x32x32xf32> to vector<32x32xf32>
    %8 = vector.shape_cast %5 : vector<32x32xf32> to vector<1x32x32xf32>
    tpu.vector_store %arg4[%c0_7, %c0_8, %c0_9], %8 {strides = array<i32>} : memref<1x32x32xf32, #tpu.memory_space<vmem>>, vector<1x32x32xf32>,
    return
  }
  func.func @transform_0(%arg0: i32) -> (i32, i32, i32) {
    %c0_i32 = arith.constant 0 : i32
    %c0_i32_0 = arith.constant 0 : i32
    %c0_i32_1 = arith.constant 0 : i32
    return %arg0, %c0_i32, %c0_i32_0 : i32, i32, i32
  }
  func.func @transform_1(%arg0: i32) -> (i32, i32) {
    %c0_i32 = arith.constant 0 : i32
    %c0_i32_0 = arith.constant 0 : i32
    %c0_i32_1 = arith.constant 0 : i32
    return %c0_i32, %c0_i32_0 : i32, i32
  }
  func.func @transform_2(%arg0: i32) -> (i32, i32) {
    %c0_i32 = arith.constant 0 : i32
    %c0_i32_0 = arith.constant 0 : i32
    %c0_i32_1 = arith.constant 0 : i32
    return %c0_i32, %c0_i32_0 : i32, i32
  }
  func.func @transform_3(%arg0: i32) -> (i32, i32, i32) {
    %c0_i32 = arith.constant 0 : i32
    %c0_i32_0 = arith.constant 0 : i32
    %c0_i32_1 = arith.constant 0 : i32
    return %arg0, %c0_i32, %c0_i32_0 : i32, i32, i32
  }
}

</mosaic_0001>

<llo_original>
// kernel: dbcism_forward.11
$region0: #{dbcism_forward.11}
  #allocation0 [shape = 'u32[]', space=smem, size = 0x4, offset = 0x4, fixed_abs, tag = 'smem constant byte address 0x4 - core index']
  #allocation1 [shape = 'u32[72,128]{1,0:T(1,128)}', space=vmem, size = 0x9000, scoped, tag = 'internal scratch']
  %s0 = inlined_call_operand.vmem [shape: bf16[128,72], index: 0, kind: input, shape index: {}]
  %s1 = inlined_call_operand.vmem [shape: bf16[72,16], index: 1, kind: input, shape index: {}]
  %s2 = inlined_call_operand.vmem [shape: f32[1,16], index: 2, kind: input, shape index: {}]
  %s3 = inlined_call_operand.vmem [shape: bf16[16,16], index: 3, kind: input, shape index: {}]
  %s4 = inlined_call_operand.vmem [shape: f32[1,16], index: 4, kind: input, shape index: {}]
  %s5 = inlined_call_operand.vmem [shape: bf16[128,16], index: 5, kind: output, shape index: {0}]
  %s6 = inlined_call_operand.vmem [shape: bf16[128,16], index: 6, kind: output, shape index: {1}]
  %7 = xla_tuple %s5, %s6
  %s8 = sld [smem:[#allocation0]]
  $region38: #{dbcism_forward.11} parent=0
    _
  %s10 = ssub.s32 1, %s8
  %s11 = scalar_select 0, %s10, %s8
  // Predicated region
  $region2: #{dbcism_forward.11} parent=0 // pred_check
    _
  $region3: #{dbcism_forward.11} parent=0 // pred_check_branch
    %13 = sbr.rel (0) target = $region5
  $region4: #{dbcism_forward.11} parent=0 // pred_region
    _
  $region5: #{dbcism_forward.11} parent=0 // pred_fallthru
    _
  // Predicated region
  $region6: #{dbcism_forward.11} parent=0 // pred_check
    _
  $region7: #{dbcism_forward.11} parent=0 // pred_check_branch
    %15 = sbr.rel (0) target = $region9
  $region8: #{dbcism_forward.11} parent=0 // pred_region
    _
  $region9: #{dbcism_forward.11} parent=0 // pred_fallthru
    _
  // Predicated region
  $region10: #{dbcism_forward.11} parent=0 // pred_check
    _
  $region11: #{dbcism_forward.11} parent=0 // pred_check_branch
    %17 = sbr.rel (0) target = $region13
  $region12: #{dbcism_forward.11} parent=0 // pred_region
    _
  $region13: #{dbcism_forward.11} parent=0 // pred_fallthru
    _
  // Predicated region
  $region14: #{dbcism_forward.11} parent=0 // pred_check
    _
  $region15: #{dbcism_forward.11} parent=0 // pred_check_branch
    %19 = sbr.rel (0) target = $region17
  $region16: #{dbcism_forward.11} parent=0 // pred_region
    _
  $region17: #{dbcism_forward.11} parent=0 // pred_fallthru
    _
  // Predicated region
  $region18: #{dbcism_forward.11} parent=0 // pred_check
    _
  $region19: #{dbcism_forward.11} parent=0 // pred_check_branch
    %21 = sbr.rel (0) target = $region21
  $region20: #{dbcism_forward.11} parent=0 // pred_region
    _
  $region21: #{dbcism_forward.11} parent=0 // pred_fallthru
    _
  %v23 = vld [vmem:[%s0] sm:$0xf]
  %v24 = vld [vmem:[%s0 + $0x4] sm:$0xf]
  %v25 = vld [vmem:[%s0 + $0x8] sm:$0xf]
  %v26 = vld [vmem:[%s0 + $0xc] sm:$0xf]
  %v27 = vld [vmem:[%s0 + $0x10] sm:$0xf]
  %v28 = vld [vmem:[%s0 + $0x14] sm:$0xf]
  %v29 = vld [vmem:[%s0 + $0x18] sm:$0xf]
  %v30 = vld [vmem:[%s0 + $0x1c] sm:$0xf]
  %v31 = vld [vmem:[%s0 + $0x20] sm:$0xf]
  %v32 = vld [vmem:[%s0 + $0x24] sm:$0xf]
  %v33 = vld [vmem:[%s0 + $0x28] sm:$0xf]
  %v34 = vld [vmem:[%s0 + $0x2c] sm:$0xf]
  %v35 = vld [vmem:[%s0 + $0x30] sm:$0xf]
  %v36 = vld [vmem:[%s0 + $0x34] sm:$0xf]
  %v37 = vld [vmem:[%s0 + $0x38] sm:$0xf]
  %v38 = vld [vmem:[%s0 + $0x3c] sm:$0xf]
  %v39 = vld [vmem:[%s1] sm:$0xf]
  %v40 = vld [vmem:[%s1 + $0x4] sm:$0xf]
  %v41 = vld [vmem:[%s1 + $0x8] sm:$0xf]
  %v42 = vld [vmem:[%s1 + $0xc] sm:$0xf]
  %v43 = vld [vmem:[%s1 + $0x10] sm:$0xf]
  %v44 = vld [vmem:[%s1 + $0x14] sm:$0xf]
  %v45 = vld [vmem:[%s1 + $0x18] sm:$0xf]
  %v46 = vld [vmem:[%s1 + $0x1c] sm:$0xf]
  %v47 = vld [vmem:[%s1 + $0x20] sm:$0xf]
  %v48 = vld [vmem:[%s2] sm:$0x1]
  %v50 = vperm.slane %v48, 0
  %v68 = vunpack.c.l.b16 %v23
  %v69 = vunpack.c.l.b16 %v24
  %v70 = vunpack.c.l.b16 %v25
  %v71 = vunpack.c.l.b16 %v26
  %v72 = vunpack.c.l.b16 %v27
  %v73 = vunpack.c.l.b16 %v28
  %v74 = vunpack.c.l.b16 %v29
  %v75 = vunpack.c.l.b16 %v30
  %v76 = vunpack.c.l.b16 %v31
  %v77 = vunpack.c.l.b16 %v32
  %v78 = vunpack.c.l.b16 %v33
  %v79 = vunpack.c.l.b16 %v34
  %v80 = vunpack.c.l.b16 %v35
  %v81 = vunpack.c.l.b16 %v36
  %v82 = vunpack.c.l.b16 %v37
  %v83 = vunpack.c.l.b16 %v38
  %v84 = vpack.c.b16 %v69, %v68
  %v85 = vpack.c.b16 %v71, %v70
  %v86 = vpack.c.b16 %v73, %v72
  %v87 = vpack.c.b16 %v75, %v74
  %v88 = vpack.c.b16 %v77, %v76
  %v89 = vpack.c.b16 %v79, %v78
  %v90 = vpack.c.b16 %v81, %v80
  %v91 = vpack.c.b16 %v83, %v82
  %v101 = vunpack.c.l.b16 %v39
  %v102 = vunpack.c.l.b16 %v40
  %v103 = vunpack.c.l.b16 %v41
  %v104 = vunpack.c.l.b16 %v42
  %v105 = vunpack.c.l.b16 %v43
  %v106 = vunpack.c.l.b16 %v44
  %v107 = vunpack.c.l.b16 %v45
  %v108 = vunpack.c.l.b16 %v46
  %v109 = vunpack.c.l.b16 %v47
  %v110 = vpack.c.b16 %v102, %v101
  %v111 = vpack.c.b16 %v104, %v103
  %v112 = vpack.c.b16 %v106, %v105
  %v113 = vpack.c.b16 %v108, %v107
  %v114 = vpack.c.b16 %v109, %v109
  %vm119 = vcmask 588800
  %v121 = vsel %vm119, %v84, 0
  %v124 = vsel %vm119, %v85, 0
  %v127 = vsel %vm119, %v86, 0
  %v130 = vsel %vm119, %v87, 0
  %v133 = vsel %vm119, %v88, 0
  %v136 = vsel %vm119, %v89, 0
  %v139 = vsel %vm119, %v90, 0
  %v142 = vsel %vm119, %v91, 0
  %vm144 = vcmask 1043456
  %v146 = vsel %vm144, %v114, 0
  %148 = vmatpush.bf16.msra.mxu0 0
  %149 = vmatpush.bf16.msra.mxu0 0
  %150 = vmatpush.bf16.msra.mxu0 0
  %151 = vmatpush.bf16.msra.mxu0 %v146
  %152 = vmatpush.bf16.msra.mxu0 %v113
  %153 = vmatpush.bf16.msra.mxu0 %v112
  %154 = vmatpush.bf16.msra.mxu0 %v111
  %155 = vmatpush.bf16.msra.mxu0 %v110
  %156 = vmatmul.bf16.gmra.mxu0 %v121
  %v157 = vpop.f32.mrf.mxu0
  %v158 = vadd.f32 %v50, %v157
  %v159 = vpop.f32.mrf.mxu0
  %v160 = vadd.f32 %v50, %v159
  %161 = vmatmul.bf16.gmra.mxu0 %v124
  %v162 = vpop.f32.mrf.mxu0
  %v163 = vadd.f32 %v50, %v162
  %v164 = vpop.f32.mrf.mxu0
  %v165 = vadd.f32 %v50, %v164
  %166 = vmatmul.bf16.gmra.mxu0 %v127
  %v167 = vpop.f32.mrf.mxu0
  %v168 = vadd.f32 %v50, %v167
  %v169 = vpop.f32.mrf.mxu0
  %v170 = vadd.f32 %v50, %v169
  %171 = vmatmul.bf16.gmra.mxu0 %v130
  %v172 = vpop.f32.mrf.mxu0
  %v173 = vadd.f32 %v50, %v172
  %v174 = vpop.f32.mrf.mxu0
  %v175 = vadd.f32 %v50, %v174
  %176 = vmatmul.bf16.gmra.mxu0 %v133
  %v177 = vpop.f32.mrf.mxu0
  %v178 = vadd.f32 %v50, %v177
  %v179 = vpop.f32.mrf.mxu0
  %v180 = vadd.f32 %v50, %v179
  %181 = vmatmul.bf16.gmra.mxu0 %v136
  %v182 = vpop.f32.mrf.mxu0
  %v183 = vadd.f32 %v50, %v182
  %v184 = vpop.f32.mrf.mxu0
  %v185 = vadd.f32 %v50, %v184
  %186 = vmatmul.bf16.gmra.mxu0 %v139
  %v187 = vpop.f32.mrf.mxu0
  %v188 = vadd.f32 %v50, %v187
  %v189 = vpop.f32.mrf.mxu0
  %v190 = vadd.f32 %v50, %v189
  %191 = vmatmul.bf16.gmra.mxu0 %v142
  %v192 = vpop.f32.mrf.mxu0
  %v193 = vadd.f32 %v50, %v192
  %v194 = vpop.f32.mrf.mxu0
  %v195 = vadd.f32 %v50, %v194
  %196 = vdwg.mxu0
  %v197 = vmax.f32 %v158, 0.0
  %v198 = vmax.f32 %v160, 0.0
  %v199 = vmax.f32 %v163, 0.0
  %v200 = vmax.f32 %v165, 0.0
  %v201 = vmax.f32 %v168, 0.0
  %v202 = vmax.f32 %v170, 0.0
  %v203 = vmax.f32 %v173, 0.0
  %v204 = vmax.f32 %v175, 0.0
  %v205 = vmax.f32 %v178, 0.0
  %v206 = vmax.f32 %v180, 0.0
  %v207 = vmax.f32 %v183, 0.0
  %v208 = vmax.f32 %v185, 0.0
  %v209 = vmax.f32 %v188, 0.0
  %v210 = vmax.f32 %v190, 0.0
  %v211 = vmax.f32 %v193, 0.0
  %v212 = vmax.f32 %v195, 0.0
  %v213 = vpack.c.bf16 %v197, %v197
  %v214 = vpack.c.bf16 %v198, %v198
  %v215 = vpack.c.bf16 %v199, %v199
  %v216 = vpack.c.bf16 %v200, %v200
  %v217 = vpack.c.bf16 %v201, %v201
  %v218 = vpack.c.bf16 %v202, %v202
  %v219 = vpack.c.bf16 %v203, %v203
  %v220 = vpack.c.bf16 %v204, %v204
  %v221 = vpack.c.bf16 %v205, %v205
  %v222 = vpack.c.bf16 %v206, %v206
  %v223 = vpack.c.bf16 %v207, %v207
  %v224 = vpack.c.bf16 %v208, %v208
  %v225 = vpack.c.bf16 %v209, %v209
  %v226 = vpack.c.bf16 %v210, %v210
  %v227 = vpack.c.bf16 %v211, %v211
  %v228 = vpack.c.bf16 %v212, %v212
  %v229 = vld [vmem:[%s3] sm:$0xf]
  %v230 = vld [vmem:[%s3 + $0x4] sm:$0xf]
  %v231 = vld [vmem:[%s4] sm:$0x1]
  %v233 = vperm.slane %v231, 0
  %v251 = vunpack.c.l.b16 %v213
  %v252 = vunpack.c.l.b16 %v214
  %v253 = vunpack.c.l.b16 %v215
  %v254 = vunpack.c.l.b16 %v216
  %v255 = vunpack.c.l.b16 %v217
  %v256 = vunpack.c.l.b16 %v218
  %v257 = vunpack.c.l.b16 %v219
  %v258 = vunpack.c.l.b16 %v220
  %v259 = vunpack.c.l.b16 %v221
  %v260 = vunpack.c.l.b16 %v222
  %v261 = vunpack.c.l.b16 %v223
  %v262 = vunpack.c.l.b16 %v224
  %v263 = vunpack.c.l.b16 %v225
  %v264 = vunpack.c.l.b16 %v226
  %v265 = vunpack.c.l.b16 %v227
  %v266 = vunpack.c.l.b16 %v228
  %v267 = vpack.c.b16 %v252, %v251
  %v268 = vpack.c.b16 %v254, %v253
  %v269 = vpack.c.b16 %v256, %v255
  %v270 = vpack.c.b16 %v258, %v257
  %v271 = vpack.c.b16 %v260, %v259
  %v272 = vpack.c.b16 %v262, %v261
  %v273 = vpack.c.b16 %v264, %v263
  %v274 = vpack.c.b16 %v266, %v265
  %v277 = vunpack.c.l.b16 %v229
  %v278 = vunpack.c.l.b16 %v230
  %v279 = vpack.c.b16 %v278, %v277
  %vm281 = vcmask 130048
  %v283 = vsel %vm281, %v267, 0
  %v286 = vsel %vm281, %v268, 0
  %v289 = vsel %vm281, %v269, 0
  %v292 = vsel %vm281, %v270, 0
  %v295 = vsel %vm281, %v271, 0
  %v298 = vsel %vm281, %v272, 0
  %v301 = vsel %vm281, %v273, 0
  %v304 = vsel %vm281, %v274, 0
  %306 = vmatpush.bf16.msra.mxu0 0
  %307 = vmatpush.bf16.msra.mxu0 0
  %308 = vmatpush.bf16.msra.mxu0 0
  %309 = vmatpush.bf16.msra.mxu0 0
  %310 = vmatpush.bf16.msra.mxu0 0
  %311 = vmatpush.bf16.msra.mxu0 0
  %312 = vmatpush.bf16.msra.mxu0 0
  %313 = vmatpush.bf16.msra.mxu0 %v279
  %314 = vmatmul.bf16.gmra.mxu0 %v283
  %v315 = vpop.f32.mrf.mxu0
  %v316 = vadd.f32 %v233, %v315
  %v317 = vpop.f32.mrf.mxu0
  %v318 = vadd.f32 %v233, %v317
  %319 = vmatmul.bf16.gmra.mxu0 %v286
  %v320 = vpop.f32.mrf.mxu0
  %v321 = vadd.f32 %v233, %v320
  %v322 = vpop.f32.mrf.mxu0
  %v323 = vadd.f32 %v233, %v322
  %324 = vmatmul.bf16.gmra.mxu0 %v289
  %v325 = vpop.f32.mrf.mxu0
  %v326 = vadd.f32 %v233, %v325
  %v327 = vpop.f32.mrf.mxu0
  %v328 = vadd.f32 %v233, %v327
  %329 = vmatmul.bf16.gmra.mxu0 %v292
  %v330 = vpop.f32.mrf.mxu0
  %v331 = vadd.f32 %v233, %v330
  %v332 = vpop.f32.mrf.mxu0
  %v333 = vadd.f32 %v233, %v332
  %334 = vmatmul.bf16.gmra.mxu0 %v295
  %v335 = vpop.f32.mrf.mxu0
  %v336 = vadd.f32 %v233, %v335
  %v337 = vpop.f32.mrf.mxu0
  %v338 = vadd.f32 %v233, %v337
  %339 = vmatmul.bf16.gmra.mxu0 %v298
  %v340 = vpop.f32.mrf.mxu0
  %v341 = vadd.f32 %v233, %v340
  %v342 = vpop.f32.mrf.mxu0
  %v343 = vadd.f32 %v233, %v342
  %344 = vmatmul.bf16.gmra.mxu0 %v301
  %v345 = vpop.f32.mrf.mxu0
  %v346 = vadd.f32 %v233, %v345
  %v347 = vpop.f32.mrf.mxu0
  %v348 = vadd.f32 %v233, %v347
  %349 = vmatmul.bf16.gmra.mxu0 %v304
  %v350 = vpop.f32.mrf.mxu0
  %v351 = vadd.f32 %v233, %v350
  %v352 = vpop.f32.mrf.mxu0
  %v353 = vadd.f32 %v233, %v352
  %354 = vdwg.mxu0
  %vm355 = vcmask 125952
  %356 = vst.msk [vmem:[%s5] sm:$0xf] %vm355, %v213
  %357 = vst.msk [vmem:[%s5 + $0x4] sm:$0xf] %vm355, %v214
  %358 = vst.msk [vmem:[%s5 + $0x8] sm:$0xf] %vm355, %v215
  %359 = vst.msk [vmem:[%s5 + $0xc] sm:$0xf] %vm355, %v216
  %360 = vst.msk [vmem:[%s5 + $0x10] sm:$0xf] %vm355, %v217
  %361 = vst.msk [vmem:[%s5 + $0x14] sm:$0xf] %vm355, %v218
  %362 = vst.msk [vmem:[%s5 + $0x18] sm:$0xf] %vm355, %v219
  %363 = vst.msk [vmem:[%s5 + $0x1c] sm:$0xf] %vm355, %v220
  %364 = vst.msk [vmem:[%s5 + $0x20] sm:$0xf] %vm355, %v221
  %365 = vst.msk [vmem:[%s5 + $0x24] sm:$0xf] %vm355, %v222
  %366 = vst.msk [vmem:[%s5 + $0x28] sm:$0xf] %vm355, %v223
  %367 = vst.msk [vmem:[%s5 + $0x2c] sm:$0xf] %vm355, %v224
  %368 = vst.msk [vmem:[%s5 + $0x30] sm:$0xf] %vm355, %v225
  %369 = vst.msk [vmem:[%s5 + $0x34] sm:$0xf] %vm355, %v226
  %370 = vst.msk [vmem:[%s5 + $0x38] sm:$0xf] %vm355, %v227
  %371 = vst.msk [vmem:[%s5 + $0x3c] sm:$0xf] %vm355, %v228
  %v372 = vpack.c.bf16 %v316, %v316
  %v373 = vpack.c.bf16 %v318, %v318
  %v374 = vpack.c.bf16 %v321, %v321
  %v375 = vpack.c.bf16 %v323, %v323
  %v376 = vpack.c.bf16 %v326, %v326
  %v377 = vpack.c.bf16 %v328, %v328
  %v378 = vpack.c.bf16 %v331, %v331
  %v379 = vpack.c.bf16 %v333, %v333
  %v380 = vpack.c.bf16 %v336, %v336
  %v381 = vpack.c.bf16 %v338, %v338
  %v382 = vpack.c.bf16 %v341, %v341
  %v383 = vpack.c.bf16 %v343, %v343
  %v384 = vpack.c.bf16 %v346, %v346
  %v385 = vpack.c.bf16 %v348, %v348
  %v386 = vpack.c.bf16 %v351, %v351
  %v387 = vpack.c.bf16 %v353, %v353
  %388 = vst.msk [vmem:[%s6] sm:$0xf] %vm355, %v372
  %389 = vst.msk [vmem:[%s6 + $0x4] sm:$0xf] %vm355, %v373
  %390 = vst.msk [vmem:[%s6 + $0x8] sm:$0xf] %vm355, %v374
  %391 = vst.msk [vmem:[%s6 + $0xc] sm:$0xf] %vm355, %v375
  %392 = vst.msk [vmem:[%s6 + $0x10] sm:$0xf] %vm355, %v376
  %393 = vst.msk [vmem:[%s6 + $0x14] sm:$0xf] %vm355, %v377
  %394 = vst.msk [vmem:[%s6 + $0x18] sm:$0xf] %vm355, %v378
  %395 = vst.msk [vmem:[%s6 + $0x1c] sm:$0xf] %vm355, %v379
  %396 = vst.msk [vmem:[%s6 + $0x20] sm:$0xf] %vm355, %v380
  %397 = vst.msk [vmem:[%s6 + $0x24] sm:$0xf] %vm355, %v381
  %398 = vst.msk [vmem:[%s6 + $0x28] sm:$0xf] %vm355, %v382
  %399 = vst.msk [vmem:[%s6 + $0x2c] sm:$0xf] %vm355, %v383
  %400 = vst.msk [vmem:[%s6 + $0x30] sm:$0xf] %vm355, %v384
  %401 = vst.msk [vmem:[%s6 + $0x34] sm:$0xf] %vm355, %v385
  %402 = vst.msk [vmem:[%s6 + $0x38] sm:$0xf] %vm355, %v386
  %403 = vst.msk [vmem:[%s6 + $0x3c] sm:$0xf] %vm355, %v387
  // Predicated region
  $region22: #{dbcism_forward.11} parent=0 // pred_check
    _
  $region23: #{dbcism_forward.11} parent=0 // pred_check_branch
    %405 = sbr.rel (0) target = $region25
  $region24: #{dbcism_forward.11} parent=0 // pred_region
    _
  $region25: #{dbcism_forward.11} parent=0 // pred_fallthru
    _
  // Predicated region
  $region26: #{dbcism_forward.11} parent=0 // pred_check
    _
  $region27: #{dbcism_forward.11} parent=0 // pred_check_branch
    %407 = sbr.rel (0) target = $region29
  $region28: #{dbcism_forward.11} parent=0 // pred_region
    _
  $region29: #{dbcism_forward.11} parent=0 // pred_fallthru
    _
  // Predicated region
  $region30: #{dbcism_forward.11} parent=0 // pred_check
    _
  $region31: #{dbcism_forward.11} parent=0 // pred_check_branch
    %409 = sbr.rel (0) target = $region33
  $region32: #{dbcism_forward.11} parent=0 // pred_region
    _
  $region33: #{dbcism_forward.11} parent=0 // pred_fallthru
    _
  // Predicated region
  $region34: #{dbcism_forward.11} parent=0 // pred_check
    _
  $region35: #{dbcism_forward.11} parent=0 // pred_check_branch
    %411 = sbr.rel (0) target = $region37
  $region36: #{dbcism_forward.11} parent=0 // pred_region
    _
  $region37: #{dbcism_forward.11} parent=0 // pred_fallthru
    _

// kernel: dbcism_forward.10
$region0: #{dbcism_forward.10}
  #allocation0 [shape = 'u32[]', space=smem, size = 0x4, offset = 0x4, fixed_abs, tag = 'smem constant byte address 0x4 - core index']
  #allocation1 [shape = 'u32[72,128]{1,0:T(1,128)}', space=vmem, size = 0x9000, scoped, tag = 'internal scratch']
  %s0 = inlined_call_operand.vmem [shape: bf16[512,27], index: 0, kind: input, shape index: {}]
  %s1 = inlined_call_operand.vmem [shape: bf16[27,8], index: 1, kind: input, shape index: {}]
  %s2 = inlined_call_operand.vmem [shape: f32[1,8], index: 2, kind: input, shape index: {}]
  %s3 = inlined_call_operand.vmem [shape: bf16[8,16], index: 3, kind: input, shape index: {}]
  %s4 = inlined_call_operand.vmem [shape: f32[1,16], index: 4, kind: input, shape index: {}]
  %s5 = inlined_call_operand.vmem [shape: bf16[512,8], index: 5, kind: output, shape index: {0}]
  %s6 = inlined_call_operand.vmem [shape: bf16[512,16], index: 6, kind: output, shape index: {1}]
  %7 = xla_tuple %s5, %s6
  %s8 = sld [smem:[#allocation0]]
  $region38: #{dbcism_forward.10} parent=0
    _
  %s10 = ssub.s32 1, %s8
  %s11 = scalar_select 0, %s10, %s8
  // Predicated region
  $region2: #{dbcism_forward.10} parent=0 // pred_check
    _
  $region3: #{dbcism_forward.10} parent=0 // pred_check_branch
    %13 = sbr.rel (0) target = $region5
  $region4: #{dbcism_forward.10} parent=0 // pred_region
    _
  $region5: #{dbcism_forward.10} parent=0 // pred_fallthru
    _
  // Predicated region
  $region6: #{dbcism_forward.10} parent=0 // pred_check
    _
  $region7: #{dbcism_forward.10} parent=0 // pred_check_branch
    %15 = sbr.rel (0) target = $region9
  $region8: #{dbcism_forward.10} parent=0 // pred_region
    _
  $region9: #{dbcism_forward.10} parent=0 // pred_fallthru
    _
  // Predicated region
  $region10: #{dbcism_forward.10} parent=0 // pred_check
    _
  $region11: #{dbcism_forward.10} parent=0 // pred_check_branch
    %17 = sbr.rel (0) target = $region13
  $region12: #{dbcism_forward.10} parent=0 // pred_region
    _
  $region13: #{dbcism_forward.10} parent=0 // pred_fallthru
    _
  // Predicated region
  $region14: #{dbcism_forward.10} parent=0 // pred_check
    _
  $region15: #{dbcism_forward.10} parent=0 // pred_check_branch
    %19 = sbr.rel (0) target = $region17
  $region16: #{dbcism_forward.10} parent=0 // pred_region
    _
  $region17: #{dbcism_forward.10} parent=0 // pred_fallthru
    _
  // Predicated region
  $region18: #{dbcism_forward.10} parent=0 // pred_check
    _
  $region19: #{dbcism_forward.10} parent=0 // pred_check_branch
    %21 = sbr.rel (0) target = $region21
  $region20: #{dbcism_forward.10} parent=0 // pred_region
    _
  $region21: #{dbcism_forward.10} parent=0 // pred_fallthru
    _
  %v23 = vld [vmem:[%s0] sm:$0xf]
  %v24 = vld [vmem:[%s0 + $0x4] sm:$0xf]
  %v25 = vld [vmem:[%s0 + $0x8] sm:$0xf]
  %v26 = vld [vmem:[%s0 + $0xc] sm:$0xf]
  %v27 = vld [vmem:[%s0 + $0x10] sm:$0xf]
  %v28 = vld [vmem:[%s0 + $0x14] sm:$0xf]
  %v29 = vld [vmem:[%s0 + $0x18] sm:$0xf]
  %v30 = vld [vmem:[%s0 + $0x1c] sm:$0xf]
  %v31 = vld [vmem:[%s0 + $0x20] sm:$0xf]
  %v32 = vld [vmem:[%s0 + $0x24] sm:$0xf]
  %v33 = vld [vmem:[%s0 + $0x28] sm:$0xf]
  %v34 = vld [vmem:[%s0 + $0x2c] sm:$0xf]
  %v35 = vld [vmem:[%s0 + $0x30] sm:$0xf]
  %v36 = vld [vmem:[%s0 + $0x34] sm:$0xf]
  %v37 = vld [vmem:[%s0 + $0x38] sm:$0xf]
  %v38 = vld [vmem:[%s0 + $0x3c] sm:$0xf]
  %v39 = vld [vmem:[%s0 + $0x40] sm:$0xf]
  %v40 = vld [vmem:[%s0 + $0x44] sm:$0xf]
  %v41 = vld [vmem:[%s0 + $0x48] sm:$0xf]
  %v42 = vld [vmem:[%s0 + $0x4c] sm:$0xf]
  %v43 = vld [vmem:[%s0 + $0x50] sm:$0xf]
  %v44 = vld [vmem:[%s0 + $0x54] sm:$0xf]
  %v45 = vld [vmem:[%s0 + $0x58] sm:$0xf]
  %v46 = vld [vmem:[%s0 + $0x5c] sm:$0xf]
  %v47 = vld [vmem:[%s0 + $0x60] sm:$0xf]
  %v48 = vld [vmem:[%s0 + $0x64] sm:$0xf]
  %v49 = vld [vmem:[%s0 + $0x68] sm:$0xf]
  %v50 = vld [vmem:[%s0 + $0x6c] sm:$0xf]
  %v51 = vld [vmem:[%s0 + $0x70] sm:$0xf]
  %v52 = vld [vmem:[%s0 + $0x74] sm:$0xf]
  %v53 = vld [vmem:[%s0 + $0x78] sm:$0xf]
  %v54 = vld [vmem:[%s0 + $0x7c] sm:$0xf]
  %v55 = vld [vmem:[%s0 + $0x80] sm:$0xf]
  %v56 = vld [vmem:[%s0 + $0x84] sm:$0xf]
  %v57 = vld [vmem:[%s0 + $0x88] sm:$0xf]
  %v58 = vld [vmem:[%s0 + $0x8c] sm:$0xf]
  %v59 = vld [vmem:[%s0 + $0x90] sm:$0xf]
  %v60 = vld [vmem:[%s0 + $0x94] sm:$0xf]
  %v61 = vld [vmem:[%s0 + $0x98] sm:$0xf]
  %v62 = vld [vmem:[%s0 + $0x9c] sm:$0xf]
  %v63 = vld [vmem:[%s0 + $0xa0] sm:$0xf]
  %v64 = vld [vmem:[%s0 + $0xa4] sm:$0xf]
  %v65 = vld [vmem:[%s0 + $0xa8] sm:$0xf]
  %v66 = vld [vmem:[%s0 + $0xac] sm:$0xf]
  %v67 = vld [vmem:[%s0 + $0xb0] sm:$0xf]
  %v68 = vld [vmem:[%s0 + $0xb4] sm:$0xf]
  %v69 = vld [vmem:[%s0 + $0xb8] sm:$0xf]
  %v70 = vld [vmem:[%s0 + $0xbc] sm:$0xf]
  %v71 = vld [vmem:[%s0 + $0xc0] sm:$0xf]
  %v72 = vld [vmem:[%s0 + $0xc4] sm:$0xf]
  %v73 = vld [vmem:[%s0 + $0xc8] sm:$0xf]
  %v74 = vld [vmem:[%s0 + $0xcc] sm:$0xf]
  %v75 = vld [vmem:[%s0 + $0xd0] sm:$0xf]
  %v76 = vld [vmem:[%s0 + $0xd4] sm:$0xf]
  %v77 = vld [vmem:[%s0 + $0xd8] sm:$0xf]
  %v78 = vld [vmem:[%s0 + $0xdc] sm:$0xf]
  %v79 = vld [vmem:[%s0 + $0xe0] sm:$0xf]
  %v80 = vld [vmem:[%s0 + $0xe4] sm:$0xf]
  %v81 = vld [vmem:[%s0 + $0xe8] sm:$0xf]
  %v82 = vld [vmem:[%s0 + $0xec] sm:$0xf]
  %v83 = vld [vmem:[%s0 + $0xf0] sm:$0xf]
  %v84 = vld [vmem:[%s0 + $0xf4] sm:$0xf]
  %v85 = vld [vmem:[%s0 + $0xf8] sm:$0xf]
  %v86 = vld [vmem:[%s0 + $0xfc] sm:$0xf]
  %v87 = vld [vmem:[%s1] sm:$0xf]
  %v88 = vld [vmem:[%s1 + $0x4] sm:$0xf]
  %v89 = vld [vmem:[%s1 + $0x8] sm:$0xf]
  %v90 = vld [vmem:[%s1 + $0xc] sm:$0x3]
  %v91 = vld [vmem:[%s2] sm:$0x1]
  %v93 = vperm.slane %v91, 0
  %v159 = vunpack.c.l.b16 %v23
  %v160 = vunpack.c.l.b16 %v24
  %v161 = vunpack.c.l.b16 %v25
  %v162 = vunpack.c.l.b16 %v26
  %v163 = vunpack.c.l.b16 %v27
  %v164 = vunpack.c.l.b16 %v28
  %v165 = vunpack.c.l.b16 %v29
  %v166 = vunpack.c.l.b16 %v30
  %v167 = vunpack.c.l.b16 %v31
  %v168 = vunpack.c.l.b16 %v32
  %v169 = vunpack.c.l.b16 %v33
  %v170 = vunpack.c.l.b16 %v34
  %v171 = vunpack.c.l.b16 %v35
  %v172 = vunpack.c.l.b16 %v36
  %v173 = vunpack.c.l.b16 %v37
  %v174 = vunpack.c.l.b16 %v38
  %v175 = vunpack.c.l.b16 %v39
  %v176 = vunpack.c.l.b16 %v40
  %v177 = vunpack.c.l.b16 %v41
  %v178 = vunpack.c.l.b16 %v42
  %v179 = vunpack.c.l.b16 %v43
  %v180 = vunpack.c.l.b16 %v44
  %v181 = vunpack.c.l.b16 %v45
  %v182 = vunpack.c.l.b16 %v46
  %v183 = vunpack.c.l.b16 %v47
  %v184 = vunpack.c.l.b16 %v48
  %v185 = vunpack.c.l.b16 %v49
  %v186 = vunpack.c.l.b16 %v50
  %v187 = vunpack.c.l.b16 %v51
  %v188 = vunpack.c.l.b16 %v52
  %v189 = vunpack.c.l.b16 %v53
  %v190 = vunpack.c.l.b16 %v54
  %v191 = vunpack.c.l.b16 %v55
  %v192 = vunpack.c.l.b16 %v56
  %v193 = vunpack.c.l.b16 %v57
  %v194 = vunpack.c.l.b16 %v58
  %v195 = vunpack.c.l.b16 %v59
  %v196 = vunpack.c.l.b16 %v60
  %v197 = vunpack.c.l.b16 %v61
  %v198 = vunpack.c.l.b16 %v62
  %v199 = vunpack.c.l.b16 %v63
  %v200 = vunpack.c.l.b16 %v64
  %v201 = vunpack.c.l.b16 %v65
  %v202 = vunpack.c.l.b16 %v66
  %v203 = vunpack.c.l.b16 %v67
  %v204 = vunpack.c.l.b16 %v68
  %v205 = vunpack.c.l.b16 %v69
  %v206 = vunpack.c.l.b16 %v70
  %v207 = vunpack.c.l.b16 %v71
  %v208 = vunpack.c.l.b16 %v72
  %v209 = vunpack.c.l.b16 %v73
  %v210 = vunpack.c.l.b16 %v74
  %v211 = vunpack.c.l.b16 %v75
  %v212 = vunpack.c.l.b16 %v76
  %v213 = vunpack.c.l.b16 %v77
  %v214 = vunpack.c.l.b16 %v78
  %v215 = vunpack.c.l.b16 %v79
  %v216 = vunpack.c.l.b16 %v80
  %v217 = vunpack.c.l.b16 %v81
  %v218 = vunpack.c.l.b16 %v82
  %v219 = vunpack.c.l.b16 %v83
  %v220 = vunpack.c.l.b16 %v84
  %v221 = vunpack.c.l.b16 %v85
  %v222 = vunpack.c.l.b16 %v86
  %v223 = vpack.c.b16 %v160, %v159
  %v224 = vpack.c.b16 %v162, %v161
  %v225 = vpack.c.b16 %v164, %v163
  %v226 = vpack.c.b16 %v166, %v165
  %v227 = vpack.c.b16 %v168, %v167
  %v228 = vpack.c.b16 %v170, %v169
  %v229 = vpack.c.b16 %v172, %v171
  %v230 = vpack.c.b16 %v174, %v173
  %v231 = vpack.c.b16 %v176, %v175
  %v232 = vpack.c.b16 %v178, %v177
  %v233 = vpack.c.b16 %v180, %v179
  %v234 = vpack.c.b16 %v182, %v181
  %v235 = vpack.c.b16 %v184, %v183
  %v236 = vpack.c.b16 %v186, %v185
  %v237 = vpack.c.b16 %v188, %v187
  %v238 = vpack.c.b16 %v190, %v189
  %v239 = vpack.c.b16 %v192, %v191
  %v240 = vpack.c.b16 %v194, %v193
  %v241 = vpack.c.b16 %v196, %v195
  %v242 = vpack.c.b16 %v198, %v197
  %v243 = vpack.c.b16 %v200, %v199
  %v244 = vpack.c.b16 %v202, %v201
  %v245 = vpack.c.b16 %v204, %v203
  %v246 = vpack.c.b16 %v206, %v205
  %v247 = vpack.c.b16 %v208, %v207
  %v248 = vpack.c.b16 %v210, %v209
  %v249 = vpack.c.b16 %v212, %v211
  %v250 = vpack.c.b16 %v214, %v213
  %v251 = vpack.c.b16 %v216, %v215
  %v252 = vpack.c.b16 %v218, %v217
  %v253 = vpack.c.b16 %v220, %v219
  %v254 = vpack.c.b16 %v222, %v221
  %v259 = vunpack.c.l.b16 %v87
  %v260 = vunpack.c.l.b16 %v88
  %v261 = vunpack.c.l.b16 %v89
  %v262 = vunpack.c.l.b16 %v90
  %v263 = vpack.c.b16 %v260, %v259
  %v264 = vpack.c.b16 %v262, %v261
  %vm266 = vcmask 220160
  %v268 = vsel %vm266, %v223, 0
  %v271 = vsel %vm266, %v224, 0
  %v274 = vsel %vm266, %v225, 0
  %v277 = vsel %vm266, %v226, 0
  %v280 = vsel %vm266, %v227, 0
  %v283 = vsel %vm266, %v228, 0
  %v286 = vsel %vm266, %v229, 0
  %v289 = vsel %vm266, %v230, 0
  %v292 = vsel %vm266, %v231, 0
  %v295 = vsel %vm266, %v232, 0
  %v298 = vsel %vm266, %v233, 0
  %v301 = vsel %vm266, %v234, 0
  %v304 = vsel %vm266, %v235, 0
  %v307 = vsel %vm266, %v236, 0
  %v310 = vsel %vm266, %v237, 0
  %v313 = vsel %vm266, %v238, 0
  %v316 = vsel %vm266, %v239, 0
  %v319 = vsel %vm266, %v240, 0
  %v322 = vsel %vm266, %v241, 0
  %v325 = vsel %vm266, %v242, 0
  %v328 = vsel %vm266, %v243, 0
  %v331 = vsel %vm266, %v244, 0
  %v334 = vsel %vm266, %v245, 0
  %v337 = vsel %vm266, %v246, 0
  %v340 = vsel %vm266, %v247, 0
  %v343 = vsel %vm266, %v248, 0
  %v346 = vsel %vm266, %v249, 0
  %v349 = vsel %vm266, %v250, 0
  %v352 = vsel %vm266, %v251, 0
  %v355 = vsel %vm266, %v252, 0
  %v358 = vsel %vm266, %v253, 0
  %v361 = vsel %vm266, %v254, 0
  %vm363 = vcmask 1044480
  %vm364 = vcmask 1045504
  %v365 = vsel %vm363, 4294967295, 65535
  %v366 = vsel %vm364, %v365, 0
  %v368 = vand.u32 %v264, %v366
  %370 = vmatpush.bf16.msra.mxu0 0
  %371 = vmatpush.bf16.msra.mxu0 0
  %372 = vmatpush.bf16.msra.mxu0 0
  %373 = vmatpush.bf16.msra.mxu0 0
  %374 = vmatpush.bf16.msra.mxu0 0
  %375 = vmatpush.bf16.msra.mxu0 0
  %376 = vmatpush.bf16.msra.mxu0 %v368
  %377 = vmatpush.bf16.msra.mxu0 %v263
  %378 = vmatmul.bf16.gmra.mxu0 %v268
  %v379 = vpop.f32.mrf.mxu0
  %v380 = vadd.f32 %v93, %v379
  %v381 = vpop.f32.mrf.mxu0
  %v382 = vadd.f32 %v93, %v381
  %383 = vmatmul.bf16.gmra.mxu0 %v271
  %v384 = vpop.f32.mrf.mxu0
  %v385 = vadd.f32 %v93, %v384
  %v386 = vpop.f32.mrf.mxu0
  %v387 = vadd.f32 %v93, %v386
  %388 = vmatmul.bf16.gmra.mxu0 %v274
  %v389 = vpop.f32.mrf.mxu0
  %v390 = vadd.f32 %v93, %v389
  %v391 = vpop.f32.mrf.mxu0
  %v392 = vadd.f32 %v93, %v391
  %393 = vmatmul.bf16.gmra.mxu0 %v277
  %v394 = vpop.f32.mrf.mxu0
  %v395 = vadd.f32 %v93, %v394
  %v396 = vpop.f32.mrf.mxu0
  %v397 = vadd.f32 %v93, %v396
  %398 = vmatmul.bf16.gmra.mxu0 %v280
  %v399 = vpop.f32.mrf.mxu0
  %v400 = vadd.f32 %v93, %v399
  %v401 = vpop.f32.mrf.mxu0
  %v402 = vadd.f32 %v93, %v401
  %403 = vmatmul.bf16.gmra.mxu0 %v283
  %v404 = vpop.f32.mrf.mxu0
  %v405 = vadd.f32 %v93, %v404
  %v406 = vpop.f32.mrf.mxu0
  %v407 = vadd.f32 %v93, %v406
  %408 = vmatmul.bf16.gmra.mxu0 %v286
  %v409 = vpop.f32.mrf.mxu0
  %v410 = vadd.f32 %v93, %v409
  %v411 = vpop.f32.mrf.mxu0
  %v412 = vadd.f32 %v93, %v411
  %413 = vmatmul.bf16.gmra.mxu0 %v289
  %v414 = vpop.f32.mrf.mxu0
  %v415 = vadd.f32 %v93, %v414
  %v416 = vpop.f32.mrf.mxu0
  %v417 = vadd.f32 %v93, %v416
  %418 = vmatmul.bf16.gmra.mxu0 %v292
  %v419 = vpop.f32.mrf.mxu0
  %v420 = vadd.f32 %v93, %v419
  %v421 = vpop.f32.mrf.mxu0
  %v422 = vadd.f32 %v93, %v421
  %423 = vmatmul.bf16.gmra.mxu0 %v295
  %v424 = vpop.f32.mrf.mxu0
  %v425 = vadd.f32 %v93, %v424
  %v426 = vpop.f32.mrf.mxu0
  %v427 = vadd.f32 %v93, %v426
  %428 = vmatmul.bf16.gmra.mxu0 %v298
  %v429 = vpop.f32.mrf.mxu0
  %v430 = vadd.f32 %v93, %v429
  %v431 = vpop.f32.mrf.mxu0
  %v432 = vadd.f32 %v93, %v431
  %433 = vmatmul.bf16.gmra.mxu0 %v301
  %v434 = vpop.f32.mrf.mxu0
  %v435 = vadd.f32 %v93, %v434
  %v436 = vpop.f32.mrf.mxu0
  %v437 = vadd.f32 %v93, %v436
  %438 = vmatmul.bf16.gmra.mxu0 %v304
  %v439 = vpop.f32.mrf.mxu0
  %v440 = vadd.f32 %v93, %v439
  %v441 = vpop.f32.mrf.mxu0
  %v442 = vadd.f32 %v93, %v441
  %443 = vmatmul.bf16.gmra.mxu0 %v307
  %v444 = vpop.f32.mrf.mxu0
  %v445 = vadd.f32 %v93, %v444
  %v446 = vpop.f32.mrf.mxu0
  %v447 = vadd.f32 %v93, %v446
  %448 = vmatmul.bf16.gmra.mxu0 %v310
  %v449 = vpop.f32.mrf.mxu0
  %v450 = vadd.f32 %v93, %v449
  %v451 = vpop.f32.mrf.mxu0
  %v452 = vadd.f32 %v93, %v451
  %453 = vmatmul.bf16.gmra.mxu0 %v313
  %v454 = vpop.f32.mrf.mxu0
  %v455 = vadd.f32 %v93, %v454
  %v456 = vpop.f32.mrf.mxu0
  %v457 = vadd.f32 %v93, %v456
  %458 = vmatmul.bf16.gmra.mxu0 %v316
  %v459 = vpop.f32.mrf.mxu0
  %v460 = vadd.f32 %v93, %v459
  %v461 = vpop.f32.mrf.mxu0
  %v462 = vadd.f32 %v93, %v461
  %463 = vmatmul.bf16.gmra.mxu0 %v319
  %v464 = vpop.f32.mrf.mxu0
  %v465 = vadd.f32 %v93, %v464
  %v466 = vpop.f32.mrf.mxu0
  %v467 = vadd.f32 %v93, %v466
  %468 = vmatmul.bf16.gmra.mxu0 %v322
  %v469 = vpop.f32.mrf.mxu0
  %v470 = vadd.f32 %v93, %v469
  %v471 = vpop.f32.mrf.mxu0
  %v472 = vadd.f32 %v93, %v471
  %473 = vmatmul.bf16.gmra.mxu0 %v325
  %v474 = vpop.f32.mrf.mxu0
  %v475 = vadd.f32 %v93, %v474
  %v476 = vpop.f32.mrf.mxu0
  %v477 = vadd.f32 %v93, %v476
  %478 = vmatmul.bf16.gmra.mxu0 %v328
  %v479 = vpop.f32.mrf.mxu0
  %v480 = vadd.f32 %v93, %v479
  %v481 = vpop.f32.mrf.mxu0
  %v482 = vadd.f32 %v93, %v481
  %483 = vmatmul.bf16.gmra.mxu0 %v331
  %v484 = vpop.f32.mrf.mxu0
  %v485 = vadd.f32 %v93, %v484
  %v486 = vpop.f32.mrf.mxu0
  %v487 = vadd.f32 %v93, %v486
  %488 = vmatmul.bf16.gmra.mxu0 %v334
  %v489 = vpop.f32.mrf.mxu0
  %v490 = vadd.f32 %v93, %v489
  %v491 = vpop.f32.mrf.mxu0
  %v492 = vadd.f32 %v93, %v491
  %493 = vmatmul.bf16.gmra.mxu0 %v337
  %v494 = vpop.f32.mrf.mxu0
  %v495 = vadd.f32 %v93, %v494
  %v496 = vpop.f32.mrf.mxu0
  %v497 = vadd.f32 %v93, %v496
  %498 = vmatmul.bf16.gmra.mxu0 %v340
  %v499 = vpop.f32.mrf.mxu0
  %v500 = vadd.f32 %v93, %v499
  %v501 = vpop.f32.mrf.mxu0
  %v502 = vadd.f32 %v93, %v501
  %503 = vmatmul.bf16.gmra.mxu0 %v343
  %v504 = vpop.f32.mrf.mxu0
  %v505 = vadd.f32 %v93, %v504
  %v506 = vpop.f32.mrf.mxu0
  %v507 = vadd.f32 %v93, %v506
  %508 = vmatmul.bf16.gmra.mxu0 %v346
  %v509 = vpop.f32.mrf.mxu0
  %v510 = vadd.f32 %v93, %v509
  %v511 = vpop.f32.mrf.mxu0
  %v512 = vadd.f32 %v93, %v511
  %513 = vmatmul.bf16.gmra.mxu0 %v349
  %v514 = vpop.f32.mrf.mxu0
  %v515 = vadd.f32 %v93, %v514
  %v516 = vpop.f32.mrf.mxu0
  %v517 = vadd.f32 %v93, %v516
  %518 = vmatmul.bf16.gmra.mxu0 %v352
  %v519 = vpop.f32.mrf.mxu0
  %v520 = vadd.f32 %v93, %v519
  %v521 = vpop.f32.mrf.mxu0
  %v522 = vadd.f32 %v93, %v521
  %523 = vmatmul.bf16.gmra.mxu0 %v355
  %v524 = vpop.f32.mrf.mxu0
  %v525 = vadd.f32 %v93, %v524
  %v526 = vpop.f32.mrf.mxu0
  %v527 = vadd.f32 %v93, %v526
  %528 = vmatmul.bf16.gmra.mxu0 %v358
  %v529 = vpop.f32.mrf.mxu0
  %v530 = vadd.f32 %v93, %v529
  %v531 = vpop.f32.mrf.mxu0
  %v532 = vadd.f32 %v93, %v531
  %533 = vmatmul.bf16.gmra.mxu0 %v361
  %v534 = vpop.f32.mrf.mxu0
  %v535 = vadd.f32 %v93, %v534
  %v536 = vpop.f32.mrf.mxu0
  %v537 = vadd.f32 %v93, %v536
  %538 = vdwg.mxu0
  %v539 = vmax.f32 %v380, 0.0
  %v540 = vmax.f32 %v382, 0.0
  %v541 = vmax.f32 %v385, 0.0
  %v542 = vmax.f32 %v387, 0.0
  %v543 = vmax.f32 %v390, 0.0
  %v544 = vmax.f32 %v392, 0.0
  %v545 = vmax.f32 %v395, 0.0
  %v546 = vmax.f32 %v397, 0.0
  %v547 = vmax.f32 %v400, 0.0
  %v548 = vmax.f32 %v402, 0.0
  %v549 = vmax.f32 %v405, 0.0
  %v550 = vmax.f32 %v407, 0.0
  %v551 = vmax.f32 %v410, 0.0
  %v552 = vmax.f32 %v412, 0.0
  %v553 = vmax.f32 %v415, 0.0
  %v554 = vmax.f32 %v417, 0.0
  %v555 = vmax.f32 %v420, 0.0
  %v556 = vmax.f32 %v422, 0.0
  %v557 = vmax.f32 %v425, 0.0
  %v558 = vmax.f32 %v427, 0.0
  %v559 = vmax.f32 %v430, 0.0
  %v560 = vmax.f32 %v432, 0.0
  %v561 = vmax.f32 %v435, 0.0
  %v562 = vmax.f32 %v437, 0.0
  %v563 = vmax.f32 %v440, 0.0
  %v564 = vmax.f32 %v442, 0.0
  %v565 = vmax.f32 %v445, 0.0
  %v566 = vmax.f32 %v447, 0.0
  %v567 = vmax.f32 %v450, 0.0
  %v568 = vmax.f32 %v452, 0.0
  %v569 = vmax.f32 %v455, 0.0
  %v570 = vmax.f32 %v457, 0.0
  %v571 = vmax.f32 %v460, 0.0
  %v572 = vmax.f32 %v462, 0.0
  %v573 = vmax.f32 %v465, 0.0
  %v574 = vmax.f32 %v467, 0.0
  %v575 = vmax.f32 %v470, 0.0
  %v576 = vmax.f32 %v472, 0.0
  %v577 = vmax.f32 %v475, 0.0
  %v578 = vmax.f32 %v477, 0.0
  %v579 = vmax.f32 %v480, 0.0
  %v580 = vmax.f32 %v482, 0.0
  %v581 = vmax.f32 %v485, 0.0
  %v582 = vmax.f32 %v487, 0.0
  %v583 = vmax.f32 %v490, 0.0
  %v584 = vmax.f32 %v492, 0.0
  %v585 = vmax.f32 %v495, 0.0
  %v586 = vmax.f32 %v497, 0.0
  %v587 = vmax.f32 %v500, 0.0
  %v588 = vmax.f32 %v502, 0.0
  %v589 = vmax.f32 %v505, 0.0
  %v590 = vmax.f32 %v507, 0.0
  %v591 = vmax.f32 %v510, 0.0
  %v592 = vmax.f32 %v512, 0.0
  %v593 = vmax.f32 %v515, 0.0
  %v594 = vmax.f32 %v517, 0.0
  %v595 = vmax.f32 %v520, 0.0
  %v596 = vmax.f32 %v522, 0.0
  %v597 = vmax.f32 %v525, 0.0
  %v598 = vmax.f32 %v527, 0.0
  %v599 = vmax.f32 %v530, 0.0
  %v600 = vmax.f32 %v532, 0.0
  %v601 = vmax.f32 %v535, 0.0
  %v602 = vmax.f32 %v537, 0.0
  %v603 = vpack.c.bf16 %v539, %v539
  %v604 = vpack.c.bf16 %v540, %v540
  %v605 = vpack.c.bf16 %v541, %v541
  %v606 = vpack.c.bf16 %v542, %v542
  %v607 = vpack.c.bf16 %v543, %v543
  %v608 = vpack.c.bf16 %v544, %v544
  %v609 = vpack.c.bf16 %v545, %v545
  %v610 = vpack.c.bf16 %v546, %v546
  %v611 = vpack.c.bf16 %v547, %v547
  %v612 = vpack.c.bf16 %v548, %v548
  %v613 = vpack.c.bf16 %v549, %v549
  %v614 = vpack.c.bf16 %v550, %v550
  %v615 = vpack.c.bf16 %v551, %v551
  %v616 = vpack.c.bf16 %v552, %v552
  %v617 = vpack.c.bf16 %v553, %v553
  %v618 = vpack.c.bf16 %v554, %v554
  %v619 = vpack.c.bf16 %v555, %v555
  %v620 = vpack.c.bf16 %v556, %v556
  %v621 = vpack.c.bf16 %v557, %v557
  %v622 = vpack.c.bf16 %v558, %v558
  %v623 = vpack.c.bf16 %v559, %v559
  %v624 = vpack.c.bf16 %v560, %v560
  %v625 = vpack.c.bf16 %v561, %v561
  %v626 = vpack.c.bf16 %v562, %v562
  %v627 = vpack.c.bf16 %v563, %v563
  %v628 = vpack.c.bf16 %v564, %v564
  %v629 = vpack.c.bf16 %v565, %v565
  %v630 = vpack.c.bf16 %v566, %v566
  %v631 = vpack.c.bf16 %v567, %v567
  %v632 = vpack.c.bf16 %v568, %v568
  %v633 = vpack.c.bf16 %v569, %v569
  %v634 = vpack.c.bf16 %v570, %v570
  %v635 = vpack.c.bf16 %v571, %v571
  %v636 = vpack.c.bf16 %v572, %v572
  %v637 = vpack.c.bf16 %v573, %v573
  %v638 = vpack.c.bf16 %v574, %v574
  %v639 = vpack.c.bf16 %v575, %v575
  %v640 = vpack.c.bf16 %v576, %v576
  %v641 = vpack.c.bf16 %v577, %v577
  %v642 = vpack.c.bf16 %v578, %v578
  %v643 = vpack.c.bf16 %v579, %v579
  %v644 = vpack.c.bf16 %v580, %v580
  %v645 = vpack.c.bf16 %v581, %v581
  %v646 = vpack.c.bf16 %v582, %v582
  %v647 = vpack.c.bf16 %v583, %v583
  %v648 = vpack.c.bf16 %v584, %v584
  %v649 = vpack.c.bf16 %v585, %v585
  %v650 = vpack.c.bf16 %v586, %v586
  %v651 = vpack.c.bf16 %v587, %v587
  %v652 = vpack.c.bf16 %v588, %v588
  %v653 = vpack.c.bf16 %v589, %v589
  %v654 = vpack.c.bf16 %v590, %v590
  %v655 = vpack.c.bf16 %v591, %v591
  %v656 = vpack.c.bf16 %v592, %v592
  %v657 = vpack.c.bf16 %v593, %v593
  %v658 = vpack.c.bf16 %v594, %v594
  %v659 = vpack.c.bf16 %v595, %v595
  %v660 = vpack.c.bf16 %v596, %v596
  %v661 = vpack.c.bf16 %v597, %v597
  %v662 = vpack.c.bf16 %v598, %v598
  %v663 = vpack.c.bf16 %v599, %v599
  %v664 = vpack.c.bf16 %v600, %v600
  %v665 = vpack.c.bf16 %v601, %v601
  %v666 = vpack.c.bf16 %v602, %v602
  %v667 = vld [vmem:[%s3] sm:$0xf]
  %v668 = vld [vmem:[%s4] sm:$0x1]
  %v670 = vperm.slane %v668, 0
  %v736 = vunpack.c.l.b16 %v603
  %v737 = vunpack.c.l.b16 %v604
  %v738 = vunpack.c.l.b16 %v605
  %v739 = vunpack.c.l.b16 %v606
  %v740 = vunpack.c.l.b16 %v607
  %v741 = vunpack.c.l.b16 %v608
  %v742 = vunpack.c.l.b16 %v609
  %v743 = vunpack.c.l.b16 %v610
  %v744 = vunpack.c.l.b16 %v611
  %v745 = vunpack.c.l.b16 %v612
  %v746 = vunpack.c.l.b16 %v613
  %v747 = vunpack.c.l.b16 %v614
  %v748 = vunpack.c.l.b16 %v615
  %v749 = vunpack.c.l.b16 %v616
  %v750 = vunpack.c.l.b16 %v617
  %v751 = vunpack.c.l.b16 %v618
  %v752 = vunpack.c.l.b16 %v619
  %v753 = vunpack.c.l.b16 %v620
  %v754 = vunpack.c.l.b16 %v621
  %v755 = vunpack.c.l.b16 %v622
  %v756 = vunpack.c.l.b16 %v623
  %v757 = vunpack.c.l.b16 %v624
  %v758 = vunpack.c.l.b16 %v625
  %v759 = vunpack.c.l.b16 %v626
  %v760 = vunpack.c.l.b16 %v627
  %v761 = vunpack.c.l.b16 %v628
  %v762 = vunpack.c.l.b16 %v629
  %v763 = vunpack.c.l.b16 %v630
  %v764 = vunpack.c.l.b16 %v631
  %v765 = vunpack.c.l.b16 %v632
  %v766 = vunpack.c.l.b16 %v633
  %v767 = vunpack.c.l.b16 %v634
  %v768 = vunpack.c.l.b16 %v635
  %v769 = vunpack.c.l.b16 %v636
  %v770 = vunpack.c.l.b16 %v637
  %v771 = vunpack.c.l.b16 %v638
  %v772 = vunpack.c.l.b16 %v639
  %v773 = vunpack.c.l.b16 %v640
  %v774 = vunpack.c.l.b16 %v641
  %v775 = vunpack.c.l.b16 %v642
  %v776 = vunpack.c.l.b16 %v643
  %v777 = vunpack.c.l.b16 %v644
  %v778 = vunpack.c.l.b16 %v645
  %v779 = vunpack.c.l.b16 %v646
  %v780 = vunpack.c.l.b16 %v647
  %v781 = vunpack.c.l.b16 %v648
  %v782 = vunpack.c.l.b16 %v649
  %v783 = vunpack.c.l.b16 %v650
  %v784 = vunpack.c.l.b16 %v651
  %v785 = vunpack.c.l.b16 %v652
  %v786 = vunpack.c.l.b16 %v653
  %v787 = vunpack.c.l.b16 %v654
  %v788 = vunpack.c.l.b16 %v655
  %v789 = vunpack.c.l.b16 %v656
  %v790 = vunpack.c.l.b16 %v657
  %v791 = vunpack.c.l.b16 %v658
  %v792 = vunpack.c.l.b16 %v659
  %v793 = vunpack.c.l.b16 %v660
  %v794 = vunpack.c.l.b16 %v661
  %v795 = vunpack.c.l.b16 %v662
  %v796 = vunpack.c.l.b16 %v663
  %v797 = vunpack.c.l.b16 %v664
  %v798 = vunpack.c.l.b16 %v665
  %v799 = vunpack.c.l.b16 %v666
  %v800 = vpack.c.b16 %v737, %v736
  %v801 = vpack.c.b16 %v739, %v738
  %v802 = vpack.c.b16 %v741, %v740
  %v803 = vpack.c.b16 %v743, %v742
  %v804 = vpack.c.b16 %v745, %v744
  %v805 = vpack.c.b16 %v747, %v746
  %v806 = vpack.c.b16 %v749, %v748
  %v807 = vpack.c.b16 %v751, %v750
  %v808 = vpack.c.b16 %v753, %v752
  %v809 = vpack.c.b16 %v755, %v754
  %v810 = vpack.c.b16 %v757, %v756
  %v811 = vpack.c.b16 %v759, %v758
  %v812 = vpack.c.b16 %v761, %v760
  %v813 = vpack.c.b16 %v763, %v762
  %v814 = vpack.c.b16 %v765, %v764
  %v815 = vpack.c.b16 %v767, %v766
  %v816 = vpack.c.b16 %v769, %v768
  %v817 = vpack.c.b16 %v771, %v770
  %v818 = vpack.c.b16 %v773, %v772
  %v819 = vpack.c.b16 %v775, %v774
  %v820 = vpack.c.b16 %v777, %v776
  %v821 = vpack.c.b16 %v779, %v778
  %v822 = vpack.c.b16 %v781, %v780
  %v823 = vpack.c.b16 %v783, %v782
  %v824 = vpack.c.b16 %v785, %v784
  %v825 = vpack.c.b16 %v787, %v786
  %v826 = vpack.c.b16 %v789, %v788
  %v827 = vpack.c.b16 %v791, %v790
  %v828 = vpack.c.b16 %v793, %v792
  %v829 = vpack.c.b16 %v795, %v794
  %v830 = vpack.c.b16 %v797, %v796
  %v831 = vpack.c.b16 %v799, %v798
  %vm832 = vcmask 64512
  %v834 = vsel %vm832, %v800, 0
  %v837 = vsel %vm832, %v801, 0
  %v840 = vsel %vm832, %v802, 0
  %v843 = vsel %vm832, %v803, 0
  %v846 = vsel %vm832, %v804, 0
  %v849 = vsel %vm832, %v805, 0
  %v852 = vsel %vm832, %v806, 0
  %v855 = vsel %vm832, %v807, 0
  %v858 = vsel %vm832, %v808, 0
  %v861 = vsel %vm832, %v809, 0
  %v864 = vsel %vm832, %v810, 0
  %v867 = vsel %vm832, %v811, 0
  %v870 = vsel %vm832, %v812, 0
  %v873 = vsel %vm832, %v813, 0
  %v876 = vsel %vm832, %v814, 0
  %v879 = vsel %vm832, %v815, 0
  %v882 = vsel %vm832, %v816, 0
  %v885 = vsel %vm832, %v817, 0
  %v888 = vsel %vm832, %v818, 0
  %v891 = vsel %vm832, %v819, 0
  %v894 = vsel %vm832, %v820, 0
  %v897 = vsel %vm832, %v821, 0
  %v900 = vsel %vm832, %v822, 0
  %v903 = vsel %vm832, %v823, 0
  %v906 = vsel %vm832, %v824, 0
  %v909 = vsel %vm832, %v825, 0
  %v912 = vsel %vm832, %v826, 0
  %v915 = vsel %vm832, %v827, 0
  %v918 = vsel %vm832, %v828, 0
  %v921 = vsel %vm832, %v829, 0
  %v924 = vsel %vm832, %v830, 0
  %v927 = vsel %vm832, %v831, 0
  %vm929 = vcmask 1043456
  %v931 = vsel %vm929, %v667, 0
  %933 = vmatpush.bf16.msra.mxu0 0
  %934 = vmatpush.bf16.msra.mxu0 0
  %935 = vmatpush.bf16.msra.mxu0 0
  %936 = vmatpush.bf16.msra.mxu0 0
  %937 = vmatpush.bf16.msra.mxu0 0
  %938 = vmatpush.bf16.msra.mxu0 0
  %939 = vmatpush.bf16.msra.mxu0 0
  %940 = vmatpush.bf16.msra.mxu0 %v931
  %941 = vmatmul.bf16.gmra.mxu0 %v834
  %v942 = vpop.f32.mrf.mxu0
  %v943 = vadd.f32 %v670, %v942
  %v944 = vpop.f32.mrf.mxu0
  %v945 = vadd.f32 %v670, %v944
  %946 = vmatmul.bf16.gmra.mxu0 %v837
  %v947 = vpop.f32.mrf.mxu0
  %v948 = vadd.f32 %v670, %v947
  %v949 = vpop.f32.mrf.mxu0
  %v950 = vadd.f32 %v670, %v949
  %951 = vmatmul.bf16.gmra.mxu0 %v840
  %v952 = vpop.f32.mrf.mxu0
  %v953 = vadd.f32 %v670, %v952
  %v954 = vpop.f32.mrf.mxu0
  %v955 = vadd.f32 %v670, %v954
  %956 = vmatmul.bf16.gmra.mxu0 %v843
  %v957 = vpop.f32.mrf.mxu0
  %v958 = vadd.f32 %v670, %v957
  %v959 = vpop.f32.mrf.mxu0
  %v960 = vadd.f32 %v670, %v959
  %961 = vmatmul.bf16.gmra.mxu0 %v846
  %v962 = vpop.f32.mrf.mxu0
  %v963 = vadd.f32 %v670, %v962
  %v964 = vpop.f32.mrf.mxu0
  %v965 = vadd.f32 %v670, %v964
  %966 = vmatmul.bf16.gmra.mxu0 %v849
  %v967 = vpop.f32.mrf.mxu0
  %v968 = vadd.f32 %v670, %v967
  %v969 = vpop.f32.mrf.mxu0
  %v970 = vadd.f32 %v670, %v969
  %971 = vmatmul.bf16.gmra.mxu0 %v852
  %v972 = vpop.f32.mrf.mxu0
  %v973 = vadd.f32 %v670, %v972
  %v974 = vpop.f32.mrf.mxu0
  %v975 = vadd.f32 %v670, %v974
  %976 = vmatmul.bf16.gmra.mxu0 %v855
  %v977 = vpop.f32.mrf.mxu0
  %v978 = vadd.f32 %v670, %v977
  %v979 = vpop.f32.mrf.mxu0
  %v980 = vadd.f32 %v670, %v979
  %981 = vmatmul.bf16.gmra.mxu0 %v858
  %v982 = vpop.f32.mrf.mxu0
  %v983 = vadd.f32 %v670, %v982
  %v984 = vpop.f32.mrf.mxu0
  %v985 = vadd.f32 %v670, %v984
  %986 = vmatmul.bf16.gmra.mxu0 %v861
  %v987 = vpop.f32.mrf.mxu0
  %v988 = vadd.f32 %v670, %v987
  %v989 = vpop.f32.mrf.mxu0
  %v990 = vadd.f32 %v670, %v989
  %991 = vmatmul.bf16.gmra.mxu0 %v864
  %v992 = vpop.f32.mrf.mxu0
  %v993 = vadd.f32 %v670, %v992
  %v994 = vpop.f32.mrf.mxu0
  %v995 = vadd.f32 %v670, %v994
  %996 = vmatmul.bf16.gmra.mxu0 %v867
  %v997 = vpop.f32.mrf.mxu0
  %v998 = vadd.f32 %v670, %v997
  %v999 = vpop.f32.mrf.mxu0
  %v1000 = vadd.f32 %v670, %v999
  %1001 = vmatmul.bf16.gmra.mxu0 %v870
  %v1002 = vpop.f32.mrf.mxu0
  %v1003 = vadd.f32 %v670, %v1002
  %v1004 = vpop.f32.mrf.mxu0
  %v1005 = vadd.f32 %v670, %v1004
  %1006 = vmatmul.bf16.gmra.mxu0 %v873
  %v1007 = vpop.f32.mrf.mxu0
  %v1008 = vadd.f32 %v670, %v1007
  %v1009 = vpop.f32.mrf.mxu0
  %v1010 = vadd.f32 %v670, %v1009
  %1011 = vmatmul.bf16.gmra.mxu0 %v876
  %v1012 = vpop.f32.mrf.mxu0
  %v1013 = vadd.f32 %v670, %v1012
  %v1014 = vpop.f32.mrf.mxu0
  %v1015 = vadd.f32 %v670, %v1014
  %1016 = vmatmul.bf16.gmra.mxu0 %v879
  %v1017 = vpop.f32.mrf.mxu0
  %v1018 = vadd.f32 %v670, %v1017
  %v1019 = vpop.f32.mrf.mxu0
  %v1020 = vadd.f32 %v670, %v1019
  %1021 = vmatmul.bf16.gmra.mxu0 %v882
  %v1022 = vpop.f32.mrf.mxu0
  %v1023 = vadd.f32 %v670, %v1022
  %v1024 = vpop.f32.mrf.mxu0
  %v1025 = vadd.f32 %v670, %v1024
  %1026 = vmatmul.bf16.gmra.mxu0 %v885
  %v1027 = vpop.f32.mrf.mxu0
  %v1028 = vadd.f32 %v670, %v1027
  %v1029 = vpop.f32.mrf.mxu0
  %v1030 = vadd.f32 %v670, %v1029
  %1031 = vmatmul.bf16.gmra.mxu0 %v888
  %v1032 = vpop.f32.mrf.mxu0
  %v1033 = vadd.f32 %v670, %v1032
  %v1034 = vpop.f32.mrf.mxu0
  %v1035 = vadd.f32 %v670, %v1034
  %1036 = vmatmul.bf16.gmra.mxu0 %v891
  %v1037 = vpop.f32.mrf.mxu0
  %v1038 = vadd.f32 %v670, %v1037
  %v1039 = vpop.f32.mrf.mxu0
  %v1040 = vadd.f32 %v670, %v1039
  %1041 = vmatmul.bf16.gmra.mxu0 %v894
  %v1042 = vpop.f32.mrf.mxu0
  %v1043 = vadd.f32 %v670, %v1042
  %v1044 = vpop.f32.mrf.mxu0
  %v1045 = vadd.f32 %v670, %v1044
  %1046 = vmatmul.bf16.gmra.mxu0 %v897
  %v1047 = vpop.f32.mrf.mxu0
  %v1048 = vadd.f32 %v670, %v1047
  %v1049 = vpop.f32.mrf.mxu0
  %v1050 = vadd.f32 %v670, %v1049
  %1051 = vmatmul.bf16.gmra.mxu0 %v900
  %v1052 = vpop.f32.mrf.mxu0
  %v1053 = vadd.f32 %v670, %v1052
  %v1054 = vpop.f32.mrf.mxu0
  %v1055 = vadd.f32 %v670, %v1054
  %1056 = vmatmul.bf16.gmra.mxu0 %v903
  %v1057 = vpop.f32.mrf.mxu0
  %v1058 = vadd.f32 %v670, %v1057
  %v1059 = vpop.f32.mrf.mxu0
  %v1060 = vadd.f32 %v670, %v1059
  %1061 = vmatmul.bf16.gmra.mxu0 %v906
  %v1062 = vpop.f32.mrf.mxu0
  %v1063 = vadd.f32 %v670, %v1062
  %v1064 = vpop.f32.mrf.mxu0
  %v1065 = vadd.f32 %v670, %v1064
  %1066 = vmatmul.bf16.gmra.mxu0 %v909
  %v1067 = vpop.f32.mrf.mxu0
  %v1068 = vadd.f32 %v670, %v1067
  %v1069 = vpop.f32.mrf.mxu0
  %v1070 = vadd.f32 %v670, %v1069
  %1071 = vmatmul.bf16.gmra.mxu0 %v912
  %v1072 = vpop.f32.mrf.mxu0
  %v1073 = vadd.f32 %v670, %v1072
  %v1074 = vpop.f32.mrf.mxu0
  %v1075 = vadd.f32 %v670, %v1074
  %1076 = vmatmul.bf16.gmra.mxu0 %v915
  %v1077 = vpop.f32.mrf.mxu0
  %v1078 = vadd.f32 %v670, %v1077
  %v1079 = vpop.f32.mrf.mxu0
  %v1080 = vadd.f32 %v670, %v1079
  %1081 = vmatmul.bf16.gmra.mxu0 %v918
  %v1082 = vpop.f32.mrf.mxu0
  %v1083 = vadd.f32 %v670, %v1082
  %v1084 = vpop.f32.mrf.mxu0
  %v1085 = vadd.f32 %v670, %v1084
  %1086 = vmatmul.bf16.gmra.mxu0 %v921
  %v1087 = vpop.f32.mrf.mxu0
  %v1088 = vadd.f32 %v670, %v1087
  %v1089 = vpop.f32.mrf.mxu0
  %v1090 = vadd.f32 %v670, %v1089
  %1091 = vmatmul.bf16.gmra.mxu0 %v924
  %v1092 = vpop.f32.mrf.mxu0
  %v1093 = vadd.f32 %v670, %v1092
  %v1094 = vpop.f32.mrf.mxu0
  %v1095 = vadd.f32 %v670, %v1094
  %1096 = vmatmul.bf16.gmra.mxu0 %v927
  %v1097 = vpop.f32.mrf.mxu0
  %v1098 = vadd.f32 %v670, %v1097
  %v1099 = vpop.f32.mrf.mxu0
  %v1100 = vadd.f32 %v670, %v1099
  %1101 = vdwg.mxu0
  %vm1102 = vcmask 60416
  %1103 = vst.msk [vmem:[%s5] sm:$0xf] %vm1102, %v603
  %1104 = vst.msk [vmem:[%s5 + $0x4] sm:$0xf] %vm1102, %v604
  %1105 = vst.msk [vmem:[%s5 + $0x8] sm:$0xf] %vm1102, %v605
  %1106 = vst.msk [vmem:[%s5 + $0xc] sm:$0xf] %vm1102, %v606
  %1107 = vst.msk [vmem:[%s5 + $0x10] sm:$0xf] %vm1102, %v607
  %1108 = vst.msk [vmem:[%s5 + $0x14] sm:$0xf] %vm1102, %v608
  %1109 = vst.msk [vmem:[%s5 + $0x18] sm:$0xf] %vm1102, %v609
  %1110 = vst.msk [vmem:[%s5 + $0x1c] sm:$0xf] %vm1102, %v610
  %1111 = vst.msk [vmem:[%s5 + $0x20] sm:$0xf] %vm1102, %v611
  %1112 = vst.msk [vmem:[%s5 + $0x24] sm:$0xf] %vm1102, %v612
  %1113 = vst.msk [vmem:[%s5 + $0x28] sm:$0xf] %vm1102, %v613
  %1114 = vst.msk [vmem:[%s5 + $0x2c] sm:$0xf] %vm1102, %v614
  %1115 = vst.msk [vmem:[%s5 + $0x30] sm:$0xf] %vm1102, %v615
  %1116 = vst.msk [vmem:[%s5 + $0x34] sm:$0xf] %vm1102, %v616
  %1117 = vst.msk [vmem:[%s5 + $0x38] sm:$0xf] %vm1102, %v617
  %1118 = vst.msk [vmem:[%s5 + $0x3c] sm:$0xf] %vm1102, %v618
  %1119 = vst.msk [vmem:[%s5 + $0x40] sm:$0xf] %vm1102, %v619
  %1120 = vst.msk [vmem:[%s5 + $0x44] sm:$0xf] %vm1102, %v620
  %1121 = vst.msk [vmem:[%s5 + $0x48] sm:$0xf] %vm1102, %v621
  %1122 = vst.msk [vmem:[%s5 + $0x4c] sm:$0xf] %vm1102, %v622
  %1123 = vst.msk [vmem:[%s5 + $0x50] sm:$0xf] %vm1102, %v623
  %1124 = vst.msk [vmem:[%s5 + $0x54] sm:$0xf] %vm1102, %v624
  %1125 = vst.msk [vmem:[%s5 + $0x58] sm:$0xf] %vm1102, %v625
  %1126 = vst.msk [vmem:[%s5 + $0x5c] sm:$0xf] %vm1102, %v626
  %1127 = vst.msk [vmem:[%s5 + $0x60] sm:$0xf] %vm1102, %v627
  %1128 = vst.msk [vmem:[%s5 + $0x64] sm:$0xf] %vm1102, %v628
  %1129 = vst.msk [vmem:[%s5 + $0x68] sm:$0xf] %vm1102, %v629
  %1130 = vst.msk [vmem:[%s5 + $0x6c] sm:$0xf] %vm1102, %v630
  %1131 = vst.msk [vmem:[%s5 + $0x70] sm:$0xf] %vm1102, %v631
  %1132 = vst.msk [vmem:[%s5 + $0x74] sm:$0xf] %vm1102, %v632
  %1133 = vst.msk [vmem:[%s5 + $0x78] sm:$0xf] %vm1102, %v633
  %1134 = vst.msk [vmem:[%s5 + $0x7c] sm:$0xf] %vm1102, %v634
  %1135 = vst.msk [vmem:[%s5 + $0x80] sm:$0xf] %vm1102, %v635
  %1136 = vst.msk [vmem:[%s5 + $0x84] sm:$0xf] %vm1102, %v636
  %1137 = vst.msk [vmem:[%s5 + $0x88] sm:$0xf] %vm1102, %v637
  %1138 = vst.msk [vmem:[%s5 + $0x8c] sm:$0xf] %vm1102, %v638
  %1139 = vst.msk [vmem:[%s5 + $0x90] sm:$0xf] %vm1102, %v639
  %1140 = vst.msk [vmem:[%s5 + $0x94] sm:$0xf] %vm1102, %v640
  %1141 = vst.msk [vmem:[%s5 + $0x98] sm:$0xf] %vm1102, %v641
  %1142 = vst.msk [vmem:[%s5 + $0x9c] sm:$0xf] %vm1102, %v642
  %1143 = vst.msk [vmem:[%s5 + $0xa0] sm:$0xf] %vm1102, %v643
  %1144 = vst.msk [vmem:[%s5 + $0xa4] sm:$0xf] %vm1102, %v644
  %1145 = vst.msk [vmem:[%s5 + $0xa8] sm:$0xf] %vm1102, %v645
  %1146 = vst.msk [vmem:[%s5 + $0xac] sm:$0xf] %vm1102, %v646
  %1147 = vst.msk [vmem:[%s5 + $0xb0] sm:$0xf] %vm1102, %v647
  %1148 = vst.msk [vmem:[%s5 + $0xb4] sm:$0xf] %vm1102, %v648
  %1149 = vst.msk [vmem:[%s5 + $0xb8] sm:$0xf] %vm1102, %v649
  %1150 = vst.msk [vmem:[%s5 + $0xbc] sm:$0xf] %vm1102, %v650
  %1151 = vst.msk [vmem:[%s5 + $0xc0] sm:$0xf] %vm1102, %v651
  %1152 = vst.msk [vmem:[%s5 + $0xc4] sm:$0xf] %vm1102, %v652
  %1153 = vst.msk [vmem:[%s5 + $0xc8] sm:$0xf] %vm1102, %v653
  %1154 = vst.msk [vmem:[%s5 + $0xcc] sm:$0xf] %vm1102, %v654
  %1155 = vst.msk [vmem:[%s5 + $0xd0] sm:$0xf] %vm1102, %v655
  %1156 = vst.msk [vmem:[%s5 + $0xd4] sm:$0xf] %vm1102, %v656
  %1157 = vst.msk [vmem:[%s5 + $0xd8] sm:$0xf] %vm1102, %v657
  %1158 = vst.msk [vmem:[%s5 + $0xdc] sm:$0xf] %vm1102, %v658
  %1159 = vst.msk [vmem:[%s5 + $0xe0] sm:$0xf] %vm1102, %v659
  %1160 = vst.msk [vmem:[%s5 + $0xe4] sm:$0xf] %vm1102, %v660
  %1161 = vst.msk [vmem:[%s5 + $0xe8] sm:$0xf] %vm1102, %v661
  %1162 = vst.msk [vmem:[%s5 + $0xec] sm:$0xf] %vm1102, %v662
  %1163 = vst.msk [vmem:[%s5 + $0xf0] sm:$0xf] %vm1102, %v663
  %1164 = vst.msk [vmem:[%s5 + $0xf4] sm:$0xf] %vm1102, %v664
  %1165 = vst.msk [vmem:[%s5 + $0xf8] sm:$0xf] %vm1102, %v665
  %1166 = vst.msk [vmem:[%s5 + $0xfc] sm:$0xf] %vm1102, %v666
  %v1167 = vpack.c.bf16 %v943, %v943
  %v1168 = vpack.c.bf16 %v945, %v945
  %v1169 = vpack.c.bf16 %v948, %v948
  %v1170 = vpack.c.bf16 %v950, %v950
  %v1171 = vpack.c.bf16 %v953, %v953
  %v1172 = vpack.c.bf16 %v955, %v955
  %v1173 = vpack.c.bf16 %v958, %v958
  %v1174 = vpack.c.bf16 %v960, %v960
  %v1175 = vpack.c.bf16 %v963, %v963
  %v1176 = vpack.c.bf16 %v965, %v965
  %v1177 = vpack.c.bf16 %v968, %v968
  %v1178 = vpack.c.bf16 %v970, %v970
  %v1179 = vpack.c.bf16 %v973, %v973
  %v1180 = vpack.c.bf16 %v975, %v975
  %v1181 = vpack.c.bf16 %v978, %v978
  %v1182 = vpack.c.bf16 %v980, %v980
  %v1183 = vpack.c.bf16 %v983, %v983
  %v1184 = vpack.c.bf16 %v985, %v985
  %v1185 = vpack.c.bf16 %v988, %v988
  %v1186 = vpack.c.bf16 %v990, %v990
  %v1187 = vpack.c.bf16 %v993, %v993
  %v1188 = vpack.c.bf16 %v995, %v995
  %v1189 = vpack.c.bf16 %v998, %v998
  %v1190 = vpack.c.bf16 %v1000, %v1000
  %v1191 = vpack.c.bf16 %v1003, %v1003
  %v1192 = vpack.c.bf16 %v1005, %v1005
  %v1193 = vpack.c.bf16 %v1008, %v1008
  %v1194 = vpack.c.bf16 %v1010, %v1010
  %v1195 = vpack.c.bf16 %v1013, %v1013
  %v1196 = vpack.c.bf16 %v1015, %v1015
  %v1197 = vpack.c.bf16 %v1018, %v1018
  %v1198 = vpack.c.bf16 %v1020, %v1020
  %v1199 = vpack.c.bf16 %v1023, %v1023
  %v1200 = vpack.c.bf16 %v1025, %v1025
  %v1201 = vpack.c.bf16 %v1028, %v1028
  %v1202 = vpack.c.bf16 %v1030, %v1030
  %v1203 = vpack.c.bf16 %v1033, %v1033
  %v1204 = vpack.c.bf16 %v1035, %v1035
  %v1205 = vpack.c.bf16 %v1038, %v1038
  %v1206 = vpack.c.bf16 %v1040, %v1040
  %v1207 = vpack.c.bf16 %v1043, %v1043
  %v1208 = vpack.c.bf16 %v1045, %v1045
  %v1209 = vpack.c.bf16 %v1048, %v1048
  %v1210 = vpack.c.bf16 %v1050, %v1050
  %v1211 = vpack.c.bf16 %v1053, %v1053
  %v1212 = vpack.c.bf16 %v1055, %v1055
  %v1213 = vpack.c.bf16 %v1058, %v1058
  %v1214 = vpack.c.bf16 %v1060, %v1060
  %v1215 = vpack.c.bf16 %v1063, %v1063
  %v1216 = vpack.c.bf16 %v1065, %v1065
  %v1217 = vpack.c.bf16 %v1068, %v1068
  %v1218 = vpack.c.bf16 %v1070, %v1070
  %v1219 = vpack.c.bf16 %v1073, %v1073
  %v1220 = vpack.c.bf16 %v1075, %v1075
  %v1221 = vpack.c.bf16 %v1078, %v1078
  %v1222 = vpack.c.bf16 %v1080, %v1080
  %v1223 = vpack.c.bf16 %v1083, %v1083
  %v1224 = vpack.c.bf16 %v1085, %v1085
  %v1225 = vpack.c.bf16 %v1088, %v1088
  %v1226 = vpack.c.bf16 %v1090, %v1090
  %v1227 = vpack.c.bf16 %v1093, %v1093
  %v1228 = vpack.c.bf16 %v1095, %v1095
  %v1229 = vpack.c.bf16 %v1098, %v1098
  %v1230 = vpack.c.bf16 %v1100, %v1100
  %vm1231 = vcmask 125952
  %1232 = vst.msk [vmem:[%s6] sm:$0xf] %vm1231, %v1167
  %1233 = vst.msk [vmem:[%s6 + $0x4] sm:$0xf] %vm1231, %v1168
  %1234 = vst.msk [vmem:[%s6 + $0x8] sm:$0xf] %vm1231, %v1169
  %1235 = vst.msk [vmem:[%s6 + $0xc] sm:$0xf] %vm1231, %v1170
  %1236 = vst.msk [vmem:[%s6 + $0x10] sm:$0xf] %vm1231, %v1171
  %1237 = vst.msk [vmem:[%s6 + $0x14] sm:$0xf] %vm1231, %v1172
  %1238 = vst.msk [vmem:[%s6 + $0x18] sm:$0xf] %vm1231, %v1173
  %1239 = vst.msk [vmem:[%s6 + $0x1c] sm:$0xf] %vm1231, %v1174
  %1240 = vst.msk [vmem:[%s6 + $0x20] sm:$0xf] %vm1231, %v1175
  %1241 = vst.msk [vmem:[%s6 + $0x24] sm:$0xf] %vm1231, %v1176
  %1242 = vst.msk [vmem:[%s6 + $0x28] sm:$0xf] %vm1231, %v1177
  %1243 = vst.msk [vmem:[%s6 + $0x2c] sm:$0xf] %vm1231, %v1178
  %1244 = vst.msk [vmem:[%s6 + $0x30] sm:$0xf] %vm1231, %v1179
  %1245 = vst.msk [vmem:[%s6 + $0x34] sm:$0xf] %vm1231, %v1180
  %1246 = vst.msk [vmem:[%s6 + $0x38] sm:$0xf] %vm1231, %v1181
  %1247 = vst.msk [vmem:[%s6 + $0x3c] sm:$0xf] %vm1231, %v1182
  %1248 = vst.msk [vmem:[%s6 + $0x40] sm:$0xf] %vm1231, %v1183
  %1249 = vst.msk [vmem:[%s6 + $0x44] sm:$0xf] %vm1231, %v1184
  %1250 = vst.msk [vmem:[%s6 + $0x48] sm:$0xf] %vm1231, %v1185
  %1251 = vst.msk [vmem:[%s6 + $0x4c] sm:$0xf] %vm1231, %v1186
  %1252 = vst.msk [vmem:[%s6 + $0x50] sm:$0xf] %vm1231, %v1187
  %1253 = vst.msk [vmem:[%s6 + $0x54] sm:$0xf] %vm1231, %v1188
  %1254 = vst.msk [vmem:[%s6 + $0x58] sm:$0xf] %vm1231, %v1189
  %1255 = vst.msk [vmem:[%s6 + $0x5c] sm:$0xf] %vm1231, %v1190
  %1256 = vst.msk [vmem:[%s6 + $0x60] sm:$0xf] %vm1231, %v1191
  %1257 = vst.msk [vmem:[%s6 + $0x64] sm:$0xf] %vm1231, %v1192
  %1258 = vst.msk [vmem:[%s6 + $0x68] sm:$0xf] %vm1231, %v1193
  %1259 = vst.msk [vmem:[%s6 + $0x6c] sm:$0xf] %vm1231, %v1194
  %1260 = vst.msk [vmem:[%s6 + $0x70] sm:$0xf] %vm1231, %v1195
  %1261 = vst.msk [vmem:[%s6 + $0x74] sm:$0xf] %vm1231, %v1196
  %1262 = vst.msk [vmem:[%s6 + $0x78] sm:$0xf] %vm1231, %v1197
  %1263 = vst.msk [vmem:[%s6 + $0x7c] sm:$0xf] %vm1231, %v1198
  %1264 = vst.msk [vmem:[%s6 + $0x80] sm:$0xf] %vm1231, %v1199
  %1265 = vst.msk [vmem:[%s6 + $0x84] sm:$0xf] %vm1231, %v1200
  %1266 = vst.msk [vmem:[%s6 + $0x88] sm:$0xf] %vm1231, %v1201
  %1267 = vst.msk [vmem:[%s6 + $0x8c] sm:$0xf] %vm1231, %v1202
  %1268 = vst.msk [vmem:[%s6 + $0x90] sm:$0xf] %vm1231, %v1203
  %1269 = vst.msk [vmem:[%s6 + $0x94] sm:$0xf] %vm1231, %v1204
  %1270 = vst.msk [vmem:[%s6 + $0x98] sm:$0xf] %vm1231, %v1205
  %1271 = vst.msk [vmem:[%s6 + $0x9c] sm:$0xf] %vm1231, %v1206
  %1272 = vst.msk [vmem:[%s6 + $0xa0] sm:$0xf] %vm1231, %v1207
  %1273 = vst.msk [vmem:[%s6 + $0xa4] sm:$0xf] %vm1231, %v1208
  %1274 = vst.msk [vmem:[%s6 + $0xa8] sm:$0xf] %vm1231, %v1209
  %1275 = vst.msk [vmem:[%s6 + $0xac] sm:$0xf] %vm1231, %v1210
  %1276 = vst.msk [vmem:[%s6 + $0xb0] sm:$0xf] %vm1231, %v1211
  %1277 = vst.msk [vmem:[%s6 + $0xb4] sm:$0xf] %vm1231, %v1212
  %1278 = vst.msk [vmem:[%s6 + $0xb8] sm:$0xf] %vm1231, %v1213
  %1279 = vst.msk [vmem:[%s6 + $0xbc] sm:$0xf] %vm1231, %v1214
  %1280 = vst.msk [vmem:[%s6 + $0xc0] sm:$0xf] %vm1231, %v1215
  %1281 = vst.msk [vmem:[%s6 + $0xc4] sm:$0xf] %vm1231, %v1216
  %1282 = vst.msk [vmem:[%s6 + $0xc8] sm:$0xf] %vm1231, %v1217
  %1283 = vst.msk [vmem:[%s6 + $0xcc] sm:$0xf] %vm1231, %v1218
  %1284 = vst.msk [vmem:[%s6 + $0xd0] sm:$0xf] %vm1231, %v1219
  %1285 = vst.msk [vmem:[%s6 + $0xd4] sm:$0xf] %vm1231, %v1220
  %1286 = vst.msk [vmem:[%s6 + $0xd8] sm:$0xf] %vm1231, %v1221
  %1287 = vst.msk [vmem:[%s6 + $0xdc] sm:$0xf] %vm1231, %v1222
  %1288 = vst.msk [vmem:[%s6 + $0xe0] sm:$0xf] %vm1231, %v1223
  %1289 = vst.msk [vmem:[%s6 + $0xe4] sm:$0xf] %vm1231, %v1224
  %1290 = vst.msk [vmem:[%s6 + $0xe8] sm:$0xf] %vm1231, %v1225
  %1291 = vst.msk [vmem:[%s6 + $0xec] sm:$0xf] %vm1231, %v1226
  %1292 = vst.msk [vmem:[%s6 + $0xf0] sm:$0xf] %vm1231, %v1227
  %1293 = vst.msk [vmem:[%s6 + $0xf4] sm:$0xf] %vm1231, %v1228
  %1294 = vst.msk [vmem:[%s6 + $0xf8] sm:$0xf] %vm1231, %v1229
  %1295 = vst.msk [vmem:[%s6 + $0xfc] sm:$0xf] %vm1231, %v1230
  // Predicated region
  $region22: #{dbcism_forward.10} parent=0 // pred_check
    _
  $region23: #{dbcism_forward.10} parent=0 // pred_check_branch
    %1297 = sbr.rel (0) target = $region25
  $region24: #{dbcism_forward.10} parent=0 // pred_region
    _
  $region25: #{dbcism_forward.10} parent=0 // pred_fallthru
    _
  // Predicated region
  $region26: #{dbcism_forward.10} parent=0 // pred_check
    _
  $region27: #{dbcism_forward.10} parent=0 // pred_check_branch
    %1299 = sbr.rel (0) target = $region29
  $region28: #{dbcism_forward.10} parent=0 // pred_region
    _
  $region29: #{dbcism_forward.10} parent=0 // pred_fallthru
    _
  // Predicated region
  $region30: #{dbcism_forward.10} parent=0 // pred_check
    _
  $region31: #{dbcism_forward.10} parent=0 // pred_check_branch
    %1301 = sbr.rel (0) target = $region33
  $region32: #{dbcism_forward.10} parent=0 // pred_region
    _
  $region33: #{dbcism_forward.10} parent=0 // pred_fallthru
    _
  // Predicated region
  $region34: #{dbcism_forward.10} parent=0 // pred_check
    _
  $region35: #{dbcism_forward.10} parent=0 // pred_check_branch
    %1303 = sbr.rel (0) target = $region37
  $region36: #{dbcism_forward.10} parent=0 // pred_region
    _
  $region37: #{dbcism_forward.10} parent=0 // pred_fallthru
    _

// kernel: dbcism_forward.12
$region0: #{dbcism_forward.12}
  #allocation0 [shape = 'u32[]', space=smem, size = 0x4, offset = 0x4, fixed_abs, tag = 'smem constant byte address 0x4 - core index']
  #allocation1 [shape = 'u32[72,128]{1,0:T(1,128)}', space=vmem, size = 0x9000, scoped, tag = 'internal scratch']
  %s0 = inlined_call_operand.vmem [shape: bf16[32,144], index: 0, kind: input, shape index: {}]
  %s1 = inlined_call_operand.vmem [shape: bf16[144,32], index: 1, kind: input, shape index: {}]
  %s2 = inlined_call_operand.vmem [shape: f32[1,32], index: 2, kind: input, shape index: {}]
  %s3 = inlined_call_operand.vmem [shape: bf16[32,16], index: 3, kind: input, shape index: {}]
  %s4 = inlined_call_operand.vmem [shape: f32[1,16], index: 4, kind: input, shape index: {}]
  %s5 = inlined_call_operand.vmem [shape: bf16[32,32], index: 5, kind: output, shape index: {0}]
  %s6 = inlined_call_operand.vmem [shape: bf16[32,16], index: 6, kind: output, shape index: {1}]
  %7 = xla_tuple %s5, %s6
  %s8 = sld [smem:[#allocation0]]
  $region38: #{dbcism_forward.12} parent=0
    _
  %s10 = ssub.s32 1, %s8
  %s11 = scalar_select 0, %s10, %s8
  // Predicated region
  $region2: #{dbcism_forward.12} parent=0 // pred_check
    _
  $region3: #{dbcism_forward.12} parent=0 // pred_check_branch
    %13 = sbr.rel (0) target = $region5
  $region4: #{dbcism_forward.12} parent=0 // pred_region
    _
  $region5: #{dbcism_forward.12} parent=0 // pred_fallthru
    _
  // Predicated region
  $region6: #{dbcism_forward.12} parent=0 // pred_check
    _
  $region7: #{dbcism_forward.12} parent=0 // pred_check_branch
    %15 = sbr.rel (0) target = $region9
  $region8: #{dbcism_forward.12} parent=0 // pred_region
    _
  $region9: #{dbcism_forward.12} parent=0 // pred_fallthru
    _
  // Predicated region
  $region10: #{dbcism_forward.12} parent=0 // pred_check
    _
  $region11: #{dbcism_forward.12} parent=0 // pred_check_branch
    %17 = sbr.rel (0) target = $region13
  $region12: #{dbcism_forward.12} parent=0 // pred_region
    _
  $region13: #{dbcism_forward.12} parent=0 // pred_fallthru
    _
  // Predicated region
  $region14: #{dbcism_forward.12} parent=0 // pred_check
    _
  $region15: #{dbcism_forward.12} parent=0 // pred_check_branch
    %19 = sbr.rel (0) target = $region17
  $region16: #{dbcism_forward.12} parent=0 // pred_region
    _
  $region17: #{dbcism_forward.12} parent=0 // pred_fallthru
    _
  // Predicated region
  $region18: #{dbcism_forward.12} parent=0 // pred_check
    _
  $region19: #{dbcism_forward.12} parent=0 // pred_check_branch
    %21 = sbr.rel (0) target = $region21
  $region20: #{dbcism_forward.12} parent=0 // pred_region
    _
  $region21: #{dbcism_forward.12} parent=0 // pred_fallthru
    _
  %v23 = vld [vmem:[%s0] sm:$0xff]
  %v24 = vld [vmem:[%s0 + $0x8] sm:$0xff]
  %v25 = vld [vmem:[%s0 + $0x10] sm:$0xff]
  %v26 = vld [vmem:[%s0 + $0x18] sm:$0xff]
  %v27 = vld [vmem:[%s1] sm:$0xf]
  %v28 = vld [vmem:[%s1 + $0x4] sm:$0xf]
  %v29 = vld [vmem:[%s1 + $0x8] sm:$0xf]
  %v30 = vld [vmem:[%s1 + $0xc] sm:$0xf]
  %v31 = vld [vmem:[%s1 + $0x10] sm:$0xf]
  %v32 = vld [vmem:[%s1 + $0x14] sm:$0xf]
  %v33 = vld [vmem:[%s1 + $0x18] sm:$0xf]
  %v34 = vld [vmem:[%s1 + $0x1c] sm:$0xf]
  %v35 = vld [vmem:[%s1 + $0x20] sm:$0xf]
  %v36 = vld [vmem:[%s1 + $0x24] sm:$0xf]
  %v37 = vld [vmem:[%s1 + $0x28] sm:$0xf]
  %v38 = vld [vmem:[%s1 + $0x2c] sm:$0xf]
  %v39 = vld [vmem:[%s1 + $0x30] sm:$0xf]
  %v40 = vld [vmem:[%s1 + $0x34] sm:$0xf]
  %v41 = vld [vmem:[%s1 + $0x38] sm:$0xf]
  %v42 = vld [vmem:[%s1 + $0x3c] sm:$0xf]
  %v43 = vld [vmem:[%s1 + $0x40] sm:$0xf]
  %v44 = vld [vmem:[%s1 + $0x44] sm:$0xf]
  %v45 = vld [vmem:[%s2] sm:$0x1]
  %v47 = vperm.slane %v45, 0
  %v53 = vunpack.c.l.b16 %v23
  %v54 = vunpack.c.h.b16 %v23
  %v55 = vunpack.c.l.b16 %v24
  %v56 = vunpack.c.h.b16 %v24
  %v57 = vunpack.c.l.b16 %v25
  %v58 = vunpack.c.h.b16 %v25
  %v59 = vunpack.c.l.b16 %v26
  %v60 = vunpack.c.h.b16 %v26
  %v61 = vpack.c.b16 %v55, %v53
  %v62 = vpack.c.b16 %v56, %v54
  %v63 = vpack.c.b16 %v59, %v57
  %v64 = vpack.c.b16 %v60, %v58
  %v85 = vunpack.c.l.b16 %v27
  %v86 = vunpack.c.l.b16 %v28
  %v87 = vunpack.c.l.b16 %v29
  %v88 = vunpack.c.l.b16 %v30
  %v89 = vunpack.c.l.b16 %v31
  %v90 = vunpack.c.l.b16 %v32
  %v91 = vunpack.c.l.b16 %v33
  %v92 = vunpack.c.l.b16 %v34
  %v93 = vunpack.c.l.b16 %v35
  %v94 = vunpack.c.l.b16 %v36
  %v95 = vunpack.c.l.b16 %v37
  %v96 = vunpack.c.l.b16 %v38
  %v97 = vunpack.c.l.b16 %v39
  %v98 = vunpack.c.l.b16 %v40
  %v99 = vunpack.c.l.b16 %v41
  %v100 = vunpack.c.l.b16 %v42
  %v101 = vunpack.c.l.b16 %v43
  %v102 = vunpack.c.l.b16 %v44
  %v103 = vpack.c.b16 %v86, %v85
  %v104 = vpack.c.b16 %v88, %v87
  %v105 = vpack.c.b16 %v90, %v89
  %v106 = vpack.c.b16 %v92, %v91
  %v107 = vpack.c.b16 %v94, %v93
  %v108 = vpack.c.b16 %v96, %v95
  %v109 = vpack.c.b16 %v98, %v97
  %v110 = vpack.c.b16 %v100, %v99
  %v111 = vpack.c.b16 %v102, %v101
  %vm121 = vcmask 130048
  %v123 = vsel %vm121, %v62, 0
  %v126 = vsel %vm121, %v64, 0
  %128 = vmatpush.bf16.msra.mxu0 %v110
  %129 = vmatpush.bf16.msra.mxu0 %v109
  %130 = vmatpush.bf16.msra.mxu0 %v108
  %131 = vmatpush.bf16.msra.mxu0 %v107
  %132 = vmatpush.bf16.msra.mxu0 %v106
  %133 = vmatpush.bf16.msra.mxu0 %v105
  %134 = vmatpush.bf16.msra.mxu0 %v104
  %135 = vmatpush.bf16.msra.mxu0 %v103
  %136 = vmatmul.bf16.gmra.mxu0 %v61
  %v137 = vpop.f32.mrf.mxu0
  %v138 = vadd.f32 %v47, %v137
  %v139 = vpop.f32.mrf.mxu0
  %v140 = vadd.f32 %v47, %v139
  %141 = vmatmul.bf16.gmra.mxu0 %v63
  %v142 = vpop.f32.mrf.mxu0
  %v143 = vadd.f32 %v47, %v142
  %v144 = vpop.f32.mrf.mxu0
  %v145 = vadd.f32 %v47, %v144
  %146 = vdwg.mxu0
  %147 = vmatpush.bf16.msra.mxu0 0
  %148 = vmatpush.bf16.msra.mxu0 0
  %149 = vmatpush.bf16.msra.mxu0 0
  %150 = vmatpush.bf16.msra.mxu0 0
  %151 = vmatpush.bf16.msra.mxu0 0
  %152 = vmatpush.bf16.msra.mxu0 0
  %153 = vmatpush.bf16.msra.mxu0 0
  %154 = vmatpush.bf16.msra.mxu0 %v111
  %155 = vmatmul.bf16.gmra.mxu0 %v123
  %v156 = vpop.f32.mrf.mxu0
  %v157 = vadd.f32 %v138, %v156
  %v158 = vpop.f32.mrf.mxu0
  %v159 = vadd.f32 %v140, %v158
  %160 = vmatmul.bf16.gmra.mxu0 %v126
  %v161 = vpop.f32.mrf.mxu0
  %v162 = vadd.f32 %v143, %v161
  %v163 = vpop.f32.mrf.mxu0
  %v164 = vadd.f32 %v145, %v163
  %165 = vdwg.mxu0
  %v166 = vmax.f32 %v157, 0.0
  %v167 = vmax.f32 %v159, 0.0
  %v168 = vmax.f32 %v162, 0.0
  %v169 = vmax.f32 %v164, 0.0
  %v170 = vpack.c.bf16 %v166, %v166
  %v171 = vpack.c.bf16 %v167, %v167
  %v172 = vpack.c.bf16 %v168, %v168
  %v173 = vpack.c.bf16 %v169, %v169
  %v174 = vld [vmem:[%s3] sm:$0xf]
  %v175 = vld [vmem:[%s3 + $0x4] sm:$0xf]
  %v176 = vld [vmem:[%s3 + $0x8] sm:$0xf]
  %v177 = vld [vmem:[%s3 + $0xc] sm:$0xf]
  %v178 = vld [vmem:[%s4] sm:$0x1]
  %v180 = vperm.slane %v178, 0
  %v186 = vunpack.c.l.b16 %v170
  %v187 = vunpack.c.l.b16 %v171
  %v188 = vunpack.c.l.b16 %v172
  %v189 = vunpack.c.l.b16 %v173
  %v190 = vpack.c.b16 %v187, %v186
  %v191 = vpack.c.b16 %v189, %v188
  %v196 = vunpack.c.l.b16 %v174
  %v197 = vunpack.c.l.b16 %v175
  %v198 = vunpack.c.l.b16 %v176
  %v199 = vunpack.c.l.b16 %v177
  %v200 = vpack.c.b16 %v197, %v196
  %v201 = vpack.c.b16 %v199, %v198
  %vm204 = vcmask 261120
  %v206 = vsel %vm204, %v190, 0
  %v209 = vsel %vm204, %v191, 0
  %211 = vmatpush.bf16.msra.mxu0 0
  %212 = vmatpush.bf16.msra.mxu0 0
  %213 = vmatpush.bf16.msra.mxu0 0
  %214 = vmatpush.bf16.msra.mxu0 0
  %215 = vmatpush.bf16.msra.mxu0 0
  %216 = vmatpush.bf16.msra.mxu0 0
  %217 = vmatpush.bf16.msra.mxu0 %v201
  %218 = vmatpush.bf16.msra.mxu0 %v200
  %219 = vmatmul.bf16.gmra.mxu0 %v206
  %v220 = vpop.f32.mrf.mxu0
  %v221 = vadd.f32 %v180, %v220
  %v222 = vpop.f32.mrf.mxu0
  %v223 = vadd.f32 %v180, %v222
  %224 = vmatmul.bf16.gmra.mxu0 %v209
  %v225 = vpop.f32.mrf.mxu0
  %v226 = vadd.f32 %v180, %v225
  %v227 = vpop.f32.mrf.mxu0
  %v228 = vadd.f32 %v180, %v227
  %229 = vdwg.mxu0
  %vm230 = vcmask 257024
  %231 = vst.msk [vmem:[%s5] sm:$0xf] %vm230, %v170
  %232 = vst.msk [vmem:[%s5 + $0x4] sm:$0xf] %vm230, %v171
  %233 = vst.msk [vmem:[%s5 + $0x8] sm:$0xf] %vm230, %v172
  %234 = vst.msk [vmem:[%s5 + $0xc] sm:$0xf] %vm230, %v173
  %v235 = vpack.c.bf16 %v221, %v221
  %v236 = vpack.c.bf16 %v223, %v223
  %v237 = vpack.c.bf16 %v226, %v226
  %v238 = vpack.c.bf16 %v228, %v228
  %vm239 = vcmask 125952
  %240 = vst.msk [vmem:[%s6] sm:$0xf] %vm239, %v235
  %241 = vst.msk [vmem:[%s6 + $0x4] sm:$0xf] %vm239, %v236
  %242 = vst.msk [vmem:[%s6 + $0x8] sm:$0xf] %vm239, %v237
  %243 = vst.msk [vmem:[%s6 + $0xc] sm:$0xf] %vm239, %v238
  // Predicated region
  $region22: #{dbcism_forward.12} parent=0 // pred_check
    _
  $region23: #{dbcism_forward.12} parent=0 // pred_check_branch
    %245 = sbr.rel (0) target = $region25
  $region24: #{dbcism_forward.12} parent=0 // pred_region
    _
  $region25: #{dbcism_forward.12} parent=0 // pred_fallthru
    _
  // Predicated region
  $region26: #{dbcism_forward.12} parent=0 // pred_check
    _
  $region27: #{dbcism_forward.12} parent=0 // pred_check_branch
    %247 = sbr.rel (0) target = $region29
  $region28: #{dbcism_forward.12} parent=0 // pred_region
    _
  $region29: #{dbcism_forward.12} parent=0 // pred_fallthru
    _
  // Predicated region
  $region30: #{dbcism_forward.12} parent=0 // pred_check
    _
  $region31: #{dbcism_forward.12} parent=0 // pred_check_branch
    %249 = sbr.rel (0) target = $region33
  $region32: #{dbcism_forward.12} parent=0 // pred_region
    _
  $region33: #{dbcism_forward.12} parent=0 // pred_fallthru
    _
  // Predicated region
  $region34: #{dbcism_forward.12} parent=0 // pred_check
    _
  $region35: #{dbcism_forward.12} parent=0 // pred_check_branch
    %251 = sbr.rel (0) target = $region37
  $region36: #{dbcism_forward.12} parent=0 // pred_region
    _
  $region37: #{dbcism_forward.12} parent=0 // pred_fallthru
    _

// kernel: dbcism_forward.13
$region0: #{dbcism_forward.13}
  #allocation0 [shape = 'u32[]', space=smem, size = 0x4, offset = 0x4, fixed_abs, tag = 'smem constant byte address 0x4 - core index']
  #allocation1 [shape = 'u32[72,128]{1,0:T(1,128)}', space=vmem, size = 0x9000, scoped, tag = 'internal scratch']
  %s0 = inlined_call_operand.vmem [shape: bf16[8,288], index: 0, kind: input, shape index: {}]
  %s1 = inlined_call_operand.vmem [shape: bf16[288,64], index: 1, kind: input, shape index: {}]
  %s2 = inlined_call_operand.vmem [shape: f32[1,64], index: 2, kind: input, shape index: {}]
  %s3 = inlined_call_operand.vmem [shape: bf16[64,16], index: 3, kind: input, shape index: {}]
  %s4 = inlined_call_operand.vmem [shape: f32[1,16], index: 4, kind: input, shape index: {}]
  %s5 = inlined_call_operand.vmem [shape: bf16[8,16], index: 5, kind: output, shape index: {}]
  %s6 = sld [smem:[#allocation0]]
  $region30: #{dbcism_forward.13} parent=0
    _
  %s8 = ssub.s32 1, %s6
  %s9 = scalar_select 0, %s8, %s6
  // Predicated region
  $region2: #{dbcism_forward.13} parent=0 // pred_check
    _
  $region3: #{dbcism_forward.13} parent=0 // pred_check_branch
    %11 = sbr.rel (0) target = $region5
  $region4: #{dbcism_forward.13} parent=0 // pred_region
    _
  $region5: #{dbcism_forward.13} parent=0 // pred_fallthru
    _
  // Predicated region
  $region6: #{dbcism_forward.13} parent=0 // pred_check
    _
  $region7: #{dbcism_forward.13} parent=0 // pred_check_branch
    %13 = sbr.rel (0) target = $region9
  $region8: #{dbcism_forward.13} parent=0 // pred_region
    _
  $region9: #{dbcism_forward.13} parent=0 // pred_fallthru
    _
  // Predicated region
  $region10: #{dbcism_forward.13} parent=0 // pred_check
    _
  $region11: #{dbcism_forward.13} parent=0 // pred_check_branch
    %15 = sbr.rel (0) target = $region13
  $region12: #{dbcism_forward.13} parent=0 // pred_region
    _
  $region13: #{dbcism_forward.13} parent=0 // pred_fallthru
    _
  // Predicated region
  $region14: #{dbcism_forward.13} parent=0 // pred_check
    _
  $region15: #{dbcism_forward.13} parent=0 // pred_check_branch
    %17 = sbr.rel (0) target = $region17
  $region16: #{dbcism_forward.13} parent=0 // pred_region
    _
  $region17: #{dbcism_forward.13} parent=0 // pred_fallthru
    _
  // Predicated region
  $region18: #{dbcism_forward.13} parent=0 // pred_check
    _
  $region19: #{dbcism_forward.13} parent=0 // pred_check_branch
    %19 = sbr.rel (0) target = $region21
  $region20: #{dbcism_forward.13} parent=0 // pred_region
    _
  $region21: #{dbcism_forward.13} parent=0 // pred_fallthru
    _
  %v21 = vld [vmem:[%s0] sm:$0xff]
  %v22 = vld [vmem:[%s0 + $0x8] sm:$0xf]
  %v23 = vld [vmem:[%s1] sm:$0xf]
  %v24 = vld [vmem:[%s1 + $0x4] sm:$0xf]
  %v25 = vld [vmem:[%s1 + $0x8] sm:$0xf]
  %v26 = vld [vmem:[%s1 + $0xc] sm:$0xf]
  %v27 = vld [vmem:[%s1 + $0x10] sm:$0xf]
  %v28 = vld [vmem:[%s1 + $0x14] sm:$0xf]
  %v29 = vld [vmem:[%s1 + $0x18] sm:$0xf]
  %v30 = vld [vmem:[%s1 + $0x1c] sm:$0xf]
  %v31 = vld [vmem:[%s1 + $0x20] sm:$0xf]
  %v32 = vld [vmem:[%s1 + $0x24] sm:$0xf]
  %v33 = vld [vmem:[%s1 + $0x28] sm:$0xf]
  %v34 = vld [vmem:[%s1 + $0x2c] sm:$0xf]
  %v35 = vld [vmem:[%s1 + $0x30] sm:$0xf]
  %v36 = vld [vmem:[%s1 + $0x34] sm:$0xf]
  %v37 = vld [vmem:[%s1 + $0x38] sm:$0xf]
  %v38 = vld [vmem:[%s1 + $0x3c] sm:$0xf]
  %v39 = vld [vmem:[%s1 + $0x40] sm:$0xf]
  %v40 = vld [vmem:[%s1 + $0x44] sm:$0xf]
  %v41 = vld [vmem:[%s1 + $0x48] sm:$0xf]
  %v42 = vld [vmem:[%s1 + $0x4c] sm:$0xf]
  %v43 = vld [vmem:[%s1 + $0x50] sm:$0xf]
  %v44 = vld [vmem:[%s1 + $0x54] sm:$0xf]
  %v45 = vld [vmem:[%s1 + $0x58] sm:$0xf]
  %v46 = vld [vmem:[%s1 + $0x5c] sm:$0xf]
  %v47 = vld [vmem:[%s1 + $0x60] sm:$0xf]
  %v48 = vld [vmem:[%s1 + $0x64] sm:$0xf]
  %v49 = vld [vmem:[%s1 + $0x68] sm:$0xf]
  %v50 = vld [vmem:[%s1 + $0x6c] sm:$0xf]
  %v51 = vld [vmem:[%s1 + $0x70] sm:$0xf]
  %v52 = vld [vmem:[%s1 + $0x74] sm:$0xf]
  %v53 = vld [vmem:[%s1 + $0x78] sm:$0xf]
  %v54 = vld [vmem:[%s1 + $0x7c] sm:$0xf]
  %v55 = vld [vmem:[%s1 + $0x80] sm:$0xf]
  %v56 = vld [vmem:[%s1 + $0x84] sm:$0xf]
  %v57 = vld [vmem:[%s1 + $0x88] sm:$0xf]
  %v58 = vld [vmem:[%s1 + $0x8c] sm:$0xf]
  %v59 = vld [vmem:[%s2] sm:$0x1]
  %v61 = vperm.slane %v59, 0
  %v65 = vunpack.c.l.b16 %v21
  %v66 = vunpack.c.h.b16 %v21
  %v67 = vunpack.c.l.b16 %v22
  %v68 = vpack.c.b16 %v65, %v65
  %v69 = vpack.c.b16 %v66, %v66
  %v70 = vpack.c.b16 %v67, %v67
  %v109 = vunpack.c.l.b16 %v23
  %v110 = vunpack.c.l.b16 %v24
  %v111 = vunpack.c.l.b16 %v25
  %v112 = vunpack.c.l.b16 %v26
  %v113 = vunpack.c.l.b16 %v27
  %v114 = vunpack.c.l.b16 %v28
  %v115 = vunpack.c.l.b16 %v29
  %v116 = vunpack.c.l.b16 %v30
  %v117 = vunpack.c.l.b16 %v31
  %v118 = vunpack.c.l.b16 %v32
  %v119 = vunpack.c.l.b16 %v33
  %v120 = vunpack.c.l.b16 %v34
  %v121 = vunpack.c.l.b16 %v35
  %v122 = vunpack.c.l.b16 %v36
  %v123 = vunpack.c.l.b16 %v37
  %v124 = vunpack.c.l.b16 %v38
  %v125 = vunpack.c.l.b16 %v39
  %v126 = vunpack.c.l.b16 %v40
  %v127 = vunpack.c.l.b16 %v41
  %v128 = vunpack.c.l.b16 %v42
  %v129 = vunpack.c.l.b16 %v43
  %v130 = vunpack.c.l.b16 %v44
  %v131 = vunpack.c.l.b16 %v45
  %v132 = vunpack.c.l.b16 %v46
  %v133 = vunpack.c.l.b16 %v47
  %v134 = vunpack.c.l.b16 %v48
  %v135 = vunpack.c.l.b16 %v49
  %v136 = vunpack.c.l.b16 %v50
  %v137 = vunpack.c.l.b16 %v51
  %v138 = vunpack.c.l.b16 %v52
  %v139 = vunpack.c.l.b16 %v53
  %v140 = vunpack.c.l.b16 %v54
  %v141 = vunpack.c.l.b16 %v55
  %v142 = vunpack.c.l.b16 %v56
  %v143 = vunpack.c.l.b16 %v57
  %v144 = vunpack.c.l.b16 %v58
  %v145 = vpack.c.b16 %v110, %v109
  %v146 = vpack.c.b16 %v112, %v111
  %v147 = vpack.c.b16 %v114, %v113
  %v148 = vpack.c.b16 %v116, %v115
  %v149 = vpack.c.b16 %v118, %v117
  %v150 = vpack.c.b16 %v120, %v119
  %v151 = vpack.c.b16 %v122, %v121
  %v152 = vpack.c.b16 %v124, %v123
  %v153 = vpack.c.b16 %v126, %v125
  %v154 = vpack.c.b16 %v128, %v127
  %v155 = vpack.c.b16 %v130, %v129
  %v156 = vpack.c.b16 %v132, %v131
  %v157 = vpack.c.b16 %v134, %v133
  %v158 = vpack.c.b16 %v136, %v135
  %v159 = vpack.c.b16 %v138, %v137
  %v160 = vpack.c.b16 %v140, %v139
  %v161 = vpack.c.b16 %v142, %v141
  %v162 = vpack.c.b16 %v144, %v143
  %vm181 = vcmask 261120
  %v183 = vsel %vm181, %v70, 0
  %185 = vmatpush.bf16.msra.mxu0 %v152
  %186 = vmatpush.bf16.msra.mxu0 %v151
  %187 = vmatpush.bf16.msra.mxu0 %v150
  %188 = vmatpush.bf16.msra.mxu0 %v149
  %189 = vmatpush.bf16.msra.mxu0 %v148
  %190 = vmatpush.bf16.msra.mxu0 %v147
  %191 = vmatpush.bf16.msra.mxu0 %v146
  %192 = vmatpush.bf16.msra.mxu0 %v145
  %193 = vmatmul.bf16.gmra.mxu0 %v68
  %v194 = vpop.f32.mrf.mxu0
  %v195 = vadd.f32 %v61, %v194
  %v196 = vpop.f32.mrf.mxu0
  %197 = vdwg.mxu0
  %198 = vmatpush.bf16.msra.mxu0 %v160
  %199 = vmatpush.bf16.msra.mxu0 %v159
  %200 = vmatpush.bf16.msra.mxu0 %v158
  %201 = vmatpush.bf16.msra.mxu0 %v157
  %202 = vmatpush.bf16.msra.mxu0 %v156
  %203 = vmatpush.bf16.msra.mxu0 %v155
  %204 = vmatpush.bf16.msra.mxu0 %v154
  %205 = vmatpush.bf16.msra.mxu0 %v153
  %206 = vmatmul.bf16.gmra.mxu0 %v69
  %v207 = vpop.f32.mrf.mxu0
  %v208 = vadd.f32 %v195, %v207
  %v209 = vpop.f32.mrf.mxu0
  %210 = vdwg.mxu0
  %211 = vmatpush.bf16.msra.mxu0 0
  %212 = vmatpush.bf16.msra.mxu0 0
  %213 = vmatpush.bf16.msra.mxu0 0
  %214 = vmatpush.bf16.msra.mxu0 0
  %215 = vmatpush.bf16.msra.mxu0 0
  %216 = vmatpush.bf16.msra.mxu0 0
  %217 = vmatpush.bf16.msra.mxu0 %v162
  %218 = vmatpush.bf16.msra.mxu0 %v161
  %219 = vmatmul.bf16.gmra.mxu0 %v183
  %v220 = vpop.f32.mrf.mxu0
  %v221 = vadd.f32 %v208, %v220
  %v222 = vpop.f32.mrf.mxu0
  %223 = vdwg.mxu0
  %v224 = vmax.f32 %v221, 0.0
  %v225 = vpack.c.bf16 %v224, %v224
  %v226 = vld [vmem:[%s3] sm:$0xf]
  %v227 = vld [vmem:[%s3 + $0x4] sm:$0xf]
  %v228 = vld [vmem:[%s3 + $0x8] sm:$0xf]
  %v229 = vld [vmem:[%s3 + $0xc] sm:$0xf]
  %v230 = vld [vmem:[%s3 + $0x10] sm:$0xf]
  %v231 = vld [vmem:[%s3 + $0x14] sm:$0xf]
  %v232 = vld [vmem:[%s3 + $0x18] sm:$0xf]
  %v233 = vld [vmem:[%s3 + $0x1c] sm:$0xf]
  %v234 = vld [vmem:[%s4] sm:$0x1]
  %v236 = vperm.slane %v234, 0
  %v246 = vunpack.c.l.b16 %v226
  %v247 = vunpack.c.l.b16 %v227
  %v248 = vunpack.c.l.b16 %v228
  %v249 = vunpack.c.l.b16 %v229
  %v250 = vunpack.c.l.b16 %v230
  %v251 = vunpack.c.l.b16 %v231
  %v252 = vunpack.c.l.b16 %v232
  %v253 = vunpack.c.l.b16 %v233
  %v254 = vpack.c.b16 %v247, %v246
  %v255 = vpack.c.b16 %v249, %v248
  %v256 = vpack.c.b16 %v251, %v250
  %v257 = vpack.c.b16 %v253, %v252
  %vm262 = vcmask 523264
  %v264 = vsel %vm262, %v225, 0
  %266 = vmatpush.bf16.msra.mxu0 0
  %267 = vmatpush.bf16.msra.mxu0 0
  %268 = vmatpush.bf16.msra.mxu0 0
  %269 = vmatpush.bf16.msra.mxu0 0
  %270 = vmatpush.bf16.msra.mxu0 %v257
  %271 = vmatpush.bf16.msra.mxu0 %v256
  %272 = vmatpush.bf16.msra.mxu0 %v255
  %273 = vmatpush.bf16.msra.mxu0 %v254
  %274 = vmatmul.bf16.gmra.mxu0 %v264
  %v275 = vpop.f32.mrf.mxu0
  %v276 = vadd.f32 %v236, %v275
  %v277 = vpop.f32.mrf.mxu0
  %278 = vdwg.mxu0
  %v279 = vpack.c.bf16 %v276, %v276
  %vm280 = vcmask 125952
  %281 = vst.msk [vmem:[%s5] sm:$0xf] %vm280, %v279
  // Predicated region
  $region22: #{dbcism_forward.13} parent=0 // pred_check
    _
  $region23: #{dbcism_forward.13} parent=0 // pred_check_branch
    %283 = sbr.rel (0) target = $region25
  $region24: #{dbcism_forward.13} parent=0 // pred_region
    _
  $region25: #{dbcism_forward.13} parent=0 // pred_fallthru
    _
  // Predicated region
  $region26: #{dbcism_forward.13} parent=0 // pred_check
    _
  $region27: #{dbcism_forward.13} parent=0 // pred_check_branch
    %285 = sbr.rel (0) target = $region29
  $region28: #{dbcism_forward.13} parent=0 // pred_region
    _
  $region29: #{dbcism_forward.13} parent=0 // pred_fallthru
    _

// kernel: dbcism_forward.17
$region0: #{dbcism_forward.17}
  #allocation0 [shape = 'u32[]', space=smem, size = 0x4, offset = 0x4, fixed_abs, tag = 'smem constant byte address 0x4 - core index']
  #allocation1 [shape = 'u32[72,128]{1,0:T(1,128)}', space=vmem, size = 0x9000, scoped, tag = 'internal scratch']
  %s0 = inlined_call_operand.vmem [shape: bf16[512,144], index: 0, kind: input, shape index: {}]
  %s1 = inlined_call_operand.vmem [shape: bf16[144,16], index: 1, kind: input, shape index: {}]
  %s2 = inlined_call_operand.vmem [shape: f32[1,16], index: 2, kind: input, shape index: {}]
  %s3 = inlined_call_operand.vmem [shape: bf16[512,16], index: 3, kind: output, shape index: {}]
  %s4 = sld [smem:[#allocation0]]
  $region22: #{dbcism_forward.17} parent=0
    _
  %s6 = ssub.s32 1, %s4
  %s7 = scalar_select 0, %s6, %s4
  // Predicated region
  $region2: #{dbcism_forward.17} parent=0 // pred_check
    _
  $region3: #{dbcism_forward.17} parent=0 // pred_check_branch
    %9 = sbr.rel (0) target = $region5
  $region4: #{dbcism_forward.17} parent=0 // pred_region
    _
  $region5: #{dbcism_forward.17} parent=0 // pred_fallthru
    _
  // Predicated region
  $region6: #{dbcism_forward.17} parent=0 // pred_check
    _
  $region7: #{dbcism_forward.17} parent=0 // pred_check_branch
    %11 = sbr.rel (0) target = $region9
  $region8: #{dbcism_forward.17} parent=0 // pred_region
    _
  $region9: #{dbcism_forward.17} parent=0 // pred_fallthru
    _
  // Predicated region
  $region10: #{dbcism_forward.17} parent=0 // pred_check
    _
  $region11: #{dbcism_forward.17} parent=0 // pred_check_branch
    %13 = sbr.rel (0) target = $region13
  $region12: #{dbcism_forward.17} parent=0 // pred_region
    _
  $region13: #{dbcism_forward.17} parent=0 // pred_fallthru
    _
  %v15 = vld [vmem:[%s0] sm:$0xff]
  %v16 = vld [vmem:[%s0 + $0x8] sm:$0xff]
  %v17 = vld [vmem:[%s0 + $0x10] sm:$0xff]
  %v18 = vld [vmem:[%s0 + $0x18] sm:$0xff]
  %v19 = vld [vmem:[%s0 + $0x20] sm:$0xff]
  %v20 = vld [vmem:[%s0 + $0x28] sm:$0xff]
  %v21 = vld [vmem:[%s0 + $0x30] sm:$0xff]
  %v22 = vld [vmem:[%s0 + $0x38] sm:$0xff]
  %v23 = vld [vmem:[%s0 + $0x40] sm:$0xff]
  %v24 = vld [vmem:[%s0 + $0x48] sm:$0xff]
  %v25 = vld [vmem:[%s0 + $0x50] sm:$0xff]
  %v26 = vld [vmem:[%s0 + $0x58] sm:$0xff]
  %v27 = vld [vmem:[%s0 + $0x60] sm:$0xff]
  %v28 = vld [vmem:[%s0 + $0x68] sm:$0xff]
  %v29 = vld [vmem:[%s0 + $0x70] sm:$0xff]
  %v30 = vld [vmem:[%s0 + $0x78] sm:$0xff]
  %v31 = vld [vmem:[%s0 + $0x80] sm:$0xff]
  %v32 = vld [vmem:[%s0 + $0x88] sm:$0xff]
  %v33 = vld [vmem:[%s0 + $0x90] sm:$0xff]
  %v34 = vld [vmem:[%s0 + $0x98] sm:$0xff]
  %v35 = vld [vmem:[%s0 + $0xa0] sm:$0xff]
  %v36 = vld [vmem:[%s0 + $0xa8] sm:$0xff]
  %v37 = vld [vmem:[%s0 + $0xb0] sm:$0xff]
  %v38 = vld [vmem:[%s0 + $0xb8] sm:$0xff]
  %v39 = vld [vmem:[%s0 + $0xc0] sm:$0xff]
  %v40 = vld [vmem:[%s0 + $0xc8] sm:$0xff]
  %v41 = vld [vmem:[%s0 + $0xd0] sm:$0xff]
  %v42 = vld [vmem:[%s0 + $0xd8] sm:$0xff]
  %v43 = vld [vmem:[%s0 + $0xe0] sm:$0xff]
  %v44 = vld [vmem:[%s0 + $0xe8] sm:$0xff]
  %v45 = vld [vmem:[%s0 + $0xf0] sm:$0xff]
  %v46 = vld [vmem:[%s0 + $0xf8] sm:$0xff]
  %v47 = vld [vmem:[%s0 + $0x100] sm:$0xff]
  %v48 = vld [vmem:[%s0 + $0x108] sm:$0xff]
  %v49 = vld [vmem:[%s0 + $0x110] sm:$0xff]
  %v50 = vld [vmem:[%s0 + $0x118] sm:$0xff]
  %v51 = vld [vmem:[%s0 + $0x120] sm:$0xff]
  %v52 = vld [vmem:[%s0 + $0x128] sm:$0xff]
  %v53 = vld [vmem:[%s0 + $0x130] sm:$0xff]
  %v54 = vld [vmem:[%s0 + $0x138] sm:$0xff]
  %v55 = vld [vmem:[%s0 + $0x140] sm:$0xff]
  %v56 = vld [vmem:[%s0 + $0x148] sm:$0xff]
  %v57 = vld [vmem:[%s0 + $0x150] sm:$0xff]
  %v58 = vld [vmem:[%s0 + $0x158] sm:$0xff]
  %v59 = vld [vmem:[%s0 + $0x160] sm:$0xff]
  %v60 = vld [vmem:[%s0 + $0x168] sm:$0xff]
  %v61 = vld [vmem:[%s0 + $0x170] sm:$0xff]
  %v62 = vld [vmem:[%s0 + $0x178] sm:$0xff]
  %v63 = vld [vmem:[%s0 + $0x180] sm:$0xff]
  %v64 = vld [vmem:[%s0 + $0x188] sm:$0xff]
  %v65 = vld [vmem:[%s0 + $0x190] sm:$0xff]
  %v66 = vld [vmem:[%s0 + $0x198] sm:$0xff]
  %v67 = vld [vmem:[%s0 + $0x1a0] sm:$0xff]
  %v68 = vld [vmem:[%s0 + $0x1a8] sm:$0xff]
  %v69 = vld [vmem:[%s0 + $0x1b0] sm:$0xff]
  %v70 = vld [vmem:[%s0 + $0x1b8] sm:$0xff]
  %v71 = vld [vmem:[%s0 + $0x1c0] sm:$0xff]
  %v72 = vld [vmem:[%s0 + $0x1c8] sm:$0xff]
  %v73 = vld [vmem:[%s0 + $0x1d0] sm:$0xff]
  %v74 = vld [vmem:[%s0 + $0x1d8] sm:$0xff]
  %v75 = vld [vmem:[%s0 + $0x1e0] sm:$0xff]
  %v76 = vld [vmem:[%s0 + $0x1e8] sm:$0xff]
  %v77 = vld [vmem:[%s0 + $0x1f0] sm:$0xff]
  %v78 = vld [vmem:[%s0 + $0x1f8] sm:$0xff]
  %v79 = vld [vmem:[%s1] sm:$0xf]
  %v80 = vld [vmem:[%s1 + $0x4] sm:$0xf]
  %v81 = vld [vmem:[%s1 + $0x8] sm:$0xf]
  %v82 = vld [vmem:[%s1 + $0xc] sm:$0xf]
  %v83 = vld [vmem:[%s1 + $0x10] sm:$0xf]
  %v84 = vld [vmem:[%s1 + $0x14] sm:$0xf]
  %v85 = vld [vmem:[%s1 + $0x18] sm:$0xf]
  %v86 = vld [vmem:[%s1 + $0x1c] sm:$0xf]
  %v87 = vld [vmem:[%s1 + $0x20] sm:$0xf]
  %v88 = vld [vmem:[%s1 + $0x24] sm:$0xf]
  %v89 = vld [vmem:[%s1 + $0x28] sm:$0xf]
  %v90 = vld [vmem:[%s1 + $0x2c] sm:$0xf]
  %v91 = vld [vmem:[%s1 + $0x30] sm:$0xf]
  %v92 = vld [vmem:[%s1 + $0x34] sm:$0xf]
  %v93 = vld [vmem:[%s1 + $0x38] sm:$0xf]
  %v94 = vld [vmem:[%s1 + $0x3c] sm:$0xf]
  %v95 = vld [vmem:[%s1 + $0x40] sm:$0xf]
  %v96 = vld [vmem:[%s1 + $0x44] sm:$0xf]
  %v97 = vld [vmem:[%s2] sm:$0x1]
  %v99 = vperm.slane %v97, 0
  %v165 = vunpack.c.l.b16 %v15
  %v166 = vunpack.c.h.b16 %v15
  %v167 = vunpack.c.l.b16 %v16
  %v168 = vunpack.c.h.b16 %v16
  %v169 = vunpack.c.l.b16 %v17
  %v170 = vunpack.c.h.b16 %v17
  %v171 = vunpack.c.l.b16 %v18
  %v172 = vunpack.c.h.b16 %v18
  %v173 = vunpack.c.l.b16 %v19
  %v174 = vunpack.c.h.b16 %v19
  %v175 = vunpack.c.l.b16 %v20
  %v176 = vunpack.c.h.b16 %v20
  %v177 = vunpack.c.l.b16 %v21
  %v178 = vunpack.c.h.b16 %v21
  %v179 = vunpack.c.l.b16 %v22
  %v180 = vunpack.c.h.b16 %v22
  %v181 = vunpack.c.l.b16 %v23
  %v182 = vunpack.c.h.b16 %v23
  %v183 = vunpack.c.l.b16 %v24
  %v184 = vunpack.c.h.b16 %v24
  %v185 = vunpack.c.l.b16 %v25
  %v186 = vunpack.c.h.b16 %v25
  %v187 = vunpack.c.l.b16 %v26
  %v188 = vunpack.c.h.b16 %v26
  %v189 = vunpack.c.l.b16 %v27
  %v190 = vunpack.c.h.b16 %v27
  %v191 = vunpack.c.l.b16 %v28
  %v192 = vunpack.c.h.b16 %v28
  %v193 = vunpack.c.l.b16 %v29
  %v194 = vunpack.c.h.b16 %v29
  %v195 = vunpack.c.l.b16 %v30
  %v196 = vunpack.c.h.b16 %v30
  %v197 = vunpack.c.l.b16 %v31
  %v198 = vunpack.c.h.b16 %v31
  %v199 = vunpack.c.l.b16 %v32
  %v200 = vunpack.c.h.b16 %v32
  %v201 = vunpack.c.l.b16 %v33
  %v202 = vunpack.c.h.b16 %v33
  %v203 = vunpack.c.l.b16 %v34
  %v204 = vunpack.c.h.b16 %v34
  %v205 = vunpack.c.l.b16 %v35
  %v206 = vunpack.c.h.b16 %v35
  %v207 = vunpack.c.l.b16 %v36
  %v208 = vunpack.c.h.b16 %v36
  %v209 = vunpack.c.l.b16 %v37
  %v210 = vunpack.c.h.b16 %v37
  %v211 = vunpack.c.l.b16 %v38
  %v212 = vunpack.c.h.b16 %v38
  %v213 = vunpack.c.l.b16 %v39
  %v214 = vunpack.c.h.b16 %v39
  %v215 = vunpack.c.l.b16 %v40
  %v216 = vunpack.c.h.b16 %v40
  %v217 = vunpack.c.l.b16 %v41
  %v218 = vunpack.c.h.b16 %v41
  %v219 = vunpack.c.l.b16 %v42
  %v220 = vunpack.c.h.b16 %v42
  %v221 = vunpack.c.l.b16 %v43
  %v222 = vunpack.c.h.b16 %v43
  %v223 = vunpack.c.l.b16 %v44
  %v224 = vunpack.c.h.b16 %v44
  %v225 = vunpack.c.l.b16 %v45
  %v226 = vunpack.c.h.b16 %v45
  %v227 = vunpack.c.l.b16 %v46
  %v228 = vunpack.c.h.b16 %v46
  %v229 = vunpack.c.l.b16 %v47
  %v230 = vunpack.c.h.b16 %v47
  %v231 = vunpack.c.l.b16 %v48
  %v232 = vunpack.c.h.b16 %v48
  %v233 = vunpack.c.l.b16 %v49
  %v234 = vunpack.c.h.b16 %v49
  %v235 = vunpack.c.l.b16 %v50
  %v236 = vunpack.c.h.b16 %v50
  %v237 = vunpack.c.l.b16 %v51
  %v238 = vunpack.c.h.b16 %v51
  %v239 = vunpack.c.l.b16 %v52
  %v240 = vunpack.c.h.b16 %v52
  %v241 = vunpack.c.l.b16 %v53
  %v242 = vunpack.c.h.b16 %v53
  %v243 = vunpack.c.l.b16 %v54
  %v244 = vunpack.c.h.b16 %v54
  %v245 = vunpack.c.l.b16 %v55
  %v246 = vunpack.c.h.b16 %v55
  %v247 = vunpack.c.l.b16 %v56
  %v248 = vunpack.c.h.b16 %v56
  %v249 = vunpack.c.l.b16 %v57
  %v250 = vunpack.c.h.b16 %v57
  %v251 = vunpack.c.l.b16 %v58
  %v252 = vunpack.c.h.b16 %v58
  %v253 = vunpack.c.l.b16 %v59
  %v254 = vunpack.c.h.b16 %v59
  %v255 = vunpack.c.l.b16 %v60
  %v256 = vunpack.c.h.b16 %v60
  %v257 = vunpack.c.l.b16 %v61
  %v258 = vunpack.c.h.b16 %v61
  %v259 = vunpack.c.l.b16 %v62
  %v260 = vunpack.c.h.b16 %v62
  %v261 = vunpack.c.l.b16 %v63
  %v262 = vunpack.c.h.b16 %v63
  %v263 = vunpack.c.l.b16 %v64
  %v264 = vunpack.c.h.b16 %v64
  %v265 = vunpack.c.l.b16 %v65
  %v266 = vunpack.c.h.b16 %v65
  %v267 = vunpack.c.l.b16 %v66
  %v268 = vunpack.c.h.b16 %v66
  %v269 = vunpack.c.l.b16 %v67
  %v270 = vunpack.c.h.b16 %v67
  %v271 = vunpack.c.l.b16 %v68
  %v272 = vunpack.c.h.b16 %v68
  %v273 = vunpack.c.l.b16 %v69
  %v274 = vunpack.c.h.b16 %v69
  %v275 = vunpack.c.l.b16 %v70
  %v276 = vunpack.c.h.b16 %v70
  %v277 = vunpack.c.l.b16 %v71
  %v278 = vunpack.c.h.b16 %v71
  %v279 = vunpack.c.l.b16 %v72
  %v280 = vunpack.c.h.b16 %v72
  %v281 = vunpack.c.l.b16 %v73
  %v282 = vunpack.c.h.b16 %v73
  %v283 = vunpack.c.l.b16 %v74
  %v284 = vunpack.c.h.b16 %v74
  %v285 = vunpack.c.l.b16 %v75
  %v286 = vunpack.c.h.b16 %v75
  %v287 = vunpack.c.l.b16 %v76
  %v288 = vunpack.c.h.b16 %v76
  %v289 = vunpack.c.l.b16 %v77
  %v290 = vunpack.c.h.b16 %v77
  %v291 = vunpack.c.l.b16 %v78
  %v292 = vunpack.c.h.b16 %v78
  %v293 = vpack.c.b16 %v167, %v165
  %v294 = vpack.c.b16 %v168, %v166
  %v295 = vpack.c.b16 %v171, %v169
  %v296 = vpack.c.b16 %v172, %v170
  %v297 = vpack.c.b16 %v175, %v173
  %v298 = vpack.c.b16 %v176, %v174
  %v299 = vpack.c.b16 %v179, %v177
  %v300 = vpack.c.b16 %v180, %v178
  %v301 = vpack.c.b16 %v183, %v181
  %v302 = vpack.c.b16 %v184, %v182
  %v303 = vpack.c.b16 %v187, %v185
  %v304 = vpack.c.b16 %v188, %v186
  %v305 = vpack.c.b16 %v191, %v189
  %v306 = vpack.c.b16 %v192, %v190
  %v307 = vpack.c.b16 %v195, %v193
  %v308 = vpack.c.b16 %v196, %v194
  %v309 = vpack.c.b16 %v199, %v197
  %v310 = vpack.c.b16 %v200, %v198
  %v311 = vpack.c.b16 %v203, %v201
  %v312 = vpack.c.b16 %v204, %v202
  %v313 = vpack.c.b16 %v207, %v205
  %v314 = vpack.c.b16 %v208, %v206
  %v315 = vpack.c.b16 %v211, %v209
  %v316 = vpack.c.b16 %v212, %v210
  %v317 = vpack.c.b16 %v215, %v213
  %v318 = vpack.c.b16 %v216, %v214
  %v319 = vpack.c.b16 %v219, %v217
  %v320 = vpack.c.b16 %v220, %v218
  %v321 = vpack.c.b16 %v223, %v221
  %v322 = vpack.c.b16 %v224, %v222
  %v323 = vpack.c.b16 %v227, %v225
  %v324 = vpack.c.b16 %v228, %v226
  %v325 = vpack.c.b16 %v231, %v229
  %v326 = vpack.c.b16 %v232, %v230
  %v327 = vpack.c.b16 %v235, %v233
  %v328 = vpack.c.b16 %v236, %v234
  %v329 = vpack.c.b16 %v239, %v237
  %v330 = vpack.c.b16 %v240, %v238
  %v331 = vpack.c.b16 %v243, %v241
  %v332 = vpack.c.b16 %v244, %v242
  %v333 = vpack.c.b16 %v247, %v245
  %v334 = vpack.c.b16 %v248, %v246
  %v335 = vpack.c.b16 %v251, %v249
  %v336 = vpack.c.b16 %v252, %v250
  %v337 = vpack.c.b16 %v255, %v253
  %v338 = vpack.c.b16 %v256, %v254
  %v339 = vpack.c.b16 %v259, %v257
  %v340 = vpack.c.b16 %v260, %v258
  %v341 = vpack.c.b16 %v263, %v261
  %v342 = vpack.c.b16 %v264, %v262
  %v343 = vpack.c.b16 %v267, %v265
  %v344 = vpack.c.b16 %v268, %v266
  %v345 = vpack.c.b16 %v271, %v269
  %v346 = vpack.c.b16 %v272, %v270
  %v347 = vpack.c.b16 %v275, %v273
  %v348 = vpack.c.b16 %v276, %v274
  %v349 = vpack.c.b16 %v279, %v277
  %v350 = vpack.c.b16 %v280, %v278
  %v351 = vpack.c.b16 %v283, %v281
  %v352 = vpack.c.b16 %v284, %v282
  %v353 = vpack.c.b16 %v287, %v285
  %v354 = vpack.c.b16 %v288, %v286
  %v355 = vpack.c.b16 %v291, %v289
  %v356 = vpack.c.b16 %v292, %v290
  %v407 = vunpack.c.l.b16 %v79
  %v408 = vunpack.c.l.b16 %v80
  %v409 = vunpack.c.l.b16 %v81
  %v410 = vunpack.c.l.b16 %v82
  %v411 = vunpack.c.l.b16 %v83
  %v412 = vunpack.c.l.b16 %v84
  %v413 = vunpack.c.l.b16 %v85
  %v414 = vunpack.c.l.b16 %v86
  %v415 = vunpack.c.l.b16 %v87
  %v416 = vunpack.c.l.b16 %v88
  %v417 = vunpack.c.l.b16 %v89
  %v418 = vunpack.c.l.b16 %v90
  %v419 = vunpack.c.l.b16 %v91
  %v420 = vunpack.c.l.b16 %v92
  %v421 = vunpack.c.l.b16 %v93
  %v422 = vunpack.c.l.b16 %v94
  %v423 = vunpack.c.l.b16 %v95
  %v424 = vunpack.c.l.b16 %v96
  %v425 = vpack.c.b16 %v408, %v407
  %v426 = vpack.c.b16 %v410, %v409
  %v427 = vpack.c.b16 %v412, %v411
  %v428 = vpack.c.b16 %v414, %v413
  %v429 = vpack.c.b16 %v416, %v415
  %v430 = vpack.c.b16 %v418, %v417
  %v431 = vpack.c.b16 %v420, %v419
  %v432 = vpack.c.b16 %v422, %v421
  %v433 = vpack.c.b16 %v424, %v423
  %vm443 = vcmask 130048
  %v445 = vsel %vm443, %v294, 0
  %v448 = vsel %vm443, %v296, 0
  %v451 = vsel %vm443, %v298, 0
  %v454 = vsel %vm443, %v300, 0
  %v457 = vsel %vm443, %v302, 0
  %v460 = vsel %vm443, %v304, 0
  %v463 = vsel %vm443, %v306, 0
  %v466 = vsel %vm443, %v308, 0
  %v469 = vsel %vm443, %v310, 0
  %v472 = vsel %vm443, %v312, 0
  %v475 = vsel %vm443, %v314, 0
  %v478 = vsel %vm443, %v316, 0
  %v481 = vsel %vm443, %v318, 0
  %v484 = vsel %vm443, %v320, 0
  %v487 = vsel %vm443, %v322, 0
  %v490 = vsel %vm443, %v324, 0
  %v493 = vsel %vm443, %v326, 0
  %v496 = vsel %vm443, %v328, 0
  %v499 = vsel %vm443, %v330, 0
  %v502 = vsel %vm443, %v332, 0
  %v505 = vsel %vm443, %v334, 0
  %v508 = vsel %vm443, %v336, 0
  %v511 = vsel %vm443, %v338, 0
  %v514 = vsel %vm443, %v340, 0
  %v517 = vsel %vm443, %v342, 0
  %v520 = vsel %vm443, %v344, 0
  %v523 = vsel %vm443, %v346, 0
  %v526 = vsel %vm443, %v348, 0
  %v529 = vsel %vm443, %v350, 0
  %v532 = vsel %vm443, %v352, 0
  %v535 = vsel %vm443, %v354, 0
  %v538 = vsel %vm443, %v356, 0
  %540 = vmatpush.bf16.msra.mxu0 %v432
  %541 = vmatpush.bf16.msra.mxu0 %v431
  %542 = vmatpush.bf16.msra.mxu0 %v430
  %543 = vmatpush.bf16.msra.mxu0 %v429
  %544 = vmatpush.bf16.msra.mxu0 %v428
  %545 = vmatpush.bf16.msra.mxu0 %v427
  %546 = vmatpush.bf16.msra.mxu0 %v426
  %547 = vmatpush.bf16.msra.mxu0 %v425
  %548 = vmatmul.bf16.gmra.mxu0 %v293
  %v549 = vpop.f32.mrf.mxu0
  %v550 = vadd.f32 %v99, %v549
  %v551 = vpop.f32.mrf.mxu0
  %v552 = vadd.f32 %v99, %v551
  %553 = vmatmul.bf16.gmra.mxu0 %v295
  %v554 = vpop.f32.mrf.mxu0
  %v555 = vadd.f32 %v99, %v554
  %v556 = vpop.f32.mrf.mxu0
  %v557 = vadd.f32 %v99, %v556
  %558 = vmatmul.bf16.gmra.mxu0 %v297
  %v559 = vpop.f32.mrf.mxu0
  %v560 = vadd.f32 %v99, %v559
  %v561 = vpop.f32.mrf.mxu0
  %v562 = vadd.f32 %v99, %v561
  %563 = vmatmul.bf16.gmra.mxu0 %v299
  %v564 = vpop.f32.mrf.mxu0
  %v565 = vadd.f32 %v99, %v564
  %v566 = vpop.f32.mrf.mxu0
  %v567 = vadd.f32 %v99, %v566
  %568 = vmatmul.bf16.gmra.mxu0 %v301
  %v569 = vpop.f32.mrf.mxu0
  %v570 = vadd.f32 %v99, %v569
  %v571 = vpop.f32.mrf.mxu0
  %v572 = vadd.f32 %v99, %v571
  %573 = vmatmul.bf16.gmra.mxu0 %v303
  %v574 = vpop.f32.mrf.mxu0
  %v575 = vadd.f32 %v99, %v574
  %v576 = vpop.f32.mrf.mxu0
  %v577 = vadd.f32 %v99, %v576
  %578 = vmatmul.bf16.gmra.mxu0 %v305
  %v579 = vpop.f32.mrf.mxu0
  %v580 = vadd.f32 %v99, %v579
  %v581 = vpop.f32.mrf.mxu0
  %v582 = vadd.f32 %v99, %v581
  %583 = vmatmul.bf16.gmra.mxu0 %v307
  %v584 = vpop.f32.mrf.mxu0
  %v585 = vadd.f32 %v99, %v584
  %v586 = vpop.f32.mrf.mxu0
  %v587 = vadd.f32 %v99, %v586
  %588 = vmatmul.bf16.gmra.mxu0 %v309
  %v589 = vpop.f32.mrf.mxu0
  %v590 = vadd.f32 %v99, %v589
  %v591 = vpop.f32.mrf.mxu0
  %v592 = vadd.f32 %v99, %v591
  %593 = vmatmul.bf16.gmra.mxu0 %v311
  %v594 = vpop.f32.mrf.mxu0
  %v595 = vadd.f32 %v99, %v594
  %v596 = vpop.f32.mrf.mxu0
  %v597 = vadd.f32 %v99, %v596
  %598 = vmatmul.bf16.gmra.mxu0 %v313
  %v599 = vpop.f32.mrf.mxu0
  %v600 = vadd.f32 %v99, %v599
  %v601 = vpop.f32.mrf.mxu0
  %v602 = vadd.f32 %v99, %v601
  %603 = vmatmul.bf16.gmra.mxu0 %v315
  %v604 = vpop.f32.mrf.mxu0
  %v605 = vadd.f32 %v99, %v604
  %v606 = vpop.f32.mrf.mxu0
  %v607 = vadd.f32 %v99, %v606
  %608 = vmatmul.bf16.gmra.mxu0 %v317
  %v609 = vpop.f32.mrf.mxu0
  %v610 = vadd.f32 %v99, %v609
  %v611 = vpop.f32.mrf.mxu0
  %v612 = vadd.f32 %v99, %v611
  %613 = vmatmul.bf16.gmra.mxu0 %v319
  %v614 = vpop.f32.mrf.mxu0
  %v615 = vadd.f32 %v99, %v614
  %v616 = vpop.f32.mrf.mxu0
  %v617 = vadd.f32 %v99, %v616
  %618 = vmatmul.bf16.gmra.mxu0 %v321
  %v619 = vpop.f32.mrf.mxu0
  %v620 = vadd.f32 %v99, %v619
  %v621 = vpop.f32.mrf.mxu0
  %v622 = vadd.f32 %v99, %v621
  %623 = vmatmul.bf16.gmra.mxu0 %v323
  %v624 = vpop.f32.mrf.mxu0
  %v625 = vadd.f32 %v99, %v624
  %v626 = vpop.f32.mrf.mxu0
  %v627 = vadd.f32 %v99, %v626
  %628 = vmatmul.bf16.gmra.mxu0 %v325
  %v629 = vpop.f32.mrf.mxu0
  %v630 = vadd.f32 %v99, %v629
  %v631 = vpop.f32.mrf.mxu0
  %v632 = vadd.f32 %v99, %v631
  %633 = vmatmul.bf16.gmra.mxu0 %v327
  %v634 = vpop.f32.mrf.mxu0
  %v635 = vadd.f32 %v99, %v634
  %v636 = vpop.f32.mrf.mxu0
  %v637 = vadd.f32 %v99, %v636
  %638 = vmatmul.bf16.gmra.mxu0 %v329
  %v639 = vpop.f32.mrf.mxu0
  %v640 = vadd.f32 %v99, %v639
  %v641 = vpop.f32.mrf.mxu0
  %v642 = vadd.f32 %v99, %v641
  %643 = vmatmul.bf16.gmra.mxu0 %v331
  %v644 = vpop.f32.mrf.mxu0
  %v645 = vadd.f32 %v99, %v644
  %v646 = vpop.f32.mrf.mxu0
  %v647 = vadd.f32 %v99, %v646
  %648 = vmatmul.bf16.gmra.mxu0 %v333
  %v649 = vpop.f32.mrf.mxu0
  %v650 = vadd.f32 %v99, %v649
  %v651 = vpop.f32.mrf.mxu0
  %v652 = vadd.f32 %v99, %v651
  %653 = vmatmul.bf16.gmra.mxu0 %v335
  %v654 = vpop.f32.mrf.mxu0
  %v655 = vadd.f32 %v99, %v654
  %v656 = vpop.f32.mrf.mxu0
  %v657 = vadd.f32 %v99, %v656
  %658 = vmatmul.bf16.gmra.mxu0 %v337
  %v659 = vpop.f32.mrf.mxu0
  %v660 = vadd.f32 %v99, %v659
  %v661 = vpop.f32.mrf.mxu0
  %v662 = vadd.f32 %v99, %v661
  %663 = vmatmul.bf16.gmra.mxu0 %v339
  %v664 = vpop.f32.mrf.mxu0
  %v665 = vadd.f32 %v99, %v664
  %v666 = vpop.f32.mrf.mxu0
  %v667 = vadd.f32 %v99, %v666
  %668 = vmatmul.bf16.gmra.mxu0 %v341
  %v669 = vpop.f32.mrf.mxu0
  %v670 = vadd.f32 %v99, %v669
  %v671 = vpop.f32.mrf.mxu0
  %v672 = vadd.f32 %v99, %v671
  %673 = vmatmul.bf16.gmra.mxu0 %v343
  %v674 = vpop.f32.mrf.mxu0
  %v675 = vadd.f32 %v99, %v674
  %v676 = vpop.f32.mrf.mxu0
  %v677 = vadd.f32 %v99, %v676
  %678 = vmatmul.bf16.gmra.mxu0 %v345
  %v679 = vpop.f32.mrf.mxu0
  %v680 = vadd.f32 %v99, %v679
  %v681 = vpop.f32.mrf.mxu0
  %v682 = vadd.f32 %v99, %v681
  %683 = vmatmul.bf16.gmra.mxu0 %v347
  %v684 = vpop.f32.mrf.mxu0
  %v685 = vadd.f32 %v99, %v684
  %v686 = vpop.f32.mrf.mxu0
  %v687 = vadd.f32 %v99, %v686
  %688 = vmatmul.bf16.gmra.mxu0 %v349
  %v689 = vpop.f32.mrf.mxu0
  %v690 = vadd.f32 %v99, %v689
  %v691 = vpop.f32.mrf.mxu0
  %v692 = vadd.f32 %v99, %v691
  %693 = vmatmul.bf16.gmra.mxu0 %v351
  %v694 = vpop.f32.mrf.mxu0
  %v695 = vadd.f32 %v99, %v694
  %v696 = vpop.f32.mrf.mxu0
  %v697 = vadd.f32 %v99, %v696
  %698 = vmatmul.bf16.gmra.mxu0 %v353
  %v699 = vpop.f32.mrf.mxu0
  %v700 = vadd.f32 %v99, %v699
  %v701 = vpop.f32.mrf.mxu0
  %v702 = vadd.f32 %v99, %v701
  %703 = vmatmul.bf16.gmra.mxu0 %v355
  %v704 = vpop.f32.mrf.mxu0
  %v705 = vadd.f32 %v99, %v704
  %v706 = vpop.f32.mrf.mxu0
  %v707 = vadd.f32 %v99, %v706
  %708 = vdwg.mxu0
  %709 = vmatpush.bf16.msra.mxu0 0
  %710 = vmatpush.bf16.msra.mxu0 0
  %711 = vmatpush.bf16.msra.mxu0 0
  %712 = vmatpush.bf16.msra.mxu0 0
  %713 = vmatpush.bf16.msra.mxu0 0
  %714 = vmatpush.bf16.msra.mxu0 0
  %715 = vmatpush.bf16.msra.mxu0 0
  %716 = vmatpush.bf16.msra.mxu0 %v433
  %717 = vmatmul.bf16.gmra.mxu0 %v445
  %v718 = vpop.f32.mrf.mxu0
  %v719 = vadd.f32 %v550, %v718
  %v720 = vpop.f32.mrf.mxu0
  %v721 = vadd.f32 %v552, %v720
  %722 = vmatmul.bf16.gmra.mxu0 %v448
  %v723 = vpop.f32.mrf.mxu0
  %v724 = vadd.f32 %v555, %v723
  %v725 = vpop.f32.mrf.mxu0
  %v726 = vadd.f32 %v557, %v725
  %727 = vmatmul.bf16.gmra.mxu0 %v451
  %v728 = vpop.f32.mrf.mxu0
  %v729 = vadd.f32 %v560, %v728
  %v730 = vpop.f32.mrf.mxu0
  %v731 = vadd.f32 %v562, %v730
  %732 = vmatmul.bf16.gmra.mxu0 %v454
  %v733 = vpop.f32.mrf.mxu0
  %v734 = vadd.f32 %v565, %v733
  %v735 = vpop.f32.mrf.mxu0
  %v736 = vadd.f32 %v567, %v735
  %737 = vmatmul.bf16.gmra.mxu0 %v457
  %v738 = vpop.f32.mrf.mxu0
  %v739 = vadd.f32 %v570, %v738
  %v740 = vpop.f32.mrf.mxu0
  %v741 = vadd.f32 %v572, %v740
  %742 = vmatmul.bf16.gmra.mxu0 %v460
  %v743 = vpop.f32.mrf.mxu0
  %v744 = vadd.f32 %v575, %v743
  %v745 = vpop.f32.mrf.mxu0
  %v746 = vadd.f32 %v577, %v745
  %747 = vmatmul.bf16.gmra.mxu0 %v463
  %v748 = vpop.f32.mrf.mxu0
  %v749 = vadd.f32 %v580, %v748
  %v750 = vpop.f32.mrf.mxu0
  %v751 = vadd.f32 %v582, %v750
  %752 = vmatmul.bf16.gmra.mxu0 %v466
  %v753 = vpop.f32.mrf.mxu0
  %v754 = vadd.f32 %v585, %v753
  %v755 = vpop.f32.mrf.mxu0
  %v756 = vadd.f32 %v587, %v755
  %757 = vmatmul.bf16.gmra.mxu0 %v469
  %v758 = vpop.f32.mrf.mxu0
  %v759 = vadd.f32 %v590, %v758
  %v760 = vpop.f32.mrf.mxu0
  %v761 = vadd.f32 %v592, %v760
  %762 = vmatmul.bf16.gmra.mxu0 %v472
  %v763 = vpop.f32.mrf.mxu0
  %v764 = vadd.f32 %v595, %v763
  %v765 = vpop.f32.mrf.mxu0
  %v766 = vadd.f32 %v597, %v765
  %767 = vmatmul.bf16.gmra.mxu0 %v475
  %v768 = vpop.f32.mrf.mxu0
  %v769 = vadd.f32 %v600, %v768
  %v770 = vpop.f32.mrf.mxu0
  %v771 = vadd.f32 %v602, %v770
  %772 = vmatmul.bf16.gmra.mxu0 %v478
  %v773 = vpop.f32.mrf.mxu0
  %v774 = vadd.f32 %v605, %v773
  %v775 = vpop.f32.mrf.mxu0
  %v776 = vadd.f32 %v607, %v775
  %777 = vmatmul.bf16.gmra.mxu0 %v481
  %v778 = vpop.f32.mrf.mxu0
  %v779 = vadd.f32 %v610, %v778
  %v780 = vpop.f32.mrf.mxu0
  %v781 = vadd.f32 %v612, %v780
  %782 = vmatmul.bf16.gmra.mxu0 %v484
  %v783 = vpop.f32.mrf.mxu0
  %v784 = vadd.f32 %v615, %v783
  %v785 = vpop.f32.mrf.mxu0
  %v786 = vadd.f32 %v617, %v785
  %787 = vmatmul.bf16.gmra.mxu0 %v487
  %v788 = vpop.f32.mrf.mxu0
  %v789 = vadd.f32 %v620, %v788
  %v790 = vpop.f32.mrf.mxu0
  %v791 = vadd.f32 %v622, %v790
  %792 = vmatmul.bf16.gmra.mxu0 %v490
  %v793 = vpop.f32.mrf.mxu0
  %v794 = vadd.f32 %v625, %v793
  %v795 = vpop.f32.mrf.mxu0
  %v796 = vadd.f32 %v627, %v795
  %797 = vmatmul.bf16.gmra.mxu0 %v493
  %v798 = vpop.f32.mrf.mxu0
  %v799 = vadd.f32 %v630, %v798
  %v800 = vpop.f32.mrf.mxu0
  %v801 = vadd.f32 %v632, %v800
  %802 = vmatmul.bf16.gmra.mxu0 %v496
  %v803 = vpop.f32.mrf.mxu0
  %v804 = vadd.f32 %v635, %v803
  %v805 = vpop.f32.mrf.mxu0
  %v806 = vadd.f32 %v637, %v805
  %807 = vmatmul.bf16.gmra.mxu0 %v499
  %v808 = vpop.f32.mrf.mxu0
  %v809 = vadd.f32 %v640, %v808
  %v810 = vpop.f32.mrf.mxu0
  %v811 = vadd.f32 %v642, %v810
  %812 = vmatmul.bf16.gmra.mxu0 %v502
  %v813 = vpop.f32.mrf.mxu0
  %v814 = vadd.f32 %v645, %v813
  %v815 = vpop.f32.mrf.mxu0
  %v816 = vadd.f32 %v647, %v815
  %817 = vmatmul.bf16.gmra.mxu0 %v505
  %v818 = vpop.f32.mrf.mxu0
  %v819 = vadd.f32 %v650, %v818
  %v820 = vpop.f32.mrf.mxu0
  %v821 = vadd.f32 %v652, %v820
  %822 = vmatmul.bf16.gmra.mxu0 %v508
  %v823 = vpop.f32.mrf.mxu0
  %v824 = vadd.f32 %v655, %v823
  %v825 = vpop.f32.mrf.mxu0
  %v826 = vadd.f32 %v657, %v825
  %827 = vmatmul.bf16.gmra.mxu0 %v511
  %v828 = vpop.f32.mrf.mxu0
  %v829 = vadd.f32 %v660, %v828
  %v830 = vpop.f32.mrf.mxu0
  %v831 = vadd.f32 %v662, %v830
  %832 = vmatmul.bf16.gmra.mxu0 %v514
  %v833 = vpop.f32.mrf.mxu0
  %v834 = vadd.f32 %v665, %v833
  %v835 = vpop.f32.mrf.mxu0
  %v836 = vadd.f32 %v667, %v835
  %837 = vmatmul.bf16.gmra.mxu0 %v517
  %v838 = vpop.f32.mrf.mxu0
  %v839 = vadd.f32 %v670, %v838
  %v840 = vpop.f32.mrf.mxu0
  %v841 = vadd.f32 %v672, %v840
  %842 = vmatmul.bf16.gmra.mxu0 %v520
  %v843 = vpop.f32.mrf.mxu0
  %v844 = vadd.f32 %v675, %v843
  %v845 = vpop.f32.mrf.mxu0
  %v846 = vadd.f32 %v677, %v845
  %847 = vmatmul.bf16.gmra.mxu0 %v523
  %v848 = vpop.f32.mrf.mxu0
  %v849 = vadd.f32 %v680, %v848
  %v850 = vpop.f32.mrf.mxu0
  %v851 = vadd.f32 %v682, %v850
  %852 = vmatmul.bf16.gmra.mxu0 %v526
  %v853 = vpop.f32.mrf.mxu0
  %v854 = vadd.f32 %v685, %v853
  %v855 = vpop.f32.mrf.mxu0
  %v856 = vadd.f32 %v687, %v855
  %857 = vmatmul.bf16.gmra.mxu0 %v529
  %v858 = vpop.f32.mrf.mxu0
  %v859 = vadd.f32 %v690, %v858
  %v860 = vpop.f32.mrf.mxu0
  %v861 = vadd.f32 %v692, %v860
  %862 = vmatmul.bf16.gmra.mxu0 %v532
  %v863 = vpop.f32.mrf.mxu0
  %v864 = vadd.f32 %v695, %v863
  %v865 = vpop.f32.mrf.mxu0
  %v866 = vadd.f32 %v697, %v865
  %867 = vmatmul.bf16.gmra.mxu0 %v535
  %v868 = vpop.f32.mrf.mxu0
  %v869 = vadd.f32 %v700, %v868
  %v870 = vpop.f32.mrf.mxu0
  %v871 = vadd.f32 %v702, %v870
  %872 = vmatmul.bf16.gmra.mxu0 %v538
  %v873 = vpop.f32.mrf.mxu0
  %v874 = vadd.f32 %v705, %v873
  %v875 = vpop.f32.mrf.mxu0
  %v876 = vadd.f32 %v707, %v875
  %877 = vdwg.mxu0
  %v878 = vpack.c.bf16 %v719, %v719
  %v879 = vpack.c.bf16 %v721, %v721
  %v880 = vpack.c.bf16 %v724, %v724
  %v881 = vpack.c.bf16 %v726, %v726
  %v882 = vpack.c.bf16 %v729, %v729
  %v883 = vpack.c.bf16 %v731, %v731
  %v884 = vpack.c.bf16 %v734, %v734
  %v885 = vpack.c.bf16 %v736, %v736
  %v886 = vpack.c.bf16 %v739, %v739
  %v887 = vpack.c.bf16 %v741, %v741
  %v888 = vpack.c.bf16 %v744, %v744
  %v889 = vpack.c.bf16 %v746, %v746
  %v890 = vpack.c.bf16 %v749, %v749
  %v891 = vpack.c.bf16 %v751, %v751
  %v892 = vpack.c.bf16 %v754, %v754
  %v893 = vpack.c.bf16 %v756, %v756
  %v894 = vpack.c.bf16 %v759, %v759
  %v895 = vpack.c.bf16 %v761, %v761
  %v896 = vpack.c.bf16 %v764, %v764
  %v897 = vpack.c.bf16 %v766, %v766
  %v898 = vpack.c.bf16 %v769, %v769
  %v899 = vpack.c.bf16 %v771, %v771
  %v900 = vpack.c.bf16 %v774, %v774
  %v901 = vpack.c.bf16 %v776, %v776
  %v902 = vpack.c.bf16 %v779, %v779
  %v903 = vpack.c.bf16 %v781, %v781
  %v904 = vpack.c.bf16 %v784, %v784
  %v905 = vpack.c.bf16 %v786, %v786
  %v906 = vpack.c.bf16 %v789, %v789
  %v907 = vpack.c.bf16 %v791, %v791
  %v908 = vpack.c.bf16 %v794, %v794
  %v909 = vpack.c.bf16 %v796, %v796
  %v910 = vpack.c.bf16 %v799, %v799
  %v911 = vpack.c.bf16 %v801, %v801
  %v912 = vpack.c.bf16 %v804, %v804
  %v913 = vpack.c.bf16 %v806, %v806
  %v914 = vpack.c.bf16 %v809, %v809
  %v915 = vpack.c.bf16 %v811, %v811
  %v916 = vpack.c.bf16 %v814, %v814
  %v917 = vpack.c.bf16 %v816, %v816
  %v918 = vpack.c.bf16 %v819, %v819
  %v919 = vpack.c.bf16 %v821, %v821
  %v920 = vpack.c.bf16 %v824, %v824
  %v921 = vpack.c.bf16 %v826, %v826
  %v922 = vpack.c.bf16 %v829, %v829
  %v923 = vpack.c.bf16 %v831, %v831
  %v924 = vpack.c.bf16 %v834, %v834
  %v925 = vpack.c.bf16 %v836, %v836
  %v926 = vpack.c.bf16 %v839, %v839
  %v927 = vpack.c.bf16 %v841, %v841
  %v928 = vpack.c.bf16 %v844, %v844
  %v929 = vpack.c.bf16 %v846, %v846
  %v930 = vpack.c.bf16 %v849, %v849
  %v931 = vpack.c.bf16 %v851, %v851
  %v932 = vpack.c.bf16 %v854, %v854
  %v933 = vpack.c.bf16 %v856, %v856
  %v934 = vpack.c.bf16 %v859, %v859
  %v935 = vpack.c.bf16 %v861, %v861
  %v936 = vpack.c.bf16 %v864, %v864
  %v937 = vpack.c.bf16 %v866, %v866
  %v938 = vpack.c.bf16 %v869, %v869
  %v939 = vpack.c.bf16 %v871, %v871
  %v940 = vpack.c.bf16 %v874, %v874
  %v941 = vpack.c.bf16 %v876, %v876
  %vm942 = vcmask 125952
  %943 = vst.msk [vmem:[%s3] sm:$0xf] %vm942, %v878
  %944 = vst.msk [vmem:[%s3 + $0x4] sm:$0xf] %vm942, %v879
  %945 = vst.msk [vmem:[%s3 + $0x8] sm:$0xf] %vm942, %v880
  %946 = vst.msk [vmem:[%s3 + $0xc] sm:$0xf] %vm942, %v881
  %947 = vst.msk [vmem:[%s3 + $0x10] sm:$0xf] %vm942, %v882
  %948 = vst.msk [vmem:[%s3 + $0x14] sm:$0xf] %vm942, %v883
  %949 = vst.msk [vmem:[%s3 + $0x18] sm:$0xf] %vm942, %v884
  %950 = vst.msk [vmem:[%s3 + $0x1c] sm:$0xf] %vm942, %v885
  %951 = vst.msk [vmem:[%s3 + $0x20] sm:$0xf] %vm942, %v886
  %952 = vst.msk [vmem:[%s3 + $0x24] sm:$0xf] %vm942, %v887
  %953 = vst.msk [vmem:[%s3 + $0x28] sm:$0xf] %vm942, %v888
  %954 = vst.msk [vmem:[%s3 + $0x2c] sm:$0xf] %vm942, %v889
  %955 = vst.msk [vmem:[%s3 + $0x30] sm:$0xf] %vm942, %v890
  %956 = vst.msk [vmem:[%s3 + $0x34] sm:$0xf] %vm942, %v891
  %957 = vst.msk [vmem:[%s3 + $0x38] sm:$0xf] %vm942, %v892
  %958 = vst.msk [vmem:[%s3 + $0x3c] sm:$0xf] %vm942, %v893
  %959 = vst.msk [vmem:[%s3 + $0x40] sm:$0xf] %vm942, %v894
  %960 = vst.msk [vmem:[%s3 + $0x44] sm:$0xf] %vm942, %v895
  %961 = vst.msk [vmem:[%s3 + $0x48] sm:$0xf] %vm942, %v896
  %962 = vst.msk [vmem:[%s3 + $0x4c] sm:$0xf] %vm942, %v897
  %963 = vst.msk [vmem:[%s3 + $0x50] sm:$0xf] %vm942, %v898
  %964 = vst.msk [vmem:[%s3 + $0x54] sm:$0xf] %vm942, %v899
  %965 = vst.msk [vmem:[%s3 + $0x58] sm:$0xf] %vm942, %v900
  %966 = vst.msk [vmem:[%s3 + $0x5c] sm:$0xf] %vm942, %v901
  %967 = vst.msk [vmem:[%s3 + $0x60] sm:$0xf] %vm942, %v902
  %968 = vst.msk [vmem:[%s3 + $0x64] sm:$0xf] %vm942, %v903
  %969 = vst.msk [vmem:[%s3 + $0x68] sm:$0xf] %vm942, %v904
  %970 = vst.msk [vmem:[%s3 + $0x6c] sm:$0xf] %vm942, %v905
  %971 = vst.msk [vmem:[%s3 + $0x70] sm:$0xf] %vm942, %v906
  %972 = vst.msk [vmem:[%s3 + $0x74] sm:$0xf] %vm942, %v907
  %973 = vst.msk [vmem:[%s3 + $0x78] sm:$0xf] %vm942, %v908
  %974 = vst.msk [vmem:[%s3 + $0x7c] sm:$0xf] %vm942, %v909
  %975 = vst.msk [vmem:[%s3 + $0x80] sm:$0xf] %vm942, %v910
  %976 = vst.msk [vmem:[%s3 + $0x84] sm:$0xf] %vm942, %v911
  %977 = vst.msk [vmem:[%s3 + $0x88] sm:$0xf] %vm942, %v912
  %978 = vst.msk [vmem:[%s3 + $0x8c] sm:$0xf] %vm942, %v913
  %979 = vst.msk [vmem:[%s3 + $0x90] sm:$0xf] %vm942, %v914
  %980 = vst.msk [vmem:[%s3 + $0x94] sm:$0xf] %vm942, %v915
  %981 = vst.msk [vmem:[%s3 + $0x98] sm:$0xf] %vm942, %v916
  %982 = vst.msk [vmem:[%s3 + $0x9c] sm:$0xf] %vm942, %v917
  %983 = vst.msk [vmem:[%s3 + $0xa0] sm:$0xf] %vm942, %v918
  %984 = vst.msk [vmem:[%s3 + $0xa4] sm:$0xf] %vm942, %v919
  %985 = vst.msk [vmem:[%s3 + $0xa8] sm:$0xf] %vm942, %v920
  %986 = vst.msk [vmem:[%s3 + $0xac] sm:$0xf] %vm942, %v921
  %987 = vst.msk [vmem:[%s3 + $0xb0] sm:$0xf] %vm942, %v922
  %988 = vst.msk [vmem:[%s3 + $0xb4] sm:$0xf] %vm942, %v923
  %989 = vst.msk [vmem:[%s3 + $0xb8] sm:$0xf] %vm942, %v924
  %990 = vst.msk [vmem:[%s3 + $0xbc] sm:$0xf] %vm942, %v925
  %991 = vst.msk [vmem:[%s3 + $0xc0] sm:$0xf] %vm942, %v926
  %992 = vst.msk [vmem:[%s3 + $0xc4] sm:$0xf] %vm942, %v927
  %993 = vst.msk [vmem:[%s3 + $0xc8] sm:$0xf] %vm942, %v928
  %994 = vst.msk [vmem:[%s3 + $0xcc] sm:$0xf] %vm942, %v929
  %995 = vst.msk [vmem:[%s3 + $0xd0] sm:$0xf] %vm942, %v930
  %996 = vst.msk [vmem:[%s3 + $0xd4] sm:$0xf] %vm942, %v931
  %997 = vst.msk [vmem:[%s3 + $0xd8] sm:$0xf] %vm942, %v932
  %998 = vst.msk [vmem:[%s3 + $0xdc] sm:$0xf] %vm942, %v933
  %999 = vst.msk [vmem:[%s3 + $0xe0] sm:$0xf] %vm942, %v934
  %1000 = vst.msk [vmem:[%s3 + $0xe4] sm:$0xf] %vm942, %v935
  %1001 = vst.msk [vmem:[%s3 + $0xe8] sm:$0xf] %vm942, %v936
  %1002 = vst.msk [vmem:[%s3 + $0xec] sm:$0xf] %vm942, %v937
  %1003 = vst.msk [vmem:[%s3 + $0xf0] sm:$0xf] %vm942, %v938
  %1004 = vst.msk [vmem:[%s3 + $0xf4] sm:$0xf] %vm942, %v939
  %1005 = vst.msk [vmem:[%s3 + $0xf8] sm:$0xf] %vm942, %v940
  %1006 = vst.msk [vmem:[%s3 + $0xfc] sm:$0xf] %vm942, %v941
  // Predicated region
  $region14: #{dbcism_forward.17} parent=0 // pred_check
    _
  $region15: #{dbcism_forward.17} parent=0 // pred_check_branch
    %1008 = sbr.rel (0) target = $region17
  $region16: #{dbcism_forward.17} parent=0 // pred_region
    _
  $region17: #{dbcism_forward.17} parent=0 // pred_fallthru
    _
  // Predicated region
  $region18: #{dbcism_forward.17} parent=0 // pred_check
    _
  $region19: #{dbcism_forward.17} parent=0 // pred_check_branch
    %1010 = sbr.rel (0) target = $region21
  $region20: #{dbcism_forward.17} parent=0 // pred_region
    _
  $region21: #{dbcism_forward.17} parent=0 // pred_fallthru
    _

// kernel: dbcism_forward.16
$region0: #{dbcism_forward.16}
  #allocation0 [shape = 'u32[]', space=smem, size = 0x4, offset = 0x4, fixed_abs, tag = 'smem constant byte address 0x4 - core index']
  #allocation1 [shape = 'u32[72,128]{1,0:T(1,128)}', space=vmem, size = 0x9000, scoped, tag = 'internal scratch']
  %s0 = inlined_call_operand.vmem [shape: bf16[128,144], index: 0, kind: input, shape index: {}]
  %s1 = inlined_call_operand.vmem [shape: bf16[144,16], index: 1, kind: input, shape index: {}]
  %s2 = inlined_call_operand.vmem [shape: f32[1,16], index: 2, kind: input, shape index: {}]
  %s3 = inlined_call_operand.vmem [shape: bf16[128,16], index: 3, kind: output, shape index: {}]
  %s4 = sld [smem:[#allocation0]]
  $region22: #{dbcism_forward.16} parent=0
    _
  %s6 = ssub.s32 1, %s4
  %s7 = scalar_select 0, %s6, %s4
  // Predicated region
  $region2: #{dbcism_forward.16} parent=0 // pred_check
    _
  $region3: #{dbcism_forward.16} parent=0 // pred_check_branch
    %9 = sbr.rel (0) target = $region5
  $region4: #{dbcism_forward.16} parent=0 // pred_region
    _
  $region5: #{dbcism_forward.16} parent=0 // pred_fallthru
    _
  // Predicated region
  $region6: #{dbcism_forward.16} parent=0 // pred_check
    _
  $region7: #{dbcism_forward.16} parent=0 // pred_check_branch
    %11 = sbr.rel (0) target = $region9
  $region8: #{dbcism_forward.16} parent=0 // pred_region
    _
  $region9: #{dbcism_forward.16} parent=0 // pred_fallthru
    _
  // Predicated region
  $region10: #{dbcism_forward.16} parent=0 // pred_check
    _
  $region11: #{dbcism_forward.16} parent=0 // pred_check_branch
    %13 = sbr.rel (0) target = $region13
  $region12: #{dbcism_forward.16} parent=0 // pred_region
    _
  $region13: #{dbcism_forward.16} parent=0 // pred_fallthru
    _
  %v15 = vld [vmem:[%s0] sm:$0xff]
  %v16 = vld [vmem:[%s0 + $0x8] sm:$0xff]
  %v17 = vld [vmem:[%s0 + $0x10] sm:$0xff]
  %v18 = vld [vmem:[%s0 + $0x18] sm:$0xff]
  %v19 = vld [vmem:[%s0 + $0x20] sm:$0xff]
  %v20 = vld [vmem:[%s0 + $0x28] sm:$0xff]
  %v21 = vld [vmem:[%s0 + $0x30] sm:$0xff]
  %v22 = vld [vmem:[%s0 + $0x38] sm:$0xff]
  %v23 = vld [vmem:[%s0 + $0x40] sm:$0xff]
  %v24 = vld [vmem:[%s0 + $0x48] sm:$0xff]
  %v25 = vld [vmem:[%s0 + $0x50] sm:$0xff]
  %v26 = vld [vmem:[%s0 + $0x58] sm:$0xff]
  %v27 = vld [vmem:[%s0 + $0x60] sm:$0xff]
  %v28 = vld [vmem:[%s0 + $0x68] sm:$0xff]
  %v29 = vld [vmem:[%s0 + $0x70] sm:$0xff]
  %v30 = vld [vmem:[%s0 + $0x78] sm:$0xff]
  %v31 = vld [vmem:[%s1] sm:$0xf]
  %v32 = vld [vmem:[%s1 + $0x4] sm:$0xf]
  %v33 = vld [vmem:[%s1 + $0x8] sm:$0xf]
  %v34 = vld [vmem:[%s1 + $0xc] sm:$0xf]
  %v35 = vld [vmem:[%s1 + $0x10] sm:$0xf]
  %v36 = vld [vmem:[%s1 + $0x14] sm:$0xf]
  %v37 = vld [vmem:[%s1 + $0x18] sm:$0xf]
  %v38 = vld [vmem:[%s1 + $0x1c] sm:$0xf]
  %v39 = vld [vmem:[%s1 + $0x20] sm:$0xf]
  %v40 = vld [vmem:[%s1 + $0x24] sm:$0xf]
  %v41 = vld [vmem:[%s1 + $0x28] sm:$0xf]
  %v42 = vld [vmem:[%s1 + $0x2c] sm:$0xf]
  %v43 = vld [vmem:[%s1 + $0x30] sm:$0xf]
  %v44 = vld [vmem:[%s1 + $0x34] sm:$0xf]
  %v45 = vld [vmem:[%s1 + $0x38] sm:$0xf]
  %v46 = vld [vmem:[%s1 + $0x3c] sm:$0xf]
  %v47 = vld [vmem:[%s1 + $0x40] sm:$0xf]
  %v48 = vld [vmem:[%s1 + $0x44] sm:$0xf]
  %v49 = vld [vmem:[%s2] sm:$0x1]
  %v51 = vperm.slane %v49, 0
  %v69 = vunpack.c.l.b16 %v15
  %v70 = vunpack.c.h.b16 %v15
  %v71 = vunpack.c.l.b16 %v16
  %v72 = vunpack.c.h.b16 %v16
  %v73 = vunpack.c.l.b16 %v17
  %v74 = vunpack.c.h.b16 %v17
  %v75 = vunpack.c.l.b16 %v18
  %v76 = vunpack.c.h.b16 %v18
  %v77 = vunpack.c.l.b16 %v19
  %v78 = vunpack.c.h.b16 %v19
  %v79 = vunpack.c.l.b16 %v20
  %v80 = vunpack.c.h.b16 %v20
  %v81 = vunpack.c.l.b16 %v21
  %v82 = vunpack.c.h.b16 %v21
  %v83 = vunpack.c.l.b16 %v22
  %v84 = vunpack.c.h.b16 %v22
  %v85 = vunpack.c.l.b16 %v23
  %v86 = vunpack.c.h.b16 %v23
  %v87 = vunpack.c.l.b16 %v24
  %v88 = vunpack.c.h.b16 %v24
  %v89 = vunpack.c.l.b16 %v25
  %v90 = vunpack.c.h.b16 %v25
  %v91 = vunpack.c.l.b16 %v26
  %v92 = vunpack.c.h.b16 %v26
  %v93 = vunpack.c.l.b16 %v27
  %v94 = vunpack.c.h.b16 %v27
  %v95 = vunpack.c.l.b16 %v28
  %v96 = vunpack.c.h.b16 %v28
  %v97 = vunpack.c.l.b16 %v29
  %v98 = vunpack.c.h.b16 %v29
  %v99 = vunpack.c.l.b16 %v30
  %v100 = vunpack.c.h.b16 %v30
  %v101 = vpack.c.b16 %v71, %v69
  %v102 = vpack.c.b16 %v72, %v70
  %v103 = vpack.c.b16 %v75, %v73
  %v104 = vpack.c.b16 %v76, %v74
  %v105 = vpack.c.b16 %v79, %v77
  %v106 = vpack.c.b16 %v80, %v78
  %v107 = vpack.c.b16 %v83, %v81
  %v108 = vpack.c.b16 %v84, %v82
  %v109 = vpack.c.b16 %v87, %v85
  %v110 = vpack.c.b16 %v88, %v86
  %v111 = vpack.c.b16 %v91, %v89
  %v112 = vpack.c.b16 %v92, %v90
  %v113 = vpack.c.b16 %v95, %v93
  %v114 = vpack.c.b16 %v96, %v94
  %v115 = vpack.c.b16 %v99, %v97
  %v116 = vpack.c.b16 %v100, %v98
  %v143 = vunpack.c.l.b16 %v31
  %v144 = vunpack.c.l.b16 %v32
  %v145 = vunpack.c.l.b16 %v33
  %v146 = vunpack.c.l.b16 %v34
  %v147 = vunpack.c.l.b16 %v35
  %v148 = vunpack.c.l.b16 %v36
  %v149 = vunpack.c.l.b16 %v37
  %v150 = vunpack.c.l.b16 %v38
  %v151 = vunpack.c.l.b16 %v39
  %v152 = vunpack.c.l.b16 %v40
  %v153 = vunpack.c.l.b16 %v41
  %v154 = vunpack.c.l.b16 %v42
  %v155 = vunpack.c.l.b16 %v43
  %v156 = vunpack.c.l.b16 %v44
  %v157 = vunpack.c.l.b16 %v45
  %v158 = vunpack.c.l.b16 %v46
  %v159 = vunpack.c.l.b16 %v47
  %v160 = vunpack.c.l.b16 %v48
  %v161 = vpack.c.b16 %v144, %v143
  %v162 = vpack.c.b16 %v146, %v145
  %v163 = vpack.c.b16 %v148, %v147
  %v164 = vpack.c.b16 %v150, %v149
  %v165 = vpack.c.b16 %v152, %v151
  %v166 = vpack.c.b16 %v154, %v153
  %v167 = vpack.c.b16 %v156, %v155
  %v168 = vpack.c.b16 %v158, %v157
  %v169 = vpack.c.b16 %v160, %v159
  %vm179 = vcmask 130048
  %v181 = vsel %vm179, %v102, 0
  %v184 = vsel %vm179, %v104, 0
  %v187 = vsel %vm179, %v106, 0
  %v190 = vsel %vm179, %v108, 0
  %v193 = vsel %vm179, %v110, 0
  %v196 = vsel %vm179, %v112, 0
  %v199 = vsel %vm179, %v114, 0
  %v202 = vsel %vm179, %v116, 0
  %204 = vmatpush.bf16.msra.mxu0 %v168
  %205 = vmatpush.bf16.msra.mxu0 %v167
  %206 = vmatpush.bf16.msra.mxu0 %v166
  %207 = vmatpush.bf16.msra.mxu0 %v165
  %208 = vmatpush.bf16.msra.mxu0 %v164
  %209 = vmatpush.bf16.msra.mxu0 %v163
  %210 = vmatpush.bf16.msra.mxu0 %v162
  %211 = vmatpush.bf16.msra.mxu0 %v161
  %212 = vmatmul.bf16.gmra.mxu0 %v101
  %v213 = vpop.f32.mrf.mxu0
  %v214 = vadd.f32 %v51, %v213
  %v215 = vpop.f32.mrf.mxu0
  %v216 = vadd.f32 %v51, %v215
  %217 = vmatmul.bf16.gmra.mxu0 %v103
  %v218 = vpop.f32.mrf.mxu0
  %v219 = vadd.f32 %v51, %v218
  %v220 = vpop.f32.mrf.mxu0
  %v221 = vadd.f32 %v51, %v220
  %222 = vmatmul.bf16.gmra.mxu0 %v105
  %v223 = vpop.f32.mrf.mxu0
  %v224 = vadd.f32 %v51, %v223
  %v225 = vpop.f32.mrf.mxu0
  %v226 = vadd.f32 %v51, %v225
  %227 = vmatmul.bf16.gmra.mxu0 %v107
  %v228 = vpop.f32.mrf.mxu0
  %v229 = vadd.f32 %v51, %v228
  %v230 = vpop.f32.mrf.mxu0
  %v231 = vadd.f32 %v51, %v230
  %232 = vmatmul.bf16.gmra.mxu0 %v109
  %v233 = vpop.f32.mrf.mxu0
  %v234 = vadd.f32 %v51, %v233
  %v235 = vpop.f32.mrf.mxu0
  %v236 = vadd.f32 %v51, %v235
  %237 = vmatmul.bf16.gmra.mxu0 %v111
  %v238 = vpop.f32.mrf.mxu0
  %v239 = vadd.f32 %v51, %v238
  %v240 = vpop.f32.mrf.mxu0
  %v241 = vadd.f32 %v51, %v240
  %242 = vmatmul.bf16.gmra.mxu0 %v113
  %v243 = vpop.f32.mrf.mxu0
  %v244 = vadd.f32 %v51, %v243
  %v245 = vpop.f32.mrf.mxu0
  %v246 = vadd.f32 %v51, %v245
  %247 = vmatmul.bf16.gmra.mxu0 %v115
  %v248 = vpop.f32.mrf.mxu0
  %v249 = vadd.f32 %v51, %v248
  %v250 = vpop.f32.mrf.mxu0
  %v251 = vadd.f32 %v51, %v250
  %252 = vdwg.mxu0
  %253 = vmatpush.bf16.msra.mxu0 0
  %254 = vmatpush.bf16.msra.mxu0 0
  %255 = vmatpush.bf16.msra.mxu0 0
  %256 = vmatpush.bf16.msra.mxu0 0
  %257 = vmatpush.bf16.msra.mxu0 0
  %258 = vmatpush.bf16.msra.mxu0 0
  %259 = vmatpush.bf16.msra.mxu0 0
  %260 = vmatpush.bf16.msra.mxu0 %v169
  %261 = vmatmul.bf16.gmra.mxu0 %v181
  %v262 = vpop.f32.mrf.mxu0
  %v263 = vadd.f32 %v214, %v262
  %v264 = vpop.f32.mrf.mxu0
  %v265 = vadd.f32 %v216, %v264
  %266 = vmatmul.bf16.gmra.mxu0 %v184
  %v267 = vpop.f32.mrf.mxu0
  %v268 = vadd.f32 %v219, %v267
  %v269 = vpop.f32.mrf.mxu0
  %v270 = vadd.f32 %v221, %v269
  %271 = vmatmul.bf16.gmra.mxu0 %v187
  %v272 = vpop.f32.mrf.mxu0
  %v273 = vadd.f32 %v224, %v272
  %v274 = vpop.f32.mrf.mxu0
  %v275 = vadd.f32 %v226, %v274
  %276 = vmatmul.bf16.gmra.mxu0 %v190
  %v277 = vpop.f32.mrf.mxu0
  %v278 = vadd.f32 %v229, %v277
  %v279 = vpop.f32.mrf.mxu0
  %v280 = vadd.f32 %v231, %v279
  %281 = vmatmul.bf16.gmra.mxu0 %v193
  %v282 = vpop.f32.mrf.mxu0
  %v283 = vadd.f32 %v234, %v282
  %v284 = vpop.f32.mrf.mxu0
  %v285 = vadd.f32 %v236, %v284
  %286 = vmatmul.bf16.gmra.mxu0 %v196
  %v287 = vpop.f32.mrf.mxu0
  %v288 = vadd.f32 %v239, %v287
  %v289 = vpop.f32.mrf.mxu0
  %v290 = vadd.f32 %v241, %v289
  %291 = vmatmul.bf16.gmra.mxu0 %v199
  %v292 = vpop.f32.mrf.mxu0
  %v293 = vadd.f32 %v244, %v292
  %v294 = vpop.f32.mrf.mxu0
  %v295 = vadd.f32 %v246, %v294
  %296 = vmatmul.bf16.gmra.mxu0 %v202
  %v297 = vpop.f32.mrf.mxu0
  %v298 = vadd.f32 %v249, %v297
  %v299 = vpop.f32.mrf.mxu0
  %v300 = vadd.f32 %v251, %v299
  %301 = vdwg.mxu0
  %v302 = vpack.c.bf16 %v263, %v263
  %v303 = vpack.c.bf16 %v265, %v265
  %v304 = vpack.c.bf16 %v268, %v268
  %v305 = vpack.c.bf16 %v270, %v270
  %v306 = vpack.c.bf16 %v273, %v273
  %v307 = vpack.c.bf16 %v275, %v275
  %v308 = vpack.c.bf16 %v278, %v278
  %v309 = vpack.c.bf16 %v280, %v280
  %v310 = vpack.c.bf16 %v283, %v283
  %v311 = vpack.c.bf16 %v285, %v285
  %v312 = vpack.c.bf16 %v288, %v288
  %v313 = vpack.c.bf16 %v290, %v290
  %v314 = vpack.c.bf16 %v293, %v293
  %v315 = vpack.c.bf16 %v295, %v295
  %v316 = vpack.c.bf16 %v298, %v298
  %v317 = vpack.c.bf16 %v300, %v300
  %vm318 = vcmask 125952
  %319 = vst.msk [vmem:[%s3] sm:$0xf] %vm318, %v302
  %320 = vst.msk [vmem:[%s3 + $0x4] sm:$0xf] %vm318, %v303
  %321 = vst.msk [vmem:[%s3 + $0x8] sm:$0xf] %vm318, %v304
  %322 = vst.msk [vmem:[%s3 + $0xc] sm:$0xf] %vm318, %v305
  %323 = vst.msk [vmem:[%s3 + $0x10] sm:$0xf] %vm318, %v306
  %324 = vst.msk [vmem:[%s3 + $0x14] sm:$0xf] %vm318, %v307
  %325 = vst.msk [vmem:[%s3 + $0x18] sm:$0xf] %vm318, %v308
  %326 = vst.msk [vmem:[%s3 + $0x1c] sm:$0xf] %vm318, %v309
  %327 = vst.msk [vmem:[%s3 + $0x20] sm:$0xf] %vm318, %v310
  %328 = vst.msk [vmem:[%s3 + $0x24] sm:$0xf] %vm318, %v311
  %329 = vst.msk [vmem:[%s3 + $0x28] sm:$0xf] %vm318, %v312
  %330 = vst.msk [vmem:[%s3 + $0x2c] sm:$0xf] %vm318, %v313
  %331 = vst.msk [vmem:[%s3 + $0x30] sm:$0xf] %vm318, %v314
  %332 = vst.msk [vmem:[%s3 + $0x34] sm:$0xf] %vm318, %v315
  %333 = vst.msk [vmem:[%s3 + $0x38] sm:$0xf] %vm318, %v316
  %334 = vst.msk [vmem:[%s3 + $0x3c] sm:$0xf] %vm318, %v317
  // Predicated region
  $region14: #{dbcism_forward.16} parent=0 // pred_check
    _
  $region15: #{dbcism_forward.16} parent=0 // pred_check_branch
    %336 = sbr.rel (0) target = $region17
  $region16: #{dbcism_forward.16} parent=0 // pred_region
    _
  $region17: #{dbcism_forward.16} parent=0 // pred_fallthru
    _
  // Predicated region
  $region18: #{dbcism_forward.16} parent=0 // pred_check
    _
  $region19: #{dbcism_forward.16} parent=0 // pred_check_branch
    %338 = sbr.rel (0) target = $region21
  $region20: #{dbcism_forward.16} parent=0 // pred_region
    _
  $region21: #{dbcism_forward.16} parent=0 // pred_fallthru
    _

// kernel: dbcism_forward.15
$region0: #{dbcism_forward.15}
  #allocation0 [shape = 'u32[]', space=smem, size = 0x4, offset = 0x4, fixed_abs, tag = 'smem constant byte address 0x4 - core index']
  #allocation1 [shape = 'u32[72,128]{1,0:T(1,128)}', space=vmem, size = 0x9000, scoped, tag = 'internal scratch']
  %s0 = inlined_call_operand.vmem [shape: bf16[32,144], index: 0, kind: input, shape index: {}]
  %s1 = inlined_call_operand.vmem [shape: bf16[144,16], index: 1, kind: input, shape index: {}]
  %s2 = inlined_call_operand.vmem [shape: f32[1,16], index: 2, kind: input, shape index: {}]
  %s3 = inlined_call_operand.vmem [shape: bf16[32,16], index: 3, kind: output, shape index: {}]
  %s4 = sld [smem:[#allocation0]]
  $region22: #{dbcism_forward.15} parent=0
    _
  %s6 = ssub.s32 1, %s4
  %s7 = scalar_select 0, %s6, %s4
  // Predicated region
  $region2: #{dbcism_forward.15} parent=0 // pred_check
    _
  $region3: #{dbcism_forward.15} parent=0 // pred_check_branch
    %9 = sbr.rel (0) target = $region5
  $region4: #{dbcism_forward.15} parent=0 // pred_region
    _
  $region5: #{dbcism_forward.15} parent=0 // pred_fallthru
    _
  // Predicated region
  $region6: #{dbcism_forward.15} parent=0 // pred_check
    _
  $region7: #{dbcism_forward.15} parent=0 // pred_check_branch
    %11 = sbr.rel (0) target = $region9
  $region8: #{dbcism_forward.15} parent=0 // pred_region
    _
  $region9: #{dbcism_forward.15} parent=0 // pred_fallthru
    _
  // Predicated region
  $region10: #{dbcism_forward.15} parent=0 // pred_check
    _
  $region11: #{dbcism_forward.15} parent=0 // pred_check_branch
    %13 = sbr.rel (0) target = $region13
  $region12: #{dbcism_forward.15} parent=0 // pred_region
    _
  $region13: #{dbcism_forward.15} parent=0 // pred_fallthru
    _
  %v15 = vld [vmem:[%s0] sm:$0xff]
  %v16 = vld [vmem:[%s0 + $0x8] sm:$0xff]
  %v17 = vld [vmem:[%s0 + $0x10] sm:$0xff]
  %v18 = vld [vmem:[%s0 + $0x18] sm:$0xff]
  %v19 = vld [vmem:[%s1] sm:$0xf]
  %v20 = vld [vmem:[%s1 + $0x4] sm:$0xf]
  %v21 = vld [vmem:[%s1 + $0x8] sm:$0xf]
  %v22 = vld [vmem:[%s1 + $0xc] sm:$0xf]
  %v23 = vld [vmem:[%s1 + $0x10] sm:$0xf]
  %v24 = vld [vmem:[%s1 + $0x14] sm:$0xf]
  %v25 = vld [vmem:[%s1 + $0x18] sm:$0xf]
  %v26 = vld [vmem:[%s1 + $0x1c] sm:$0xf]
  %v27 = vld [vmem:[%s1 + $0x20] sm:$0xf]
  %v28 = vld [vmem:[%s1 + $0x24] sm:$0xf]
  %v29 = vld [vmem:[%s1 + $0x28] sm:$0xf]
  %v30 = vld [vmem:[%s1 + $0x2c] sm:$0xf]
  %v31 = vld [vmem:[%s1 + $0x30] sm:$0xf]
  %v32 = vld [vmem:[%s1 + $0x34] sm:$0xf]
  %v33 = vld [vmem:[%s1 + $0x38] sm:$0xf]
  %v34 = vld [vmem:[%s1 + $0x3c] sm:$0xf]
  %v35 = vld [vmem:[%s1 + $0x40] sm:$0xf]
  %v36 = vld [vmem:[%s1 + $0x44] sm:$0xf]
  %v37 = vld [vmem:[%s2] sm:$0x1]
  %v39 = vperm.slane %v37, 0
  %v45 = vunpack.c.l.b16 %v15
  %v46 = vunpack.c.h.b16 %v15
  %v47 = vunpack.c.l.b16 %v16
  %v48 = vunpack.c.h.b16 %v16
  %v49 = vunpack.c.l.b16 %v17
  %v50 = vunpack.c.h.b16 %v17
  %v51 = vunpack.c.l.b16 %v18
  %v52 = vunpack.c.h.b16 %v18
  %v53 = vpack.c.b16 %v47, %v45
  %v54 = vpack.c.b16 %v48, %v46
  %v55 = vpack.c.b16 %v51, %v49
  %v56 = vpack.c.b16 %v52, %v50
  %v77 = vunpack.c.l.b16 %v19
  %v78 = vunpack.c.l.b16 %v20
  %v79 = vunpack.c.l.b16 %v21
  %v80 = vunpack.c.l.b16 %v22
  %v81 = vunpack.c.l.b16 %v23
  %v82 = vunpack.c.l.b16 %v24
  %v83 = vunpack.c.l.b16 %v25
  %v84 = vunpack.c.l.b16 %v26
  %v85 = vunpack.c.l.b16 %v27
  %v86 = vunpack.c.l.b16 %v28
  %v87 = vunpack.c.l.b16 %v29
  %v88 = vunpack.c.l.b16 %v30
  %v89 = vunpack.c.l.b16 %v31
  %v90 = vunpack.c.l.b16 %v32
  %v91 = vunpack.c.l.b16 %v33
  %v92 = vunpack.c.l.b16 %v34
  %v93 = vunpack.c.l.b16 %v35
  %v94 = vunpack.c.l.b16 %v36
  %v95 = vpack.c.b16 %v78, %v77
  %v96 = vpack.c.b16 %v80, %v79
  %v97 = vpack.c.b16 %v82, %v81
  %v98 = vpack.c.b16 %v84, %v83
  %v99 = vpack.c.b16 %v86, %v85
  %v100 = vpack.c.b16 %v88, %v87
  %v101 = vpack.c.b16 %v90, %v89
  %v102 = vpack.c.b16 %v92, %v91
  %v103 = vpack.c.b16 %v94, %v93
  %vm113 = vcmask 130048
  %v115 = vsel %vm113, %v54, 0
  %v118 = vsel %vm113, %v56, 0
  %120 = vmatpush.bf16.msra.mxu0 %v102
  %121 = vmatpush.bf16.msra.mxu0 %v101
  %122 = vmatpush.bf16.msra.mxu0 %v100
  %123 = vmatpush.bf16.msra.mxu0 %v99
  %124 = vmatpush.bf16.msra.mxu0 %v98
  %125 = vmatpush.bf16.msra.mxu0 %v97
  %126 = vmatpush.bf16.msra.mxu0 %v96
  %127 = vmatpush.bf16.msra.mxu0 %v95
  %128 = vmatmul.bf16.gmra.mxu0 %v53
  %v129 = vpop.f32.mrf.mxu0
  %v130 = vadd.f32 %v39, %v129
  %v131 = vpop.f32.mrf.mxu0
  %v132 = vadd.f32 %v39, %v131
  %133 = vmatmul.bf16.gmra.mxu0 %v55
  %v134 = vpop.f32.mrf.mxu0
  %v135 = vadd.f32 %v39, %v134
  %v136 = vpop.f32.mrf.mxu0
  %v137 = vadd.f32 %v39, %v136
  %138 = vdwg.mxu0
  %139 = vmatpush.bf16.msra.mxu0 0
  %140 = vmatpush.bf16.msra.mxu0 0
  %141 = vmatpush.bf16.msra.mxu0 0
  %142 = vmatpush.bf16.msra.mxu0 0
  %143 = vmatpush.bf16.msra.mxu0 0
  %144 = vmatpush.bf16.msra.mxu0 0
  %145 = vmatpush.bf16.msra.mxu0 0
  %146 = vmatpush.bf16.msra.mxu0 %v103
  %147 = vmatmul.bf16.gmra.mxu0 %v115
  %v148 = vpop.f32.mrf.mxu0
  %v149 = vadd.f32 %v130, %v148
  %v150 = vpop.f32.mrf.mxu0
  %v151 = vadd.f32 %v132, %v150
  %152 = vmatmul.bf16.gmra.mxu0 %v118
  %v153 = vpop.f32.mrf.mxu0
  %v154 = vadd.f32 %v135, %v153
  %v155 = vpop.f32.mrf.mxu0
  %v156 = vadd.f32 %v137, %v155
  %157 = vdwg.mxu0
  %v158 = vpack.c.bf16 %v149, %v149
  %v159 = vpack.c.bf16 %v151, %v151
  %v160 = vpack.c.bf16 %v154, %v154
  %v161 = vpack.c.bf16 %v156, %v156
  %vm162 = vcmask 125952
  %163 = vst.msk [vmem:[%s3] sm:$0xf] %vm162, %v158
  %164 = vst.msk [vmem:[%s3 + $0x4] sm:$0xf] %vm162, %v159
  %165 = vst.msk [vmem:[%s3 + $0x8] sm:$0xf] %vm162, %v160
  %166 = vst.msk [vmem:[%s3 + $0xc] sm:$0xf] %vm162, %v161
  // Predicated region
  $region14: #{dbcism_forward.15} parent=0 // pred_check
    _
  $region15: #{dbcism_forward.15} parent=0 // pred_check_branch
    %168 = sbr.rel (0) target = $region17
  $region16: #{dbcism_forward.15} parent=0 // pred_region
    _
  $region17: #{dbcism_forward.15} parent=0 // pred_fallthru
    _
  // Predicated region
  $region18: #{dbcism_forward.15} parent=0 // pred_check
    _
  $region19: #{dbcism_forward.15} parent=0 // pred_check_branch
    %170 = sbr.rel (0) target = $region21
  $region20: #{dbcism_forward.15} parent=0 // pred_region
    _
  $region21: #{dbcism_forward.15} parent=0 // pred_fallthru
    _

// kernel: dbcism_forward.14
$region0: #{dbcism_forward.14}
  #allocation0 [shape = 'u32[]', space=smem, size = 0x4, offset = 0x4, fixed_abs, tag = 'smem constant byte address 0x4 - core index']
  #allocation1 [shape = 'u32[72,128]{1,0:T(1,128)}', space=vmem, size = 0x9000, scoped, tag = 'internal scratch']
  %s0 = inlined_call_operand.vmem [shape: bf16[8,144], index: 0, kind: input, shape index: {}]
  %s1 = inlined_call_operand.vmem [shape: bf16[144,16], index: 1, kind: input, shape index: {}]
  %s2 = inlined_call_operand.vmem [shape: f32[1,16], index: 2, kind: input, shape index: {}]
  %s3 = inlined_call_operand.vmem [shape: bf16[8,16], index: 3, kind: output, shape index: {}]
  %s4 = sld [smem:[#allocation0]]
  $region22: #{dbcism_forward.14} parent=0
    _
  %s6 = ssub.s32 1, %s4
  %s7 = scalar_select 0, %s6, %s4
  // Predicated region
  $region2: #{dbcism_forward.14} parent=0 // pred_check
    _
  $region3: #{dbcism_forward.14} parent=0 // pred_check_branch
    %9 = sbr.rel (0) target = $region5
  $region4: #{dbcism_forward.14} parent=0 // pred_region
    _
  $region5: #{dbcism_forward.14} parent=0 // pred_fallthru
    _
  // Predicated region
  $region6: #{dbcism_forward.14} parent=0 // pred_check
    _
  $region7: #{dbcism_forward.14} parent=0 // pred_check_branch
    %11 = sbr.rel (0) target = $region9
  $region8: #{dbcism_forward.14} parent=0 // pred_region
    _
  $region9: #{dbcism_forward.14} parent=0 // pred_fallthru
    _
  // Predicated region
  $region10: #{dbcism_forward.14} parent=0 // pred_check
    _
  $region11: #{dbcism_forward.14} parent=0 // pred_check_branch
    %13 = sbr.rel (0) target = $region13
  $region12: #{dbcism_forward.14} parent=0 // pred_region
    _
  $region13: #{dbcism_forward.14} parent=0 // pred_fallthru
    _
  %v15 = vld [vmem:[%s0] sm:$0xff]
  %v16 = vld [vmem:[%s1] sm:$0xf]
  %v17 = vld [vmem:[%s1 + $0x4] sm:$0xf]
  %v18 = vld [vmem:[%s1 + $0x8] sm:$0xf]
  %v19 = vld [vmem:[%s1 + $0xc] sm:$0xf]
  %v20 = vld [vmem:[%s1 + $0x10] sm:$0xf]
  %v21 = vld [vmem:[%s1 + $0x14] sm:$0xf]
  %v22 = vld [vmem:[%s1 + $0x18] sm:$0xf]
  %v23 = vld [vmem:[%s1 + $0x1c] sm:$0xf]
  %v24 = vld [vmem:[%s1 + $0x20] sm:$0xf]
  %v25 = vld [vmem:[%s1 + $0x24] sm:$0xf]
  %v26 = vld [vmem:[%s1 + $0x28] sm:$0xf]
  %v27 = vld [vmem:[%s1 + $0x2c] sm:$0xf]
  %v28 = vld [vmem:[%s1 + $0x30] sm:$0xf]
  %v29 = vld [vmem:[%s1 + $0x34] sm:$0xf]
  %v30 = vld [vmem:[%s1 + $0x38] sm:$0xf]
  %v31 = vld [vmem:[%s1 + $0x3c] sm:$0xf]
  %v32 = vld [vmem:[%s1 + $0x40] sm:$0xf]
  %v33 = vld [vmem:[%s1 + $0x44] sm:$0xf]
  %v34 = vld [vmem:[%s2] sm:$0x1]
  %v36 = vperm.slane %v34, 0
  %v39 = vunpack.c.l.b16 %v15
  %v40 = vunpack.c.h.b16 %v15
  %v41 = vpack.c.b16 %v39, %v39
  %v42 = vpack.c.b16 %v40, %v40
  %v62 = vunpack.c.l.b16 %v16
  %v63 = vunpack.c.l.b16 %v17
  %v64 = vunpack.c.l.b16 %v18
  %v65 = vunpack.c.l.b16 %v19
  %v66 = vunpack.c.l.b16 %v20
  %v67 = vunpack.c.l.b16 %v21
  %v68 = vunpack.c.l.b16 %v22
  %v69 = vunpack.c.l.b16 %v23
  %v70 = vunpack.c.l.b16 %v24
  %v71 = vunpack.c.l.b16 %v25
  %v72 = vunpack.c.l.b16 %v26
  %v73 = vunpack.c.l.b16 %v27
  %v74 = vunpack.c.l.b16 %v28
  %v75 = vunpack.c.l.b16 %v29
  %v76 = vunpack.c.l.b16 %v30
  %v77 = vunpack.c.l.b16 %v31
  %v78 = vunpack.c.l.b16 %v32
  %v79 = vunpack.c.l.b16 %v33
  %v80 = vpack.c.b16 %v63, %v62
  %v81 = vpack.c.b16 %v65, %v64
  %v82 = vpack.c.b16 %v67, %v66
  %v83 = vpack.c.b16 %v69, %v68
  %v84 = vpack.c.b16 %v71, %v70
  %v85 = vpack.c.b16 %v73, %v72
  %v86 = vpack.c.b16 %v75, %v74
  %v87 = vpack.c.b16 %v77, %v76
  %v88 = vpack.c.b16 %v79, %v78
  %vm98 = vcmask 130048
  %v100 = vsel %vm98, %v42, 0
  %102 = vmatpush.bf16.msra.mxu0 %v87
  %103 = vmatpush.bf16.msra.mxu0 %v86
  %104 = vmatpush.bf16.msra.mxu0 %v85
  %105 = vmatpush.bf16.msra.mxu0 %v84
  %106 = vmatpush.bf16.msra.mxu0 %v83
  %107 = vmatpush.bf16.msra.mxu0 %v82
  %108 = vmatpush.bf16.msra.mxu0 %v81
  %109 = vmatpush.bf16.msra.mxu0 %v80
  %110 = vmatmul.bf16.gmra.mxu0 %v41
  %v111 = vpop.f32.mrf.mxu0
  %v112 = vadd.f32 %v36, %v111
  %v113 = vpop.f32.mrf.mxu0
  %114 = vdwg.mxu0
  %115 = vmatpush.bf16.msra.mxu0 0
  %116 = vmatpush.bf16.msra.mxu0 0
  %117 = vmatpush.bf16.msra.mxu0 0
  %118 = vmatpush.bf16.msra.mxu0 0
  %119 = vmatpush.bf16.msra.mxu0 0
  %120 = vmatpush.bf16.msra.mxu0 0
  %121 = vmatpush.bf16.msra.mxu0 0
  %122 = vmatpush.bf16.msra.mxu0 %v88
  %123 = vmatmul.bf16.gmra.mxu0 %v100
  %v124 = vpop.f32.mrf.mxu0
  %v125 = vadd.f32 %v112, %v124
  %v126 = vpop.f32.mrf.mxu0
  %127 = vdwg.mxu0
  %v128 = vpack.c.bf16 %v125, %v125
  %vm129 = vcmask 125952
  %130 = vst.msk [vmem:[%s3] sm:$0xf] %vm129, %v128
  // Predicated region
  $region14: #{dbcism_forward.14} parent=0 // pred_check
    _
  $region15: #{dbcism_forward.14} parent=0 // pred_check_branch
    %132 = sbr.rel (0) target = $region17
  $region16: #{dbcism_forward.14} parent=0 // pred_region
    _
  $region17: #{dbcism_forward.14} parent=0 // pred_fallthru
    _
  // Predicated region
  $region18: #{dbcism_forward.14} parent=0 // pred_check
    _
  $region19: #{dbcism_forward.14} parent=0 // pred_check_branch
    %134 = sbr.rel (0) target = $region21
  $region20: #{dbcism_forward.14} parent=0 // pred_region
    _
  $region21: #{dbcism_forward.14} parent=0 // pred_fallthru
    _

// kernel: dbcism_forward.18
$region0: #{dbcism_forward.18}
  #allocation0 [shape = 'u32[]', space=smem, size = 0x4, offset = 0x4, fixed_abs, tag = 'smem constant byte address 0x4 - core index']
  #allocation1 [shape = 'u32[72,128]{1,0:T(1,128)}', space=vmem, size = 0x9000, scoped, tag = 'internal scratch']
  %s0 = inlined_call_operand.vmem [shape: bf16[512,576], index: 0, kind: input, shape index: {}]
  %s1 = inlined_call_operand.vmem [shape: bf16[576,32], index: 1, kind: input, shape index: {}]
  %s2 = inlined_call_operand.vmem [shape: f32[1,32], index: 2, kind: input, shape index: {}]
  %s3 = inlined_call_operand.vmem [shape: bf16[32,2], index: 3, kind: input, shape index: {}]
  %s4 = inlined_call_operand.vmem [shape: f32[1,2], index: 4, kind: input, shape index: {}]
  %s5 = inlined_call_operand.vmem [shape: f32[512,2], index: 5, kind: output, shape index: {}]
  %s6 = sld [smem:[#allocation0]]
  $region30: #{dbcism_forward.18} parent=0
    _
  %s8 = ssub.s32 1, %s6
  %s9 = scalar_select 0, %s8, %s6
  // Predicated region
  $region2: #{dbcism_forward.18} parent=0 // pred_check
    _
  $region3: #{dbcism_forward.18} parent=0 // pred_check_branch
    %11 = sbr.rel (0) target = $region5
  $region4: #{dbcism_forward.18} parent=0 // pred_region
    _
  $region5: #{dbcism_forward.18} parent=0 // pred_fallthru
    _
  // Predicated region
  $region6: #{dbcism_forward.18} parent=0 // pred_check
    _
  $region7: #{dbcism_forward.18} parent=0 // pred_check_branch
    %13 = sbr.rel (0) target = $region9
  $region8: #{dbcism_forward.18} parent=0 // pred_region
    _
  $region9: #{dbcism_forward.18} parent=0 // pred_fallthru
    _
  // Predicated region
  $region10: #{dbcism_forward.18} parent=0 // pred_check
    _
  $region11: #{dbcism_forward.18} parent=0 // pred_check_branch
    %15 = sbr.rel (0) target = $region13
  $region12: #{dbcism_forward.18} parent=0 // pred_region
    _
  $region13: #{dbcism_forward.18} parent=0 // pred_fallthru
    _
  // Predicated region
  $region14: #{dbcism_forward.18} parent=0 // pred_check
    _
  $region15: #{dbcism_forward.18} parent=0 // pred_check_branch
    %17 = sbr.rel (0) target = $region17
  $region16: #{dbcism_forward.18} parent=0 // pred_region
    _
  $region17: #{dbcism_forward.18} parent=0 // pred_fallthru
    _
  // Predicated region
  $region18: #{dbcism_forward.18} parent=0 // pred_check
    _
  $region19: #{dbcism_forward.18} parent=0 // pred_check_branch
    %19 = sbr.rel (0) target = $region21
  $region20: #{dbcism_forward.18} parent=0 // pred_region
    _
  $region21: #{dbcism_forward.18} parent=0 // pred_fallthru
    _
  %v21 = vld [vmem:[%s0] sm:$0xff]
  %v22 = vld [vmem:[%s0 + $0x8] sm:$0xff]
  %v23 = vld [vmem:[%s0 + $0x10] sm:$0xf]
  %v24 = vld [vmem:[%s0 + $0x14] sm:$0xff]
  %v25 = vld [vmem:[%s0 + $0x1c] sm:$0xff]
  %v26 = vld [vmem:[%s0 + $0x24] sm:$0xf]
  %v27 = vld [vmem:[%s0 + $0x28] sm:$0xff]
  %v28 = vld [vmem:[%s0 + $0x30] sm:$0xff]
  %v29 = vld [vmem:[%s0 + $0x38] sm:$0xf]
  %v30 = vld [vmem:[%s0 + $0x3c] sm:$0xff]
  %v31 = vld [vmem:[%s0 + $0x44] sm:$0xff]
  %v32 = vld [vmem:[%s0 + $0x4c] sm:$0xf]
  %v33 = vld [vmem:[%s0 + $0x50] sm:$0xff]
  %v34 = vld [vmem:[%s0 + $0x58] sm:$0xff]
  %v35 = vld [vmem:[%s0 + $0x60] sm:$0xf]
  %v36 = vld [vmem:[%s0 + $0x64] sm:$0xff]
  %v37 = vld [vmem:[%s0 + $0x6c] sm:$0xff]
  %v38 = vld [vmem:[%s0 + $0x74] sm:$0xf]
  %v39 = vld [vmem:[%s0 + $0x78] sm:$0xff]
  %v40 = vld [vmem:[%s0 + $0x80] sm:$0xff]
  %v41 = vld [vmem:[%s0 + $0x88] sm:$0xf]
  %v42 = vld [vmem:[%s0 + $0x8c] sm:$0xff]
  %v43 = vld [vmem:[%s0 + $0x94] sm:$0xff]
  %v44 = vld [vmem:[%s0 + $0x9c] sm:$0xf]
  %v45 = vld [vmem:[%s0 + $0xa0] sm:$0xff]
  %v46 = vld [vmem:[%s0 + $0xa8] sm:$0xff]
  %v47 = vld [vmem:[%s0 + $0xb0] sm:$0xf]
  %v48 = vld [vmem:[%s0 + $0xb4] sm:$0xff]
  %v49 = vld [vmem:[%s0 + $0xbc] sm:$0xff]
  %v50 = vld [vmem:[%s0 + $0xc4] sm:$0xf]
  %v51 = vld [vmem:[%s0 + $0xc8] sm:$0xff]
  %v52 = vld [vmem:[%s0 + $0xd0] sm:$0xff]
  %v53 = vld [vmem:[%s0 + $0xd8] sm:$0xf]
  %v54 = vld [vmem:[%s0 + $0xdc] sm:$0xff]
  %v55 = vld [vmem:[%s0 + $0xe4] sm:$0xff]
  %v56 = vld [vmem:[%s0 + $0xec] sm:$0xf]
  %v57 = vld [vmem:[%s0 + $0xf0] sm:$0xff]
  %v58 = vld [vmem:[%s0 + $0xf8] sm:$0xff]
  %v59 = vld [vmem:[%s0 + $0x100] sm:$0xf]
  %v60 = vld [vmem:[%s0 + $0x104] sm:$0xff]
  %v61 = vld [vmem:[%s0 + $0x10c] sm:$0xff]
  %v62 = vld [vmem:[%s0 + $0x114] sm:$0xf]
  %v63 = vld [vmem:[%s0 + $0x118] sm:$0xff]
  %v64 = vld [vmem:[%s0 + $0x120] sm:$0xff]
  %v65 = vld [vmem:[%s0 + $0x128] sm:$0xf]
  %v66 = vld [vmem:[%s0 + $0x12c] sm:$0xff]
  %v67 = vld [vmem:[%s0 + $0x134] sm:$0xff]
  %v68 = vld [vmem:[%s0 + $0x13c] sm:$0xf]
  %v69 = vld [vmem:[%s0 + $0x140] sm:$0xff]
  %v70 = vld [vmem:[%s0 + $0x148] sm:$0xff]
  %v71 = vld [vmem:[%s0 + $0x150] sm:$0xf]
  %v72 = vld [vmem:[%s0 + $0x154] sm:$0xff]
  %v73 = vld [vmem:[%s0 + $0x15c] sm:$0xff]
  %v74 = vld [vmem:[%s0 + $0x164] sm:$0xf]
  %v75 = vld [vmem:[%s0 + $0x168] sm:$0xff]
  %v76 = vld [vmem:[%s0 + $0x170] sm:$0xff]
  %v77 = vld [vmem:[%s0 + $0x178] sm:$0xf]
  %v78 = vld [vmem:[%s0 + $0x17c] sm:$0xff]
  %v79 = vld [vmem:[%s0 + $0x184] sm:$0xff]
  %v80 = vld [vmem:[%s0 + $0x18c] sm:$0xf]
  %v81 = vld [vmem:[%s0 + $0x190] sm:$0xff]
  %v82 = vld [vmem:[%s0 + $0x198] sm:$0xff]
  %v83 = vld [vmem:[%s0 + $0x1a0] sm:$0xf]
  %v84 = vld [vmem:[%s0 + $0x1a4] sm:$0xff]
  %v85 = vld [vmem:[%s0 + $0x1ac] sm:$0xff]
  %v86 = vld [vmem:[%s0 + $0x1b4] sm:$0xf]
  %v87 = vld [vmem:[%s0 + $0x1b8] sm:$0xff]
  %v88 = vld [vmem:[%s0 + $0x1c0] sm:$0xff]
  %v89 = vld [vmem:[%s0 + $0x1c8] sm:$0xf]
  %v90 = vld [vmem:[%s0 + $0x1cc] sm:$0xff]
  %v91 = vld [vmem:[%s0 + $0x1d4] sm:$0xff]
  %v92 = vld [vmem:[%s0 + $0x1dc] sm:$0xf]
  %v93 = vld [vmem:[%s0 + $0x1e0] sm:$0xff]
  %v94 = vld [vmem:[%s0 + $0x1e8] sm:$0xff]
  %v95 = vld [vmem:[%s0 + $0x1f0] sm:$0xf]
  %v96 = vld [vmem:[%s0 + $0x1f4] sm:$0xff]
  %v97 = vld [vmem:[%s0 + $0x1fc] sm:$0xff]
  %v98 = vld [vmem:[%s0 + $0x204] sm:$0xf]
  %v99 = vld [vmem:[%s0 + $0x208] sm:$0xff]
  %v100 = vld [vmem:[%s0 + $0x210] sm:$0xff]
  %v101 = vld [vmem:[%s0 + $0x218] sm:$0xf]
  %v102 = vld [vmem:[%s0 + $0x21c] sm:$0xff]
  %v103 = vld [vmem:[%s0 + $0x224] sm:$0xff]
  %v104 = vld [vmem:[%s0 + $0x22c] sm:$0xf]
  %v105 = vld [vmem:[%s0 + $0x230] sm:$0xff]
  %v106 = vld [vmem:[%s0 + $0x238] sm:$0xff]
  %v107 = vld [vmem:[%s0 + $0x240] sm:$0xf]
  %v108 = vld [vmem:[%s0 + $0x244] sm:$0xff]
  %v109 = vld [vmem:[%s0 + $0x24c] sm:$0xff]
  %v110 = vld [vmem:[%s0 + $0x254] sm:$0xf]
  %v111 = vld [vmem:[%s0 + $0x258] sm:$0xff]
  %v112 = vld [vmem:[%s0 + $0x260] sm:$0xff]
  %v113 = vld [vmem:[%s0 + $0x268] sm:$0xf]
  %v114 = vld [vmem:[%s0 + $0x26c] sm:$0xff]
  %v115 = vld [vmem:[%s0 + $0x274] sm:$0xff]
  %v116 = vld [vmem:[%s0 + $0x27c] sm:$0xf]
  %v117 = vld [vmem:[%s0 + $0x280] sm:$0xff]
  %v118 = vld [vmem:[%s0 + $0x288] sm:$0xff]
  %v119 = vld [vmem:[%s0 + $0x290] sm:$0xf]
  %v120 = vld [vmem:[%s0 + $0x294] sm:$0xff]
  %v121 = vld [vmem:[%s0 + $0x29c] sm:$0xff]
  %v122 = vld [vmem:[%s0 + $0x2a4] sm:$0xf]
  %v123 = vld [vmem:[%s0 + $0x2a8] sm:$0xff]
  %v124 = vld [vmem:[%s0 + $0x2b0] sm:$0xff]
  %v125 = vld [vmem:[%s0 + $0x2b8] sm:$0xf]
  %v126 = vld [vmem:[%s0 + $0x2bc] sm:$0xff]
  %v127 = vld [vmem:[%s0 + $0x2c4] sm:$0xff]
  %v128 = vld [vmem:[%s0 + $0x2cc] sm:$0xf]
  %v129 = vld [vmem:[%s0 + $0x2d0] sm:$0xff]
  %v130 = vld [vmem:[%s0 + $0x2d8] sm:$0xff]
  %v131 = vld [vmem:[%s0 + $0x2e0] sm:$0xf]
  %v132 = vld [vmem:[%s0 + $0x2e4] sm:$0xff]
  %v133 = vld [vmem:[%s0 + $0x2ec] sm:$0xff]
  %v134 = vld [vmem:[%s0 + $0x2f4] sm:$0xf]
  %v135 = vld [vmem:[%s0 + $0x2f8] sm:$0xff]
  %v136 = vld [vmem:[%s0 + $0x300] sm:$0xff]
  %v137 = vld [vmem:[%s0 + $0x308] sm:$0xf]
  %v138 = vld [vmem:[%s0 + $0x30c] sm:$0xff]
  %v139 = vld [vmem:[%s0 + $0x314] sm:$0xff]
  %v140 = vld [vmem:[%s0 + $0x31c] sm:$0xf]
  %v141 = vld [vmem:[%s0 + $0x320] sm:$0xff]
  %v142 = vld [vmem:[%s0 + $0x328] sm:$0xff]
  %v143 = vld [vmem:[%s0 + $0x330] sm:$0xf]
  %v144 = vld [vmem:[%s0 + $0x334] sm:$0xff]
  %v145 = vld [vmem:[%s0 + $0x33c] sm:$0xff]
  %v146 = vld [vmem:[%s0 + $0x344] sm:$0xf]
  %v147 = vld [vmem:[%s0 + $0x348] sm:$0xff]
  %v148 = vld [vmem:[%s0 + $0x350] sm:$0xff]
  %v149 = vld [vmem:[%s0 + $0x358] sm:$0xf]
  %v150 = vld [vmem:[%s0 + $0x35c] sm:$0xff]
  %v151 = vld [vmem:[%s0 + $0x364] sm:$0xff]
  %v152 = vld [vmem:[%s0 + $0x36c] sm:$0xf]
  %v153 = vld [vmem:[%s0 + $0x370] sm:$0xff]
  %v154 = vld [vmem:[%s0 + $0x378] sm:$0xff]
  %v155 = vld [vmem:[%s0 + $0x380] sm:$0xf]
  %v156 = vld [vmem:[%s0 + $0x384] sm:$0xff]
  %v157 = vld [vmem:[%s0 + $0x38c] sm:$0xff]
  %v158 = vld [vmem:[%s0 + $0x394] sm:$0xf]
  %v159 = vld [vmem:[%s0 + $0x398] sm:$0xff]
  %v160 = vld [vmem:[%s0 + $0x3a0] sm:$0xff]
  %v161 = vld [vmem:[%s0 + $0x3a8] sm:$0xf]
  %v162 = vld [vmem:[%s0 + $0x3ac] sm:$0xff]
  %v163 = vld [vmem:[%s0 + $0x3b4] sm:$0xff]
  %v164 = vld [vmem:[%s0 + $0x3bc] sm:$0xf]
  %v165 = vld [vmem:[%s0 + $0x3c0] sm:$0xff]
  %v166 = vld [vmem:[%s0 + $0x3c8] sm:$0xff]
  %v167 = vld [vmem:[%s0 + $0x3d0] sm:$0xf]
  %v168 = vld [vmem:[%s0 + $0x3d4] sm:$0xff]
  %v169 = vld [vmem:[%s0 + $0x3dc] sm:$0xff]
  %v170 = vld [vmem:[%s0 + $0x3e4] sm:$0xf]
  %v171 = vld [vmem:[%s0 + $0x3e8] sm:$0xff]
  %v172 = vld [vmem:[%s0 + $0x3f0] sm:$0xff]
  %v173 = vld [vmem:[%s0 + $0x3f8] sm:$0xf]
  %v174 = vld [vmem:[%s0 + $0x3fc] sm:$0xff]
  %v175 = vld [vmem:[%s0 + $0x404] sm:$0xff]
  %v176 = vld [vmem:[%s0 + $0x40c] sm:$0xf]
  %v177 = vld [vmem:[%s0 + $0x410] sm:$0xff]
  %v178 = vld [vmem:[%s0 + $0x418] sm:$0xff]
  %v179 = vld [vmem:[%s0 + $0x420] sm:$0xf]
  %v180 = vld [vmem:[%s0 + $0x424] sm:$0xff]
  %v181 = vld [vmem:[%s0 + $0x42c] sm:$0xff]
  %v182 = vld [vmem:[%s0 + $0x434] sm:$0xf]
  %v183 = vld [vmem:[%s0 + $0x438] sm:$0xff]
  %v184 = vld [vmem:[%s0 + $0x440] sm:$0xff]
  %v185 = vld [vmem:[%s0 + $0x448] sm:$0xf]
  %v186 = vld [vmem:[%s0 + $0x44c] sm:$0xff]
  %v187 = vld [vmem:[%s0 + $0x454] sm:$0xff]
  %v188 = vld [vmem:[%s0 + $0x45c] sm:$0xf]
  %v189 = vld [vmem:[%s0 + $0x460] sm:$0xff]
  %v190 = vld [vmem:[%s0 + $0x468] sm:$0xff]
  %v191 = vld [vmem:[%s0 + $0x470] sm:$0xf]
  %v192 = vld [vmem:[%s0 + $0x474] sm:$0xff]
  %v193 = vld [vmem:[%s0 + $0x47c] sm:$0xff]
  %v194 = vld [vmem:[%s0 + $0x484] sm:$0xf]
  %v195 = vld [vmem:[%s0 + $0x488] sm:$0xff]
  %v196 = vld [vmem:[%s0 + $0x490] sm:$0xff]
  %v197 = vld [vmem:[%s0 + $0x498] sm:$0xf]
  %v198 = vld [vmem:[%s0 + $0x49c] sm:$0xff]
  %v199 = vld [vmem:[%s0 + $0x4a4] sm:$0xff]
  %v200 = vld [vmem:[%s0 + $0x4ac] sm:$0xf]
  %v201 = vld [vmem:[%s0 + $0x4b0] sm:$0xff]
  %v202 = vld [vmem:[%s0 + $0x4b8] sm:$0xff]
  %v203 = vld [vmem:[%s0 + $0x4c0] sm:$0xf]
  %v204 = vld [vmem:[%s0 + $0x4c4] sm:$0xff]
  %v205 = vld [vmem:[%s0 + $0x4cc] sm:$0xff]
  %v206 = vld [vmem:[%s0 + $0x4d4] sm:$0xf]
  %v207 = vld [vmem:[%s0 + $0x4d8] sm:$0xff]
  %v208 = vld [vmem:[%s0 + $0x4e0] sm:$0xff]
  %v209 = vld [vmem:[%s0 + $0x4e8] sm:$0xf]
  %v210 = vld [vmem:[%s0 + $0x4ec] sm:$0xff]
  %v211 = vld [vmem:[%s0 + $0x4f4] sm:$0xff]
  %v212 = vld [vmem:[%s0 + $0x4fc] sm:$0xf]
  %v213 = vld [vmem:[%s1] sm:$0xf]
  %v214 = vld [vmem:[%s1 + $0x4] sm:$0xf]
  %v215 = vld [vmem:[%s1 + $0x8] sm:$0xf]
  %v216 = vld [vmem:[%s1 + $0xc] sm:$0xf]
  %v217 = vld [vmem:[%s1 + $0x10] sm:$0xf]
  %v218 = vld [vmem:[%s1 + $0x14] sm:$0xf]
  %v219 = vld [vmem:[%s1 + $0x18] sm:$0xf]
  %v220 = vld [vmem:[%s1 + $0x1c] sm:$0xf]
  %v221 = vld [vmem:[%s1 + $0x20] sm:$0xf]
  %v222 = vld [vmem:[%s1 + $0x24] sm:$0xf]
  %v223 = vld [vmem:[%s1 + $0x28] sm:$0xf]
  %v224 = vld [vmem:[%s1 + $0x2c] sm:$0xf]
  %v225 = vld [vmem:[%s1 + $0x30] sm:$0xf]
  %v226 = vld [vmem:[%s1 + $0x34] sm:$0xf]
  %v227 = vld [vmem:[%s1 + $0x38] sm:$0xf]
  %v228 = vld [vmem:[%s1 + $0x3c] sm:$0xf]
  %v229 = vld [vmem:[%s1 + $0x40] sm:$0xf]
  %v230 = vld [vmem:[%s1 + $0x44] sm:$0xf]
  %v231 = vld [vmem:[%s1 + $0x48] sm:$0xf]
  %v232 = vld [vmem:[%s1 + $0x4c] sm:$0xf]
  %v233 = vld [vmem:[%s1 + $0x50] sm:$0xf]
  %v234 = vld [vmem:[%s1 + $0x54] sm:$0xf]
  %v235 = vld [vmem:[%s1 + $0x58] sm:$0xf]
  %v236 = vld [vmem:[%s1 + $0x5c] sm:$0xf]
  %v237 = vld [vmem:[%s1 + $0x60] sm:$0xf]
  %v238 = vld [vmem:[%s1 + $0x64] sm:$0xf]
  %v239 = vld [vmem:[%s1 + $0x68] sm:$0xf]
  %v240 = vld [vmem:[%s1 + $0x6c] sm:$0xf]
  %v241 = vld [vmem:[%s1 + $0x70] sm:$0xf]
  %v242 = vld [vmem:[%s1 + $0x74] sm:$0xf]
  %v243 = vld [vmem:[%s1 + $0x78] sm:$0xf]
  %v244 = vld [vmem:[%s1 + $0x7c] sm:$0xf]
  %v245 = vld [vmem:[%s1 + $0x80] sm:$0xf]
  %v246 = vld [vmem:[%s1 + $0x84] sm:$0xf]
  %v247 = vld [vmem:[%s1 + $0x88] sm:$0xf]
  %v248 = vld [vmem:[%s1 + $0x8c] sm:$0xf]
  %v249 = vld [vmem:[%s1 + $0x90] sm:$0xf]
  %v250 = vld [vmem:[%s1 + $0x94] sm:$0xf]
  %v251 = vld [vmem:[%s1 + $0x98] sm:$0xf]
  %v252 = vld [vmem:[%s1 + $0x9c] sm:$0xf]
  %v253 = vld [vmem:[%s1 + $0xa0] sm:$0xf]
  %v254 = vld [vmem:[%s1 + $0xa4] sm:$0xf]
  %v255 = vld [vmem:[%s1 + $0xa8] sm:$0xf]
  %v256 = vld [vmem:[%s1 + $0xac] sm:$0xf]
  %v257 = vld [vmem:[%s1 + $0xb0] sm:$0xf]
  %v258 = vld [vmem:[%s1 + $0xb4] sm:$0xf]
  %v259 = vld [vmem:[%s1 + $0xb8] sm:$0xf]
  %v260 = vld [vmem:[%s1 + $0xbc] sm:$0xf]
  %v261 = vld [vmem:[%s1 + $0xc0] sm:$0xf]
  %v262 = vld [vmem:[%s1 + $0xc4] sm:$0xf]
  %v263 = vld [vmem:[%s1 + $0xc8] sm:$0xf]
  %v264 = vld [vmem:[%s1 + $0xcc] sm:$0xf]
  %v265 = vld [vmem:[%s1 + $0xd0] sm:$0xf]
  %v266 = vld [vmem:[%s1 + $0xd4] sm:$0xf]
  %v267 = vld [vmem:[%s1 + $0xd8] sm:$0xf]
  %v268 = vld [vmem:[%s1 + $0xdc] sm:$0xf]
  %v269 = vld [vmem:[%s1 + $0xe0] sm:$0xf]
  %v270 = vld [vmem:[%s1 + $0xe4] sm:$0xf]
  %v271 = vld [vmem:[%s1 + $0xe8] sm:$0xf]
  %v272 = vld [vmem:[%s1 + $0xec] sm:$0xf]
  %v273 = vld [vmem:[%s1 + $0xf0] sm:$0xf]
  %v274 = vld [vmem:[%s1 + $0xf4] sm:$0xf]
  %v275 = vld [vmem:[%s1 + $0xf8] sm:$0xf]
  %v276 = vld [vmem:[%s1 + $0xfc] sm:$0xf]
  %v277 = vld [vmem:[%s1 + $0x100] sm:$0xf]
  %v278 = vld [vmem:[%s1 + $0x104] sm:$0xf]
  %v279 = vld [vmem:[%s1 + $0x108] sm:$0xf]
  %v280 = vld [vmem:[%s1 + $0x10c] sm:$0xf]
  %v281 = vld [vmem:[%s1 + $0x110] sm:$0xf]
  %v282 = vld [vmem:[%s1 + $0x114] sm:$0xf]
  %v283 = vld [vmem:[%s1 + $0x118] sm:$0xf]
  %v284 = vld [vmem:[%s1 + $0x11c] sm:$0xf]
  %v285 = vld [vmem:[%s2] sm:$0x1]
  %v287 = vperm.slane %v285, 0
  %v481 = vunpack.c.l.b16 %v21
  %v482 = vunpack.c.h.b16 %v21
  %v483 = vunpack.c.l.b16 %v22
  %v484 = vunpack.c.h.b16 %v22
  %v485 = vunpack.c.l.b16 %v23
  %v486 = vunpack.c.l.b16 %v24
  %v487 = vunpack.c.h.b16 %v24
  %v488 = vunpack.c.l.b16 %v25
  %v489 = vunpack.c.h.b16 %v25
  %v490 = vunpack.c.l.b16 %v26
  %v491 = vunpack.c.l.b16 %v27
  %v492 = vunpack.c.h.b16 %v27
  %v493 = vunpack.c.l.b16 %v28
  %v494 = vunpack.c.h.b16 %v28
  %v495 = vunpack.c.l.b16 %v29
  %v496 = vunpack.c.l.b16 %v30
  %v497 = vunpack.c.h.b16 %v30
  %v498 = vunpack.c.l.b16 %v31
  %v499 = vunpack.c.h.b16 %v31
  %v500 = vunpack.c.l.b16 %v32
  %v501 = vunpack.c.l.b16 %v33
  %v502 = vunpack.c.h.b16 %v33
  %v503 = vunpack.c.l.b16 %v34
  %v504 = vunpack.c.h.b16 %v34
  %v505 = vunpack.c.l.b16 %v35
  %v506 = vunpack.c.l.b16 %v36
  %v507 = vunpack.c.h.b16 %v36
  %v508 = vunpack.c.l.b16 %v37
  %v509 = vunpack.c.h.b16 %v37
  %v510 = vunpack.c.l.b16 %v38
  %v511 = vunpack.c.l.b16 %v39
  %v512 = vunpack.c.h.b16 %v39
  %v513 = vunpack.c.l.b16 %v40
  %v514 = vunpack.c.h.b16 %v40
  %v515 = vunpack.c.l.b16 %v41
  %v516 = vunpack.c.l.b16 %v42
  %v517 = vunpack.c.h.b16 %v42
  %v518 = vunpack.c.l.b16 %v43
  %v519 = vunpack.c.h.b16 %v43
  %v520 = vunpack.c.l.b16 %v44
  %v521 = vunpack.c.l.b16 %v45
  %v522 = vunpack.c.h.b16 %v45
  %v523 = vunpack.c.l.b16 %v46
  %v524 = vunpack.c.h.b16 %v46
  %v525 = vunpack.c.l.b16 %v47
  %v526 = vunpack.c.l.b16 %v48
  %v527 = vunpack.c.h.b16 %v48
  %v528 = vunpack.c.l.b16 %v49
  %v529 = vunpack.c.h.b16 %v49
  %v530 = vunpack.c.l.b16 %v50
  %v531 = vunpack.c.l.b16 %v51
  %v532 = vunpack.c.h.b16 %v51
  %v533 = vunpack.c.l.b16 %v52
  %v534 = vunpack.c.h.b16 %v52
  %v535 = vunpack.c.l.b16 %v53
  %v536 = vunpack.c.l.b16 %v54
  %v537 = vunpack.c.h.b16 %v54
  %v538 = vunpack.c.l.b16 %v55
  %v539 = vunpack.c.h.b16 %v55
  %v540 = vunpack.c.l.b16 %v56
  %v541 = vunpack.c.l.b16 %v57
  %v542 = vunpack.c.h.b16 %v57
  %v543 = vunpack.c.l.b16 %v58
  %v544 = vunpack.c.h.b16 %v58
  %v545 = vunpack.c.l.b16 %v59
  %v546 = vunpack.c.l.b16 %v60
  %v547 = vunpack.c.h.b16 %v60
  %v548 = vunpack.c.l.b16 %v61
  %v549 = vunpack.c.h.b16 %v61
  %v550 = vunpack.c.l.b16 %v62
  %v551 = vunpack.c.l.b16 %v63
  %v552 = vunpack.c.h.b16 %v63
  %v553 = vunpack.c.l.b16 %v64
  %v554 = vunpack.c.h.b16 %v64
  %v555 = vunpack.c.l.b16 %v65
  %v556 = vunpack.c.l.b16 %v66
  %v557 = vunpack.c.h.b16 %v66
  %v558 = vunpack.c.l.b16 %v67
  %v559 = vunpack.c.h.b16 %v67
  %v560 = vunpack.c.l.b16 %v68
  %v561 = vunpack.c.l.b16 %v69
  %v562 = vunpack.c.h.b16 %v69
  %v563 = vunpack.c.l.b16 %v70
  %v564 = vunpack.c.h.b16 %v70
  %v565 = vunpack.c.l.b16 %v71
  %v566 = vunpack.c.l.b16 %v72
  %v567 = vunpack.c.h.b16 %v72
  %v568 = vunpack.c.l.b16 %v73
  %v569 = vunpack.c.h.b16 %v73
  %v570 = vunpack.c.l.b16 %v74
  %v571 = vunpack.c.l.b16 %v75
  %v572 = vunpack.c.h.b16 %v75
  %v573 = vunpack.c.l.b16 %v76
  %v574 = vunpack.c.h.b16 %v76
  %v575 = vunpack.c.l.b16 %v77
  %v576 = vunpack.c.l.b16 %v78
  %v577 = vunpack.c.h.b16 %v78
  %v578 = vunpack.c.l.b16 %v79
  %v579 = vunpack.c.h.b16 %v79
  %v580 = vunpack.c.l.b16 %v80
  %v581 = vunpack.c.l.b16 %v81
  %v582 = vunpack.c.h.b16 %v81
  %v583 = vunpack.c.l.b16 %v82
  %v584 = vunpack.c.h.b16 %v82
  %v585 = vunpack.c.l.b16 %v83
  %v586 = vunpack.c.l.b16 %v84
  %v587 = vunpack.c.h.b16 %v84
  %v588 = vunpack.c.l.b16 %v85
  %v589 = vunpack.c.h.b16 %v85
  %v590 = vunpack.c.l.b16 %v86
  %v591 = vunpack.c.l.b16 %v87
  %v592 = vunpack.c.h.b16 %v87
  %v593 = vunpack.c.l.b16 %v88
  %v594 = vunpack.c.h.b16 %v88
  %v595 = vunpack.c.l.b16 %v89
  %v596 = vunpack.c.l.b16 %v90
  %v597 = vunpack.c.h.b16 %v90
  %v598 = vunpack.c.l.b16 %v91
  %v599 = vunpack.c.h.b16 %v91
  %v600 = vunpack.c.l.b16 %v92
  %v601 = vunpack.c.l.b16 %v93
  %v602 = vunpack.c.h.b16 %v93
  %v603 = vunpack.c.l.b16 %v94
  %v604 = vunpack.c.h.b16 %v94
  %v605 = vunpack.c.l.b16 %v95
  %v606 = vunpack.c.l.b16 %v96
  %v607 = vunpack.c.h.b16 %v96
  %v608 = vunpack.c.l.b16 %v97
  %v609 = vunpack.c.h.b16 %v97
  %v610 = vunpack.c.l.b16 %v98
  %v611 = vunpack.c.l.b16 %v99
  %v612 = vunpack.c.h.b16 %v99
  %v613 = vunpack.c.l.b16 %v100
  %v614 = vunpack.c.h.b16 %v100
  %v615 = vunpack.c.l.b16 %v101
  %v616 = vunpack.c.l.b16 %v102
  %v617 = vunpack.c.h.b16 %v102
  %v618 = vunpack.c.l.b16 %v103
  %v619 = vunpack.c.h.b16 %v103
  %v620 = vunpack.c.l.b16 %v104
  %v621 = vunpack.c.l.b16 %v105
  %v622 = vunpack.c.h.b16 %v105
  %v623 = vunpack.c.l.b16 %v106
  %v624 = vunpack.c.h.b16 %v106
  %v625 = vunpack.c.l.b16 %v107
  %v626 = vunpack.c.l.b16 %v108
  %v627 = vunpack.c.h.b16 %v108
  %v628 = vunpack.c.l.b16 %v109
  %v629 = vunpack.c.h.b16 %v109
  %v630 = vunpack.c.l.b16 %v110
  %v631 = vunpack.c.l.b16 %v111
  %v632 = vunpack.c.h.b16 %v111
  %v633 = vunpack.c.l.b16 %v112
  %v634 = vunpack.c.h.b16 %v112
  %v635 = vunpack.c.l.b16 %v113
  %v636 = vunpack.c.l.b16 %v114
  %v637 = vunpack.c.h.b16 %v114
  %v638 = vunpack.c.l.b16 %v115
  %v639 = vunpack.c.h.b16 %v115
  %v640 = vunpack.c.l.b16 %v116
  %v641 = vunpack.c.l.b16 %v117
  %v642 = vunpack.c.h.b16 %v117
  %v643 = vunpack.c.l.b16 %v118
  %v644 = vunpack.c.h.b16 %v118
  %v645 = vunpack.c.l.b16 %v119
  %v646 = vunpack.c.l.b16 %v120
  %v647 = vunpack.c.h.b16 %v120
  %v648 = vunpack.c.l.b16 %v121
  %v649 = vunpack.c.h.b16 %v121
  %v650 = vunpack.c.l.b16 %v122
  %v651 = vunpack.c.l.b16 %v123
  %v652 = vunpack.c.h.b16 %v123
  %v653 = vunpack.c.l.b16 %v124
  %v654 = vunpack.c.h.b16 %v124
  %v655 = vunpack.c.l.b16 %v125
  %v656 = vunpack.c.l.b16 %v126
  %v657 = vunpack.c.h.b16 %v126
  %v658 = vunpack.c.l.b16 %v127
  %v659 = vunpack.c.h.b16 %v127
  %v660 = vunpack.c.l.b16 %v128
  %v661 = vunpack.c.l.b16 %v129
  %v662 = vunpack.c.h.b16 %v129
  %v663 = vunpack.c.l.b16 %v130
  %v664 = vunpack.c.h.b16 %v130
  %v665 = vunpack.c.l.b16 %v131
  %v666 = vunpack.c.l.b16 %v132
  %v667 = vunpack.c.h.b16 %v132
  %v668 = vunpack.c.l.b16 %v133
  %v669 = vunpack.c.h.b16 %v133
  %v670 = vunpack.c.l.b16 %v134
  %v671 = vunpack.c.l.b16 %v135
  %v672 = vunpack.c.h.b16 %v135
  %v673 = vunpack.c.l.b16 %v136
  %v674 = vunpack.c.h.b16 %v136
  %v675 = vunpack.c.l.b16 %v137
  %v676 = vunpack.c.l.b16 %v138
  %v677 = vunpack.c.h.b16 %v138
  %v678 = vunpack.c.l.b16 %v139
  %v679 = vunpack.c.h.b16 %v139
  %v680 = vunpack.c.l.b16 %v140
  %v681 = vunpack.c.l.b16 %v141
  %v682 = vunpack.c.h.b16 %v141
  %v683 = vunpack.c.l.b16 %v142
  %v684 = vunpack.c.h.b16 %v142
  %v685 = vunpack.c.l.b16 %v143
  %v686 = vunpack.c.l.b16 %v144
  %v687 = vunpack.c.h.b16 %v144
  %v688 = vunpack.c.l.b16 %v145
  %v689 = vunpack.c.h.b16 %v145
  %v690 = vunpack.c.l.b16 %v146
  %v691 = vunpack.c.l.b16 %v147
  %v692 = vunpack.c.h.b16 %v147
  %v693 = vunpack.c.l.b16 %v148
  %v694 = vunpack.c.h.b16 %v148
  %v695 = vunpack.c.l.b16 %v149
  %v696 = vunpack.c.l.b16 %v150
  %v697 = vunpack.c.h.b16 %v150
  %v698 = vunpack.c.l.b16 %v151
  %v699 = vunpack.c.h.b16 %v151
  %v700 = vunpack.c.l.b16 %v152
  %v701 = vunpack.c.l.b16 %v153
  %v702 = vunpack.c.h.b16 %v153
  %v703 = vunpack.c.l.b16 %v154
  %v704 = vunpack.c.h.b16 %v154
  %v705 = vunpack.c.l.b16 %v155
  %v706 = vunpack.c.l.b16 %v156
  %v707 = vunpack.c.h.b16 %v156
  %v708 = vunpack.c.l.b16 %v157
  %v709 = vunpack.c.h.b16 %v157
  %v710 = vunpack.c.l.b16 %v158
  %v711 = vunpack.c.l.b16 %v159
  %v712 = vunpack.c.h.b16 %v159
  %v713 = vunpack.c.l.b16 %v160
  %v714 = vunpack.c.h.b16 %v160
  %v715 = vunpack.c.l.b16 %v161
  %v716 = vunpack.c.l.b16 %v162
  %v717 = vunpack.c.h.b16 %v162
  %v718 = vunpack.c.l.b16 %v163
  %v719 = vunpack.c.h.b16 %v163
  %v720 = vunpack.c.l.b16 %v164
  %v721 = vunpack.c.l.b16 %v165
  %v722 = vunpack.c.h.b16 %v165
  %v723 = vunpack.c.l.b16 %v166
  %v724 = vunpack.c.h.b16 %v166
  %v725 = vunpack.c.l.b16 %v167
  %v726 = vunpack.c.l.b16 %v168
  %v727 = vunpack.c.h.b16 %v168
  %v728 = vunpack.c.l.b16 %v169
  %v729 = vunpack.c.h.b16 %v169
  %v730 = vunpack.c.l.b16 %v170
  %v731 = vunpack.c.l.b16 %v171
  %v732 = vunpack.c.h.b16 %v171
  %v733 = vunpack.c.l.b16 %v172
  %v734 = vunpack.c.h.b16 %v172
  %v735 = vunpack.c.l.b16 %v173
  %v736 = vunpack.c.l.b16 %v174
  %v737 = vunpack.c.h.b16 %v174
  %v738 = vunpack.c.l.b16 %v175
  %v739 = vunpack.c.h.b16 %v175
  %v740 = vunpack.c.l.b16 %v176
  %v741 = vunpack.c.l.b16 %v177
  %v742 = vunpack.c.h.b16 %v177
  %v743 = vunpack.c.l.b16 %v178
  %v744 = vunpack.c.h.b16 %v178
  %v745 = vunpack.c.l.b16 %v179
  %v746 = vunpack.c.l.b16 %v180
  %v747 = vunpack.c.h.b16 %v180
  %v748 = vunpack.c.l.b16 %v181
  %v749 = vunpack.c.h.b16 %v181
  %v750 = vunpack.c.l.b16 %v182
  %v751 = vunpack.c.l.b16 %v183
  %v752 = vunpack.c.h.b16 %v183
  %v753 = vunpack.c.l.b16 %v184
  %v754 = vunpack.c.h.b16 %v184
  %v755 = vunpack.c.l.b16 %v185
  %v756 = vunpack.c.l.b16 %v186
  %v757 = vunpack.c.h.b16 %v186
  %v758 = vunpack.c.l.b16 %v187
  %v759 = vunpack.c.h.b16 %v187
  %v760 = vunpack.c.l.b16 %v188
  %v761 = vunpack.c.l.b16 %v189
  %v762 = vunpack.c.h.b16 %v189
  %v763 = vunpack.c.l.b16 %v190
  %v764 = vunpack.c.h.b16 %v190
  %v765 = vunpack.c.l.b16 %v191
  %v766 = vunpack.c.l.b16 %v192
  %v767 = vunpack.c.h.b16 %v192
  %v768 = vunpack.c.l.b16 %v193
  %v769 = vunpack.c.h.b16 %v193
  %v770 = vunpack.c.l.b16 %v194
  %v771 = vunpack.c.l.b16 %v195
  %v772 = vunpack.c.h.b16 %v195
  %v773 = vunpack.c.l.b16 %v196
  %v774 = vunpack.c.h.b16 %v196
  %v775 = vunpack.c.l.b16 %v197
  %v776 = vunpack.c.l.b16 %v198
  %v777 = vunpack.c.h.b16 %v198
  %v778 = vunpack.c.l.b16 %v199
  %v779 = vunpack.c.h.b16 %v199
  %v780 = vunpack.c.l.b16 %v200
  %v781 = vunpack.c.l.b16 %v201
  %v782 = vunpack.c.h.b16 %v201
  %v783 = vunpack.c.l.b16 %v202
  %v784 = vunpack.c.h.b16 %v202
  %v785 = vunpack.c.l.b16 %v203
  %v786 = vunpack.c.l.b16 %v204
  %v787 = vunpack.c.h.b16 %v204
  %v788 = vunpack.c.l.b16 %v205
  %v789 = vunpack.c.h.b16 %v205
  %v790 = vunpack.c.l.b16 %v206
  %v791 = vunpack.c.l.b16 %v207
  %v792 = vunpack.c.h.b16 %v207
  %v793 = vunpack.c.l.b16 %v208
  %v794 = vunpack.c.h.b16 %v208
  %v795 = vunpack.c.l.b16 %v209
  %v796 = vunpack.c.l.b16 %v210
  %v797 = vunpack.c.h.b16 %v210
  %v798 = vunpack.c.l.b16 %v211
  %v799 = vunpack.c.h.b16 %v211
  %v800 = vunpack.c.l.b16 %v212
  %v801 = vpack.c.b16 %v486, %v481
  %v802 = vpack.c.b16 %v487, %v482
  %v803 = vpack.c.b16 %v488, %v483
  %v804 = vpack.c.b16 %v489, %v484
  %v805 = vpack.c.b16 %v490, %v485
  %v806 = vpack.c.b16 %v496, %v491
  %v807 = vpack.c.b16 %v497, %v492
  %v808 = vpack.c.b16 %v498, %v493
  %v809 = vpack.c.b16 %v499, %v494
  %v810 = vpack.c.b16 %v500, %v495
  %v811 = vpack.c.b16 %v506, %v501
  %v812 = vpack.c.b16 %v507, %v502
  %v813 = vpack.c.b16 %v508, %v503
  %v814 = vpack.c.b16 %v509, %v504
  %v815 = vpack.c.b16 %v510, %v505
  %v816 = vpack.c.b16 %v516, %v511
  %v817 = vpack.c.b16 %v517, %v512
  %v818 = vpack.c.b16 %v518, %v513
  %v819 = vpack.c.b16 %v519, %v514
  %v820 = vpack.c.b16 %v520, %v515
  %v821 = vpack.c.b16 %v526, %v521
  %v822 = vpack.c.b16 %v527, %v522
  %v823 = vpack.c.b16 %v528, %v523
  %v824 = vpack.c.b16 %v529, %v524
  %v825 = vpack.c.b16 %v530, %v525
  %v826 = vpack.c.b16 %v536, %v531
  %v827 = vpack.c.b16 %v537, %v532
  %v828 = vpack.c.b16 %v538, %v533
  %v829 = vpack.c.b16 %v539, %v534
  %v830 = vpack.c.b16 %v540, %v535
  %v831 = vpack.c.b16 %v546, %v541
  %v832 = vpack.c.b16 %v547, %v542
  %v833 = vpack.c.b16 %v548, %v543
  %v834 = vpack.c.b16 %v549, %v544
  %v835 = vpack.c.b16 %v550, %v545
  %v836 = vpack.c.b16 %v556, %v551
  %v837 = vpack.c.b16 %v557, %v552
  %v838 = vpack.c.b16 %v558, %v553
  %v839 = vpack.c.b16 %v559, %v554
  %v840 = vpack.c.b16 %v560, %v555
  %v841 = vpack.c.b16 %v566, %v561
  %v842 = vpack.c.b16 %v567, %v562
  %v843 = vpack.c.b16 %v568, %v563
  %v844 = vpack.c.b16 %v569, %v564
  %v845 = vpack.c.b16 %v570, %v565
  %v846 = vpack.c.b16 %v576, %v571
  %v847 = vpack.c.b16 %v577, %v572
  %v848 = vpack.c.b16 %v578, %v573
  %v849 = vpack.c.b16 %v579, %v574
  %v850 = vpack.c.b16 %v580, %v575
  %v851 = vpack.c.b16 %v586, %v581
  %v852 = vpack.c.b16 %v587, %v582
  %v853 = vpack.c.b16 %v588, %v583
  %v854 = vpack.c.b16 %v589, %v584
  %v855 = vpack.c.b16 %v590, %v585
  %v856 = vpack.c.b16 %v596, %v591
  %v857 = vpack.c.b16 %v597, %v592
  %v858 = vpack.c.b16 %v598, %v593
  %v859 = vpack.c.b16 %v599, %v594
  %v860 = vpack.c.b16 %v600, %v595
  %v861 = vpack.c.b16 %v606, %v601
  %v862 = vpack.c.b16 %v607, %v602
  %v863 = vpack.c.b16 %v608, %v603
  %v864 = vpack.c.b16 %v609, %v604
  %v865 = vpack.c.b16 %v610, %v605
  %v866 = vpack.c.b16 %v616, %v611
  %v867 = vpack.c.b16 %v617, %v612
  %v868 = vpack.c.b16 %v618, %v613
  %v869 = vpack.c.b16 %v619, %v614
  %v870 = vpack.c.b16 %v620, %v615
  %v871 = vpack.c.b16 %v626, %v621
  %v872 = vpack.c.b16 %v627, %v622
  %v873 = vpack.c.b16 %v628, %v623
  %v874 = vpack.c.b16 %v629, %v624
  %v875 = vpack.c.b16 %v630, %v625
  %v876 = vpack.c.b16 %v636, %v631
  %v877 = vpack.c.b16 %v637, %v632
  %v878 = vpack.c.b16 %v638, %v633
  %v879 = vpack.c.b16 %v639, %v634
  %v880 = vpack.c.b16 %v640, %v635
  %v881 = vpack.c.b16 %v646, %v641
  %v882 = vpack.c.b16 %v647, %v642
  %v883 = vpack.c.b16 %v648, %v643
  %v884 = vpack.c.b16 %v649, %v644
  %v885 = vpack.c.b16 %v650, %v645
  %v886 = vpack.c.b16 %v656, %v651
  %v887 = vpack.c.b16 %v657, %v652
  %v888 = vpack.c.b16 %v658, %v653
  %v889 = vpack.c.b16 %v659, %v654
  %v890 = vpack.c.b16 %v660, %v655
  %v891 = vpack.c.b16 %v666, %v661
  %v892 = vpack.c.b16 %v667, %v662
  %v893 = vpack.c.b16 %v668, %v663
  %v894 = vpack.c.b16 %v669, %v664
  %v895 = vpack.c.b16 %v670, %v665
  %v896 = vpack.c.b16 %v676, %v671
  %v897 = vpack.c.b16 %v677, %v672
  %v898 = vpack.c.b16 %v678, %v673
  %v899 = vpack.c.b16 %v679, %v674
  %v900 = vpack.c.b16 %v680, %v675
  %v901 = vpack.c.b16 %v686, %v681
  %v902 = vpack.c.b16 %v687, %v682
  %v903 = vpack.c.b16 %v688, %v683
  %v904 = vpack.c.b16 %v689, %v684
  %v905 = vpack.c.b16 %v690, %v685
  %v906 = vpack.c.b16 %v696, %v691
  %v907 = vpack.c.b16 %v697, %v692
  %v908 = vpack.c.b16 %v698, %v693
  %v909 = vpack.c.b16 %v699, %v694
  %v910 = vpack.c.b16 %v700, %v695
  %v911 = vpack.c.b16 %v706, %v701
  %v912 = vpack.c.b16 %v707, %v702
  %v913 = vpack.c.b16 %v708, %v703
  %v914 = vpack.c.b16 %v709, %v704
  %v915 = vpack.c.b16 %v710, %v705
  %v916 = vpack.c.b16 %v716, %v711
  %v917 = vpack.c.b16 %v717, %v712
  %v918 = vpack.c.b16 %v718, %v713
  %v919 = vpack.c.b16 %v719, %v714
  %v920 = vpack.c.b16 %v720, %v715
  %v921 = vpack.c.b16 %v726, %v721
  %v922 = vpack.c.b16 %v727, %v722
  %v923 = vpack.c.b16 %v728, %v723
  %v924 = vpack.c.b16 %v729, %v724
  %v925 = vpack.c.b16 %v730, %v725
  %v926 = vpack.c.b16 %v736, %v731
  %v927 = vpack.c.b16 %v737, %v732
  %v928 = vpack.c.b16 %v738, %v733
  %v929 = vpack.c.b16 %v739, %v734
  %v930 = vpack.c.b16 %v740, %v735
  %v931 = vpack.c.b16 %v746, %v741
  %v932 = vpack.c.b16 %v747, %v742
  %v933 = vpack.c.b16 %v748, %v743
  %v934 = vpack.c.b16 %v749, %v744
  %v935 = vpack.c.b16 %v750, %v745
  %v936 = vpack.c.b16 %v756, %v751
  %v937 = vpack.c.b16 %v757, %v752
  %v938 = vpack.c.b16 %v758, %v753
  %v939 = vpack.c.b16 %v759, %v754
  %v940 = vpack.c.b16 %v760, %v755
  %v941 = vpack.c.b16 %v766, %v761
  %v942 = vpack.c.b16 %v767, %v762
  %v943 = vpack.c.b16 %v768, %v763
  %v944 = vpack.c.b16 %v769, %v764
  %v945 = vpack.c.b16 %v770, %v765
  %v946 = vpack.c.b16 %v776, %v771
  %v947 = vpack.c.b16 %v777, %v772
  %v948 = vpack.c.b16 %v778, %v773
  %v949 = vpack.c.b16 %v779, %v774
  %v950 = vpack.c.b16 %v780, %v775
  %v951 = vpack.c.b16 %v786, %v781
  %v952 = vpack.c.b16 %v787, %v782
  %v953 = vpack.c.b16 %v788, %v783
  %v954 = vpack.c.b16 %v789, %v784
  %v955 = vpack.c.b16 %v790, %v785
  %v956 = vpack.c.b16 %v796, %v791
  %v957 = vpack.c.b16 %v797, %v792
  %v958 = vpack.c.b16 %v798, %v793
  %v959 = vpack.c.b16 %v799, %v794
  %v960 = vpack.c.b16 %v800, %v795
  %v1161 = vunpack.c.l.b16 %v213
  %v1162 = vunpack.c.l.b16 %v214
  %v1163 = vunpack.c.l.b16 %v215
  %v1164 = vunpack.c.l.b16 %v216
  %v1165 = vunpack.c.l.b16 %v217
  %v1166 = vunpack.c.l.b16 %v218
  %v1167 = vunpack.c.l.b16 %v219
  %v1168 = vunpack.c.l.b16 %v220
  %v1169 = vunpack.c.l.b16 %v221
  %v1170 = vunpack.c.l.b16 %v222
  %v1171 = vunpack.c.l.b16 %v223
  %v1172 = vunpack.c.l.b16 %v224
  %v1173 = vunpack.c.l.b16 %v225
  %v1174 = vunpack.c.l.b16 %v226
  %v1175 = vunpack.c.l.b16 %v227
  %v1176 = vunpack.c.l.b16 %v228
  %v1177 = vunpack.c.l.b16 %v229
  %v1178 = vunpack.c.l.b16 %v230
  %v1179 = vunpack.c.l.b16 %v231
  %v1180 = vunpack.c.l.b16 %v232
  %v1181 = vunpack.c.l.b16 %v233
  %v1182 = vunpack.c.l.b16 %v234
  %v1183 = vunpack.c.l.b16 %v235
  %v1184 = vunpack.c.l.b16 %v236
  %v1185 = vunpack.c.l.b16 %v237
  %v1186 = vunpack.c.l.b16 %v238
  %v1187 = vunpack.c.l.b16 %v239
  %v1188 = vunpack.c.l.b16 %v240
  %v1189 = vunpack.c.l.b16 %v241
  %v1190 = vunpack.c.l.b16 %v242
  %v1191 = vunpack.c.l.b16 %v243
  %v1192 = vunpack.c.l.b16 %v244
  %v1193 = vunpack.c.l.b16 %v245
  %v1194 = vunpack.c.l.b16 %v246
  %v1195 = vunpack.c.l.b16 %v247
  %v1196 = vunpack.c.l.b16 %v248
  %v1197 = vunpack.c.l.b16 %v249
  %v1198 = vunpack.c.l.b16 %v250
  %v1199 = vunpack.c.l.b16 %v251
  %v1200 = vunpack.c.l.b16 %v252
  %v1201 = vunpack.c.l.b16 %v253
  %v1202 = vunpack.c.l.b16 %v254
  %v1203 = vunpack.c.l.b16 %v255
  %v1204 = vunpack.c.l.b16 %v256
  %v1205 = vunpack.c.l.b16 %v257
  %v1206 = vunpack.c.l.b16 %v258
  %v1207 = vunpack.c.l.b16 %v259
  %v1208 = vunpack.c.l.b16 %v260
  %v1209 = vunpack.c.l.b16 %v261
  %v1210 = vunpack.c.l.b16 %v262
  %v1211 = vunpack.c.l.b16 %v263
  %v1212 = vunpack.c.l.b16 %v264
  %v1213 = vunpack.c.l.b16 %v265
  %v1214 = vunpack.c.l.b16 %v266
  %v1215 = vunpack.c.l.b16 %v267
  %v1216 = vunpack.c.l.b16 %v268
  %v1217 = vunpack.c.l.b16 %v269
  %v1218 = vunpack.c.l.b16 %v270
  %v1219 = vunpack.c.l.b16 %v271
  %v1220 = vunpack.c.l.b16 %v272
  %v1221 = vunpack.c.l.b16 %v273
  %v1222 = vunpack.c.l.b16 %v274
  %v1223 = vunpack.c.l.b16 %v275
  %v1224 = vunpack.c.l.b16 %v276
  %v1225 = vunpack.c.l.b16 %v277
  %v1226 = vunpack.c.l.b16 %v278
  %v1227 = vunpack.c.l.b16 %v279
  %v1228 = vunpack.c.l.b16 %v280
  %v1229 = vunpack.c.l.b16 %v281
  %v1230 = vunpack.c.l.b16 %v282
  %v1231 = vunpack.c.l.b16 %v283
  %v1232 = vunpack.c.l.b16 %v284
  %v1233 = vpack.c.b16 %v1162, %v1161
  %v1234 = vpack.c.b16 %v1164, %v1163
  %v1235 = vpack.c.b16 %v1166, %v1165
  %v1236 = vpack.c.b16 %v1168, %v1167
  %v1237 = vpack.c.b16 %v1170, %v1169
  %v1238 = vpack.c.b16 %v1172, %v1171
  %v1239 = vpack.c.b16 %v1174, %v1173
  %v1240 = vpack.c.b16 %v1176, %v1175
  %v1241 = vpack.c.b16 %v1178, %v1177
  %v1242 = vpack.c.b16 %v1180, %v1179
  %v1243 = vpack.c.b16 %v1182, %v1181
  %v1244 = vpack.c.b16 %v1184, %v1183
  %v1245 = vpack.c.b16 %v1186, %v1185
  %v1246 = vpack.c.b16 %v1188, %v1187
  %v1247 = vpack.c.b16 %v1190, %v1189
  %v1248 = vpack.c.b16 %v1192, %v1191
  %v1249 = vpack.c.b16 %v1194, %v1193
  %v1250 = vpack.c.b16 %v1196, %v1195
  %v1251 = vpack.c.b16 %v1198, %v1197
  %v1252 = vpack.c.b16 %v1200, %v1199
  %v1253 = vpack.c.b16 %v1202, %v1201
  %v1254 = vpack.c.b16 %v1204, %v1203
  %v1255 = vpack.c.b16 %v1206, %v1205
  %v1256 = vpack.c.b16 %v1208, %v1207
  %v1257 = vpack.c.b16 %v1210, %v1209
  %v1258 = vpack.c.b16 %v1212, %v1211
  %v1259 = vpack.c.b16 %v1214, %v1213
  %v1260 = vpack.c.b16 %v1216, %v1215
  %v1261 = vpack.c.b16 %v1218, %v1217
  %v1262 = vpack.c.b16 %v1220, %v1219
  %v1263 = vpack.c.b16 %v1222, %v1221
  %v1264 = vpack.c.b16 %v1224, %v1223
  %v1265 = vpack.c.b16 %v1226, %v1225
  %v1266 = vpack.c.b16 %v1228, %v1227
  %v1267 = vpack.c.b16 %v1230, %v1229
  %v1268 = vpack.c.b16 %v1232, %v1231
  %vm1305 = vcmask 523264
  %v1307 = vsel %vm1305, %v805, 0
  %v1310 = vsel %vm1305, %v810, 0
  %v1313 = vsel %vm1305, %v815, 0
  %v1316 = vsel %vm1305, %v820, 0
  %v1319 = vsel %vm1305, %v825, 0
  %v1322 = vsel %vm1305, %v830, 0
  %v1325 = vsel %vm1305, %v835, 0
  %v1328 = vsel %vm1305, %v840, 0
  %v1331 = vsel %vm1305, %v845, 0
  %v1334 = vsel %vm1305, %v850, 0
  %v1337 = vsel %vm1305, %v855, 0
  %v1340 = vsel %vm1305, %v860, 0
  %v1343 = vsel %vm1305, %v865, 0
  %v1346 = vsel %vm1305, %v870, 0
  %v1349 = vsel %vm1305, %v875, 0
  %v1352 = vsel %vm1305, %v880, 0
  %v1355 = vsel %vm1305, %v885, 0
  %v1358 = vsel %vm1305, %v890, 0
  %v1361 = vsel %vm1305, %v895, 0
  %v1364 = vsel %vm1305, %v900, 0
  %v1367 = vsel %vm1305, %v905, 0
  %v1370 = vsel %vm1305, %v910, 0
  %v1373 = vsel %vm1305, %v915, 0
  %v1376 = vsel %vm1305, %v920, 0
  %v1379 = vsel %vm1305, %v925, 0
  %v1382 = vsel %vm1305, %v930, 0
  %v1385 = vsel %vm1305, %v935, 0
  %v1388 = vsel %vm1305, %v940, 0
  %v1391 = vsel %vm1305, %v945, 0
  %v1394 = vsel %vm1305, %v950, 0
  %v1397 = vsel %vm1305, %v955, 0
  %v1400 = vsel %vm1305, %v960, 0
  %1402 = vmatpush.bf16.msra.mxu0 %v1240
  %1403 = vmatpush.bf16.msra.mxu0 %v1239
  %1404 = vmatpush.bf16.msra.mxu0 %v1238
  %1405 = vmatpush.bf16.msra.mxu0 %v1237
  %1406 = vmatpush.bf16.msra.mxu0 %v1236
  %1407 = vmatpush.bf16.msra.mxu0 %v1235
  %1408 = vmatpush.bf16.msra.mxu0 %v1234
  %1409 = vmatpush.bf16.msra.mxu0 %v1233
  %1410 = vmatmul.bf16.gmra.mxu0 %v801
  %v1411 = vpop.f32.mrf.mxu0
  %v1412 = vadd.f32 %v287, %v1411
  %v1413 = vpop.f32.mrf.mxu0
  %v1414 = vadd.f32 %v287, %v1413
  %1415 = vmatmul.bf16.gmra.mxu0 %v806
  %v1416 = vpop.f32.mrf.mxu0
  %v1417 = vadd.f32 %v287, %v1416
  %v1418 = vpop.f32.mrf.mxu0
  %v1419 = vadd.f32 %v287, %v1418
  %1420 = vmatmul.bf16.gmra.mxu0 %v811
  %v1421 = vpop.f32.mrf.mxu0
  %v1422 = vadd.f32 %v287, %v1421
  %v1423 = vpop.f32.mrf.mxu0
  %v1424 = vadd.f32 %v287, %v1423
  %1425 = vmatmul.bf16.gmra.mxu0 %v816
  %v1426 = vpop.f32.mrf.mxu0
  %v1427 = vadd.f32 %v287, %v1426
  %v1428 = vpop.f32.mrf.mxu0
  %v1429 = vadd.f32 %v287, %v1428
  %1430 = vmatmul.bf16.gmra.mxu0 %v821
  %v1431 = vpop.f32.mrf.mxu0
  %v1432 = vadd.f32 %v287, %v1431
  %v1433 = vpop.f32.mrf.mxu0
  %v1434 = vadd.f32 %v287, %v1433
  %1435 = vmatmul.bf16.gmra.mxu0 %v826
  %v1436 = vpop.f32.mrf.mxu0
  %v1437 = vadd.f32 %v287, %v1436
  %v1438 = vpop.f32.mrf.mxu0
  %v1439 = vadd.f32 %v287, %v1438
  %1440 = vmatmul.bf16.gmra.mxu0 %v831
  %v1441 = vpop.f32.mrf.mxu0
  %v1442 = vadd.f32 %v287, %v1441
  %v1443 = vpop.f32.mrf.mxu0
  %v1444 = vadd.f32 %v287, %v1443
  %1445 = vmatmul.bf16.gmra.mxu0 %v836
  %v1446 = vpop.f32.mrf.mxu0
  %v1447 = vadd.f32 %v287, %v1446
  %v1448 = vpop.f32.mrf.mxu0
  %v1449 = vadd.f32 %v287, %v1448
  %1450 = vmatmul.bf16.gmra.mxu0 %v841
  %v1451 = vpop.f32.mrf.mxu0
  %v1452 = vadd.f32 %v287, %v1451
  %v1453 = vpop.f32.mrf.mxu0
  %v1454 = vadd.f32 %v287, %v1453
  %1455 = vmatmul.bf16.gmra.mxu0 %v846
  %v1456 = vpop.f32.mrf.mxu0
  %v1457 = vadd.f32 %v287, %v1456
  %v1458 = vpop.f32.mrf.mxu0
  %v1459 = vadd.f32 %v287, %v1458
  %1460 = vmatmul.bf16.gmra.mxu0 %v851
  %v1461 = vpop.f32.mrf.mxu0
  %v1462 = vadd.f32 %v287, %v1461
  %v1463 = vpop.f32.mrf.mxu0
  %v1464 = vadd.f32 %v287, %v1463
  %1465 = vmatmul.bf16.gmra.mxu0 %v856
  %v1466 = vpop.f32.mrf.mxu0
  %v1467 = vadd.f32 %v287, %v1466
  %v1468 = vpop.f32.mrf.mxu0
  %v1469 = vadd.f32 %v287, %v1468
  %1470 = vmatmul.bf16.gmra.mxu0 %v861
  %v1471 = vpop.f32.mrf.mxu0
  %v1472 = vadd.f32 %v287, %v1471
  %v1473 = vpop.f32.mrf.mxu0
  %v1474 = vadd.f32 %v287, %v1473
  %1475 = vmatmul.bf16.gmra.mxu0 %v866
  %v1476 = vpop.f32.mrf.mxu0
  %v1477 = vadd.f32 %v287, %v1476
  %v1478 = vpop.f32.mrf.mxu0
  %v1479 = vadd.f32 %v287, %v1478
  %1480 = vmatmul.bf16.gmra.mxu0 %v871
  %v1481 = vpop.f32.mrf.mxu0
  %v1482 = vadd.f32 %v287, %v1481
  %v1483 = vpop.f32.mrf.mxu0
  %v1484 = vadd.f32 %v287, %v1483
  %1485 = vmatmul.bf16.gmra.mxu0 %v876
  %v1486 = vpop.f32.mrf.mxu0
  %v1487 = vadd.f32 %v287, %v1486
  %v1488 = vpop.f32.mrf.mxu0
  %v1489 = vadd.f32 %v287, %v1488
  %1490 = vmatmul.bf16.gmra.mxu0 %v881
  %v1491 = vpop.f32.mrf.mxu0
  %v1492 = vadd.f32 %v287, %v1491
  %v1493 = vpop.f32.mrf.mxu0
  %v1494 = vadd.f32 %v287, %v1493
  %1495 = vmatmul.bf16.gmra.mxu0 %v886
  %v1496 = vpop.f32.mrf.mxu0
  %v1497 = vadd.f32 %v287, %v1496
  %v1498 = vpop.f32.mrf.mxu0
  %v1499 = vadd.f32 %v287, %v1498
  %1500 = vmatmul.bf16.gmra.mxu0 %v891
  %v1501 = vpop.f32.mrf.mxu0
  %v1502 = vadd.f32 %v287, %v1501
  %v1503 = vpop.f32.mrf.mxu0
  %v1504 = vadd.f32 %v287, %v1503
  %1505 = vmatmul.bf16.gmra.mxu0 %v896
  %v1506 = vpop.f32.mrf.mxu0
  %v1507 = vadd.f32 %v287, %v1506
  %v1508 = vpop.f32.mrf.mxu0
  %v1509 = vadd.f32 %v287, %v1508
  %1510 = vmatmul.bf16.gmra.mxu0 %v901
  %v1511 = vpop.f32.mrf.mxu0
  %v1512 = vadd.f32 %v287, %v1511
  %v1513 = vpop.f32.mrf.mxu0
  %v1514 = vadd.f32 %v287, %v1513
  %1515 = vmatmul.bf16.gmra.mxu0 %v906
  %v1516 = vpop.f32.mrf.mxu0
  %v1517 = vadd.f32 %v287, %v1516
  %v1518 = vpop.f32.mrf.mxu0
  %v1519 = vadd.f32 %v287, %v1518
  %1520 = vmatmul.bf16.gmra.mxu0 %v911
  %v1521 = vpop.f32.mrf.mxu0
  %v1522 = vadd.f32 %v287, %v1521
  %v1523 = vpop.f32.mrf.mxu0
  %v1524 = vadd.f32 %v287, %v1523
  %1525 = vmatmul.bf16.gmra.mxu0 %v916
  %v1526 = vpop.f32.mrf.mxu0
  %v1527 = vadd.f32 %v287, %v1526
  %v1528 = vpop.f32.mrf.mxu0
  %v1529 = vadd.f32 %v287, %v1528
  %1530 = vmatmul.bf16.gmra.mxu0 %v921
  %v1531 = vpop.f32.mrf.mxu0
  %v1532 = vadd.f32 %v287, %v1531
  %v1533 = vpop.f32.mrf.mxu0
  %v1534 = vadd.f32 %v287, %v1533
  %1535 = vmatmul.bf16.gmra.mxu0 %v926
  %v1536 = vpop.f32.mrf.mxu0
  %v1537 = vadd.f32 %v287, %v1536
  %v1538 = vpop.f32.mrf.mxu0
  %v1539 = vadd.f32 %v287, %v1538
  %1540 = vmatmul.bf16.gmra.mxu0 %v931
  %v1541 = vpop.f32.mrf.mxu0
  %v1542 = vadd.f32 %v287, %v1541
  %v1543 = vpop.f32.mrf.mxu0
  %v1544 = vadd.f32 %v287, %v1543
  %1545 = vmatmul.bf16.gmra.mxu0 %v936
  %v1546 = vpop.f32.mrf.mxu0
  %v1547 = vadd.f32 %v287, %v1546
  %v1548 = vpop.f32.mrf.mxu0
  %v1549 = vadd.f32 %v287, %v1548
  %1550 = vmatmul.bf16.gmra.mxu0 %v941
  %v1551 = vpop.f32.mrf.mxu0
  %v1552 = vadd.f32 %v287, %v1551
  %v1553 = vpop.f32.mrf.mxu0
  %v1554 = vadd.f32 %v287, %v1553
  %1555 = vmatmul.bf16.gmra.mxu0 %v946
  %v1556 = vpop.f32.mrf.mxu0
  %v1557 = vadd.f32 %v287, %v1556
  %v1558 = vpop.f32.mrf.mxu0
  %v1559 = vadd.f32 %v287, %v1558
  %1560 = vmatmul.bf16.gmra.mxu0 %v951
  %v1561 = vpop.f32.mrf.mxu0
  %v1562 = vadd.f32 %v287, %v1561
  %v1563 = vpop.f32.mrf.mxu0
  %v1564 = vadd.f32 %v287, %v1563
  %1565 = vmatmul.bf16.gmra.mxu0 %v956
  %v1566 = vpop.f32.mrf.mxu0
  %v1567 = vadd.f32 %v287, %v1566
  %v1568 = vpop.f32.mrf.mxu0
  %v1569 = vadd.f32 %v287, %v1568
  %1570 = vdwg.mxu0
  %1571 = vmatpush.bf16.msra.mxu0 %v1248
  %1572 = vmatpush.bf16.msra.mxu0 %v1247
  %1573 = vmatpush.bf16.msra.mxu0 %v1246
  %1574 = vmatpush.bf16.msra.mxu0 %v1245
  %1575 = vmatpush.bf16.msra.mxu0 %v1244
  %1576 = vmatpush.bf16.msra.mxu0 %v1243
  %1577 = vmatpush.bf16.msra.mxu0 %v1242
  %1578 = vmatpush.bf16.msra.mxu0 %v1241
  %1579 = vmatmul.bf16.gmra.mxu0 %v802
  %v1580 = vpop.f32.mrf.mxu0
  %v1581 = vadd.f32 %v1412, %v1580
  %v1582 = vpop.f32.mrf.mxu0
  %v1583 = vadd.f32 %v1414, %v1582
  %1584 = vmatmul.bf16.gmra.mxu0 %v807
  %v1585 = vpop.f32.mrf.mxu0
  %v1586 = vadd.f32 %v1417, %v1585
  %v1587 = vpop.f32.mrf.mxu0
  %v1588 = vadd.f32 %v1419, %v1587
  %1589 = vmatmul.bf16.gmra.mxu0 %v812
  %v1590 = vpop.f32.mrf.mxu0
  %v1591 = vadd.f32 %v1422, %v1590
  %v1592 = vpop.f32.mrf.mxu0
  %v1593 = vadd.f32 %v1424, %v1592
  %1594 = vmatmul.bf16.gmra.mxu0 %v817
  %v1595 = vpop.f32.mrf.mxu0
  %v1596 = vadd.f32 %v1427, %v1595
  %v1597 = vpop.f32.mrf.mxu0
  %v1598 = vadd.f32 %v1429, %v1597
  %1599 = vmatmul.bf16.gmra.mxu0 %v822
  %v1600 = vpop.f32.mrf.mxu0
  %v1601 = vadd.f32 %v1432, %v1600
  %v1602 = vpop.f32.mrf.mxu0
  %v1603 = vadd.f32 %v1434, %v1602
  %1604 = vmatmul.bf16.gmra.mxu0 %v827
  %v1605 = vpop.f32.mrf.mxu0
  %v1606 = vadd.f32 %v1437, %v1605
  %v1607 = vpop.f32.mrf.mxu0
  %v1608 = vadd.f32 %v1439, %v1607
  %1609 = vmatmul.bf16.gmra.mxu0 %v832
  %v1610 = vpop.f32.mrf.mxu0
  %v1611 = vadd.f32 %v1442, %v1610
  %v1612 = vpop.f32.mrf.mxu0
  %v1613 = vadd.f32 %v1444, %v1612
  %1614 = vmatmul.bf16.gmra.mxu0 %v837
  %v1615 = vpop.f32.mrf.mxu0
  %v1616 = vadd.f32 %v1447, %v1615
  %v1617 = vpop.f32.mrf.mxu0
  %v1618 = vadd.f32 %v1449, %v1617
  %1619 = vmatmul.bf16.gmra.mxu0 %v842
  %v1620 = vpop.f32.mrf.mxu0
  %v1621 = vadd.f32 %v1452, %v1620
  %v1622 = vpop.f32.mrf.mxu0
  %v1623 = vadd.f32 %v1454, %v1622
  %1624 = vmatmul.bf16.gmra.mxu0 %v847
  %v1625 = vpop.f32.mrf.mxu0
  %v1626 = vadd.f32 %v1457, %v1625
  %v1627 = vpop.f32.mrf.mxu0
  %v1628 = vadd.f32 %v1459, %v1627
  %1629 = vmatmul.bf16.gmra.mxu0 %v852
  %v1630 = vpop.f32.mrf.mxu0
  %v1631 = vadd.f32 %v1462, %v1630
  %v1632 = vpop.f32.mrf.mxu0
  %v1633 = vadd.f32 %v1464, %v1632
  %1634 = vmatmul.bf16.gmra.mxu0 %v857
  %v1635 = vpop.f32.mrf.mxu0
  %v1636 = vadd.f32 %v1467, %v1635
  %v1637 = vpop.f32.mrf.mxu0
  %v1638 = vadd.f32 %v1469, %v1637
  %1639 = vmatmul.bf16.gmra.mxu0 %v862
  %v1640 = vpop.f32.mrf.mxu0
  %v1641 = vadd.f32 %v1472, %v1640
  %v1642 = vpop.f32.mrf.mxu0
  %v1643 = vadd.f32 %v1474, %v1642
  %1644 = vmatmul.bf16.gmra.mxu0 %v867
  %v1645 = vpop.f32.mrf.mxu0
  %v1646 = vadd.f32 %v1477, %v1645
  %v1647 = vpop.f32.mrf.mxu0
  %v1648 = vadd.f32 %v1479, %v1647
  %1649 = vmatmul.bf16.gmra.mxu0 %v872
  %v1650 = vpop.f32.mrf.mxu0
  %v1651 = vadd.f32 %v1482, %v1650
  %v1652 = vpop.f32.mrf.mxu0
  %v1653 = vadd.f32 %v1484, %v1652
  %1654 = vmatmul.bf16.gmra.mxu0 %v877
  %v1655 = vpop.f32.mrf.mxu0
  %v1656 = vadd.f32 %v1487, %v1655
  %v1657 = vpop.f32.mrf.mxu0
  %v1658 = vadd.f32 %v1489, %v1657
  %1659 = vmatmul.bf16.gmra.mxu0 %v882
  %v1660 = vpop.f32.mrf.mxu0
  %v1661 = vadd.f32 %v1492, %v1660
  %v1662 = vpop.f32.mrf.mxu0
  %v1663 = vadd.f32 %v1494, %v1662
  %1664 = vmatmul.bf16.gmra.mxu0 %v887
  %v1665 = vpop.f32.mrf.mxu0
  %v1666 = vadd.f32 %v1497, %v1665
  %v1667 = vpop.f32.mrf.mxu0
  %v1668 = vadd.f32 %v1499, %v1667
  %1669 = vmatmul.bf16.gmra.mxu0 %v892
  %v1670 = vpop.f32.mrf.mxu0
  %v1671 = vadd.f32 %v1502, %v1670
  %v1672 = vpop.f32.mrf.mxu0
  %v1673 = vadd.f32 %v1504, %v1672
  %1674 = vmatmul.bf16.gmra.mxu0 %v897
  %v1675 = vpop.f32.mrf.mxu0
  %v1676 = vadd.f32 %v1507, %v1675
  %v1677 = vpop.f32.mrf.mxu0
  %v1678 = vadd.f32 %v1509, %v1677
  %1679 = vmatmul.bf16.gmra.mxu0 %v902
  %v1680 = vpop.f32.mrf.mxu0
  %v1681 = vadd.f32 %v1512, %v1680
  %v1682 = vpop.f32.mrf.mxu0
  %v1683 = vadd.f32 %v1514, %v1682
  %1684 = vmatmul.bf16.gmra.mxu0 %v907
  %v1685 = vpop.f32.mrf.mxu0
  %v1686 = vadd.f32 %v1517, %v1685
  %v1687 = vpop.f32.mrf.mxu0
  %v1688 = vadd.f32 %v1519, %v1687
  %1689 = vmatmul.bf16.gmra.mxu0 %v912
  %v1690 = vpop.f32.mrf.mxu0
  %v1691 = vadd.f32 %v1522, %v1690
  %v1692 = vpop.f32.mrf.mxu0
  %v1693 = vadd.f32 %v1524, %v1692
  %1694 = vmatmul.bf16.gmra.mxu0 %v917
  %v1695 = vpop.f32.mrf.mxu0
  %v1696 = vadd.f32 %v1527, %v1695
  %v1697 = vpop.f32.mrf.mxu0
  %v1698 = vadd.f32 %v1529, %v1697
  %1699 = vmatmul.bf16.gmra.mxu0 %v922
  %v1700 = vpop.f32.mrf.mxu0
  %v1701 = vadd.f32 %v1532, %v1700
  %v1702 = vpop.f32.mrf.mxu0
  %v1703 = vadd.f32 %v1534, %v1702
  %1704 = vmatmul.bf16.gmra.mxu0 %v927
  %v1705 = vpop.f32.mrf.mxu0
  %v1706 = vadd.f32 %v1537, %v1705
  %v1707 = vpop.f32.mrf.mxu0
  %v1708 = vadd.f32 %v1539, %v1707
  %1709 = vmatmul.bf16.gmra.mxu0 %v932
  %v1710 = vpop.f32.mrf.mxu0
  %v1711 = vadd.f32 %v1542, %v1710
  %v1712 = vpop.f32.mrf.mxu0
  %v1713 = vadd.f32 %v1544, %v1712
  %1714 = vmatmul.bf16.gmra.mxu0 %v937
  %v1715 = vpop.f32.mrf.mxu0
  %v1716 = vadd.f32 %v1547, %v1715
  %v1717 = vpop.f32.mrf.mxu0
  %v1718 = vadd.f32 %v1549, %v1717
  %1719 = vmatmul.bf16.gmra.mxu0 %v942
  %v1720 = vpop.f32.mrf.mxu0
  %v1721 = vadd.f32 %v1552, %v1720
  %v1722 = vpop.f32.mrf.mxu0
  %v1723 = vadd.f32 %v1554, %v1722
  %1724 = vmatmul.bf16.gmra.mxu0 %v947
  %v1725 = vpop.f32.mrf.mxu0
  %v1726 = vadd.f32 %v1557, %v1725
  %v1727 = vpop.f32.mrf.mxu0
  %v1728 = vadd.f32 %v1559, %v1727
  %1729 = vmatmul.bf16.gmra.mxu0 %v952
  %v1730 = vpop.f32.mrf.mxu0
  %v1731 = vadd.f32 %v1562, %v1730
  %v1732 = vpop.f32.mrf.mxu0
  %v1733 = vadd.f32 %v1564, %v1732
  %1734 = vmatmul.bf16.gmra.mxu0 %v957
  %v1735 = vpop.f32.mrf.mxu0
  %v1736 = vadd.f32 %v1567, %v1735
  %v1737 = vpop.f32.mrf.mxu0
  %v1738 = vadd.f32 %v1569, %v1737
  %1739 = vdwg.mxu0
  %1740 = vmatpush.bf16.msra.mxu0 %v1256
  %1741 = vmatpush.bf16.msra.mxu0 %v1255
  %1742 = vmatpush.bf16.msra.mxu0 %v1254
  %1743 = vmatpush.bf16.msra.mxu0 %v1253
  %1744 = vmatpush.bf16.msra.mxu0 %v1252
  %1745 = vmatpush.bf16.msra.mxu0 %v1251
  %1746 = vmatpush.bf16.msra.mxu0 %v1250
  %1747 = vmatpush.bf16.msra.mxu0 %v1249
  %1748 = vmatmul.bf16.gmra.mxu0 %v803
  %v1749 = vpop.f32.mrf.mxu0
  %v1750 = vadd.f32 %v1581, %v1749
  %v1751 = vpop.f32.mrf.mxu0
  %v1752 = vadd.f32 %v1583, %v1751
  %1753 = vmatmul.bf16.gmra.mxu0 %v808
  %v1754 = vpop.f32.mrf.mxu0
  %v1755 = vadd.f32 %v1586, %v1754
  %v1756 = vpop.f32.mrf.mxu0
  %v1757 = vadd.f32 %v1588, %v1756
  %1758 = vmatmul.bf16.gmra.mxu0 %v813
  %v1759 = vpop.f32.mrf.mxu0
  %v1760 = vadd.f32 %v1591, %v1759
  %v1761 = vpop.f32.mrf.mxu0
  %v1762 = vadd.f32 %v1593, %v1761
  %1763 = vmatmul.bf16.gmra.mxu0 %v818
  %v1764 = vpop.f32.mrf.mxu0
  %v1765 = vadd.f32 %v1596, %v1764
  %v1766 = vpop.f32.mrf.mxu0
  %v1767 = vadd.f32 %v1598, %v1766
  %1768 = vmatmul.bf16.gmra.mxu0 %v823
  %v1769 = vpop.f32.mrf.mxu0
  %v1770 = vadd.f32 %v1601, %v1769
  %v1771 = vpop.f32.mrf.mxu0
  %v1772 = vadd.f32 %v1603, %v1771
  %1773 = vmatmul.bf16.gmra.mxu0 %v828
  %v1774 = vpop.f32.mrf.mxu0
  %v1775 = vadd.f32 %v1606, %v1774
  %v1776 = vpop.f32.mrf.mxu0
  %v1777 = vadd.f32 %v1608, %v1776
  %1778 = vmatmul.bf16.gmra.mxu0 %v833
  %v1779 = vpop.f32.mrf.mxu0
  %v1780 = vadd.f32 %v1611, %v1779
  %v1781 = vpop.f32.mrf.mxu0
  %v1782 = vadd.f32 %v1613, %v1781
  %1783 = vmatmul.bf16.gmra.mxu0 %v838
  %v1784 = vpop.f32.mrf.mxu0
  %v1785 = vadd.f32 %v1616, %v1784
  %v1786 = vpop.f32.mrf.mxu0
  %v1787 = vadd.f32 %v1618, %v1786
  %1788 = vmatmul.bf16.gmra.mxu0 %v843
  %v1789 = vpop.f32.mrf.mxu0
  %v1790 = vadd.f32 %v1621, %v1789
  %v1791 = vpop.f32.mrf.mxu0
  %v1792 = vadd.f32 %v1623, %v1791
  %1793 = vmatmul.bf16.gmra.mxu0 %v848
  %v1794 = vpop.f32.mrf.mxu0
  %v1795 = vadd.f32 %v1626, %v1794
  %v1796 = vpop.f32.mrf.mxu0
  %v1797 = vadd.f32 %v1628, %v1796
  %1798 = vmatmul.bf16.gmra.mxu0 %v853
  %v1799 = vpop.f32.mrf.mxu0
  %v1800 = vadd.f32 %v1631, %v1799
  %v1801 = vpop.f32.mrf.mxu0
  %v1802 = vadd.f32 %v1633, %v1801
  %1803 = vmatmul.bf16.gmra.mxu0 %v858
  %v1804 = vpop.f32.mrf.mxu0
  %v1805 = vadd.f32 %v1636, %v1804
  %v1806 = vpop.f32.mrf.mxu0
  %v1807 = vadd.f32 %v1638, %v1806
  %1808 = vmatmul.bf16.gmra.mxu0 %v863
  %v1809 = vpop.f32.mrf.mxu0
  %v1810 = vadd.f32 %v1641, %v1809
  %v1811 = vpop.f32.mrf.mxu0
  %v1812 = vadd.f32 %v1643, %v1811
  %1813 = vmatmul.bf16.gmra.mxu0 %v868
  %v1814 = vpop.f32.mrf.mxu0
  %v1815 = vadd.f32 %v1646, %v1814
  %v1816 = vpop.f32.mrf.mxu0
  %v1817 = vadd.f32 %v1648, %v1816
  %1818 = vmatmul.bf16.gmra.mxu0 %v873
  %v1819 = vpop.f32.mrf.mxu0
  %v1820 = vadd.f32 %v1651, %v1819
  %v1821 = vpop.f32.mrf.mxu0
  %v1822 = vadd.f32 %v1653, %v1821
  %1823 = vmatmul.bf16.gmra.mxu0 %v878
  %v1824 = vpop.f32.mrf.mxu0
  %v1825 = vadd.f32 %v1656, %v1824
  %v1826 = vpop.f32.mrf.mxu0
  %v1827 = vadd.f32 %v1658, %v1826
  %1828 = vmatmul.bf16.gmra.mxu0 %v883
  %v1829 = vpop.f32.mrf.mxu0
  %v1830 = vadd.f32 %v1661, %v1829
  %v1831 = vpop.f32.mrf.mxu0
  %v1832 = vadd.f32 %v1663, %v1831
  %1833 = vmatmul.bf16.gmra.mxu0 %v888
  %v1834 = vpop.f32.mrf.mxu0
  %v1835 = vadd.f32 %v1666, %v1834
  %v1836 = vpop.f32.mrf.mxu0
  %v1837 = vadd.f32 %v1668, %v1836
  %1838 = vmatmul.bf16.gmra.mxu0 %v893
  %v1839 = vpop.f32.mrf.mxu0
  %v1840 = vadd.f32 %v1671, %v1839
  %v1841 = vpop.f32.mrf.mxu0
  %v1842 = vadd.f32 %v1673, %v1841
  %1843 = vmatmul.bf16.gmra.mxu0 %v898
  %v1844 = vpop.f32.mrf.mxu0
  %v1845 = vadd.f32 %v1676, %v1844
  %v1846 = vpop.f32.mrf.mxu0
  %v1847 = vadd.f32 %v1678, %v1846
  %1848 = vmatmul.bf16.gmra.mxu0 %v903
  %v1849 = vpop.f32.mrf.mxu0
  %v1850 = vadd.f32 %v1681, %v1849
  %v1851 = vpop.f32.mrf.mxu0
  %v1852 = vadd.f32 %v1683, %v1851
  %1853 = vmatmul.bf16.gmra.mxu0 %v908
  %v1854 = vpop.f32.mrf.mxu0
  %v1855 = vadd.f32 %v1686, %v1854
  %v1856 = vpop.f32.mrf.mxu0
  %v1857 = vadd.f32 %v1688, %v1856
  %1858 = vmatmul.bf16.gmra.mxu0 %v913
  %v1859 = vpop.f32.mrf.mxu0
  %v1860 = vadd.f32 %v1691, %v1859
  %v1861 = vpop.f32.mrf.mxu0
  %v1862 = vadd.f32 %v1693, %v1861
  %1863 = vmatmul.bf16.gmra.mxu0 %v918
  %v1864 = vpop.f32.mrf.mxu0
  %v1865 = vadd.f32 %v1696, %v1864
  %v1866 = vpop.f32.mrf.mxu0
  %v1867 = vadd.f32 %v1698, %v1866
  %1868 = vmatmul.bf16.gmra.mxu0 %v923
  %v1869 = vpop.f32.mrf.mxu0
  %v1870 = vadd.f32 %v1701, %v1869
  %v1871 = vpop.f32.mrf.mxu0
  %v1872 = vadd.f32 %v1703, %v1871
  %1873 = vmatmul.bf16.gmra.mxu0 %v928
  %v1874 = vpop.f32.mrf.mxu0
  %v1875 = vadd.f32 %v1706, %v1874
  %v1876 = vpop.f32.mrf.mxu0
  %v1877 = vadd.f32 %v1708, %v1876
  %1878 = vmatmul.bf16.gmra.mxu0 %v933
  %v1879 = vpop.f32.mrf.mxu0
  %v1880 = vadd.f32 %v1711, %v1879
  %v1881 = vpop.f32.mrf.mxu0
  %v1882 = vadd.f32 %v1713, %v1881
  %1883 = vmatmul.bf16.gmra.mxu0 %v938
  %v1884 = vpop.f32.mrf.mxu0
  %v1885 = vadd.f32 %v1716, %v1884
  %v1886 = vpop.f32.mrf.mxu0
  %v1887 = vadd.f32 %v1718, %v1886
  %1888 = vmatmul.bf16.gmra.mxu0 %v943
  %v1889 = vpop.f32.mrf.mxu0
  %v1890 = vadd.f32 %v1721, %v1889
  %v1891 = vpop.f32.mrf.mxu0
  %v1892 = vadd.f32 %v1723, %v1891
  %1893 = vmatmul.bf16.gmra.mxu0 %v948
  %v1894 = vpop.f32.mrf.mxu0
  %v1895 = vadd.f32 %v1726, %v1894
  %v1896 = vpop.f32.mrf.mxu0
  %v1897 = vadd.f32 %v1728, %v1896
  %1898 = vmatmul.bf16.gmra.mxu0 %v953
  %v1899 = vpop.f32.mrf.mxu0
  %v1900 = vadd.f32 %v1731, %v1899
  %v1901 = vpop.f32.mrf.mxu0
  %v1902 = vadd.f32 %v1733, %v1901
  %1903 = vmatmul.bf16.gmra.mxu0 %v958
  %v1904 = vpop.f32.mrf.mxu0
  %v1905 = vadd.f32 %v1736, %v1904
  %v1906 = vpop.f32.mrf.mxu0
  %v1907 = vadd.f32 %v1738, %v1906
  %1908 = vdwg.mxu0
  %1909 = vmatpush.bf16.msra.mxu0 %v1264
  %1910 = vmatpush.bf16.msra.mxu0 %v1263
  %1911 = vmatpush.bf16.msra.mxu0 %v1262
  %1912 = vmatpush.bf16.msra.mxu0 %v1261
  %1913 = vmatpush.bf16.msra.mxu0 %v1260
  %1914 = vmatpush.bf16.msra.mxu0 %v1259
  %1915 = vmatpush.bf16.msra.mxu0 %v1258
  %1916 = vmatpush.bf16.msra.mxu0 %v1257
  %1917 = vmatmul.bf16.gmra.mxu0 %v804
  %v1918 = vpop.f32.mrf.mxu0
  %v1919 = vadd.f32 %v1750, %v1918
  %v1920 = vpop.f32.mrf.mxu0
  %v1921 = vadd.f32 %v1752, %v1920
  %1922 = vmatmul.bf16.gmra.mxu0 %v809
  %v1923 = vpop.f32.mrf.mxu0
  %v1924 = vadd.f32 %v1755, %v1923
  %v1925 = vpop.f32.mrf.mxu0
  %v1926 = vadd.f32 %v1757, %v1925
  %1927 = vmatmul.bf16.gmra.mxu0 %v814
  %v1928 = vpop.f32.mrf.mxu0
  %v1929 = vadd.f32 %v1760, %v1928
  %v1930 = vpop.f32.mrf.mxu0
  %v1931 = vadd.f32 %v1762, %v1930
  %1932 = vmatmul.bf16.gmra.mxu0 %v819
  %v1933 = vpop.f32.mrf.mxu0
  %v1934 = vadd.f32 %v1765, %v1933
  %v1935 = vpop.f32.mrf.mxu0
  %v1936 = vadd.f32 %v1767, %v1935
  %1937 = vmatmul.bf16.gmra.mxu0 %v824
  %v1938 = vpop.f32.mrf.mxu0
  %v1939 = vadd.f32 %v1770, %v1938
  %v1940 = vpop.f32.mrf.mxu0
  %v1941 = vadd.f32 %v1772, %v1940
  %1942 = vmatmul.bf16.gmra.mxu0 %v829
  %v1943 = vpop.f32.mrf.mxu0
  %v1944 = vadd.f32 %v1775, %v1943
  %v1945 = vpop.f32.mrf.mxu0
  %v1946 = vadd.f32 %v1777, %v1945
  %1947 = vmatmul.bf16.gmra.mxu0 %v834
  %v1948 = vpop.f32.mrf.mxu0
  %v1949 = vadd.f32 %v1780, %v1948
  %v1950 = vpop.f32.mrf.mxu0
  %v1951 = vadd.f32 %v1782, %v1950
  %1952 = vmatmul.bf16.gmra.mxu0 %v839
  %v1953 = vpop.f32.mrf.mxu0
  %v1954 = vadd.f32 %v1785, %v1953
  %v1955 = vpop.f32.mrf.mxu0
  %v1956 = vadd.f32 %v1787, %v1955
  %1957 = vmatmul.bf16.gmra.mxu0 %v844
  %v1958 = vpop.f32.mrf.mxu0
  %v1959 = vadd.f32 %v1790, %v1958
  %v1960 = vpop.f32.mrf.mxu0
  %v1961 = vadd.f32 %v1792, %v1960
  %1962 = vmatmul.bf16.gmra.mxu0 %v849
  %v1963 = vpop.f32.mrf.mxu0
  %v1964 = vadd.f32 %v1795, %v1963
  %v1965 = vpop.f32.mrf.mxu0
  %v1966 = vadd.f32 %v1797, %v1965
  %1967 = vmatmul.bf16.gmra.mxu0 %v854
  %v1968 = vpop.f32.mrf.mxu0
  %v1969 = vadd.f32 %v1800, %v1968
  %v1970 = vpop.f32.mrf.mxu0
  %v1971 = vadd.f32 %v1802, %v1970
  %1972 = vmatmul.bf16.gmra.mxu0 %v859
  %v1973 = vpop.f32.mrf.mxu0
  %v1974 = vadd.f32 %v1805, %v1973
  %v1975 = vpop.f32.mrf.mxu0
  %v1976 = vadd.f32 %v1807, %v1975
  %1977 = vmatmul.bf16.gmra.mxu0 %v864
  %v1978 = vpop.f32.mrf.mxu0
  %v1979 = vadd.f32 %v1810, %v1978
  %v1980 = vpop.f32.mrf.mxu0
  %v1981 = vadd.f32 %v1812, %v1980
  %1982 = vmatmul.bf16.gmra.mxu0 %v869
  %v1983 = vpop.f32.mrf.mxu0
  %v1984 = vadd.f32 %v1815, %v1983
  %v1985 = vpop.f32.mrf.mxu0
  %v1986 = vadd.f32 %v1817, %v1985
  %1987 = vmatmul.bf16.gmra.mxu0 %v874
  %v1988 = vpop.f32.mrf.mxu0
  %v1989 = vadd.f32 %v1820, %v1988
  %v1990 = vpop.f32.mrf.mxu0
  %v1991 = vadd.f32 %v1822, %v1990
  %1992 = vmatmul.bf16.gmra.mxu0 %v879
  %v1993 = vpop.f32.mrf.mxu0
  %v1994 = vadd.f32 %v1825, %v1993
  %v1995 = vpop.f32.mrf.mxu0
  %v1996 = vadd.f32 %v1827, %v1995
  %1997 = vmatmul.bf16.gmra.mxu0 %v884
  %v1998 = vpop.f32.mrf.mxu0
  %v1999 = vadd.f32 %v1830, %v1998
  %v2000 = vpop.f32.mrf.mxu0
  %v2001 = vadd.f32 %v1832, %v2000
  %2002 = vmatmul.bf16.gmra.mxu0 %v889
  %v2003 = vpop.f32.mrf.mxu0
  %v2004 = vadd.f32 %v1835, %v2003
  %v2005 = vpop.f32.mrf.mxu0
  %v2006 = vadd.f32 %v1837, %v2005
  %2007 = vmatmul.bf16.gmra.mxu0 %v894
  %v2008 = vpop.f32.mrf.mxu0
  %v2009 = vadd.f32 %v1840, %v2008
  %v2010 = vpop.f32.mrf.mxu0
  %v2011 = vadd.f32 %v1842, %v2010
  %2012 = vmatmul.bf16.gmra.mxu0 %v899
  %v2013 = vpop.f32.mrf.mxu0
  %v2014 = vadd.f32 %v1845, %v2013
  %v2015 = vpop.f32.mrf.mxu0
  %v2016 = vadd.f32 %v1847, %v2015
  %2017 = vmatmul.bf16.gmra.mxu0 %v904
  %v2018 = vpop.f32.mrf.mxu0
  %v2019 = vadd.f32 %v1850, %v2018
  %v2020 = vpop.f32.mrf.mxu0
  %v2021 = vadd.f32 %v1852, %v2020
  %2022 = vmatmul.bf16.gmra.mxu0 %v909
  %v2023 = vpop.f32.mrf.mxu0
  %v2024 = vadd.f32 %v1855, %v2023
  %v2025 = vpop.f32.mrf.mxu0
  %v2026 = vadd.f32 %v1857, %v2025
  %2027 = vmatmul.bf16.gmra.mxu0 %v914
  %v2028 = vpop.f32.mrf.mxu0
  %v2029 = vadd.f32 %v1860, %v2028
  %v2030 = vpop.f32.mrf.mxu0
  %v2031 = vadd.f32 %v1862, %v2030
  %2032 = vmatmul.bf16.gmra.mxu0 %v919
  %v2033 = vpop.f32.mrf.mxu0
  %v2034 = vadd.f32 %v1865, %v2033
  %v2035 = vpop.f32.mrf.mxu0
  %v2036 = vadd.f32 %v1867, %v2035
  %2037 = vmatmul.bf16.gmra.mxu0 %v924
  %v2038 = vpop.f32.mrf.mxu0
  %v2039 = vadd.f32 %v1870, %v2038
  %v2040 = vpop.f32.mrf.mxu0
  %v2041 = vadd.f32 %v1872, %v2040
  %2042 = vmatmul.bf16.gmra.mxu0 %v929
  %v2043 = vpop.f32.mrf.mxu0
  %v2044 = vadd.f32 %v1875, %v2043
  %v2045 = vpop.f32.mrf.mxu0
  %v2046 = vadd.f32 %v1877, %v2045
  %2047 = vmatmul.bf16.gmra.mxu0 %v934
  %v2048 = vpop.f32.mrf.mxu0
  %v2049 = vadd.f32 %v1880, %v2048
  %v2050 = vpop.f32.mrf.mxu0
  %v2051 = vadd.f32 %v1882, %v2050
  %2052 = vmatmul.bf16.gmra.mxu0 %v939
  %v2053 = vpop.f32.mrf.mxu0
  %v2054 = vadd.f32 %v1885, %v2053
  %v2055 = vpop.f32.mrf.mxu0
  %v2056 = vadd.f32 %v1887, %v2055
  %2057 = vmatmul.bf16.gmra.mxu0 %v944
  %v2058 = vpop.f32.mrf.mxu0
  %v2059 = vadd.f32 %v1890, %v2058
  %v2060 = vpop.f32.mrf.mxu0
  %v2061 = vadd.f32 %v1892, %v2060
  %2062 = vmatmul.bf16.gmra.mxu0 %v949
  %v2063 = vpop.f32.mrf.mxu0
  %v2064 = vadd.f32 %v1895, %v2063
  %v2065 = vpop.f32.mrf.mxu0
  %v2066 = vadd.f32 %v1897, %v2065
  %2067 = vmatmul.bf16.gmra.mxu0 %v954
  %v2068 = vpop.f32.mrf.mxu0
  %v2069 = vadd.f32 %v1900, %v2068
  %v2070 = vpop.f32.mrf.mxu0
  %v2071 = vadd.f32 %v1902, %v2070
  %2072 = vmatmul.bf16.gmra.mxu0 %v959
  %v2073 = vpop.f32.mrf.mxu0
  %v2074 = vadd.f32 %v1905, %v2073
  %v2075 = vpop.f32.mrf.mxu0
  %v2076 = vadd.f32 %v1907, %v2075
  %2077 = vdwg.mxu0
  %2078 = vmatpush.bf16.msra.mxu0 0
  %2079 = vmatpush.bf16.msra.mxu0 0
  %2080 = vmatpush.bf16.msra.mxu0 0
  %2081 = vmatpush.bf16.msra.mxu0 0
  %2082 = vmatpush.bf16.msra.mxu0 %v1268
  %2083 = vmatpush.bf16.msra.mxu0 %v1267
  %2084 = vmatpush.bf16.msra.mxu0 %v1266
  %2085 = vmatpush.bf16.msra.mxu0 %v1265
  %2086 = vmatmul.bf16.gmra.mxu0 %v1307
  %v2087 = vpop.f32.mrf.mxu0
  %v2088 = vadd.f32 %v1919, %v2087
  %v2089 = vpop.f32.mrf.mxu0
  %v2090 = vadd.f32 %v1921, %v2089
  %2091 = vmatmul.bf16.gmra.mxu0 %v1310
  %v2092 = vpop.f32.mrf.mxu0
  %v2093 = vadd.f32 %v1924, %v2092
  %v2094 = vpop.f32.mrf.mxu0
  %v2095 = vadd.f32 %v1926, %v2094
  %2096 = vmatmul.bf16.gmra.mxu0 %v1313
  %v2097 = vpop.f32.mrf.mxu0
  %v2098 = vadd.f32 %v1929, %v2097
  %v2099 = vpop.f32.mrf.mxu0
  %v2100 = vadd.f32 %v1931, %v2099
  %2101 = vmatmul.bf16.gmra.mxu0 %v1316
  %v2102 = vpop.f32.mrf.mxu0
  %v2103 = vadd.f32 %v1934, %v2102
  %v2104 = vpop.f32.mrf.mxu0
  %v2105 = vadd.f32 %v1936, %v2104
  %2106 = vmatmul.bf16.gmra.mxu0 %v1319
  %v2107 = vpop.f32.mrf.mxu0
  %v2108 = vadd.f32 %v1939, %v2107
  %v2109 = vpop.f32.mrf.mxu0
  %v2110 = vadd.f32 %v1941, %v2109
  %2111 = vmatmul.bf16.gmra.mxu0 %v1322
  %v2112 = vpop.f32.mrf.mxu0
  %v2113 = vadd.f32 %v1944, %v2112
  %v2114 = vpop.f32.mrf.mxu0
  %v2115 = vadd.f32 %v1946, %v2114
  %2116 = vmatmul.bf16.gmra.mxu0 %v1325
  %v2117 = vpop.f32.mrf.mxu0
  %v2118 = vadd.f32 %v1949, %v2117
  %v2119 = vpop.f32.mrf.mxu0
  %v2120 = vadd.f32 %v1951, %v2119
  %2121 = vmatmul.bf16.gmra.mxu0 %v1328
  %v2122 = vpop.f32.mrf.mxu0
  %v2123 = vadd.f32 %v1954, %v2122
  %v2124 = vpop.f32.mrf.mxu0
  %v2125 = vadd.f32 %v1956, %v2124
  %2126 = vmatmul.bf16.gmra.mxu0 %v1331
  %v2127 = vpop.f32.mrf.mxu0
  %v2128 = vadd.f32 %v1959, %v2127
  %v2129 = vpop.f32.mrf.mxu0
  %v2130 = vadd.f32 %v1961, %v2129
  %2131 = vmatmul.bf16.gmra.mxu0 %v1334
  %v2132 = vpop.f32.mrf.mxu0
  %v2133 = vadd.f32 %v1964, %v2132
  %v2134 = vpop.f32.mrf.mxu0
  %v2135 = vadd.f32 %v1966, %v2134
  %2136 = vmatmul.bf16.gmra.mxu0 %v1337
  %v2137 = vpop.f32.mrf.mxu0
  %v2138 = vadd.f32 %v1969, %v2137
  %v2139 = vpop.f32.mrf.mxu0
  %v2140 = vadd.f32 %v1971, %v2139
  %2141 = vmatmul.bf16.gmra.mxu0 %v1340
  %v2142 = vpop.f32.mrf.mxu0
  %v2143 = vadd.f32 %v1974, %v2142
  %v2144 = vpop.f32.mrf.mxu0
  %v2145 = vadd.f32 %v1976, %v2144
  %2146 = vmatmul.bf16.gmra.mxu0 %v1343
  %v2147 = vpop.f32.mrf.mxu0
  %v2148 = vadd.f32 %v1979, %v2147
  %v2149 = vpop.f32.mrf.mxu0
  %v2150 = vadd.f32 %v1981, %v2149
  %2151 = vmatmul.bf16.gmra.mxu0 %v1346
  %v2152 = vpop.f32.mrf.mxu0
  %v2153 = vadd.f32 %v1984, %v2152
  %v2154 = vpop.f32.mrf.mxu0
  %v2155 = vadd.f32 %v1986, %v2154
  %2156 = vmatmul.bf16.gmra.mxu0 %v1349
  %v2157 = vpop.f32.mrf.mxu0
  %v2158 = vadd.f32 %v1989, %v2157
  %v2159 = vpop.f32.mrf.mxu0
  %v2160 = vadd.f32 %v1991, %v2159
  %2161 = vmatmul.bf16.gmra.mxu0 %v1352
  %v2162 = vpop.f32.mrf.mxu0
  %v2163 = vadd.f32 %v1994, %v2162
  %v2164 = vpop.f32.mrf.mxu0
  %v2165 = vadd.f32 %v1996, %v2164
  %2166 = vmatmul.bf16.gmra.mxu0 %v1355
  %v2167 = vpop.f32.mrf.mxu0
  %v2168 = vadd.f32 %v1999, %v2167
  %v2169 = vpop.f32.mrf.mxu0
  %v2170 = vadd.f32 %v2001, %v2169
  %2171 = vmatmul.bf16.gmra.mxu0 %v1358
  %v2172 = vpop.f32.mrf.mxu0
  %v2173 = vadd.f32 %v2004, %v2172
  %v2174 = vpop.f32.mrf.mxu0
  %v2175 = vadd.f32 %v2006, %v2174
  %2176 = vmatmul.bf16.gmra.mxu0 %v1361
  %v2177 = vpop.f32.mrf.mxu0
  %v2178 = vadd.f32 %v2009, %v2177
  %v2179 = vpop.f32.mrf.mxu0
  %v2180 = vadd.f32 %v2011, %v2179
  %2181 = vmatmul.bf16.gmra.mxu0 %v1364
  %v2182 = vpop.f32.mrf.mxu0
  %v2183 = vadd.f32 %v2014, %v2182
  %v2184 = vpop.f32.mrf.mxu0
  %v2185 = vadd.f32 %v2016, %v2184
  %2186 = vmatmul.bf16.gmra.mxu0 %v1367
  %v2187 = vpop.f32.mrf.mxu0
  %v2188 = vadd.f32 %v2019, %v2187
  %v2189 = vpop.f32.mrf.mxu0
  %v2190 = vadd.f32 %v2021, %v2189
  %2191 = vmatmul.bf16.gmra.mxu0 %v1370
  %v2192 = vpop.f32.mrf.mxu0
  %v2193 = vadd.f32 %v2024, %v2192
  %v2194 = vpop.f32.mrf.mxu0
  %v2195 = vadd.f32 %v2026, %v2194
  %2196 = vmatmul.bf16.gmra.mxu0 %v1373
  %v2197 = vpop.f32.mrf.mxu0
  %v2198 = vadd.f32 %v2029, %v2197
  %v2199 = vpop.f32.mrf.mxu0
  %v2200 = vadd.f32 %v2031, %v2199
  %2201 = vmatmul.bf16.gmra.mxu0 %v1376
  %v2202 = vpop.f32.mrf.mxu0
  %v2203 = vadd.f32 %v2034, %v2202
  %v2204 = vpop.f32.mrf.mxu0
  %v2205 = vadd.f32 %v2036, %v2204
  %2206 = vmatmul.bf16.gmra.mxu0 %v1379
  %v2207 = vpop.f32.mrf.mxu0
  %v2208 = vadd.f32 %v2039, %v2207
  %v2209 = vpop.f32.mrf.mxu0
  %v2210 = vadd.f32 %v2041, %v2209
  %2211 = vmatmul.bf16.gmra.mxu0 %v1382
  %v2212 = vpop.f32.mrf.mxu0
  %v2213 = vadd.f32 %v2044, %v2212
  %v2214 = vpop.f32.mrf.mxu0
  %v2215 = vadd.f32 %v2046, %v2214
  %2216 = vmatmul.bf16.gmra.mxu0 %v1385
  %v2217 = vpop.f32.mrf.mxu0
  %v2218 = vadd.f32 %v2049, %v2217
  %v2219 = vpop.f32.mrf.mxu0
  %v2220 = vadd.f32 %v2051, %v2219
  %2221 = vmatmul.bf16.gmra.mxu0 %v1388
  %v2222 = vpop.f32.mrf.mxu0
  %v2223 = vadd.f32 %v2054, %v2222
  %v2224 = vpop.f32.mrf.mxu0
  %v2225 = vadd.f32 %v2056, %v2224
  %2226 = vmatmul.bf16.gmra.mxu0 %v1391
  %v2227 = vpop.f32.mrf.mxu0
  %v2228 = vadd.f32 %v2059, %v2227
  %v2229 = vpop.f32.mrf.mxu0
  %v2230 = vadd.f32 %v2061, %v2229
  %2231 = vmatmul.bf16.gmra.mxu0 %v1394
  %v2232 = vpop.f32.mrf.mxu0
  %v2233 = vadd.f32 %v2064, %v2232
  %v2234 = vpop.f32.mrf.mxu0
  %v2235 = vadd.f32 %v2066, %v2234
  %2236 = vmatmul.bf16.gmra.mxu0 %v1397
  %v2237 = vpop.f32.mrf.mxu0
  %v2238 = vadd.f32 %v2069, %v2237
  %v2239 = vpop.f32.mrf.mxu0
  %v2240 = vadd.f32 %v2071, %v2239
  %2241 = vmatmul.bf16.gmra.mxu0 %v1400
  %v2242 = vpop.f32.mrf.mxu0
  %v2243 = vadd.f32 %v2074, %v2242
  %v2244 = vpop.f32.mrf.mxu0
  %v2245 = vadd.f32 %v2076, %v2244
  %2246 = vdwg.mxu0
  %v2247 = vmax.f32 %v2088, 0.0
  %v2248 = vmax.f32 %v2090, 0.0
  %v2249 = vmax.f32 %v2093, 0.0
  %v2250 = vmax.f32 %v2095, 0.0
  %v2251 = vmax.f32 %v2098, 0.0
  %v2252 = vmax.f32 %v2100, 0.0
  %v2253 = vmax.f32 %v2103, 0.0
  %v2254 = vmax.f32 %v2105, 0.0
  %v2255 = vmax.f32 %v2108, 0.0
  %v2256 = vmax.f32 %v2110, 0.0
  %v2257 = vmax.f32 %v2113, 0.0
  %v2258 = vmax.f32 %v2115, 0.0
  %v2259 = vmax.f32 %v2118, 0.0
  %v2260 = vmax.f32 %v2120, 0.0
  %v2261 = vmax.f32 %v2123, 0.0
  %v2262 = vmax.f32 %v2125, 0.0
  %v2263 = vmax.f32 %v2128, 0.0
  %v2264 = vmax.f32 %v2130, 0.0
  %v2265 = vmax.f32 %v2133, 0.0
  %v2266 = vmax.f32 %v2135, 0.0
  %v2267 = vmax.f32 %v2138, 0.0
  %v2268 = vmax.f32 %v2140, 0.0
  %v2269 = vmax.f32 %v2143, 0.0
  %v2270 = vmax.f32 %v2145, 0.0
  %v2271 = vmax.f32 %v2148, 0.0
  %v2272 = vmax.f32 %v2150, 0.0
  %v2273 = vmax.f32 %v2153, 0.0
  %v2274 = vmax.f32 %v2155, 0.0
  %v2275 = vmax.f32 %v2158, 0.0
  %v2276 = vmax.f32 %v2160, 0.0
  %v2277 = vmax.f32 %v2163, 0.0
  %v2278 = vmax.f32 %v2165, 0.0
  %v2279 = vmax.f32 %v2168, 0.0
  %v2280 = vmax.f32 %v2170, 0.0
  %v2281 = vmax.f32 %v2173, 0.0
  %v2282 = vmax.f32 %v2175, 0.0
  %v2283 = vmax.f32 %v2178, 0.0
  %v2284 = vmax.f32 %v2180, 0.0
  %v2285 = vmax.f32 %v2183, 0.0
  %v2286 = vmax.f32 %v2185, 0.0
  %v2287 = vmax.f32 %v2188, 0.0
  %v2288 = vmax.f32 %v2190, 0.0
  %v2289 = vmax.f32 %v2193, 0.0
  %v2290 = vmax.f32 %v2195, 0.0
  %v2291 = vmax.f32 %v2198, 0.0
  %v2292 = vmax.f32 %v2200, 0.0
  %v2293 = vmax.f32 %v2203, 0.0
  %v2294 = vmax.f32 %v2205, 0.0
  %v2295 = vmax.f32 %v2208, 0.0
  %v2296 = vmax.f32 %v2210, 0.0
  %v2297 = vmax.f32 %v2213, 0.0
  %v2298 = vmax.f32 %v2215, 0.0
  %v2299 = vmax.f32 %v2218, 0.0
  %v2300 = vmax.f32 %v2220, 0.0
  %v2301 = vmax.f32 %v2223, 0.0
  %v2302 = vmax.f32 %v2225, 0.0
  %v2303 = vmax.f32 %v2228, 0.0
  %v2304 = vmax.f32 %v2230, 0.0
  %v2305 = vmax.f32 %v2233, 0.0
  %v2306 = vmax.f32 %v2235, 0.0
  %v2307 = vmax.f32 %v2238, 0.0
  %v2308 = vmax.f32 %v2240, 0.0
  %v2309 = vmax.f32 %v2243, 0.0
  %v2310 = vmax.f32 %v2245, 0.0
  %v2311 = vpack.c.bf16 %v2248, %v2247
  %v2312 = vpack.c.bf16 %v2250, %v2249
  %v2313 = vpack.c.bf16 %v2252, %v2251
  %v2314 = vpack.c.bf16 %v2254, %v2253
  %v2315 = vpack.c.bf16 %v2256, %v2255
  %v2316 = vpack.c.bf16 %v2258, %v2257
  %v2317 = vpack.c.bf16 %v2260, %v2259
  %v2318 = vpack.c.bf16 %v2262, %v2261
  %v2319 = vpack.c.bf16 %v2264, %v2263
  %v2320 = vpack.c.bf16 %v2266, %v2265
  %v2321 = vpack.c.bf16 %v2268, %v2267
  %v2322 = vpack.c.bf16 %v2270, %v2269
  %v2323 = vpack.c.bf16 %v2272, %v2271
  %v2324 = vpack.c.bf16 %v2274, %v2273
  %v2325 = vpack.c.bf16 %v2276, %v2275
  %v2326 = vpack.c.bf16 %v2278, %v2277
  %v2327 = vpack.c.bf16 %v2280, %v2279
  %v2328 = vpack.c.bf16 %v2282, %v2281
  %v2329 = vpack.c.bf16 %v2284, %v2283
  %v2330 = vpack.c.bf16 %v2286, %v2285
  %v2331 = vpack.c.bf16 %v2288, %v2287
  %v2332 = vpack.c.bf16 %v2290, %v2289
  %v2333 = vpack.c.bf16 %v2292, %v2291
  %v2334 = vpack.c.bf16 %v2294, %v2293
  %v2335 = vpack.c.bf16 %v2296, %v2295
  %v2336 = vpack.c.bf16 %v2298, %v2297
  %v2337 = vpack.c.bf16 %v2300, %v2299
  %v2338 = vpack.c.bf16 %v2302, %v2301
  %v2339 = vpack.c.bf16 %v2304, %v2303
  %v2340 = vpack.c.bf16 %v2306, %v2305
  %v2341 = vpack.c.bf16 %v2308, %v2307
  %v2342 = vpack.c.bf16 %v2310, %v2309
  %v2343 = vld [vmem:[%s3] sm:$0xf]
  %v2344 = vld [vmem:[%s3 + $0x4] sm:$0xf]
  %v2345 = vld [vmem:[%s3 + $0x8] sm:$0xf]
  %v2346 = vld [vmem:[%s3 + $0xc] sm:$0xf]
  %v2347 = vld [vmem:[%s4] sm:$0x1]
  %v2349 = vperm.slane %v2347, 0
  %v2355 = vunpack.c.l.b16 %v2343
  %v2356 = vunpack.c.l.b16 %v2344
  %v2357 = vunpack.c.l.b16 %v2345
  %v2358 = vunpack.c.l.b16 %v2346
  %v2359 = vpack.c.b16 %v2356, %v2355
  %v2360 = vpack.c.b16 %v2358, %v2357
  %vm2363 = vcmask 261120
  %v2365 = vsel %vm2363, %v2311, 0
  %v2368 = vsel %vm2363, %v2312, 0
  %v2371 = vsel %vm2363, %v2313, 0
  %v2374 = vsel %vm2363, %v2314, 0
  %v2377 = vsel %vm2363, %v2315, 0
  %v2380 = vsel %vm2363, %v2316, 0
  %v2383 = vsel %vm2363, %v2317, 0
  %v2386 = vsel %vm2363, %v2318, 0
  %v2389 = vsel %vm2363, %v2319, 0
  %v2392 = vsel %vm2363, %v2320, 0
  %v2395 = vsel %vm2363, %v2321, 0
  %v2398 = vsel %vm2363, %v2322, 0
  %v2401 = vsel %vm2363, %v2323, 0
  %v2404 = vsel %vm2363, %v2324, 0
  %v2407 = vsel %vm2363, %v2325, 0
  %v2410 = vsel %vm2363, %v2326, 0
  %v2413 = vsel %vm2363, %v2327, 0
  %v2416 = vsel %vm2363, %v2328, 0
  %v2419 = vsel %vm2363, %v2329, 0
  %v2422 = vsel %vm2363, %v2330, 0
  %v2425 = vsel %vm2363, %v2331, 0
  %v2428 = vsel %vm2363, %v2332, 0
  %v2431 = vsel %vm2363, %v2333, 0
  %v2434 = vsel %vm2363, %v2334, 0
  %v2437 = vsel %vm2363, %v2335, 0
  %v2440 = vsel %vm2363, %v2336, 0
  %v2443 = vsel %vm2363, %v2337, 0
  %v2446 = vsel %vm2363, %v2338, 0
  %v2449 = vsel %vm2363, %v2339, 0
  %v2452 = vsel %vm2363, %v2340, 0
  %v2455 = vsel %vm2363, %v2341, 0
  %v2458 = vsel %vm2363, %v2342, 0
  %2460 = vmatpush.bf16.msra.mxu0 0
  %2461 = vmatpush.bf16.msra.mxu0 0
  %2462 = vmatpush.bf16.msra.mxu0 0
  %2463 = vmatpush.bf16.msra.mxu0 0
  %2464 = vmatpush.bf16.msra.mxu0 0
  %2465 = vmatpush.bf16.msra.mxu0 0
  %2466 = vmatpush.bf16.msra.mxu0 %v2360
  %2467 = vmatpush.bf16.msra.mxu0 %v2359
  %2468 = vmatmul.bf16.gmra.mxu0 %v2365
  %v2469 = vpop.f32.mrf.mxu0
  %v2470 = vadd.f32 %v2349, %v2469
  %v2471 = vpop.f32.mrf.mxu0
  %v2472 = vadd.f32 %v2349, %v2471
  %2473 = vmatmul.bf16.gmra.mxu0 %v2368
  %v2474 = vpop.f32.mrf.mxu0
  %v2475 = vadd.f32 %v2349, %v2474
  %v2476 = vpop.f32.mrf.mxu0
  %v2477 = vadd.f32 %v2349, %v2476
  %2478 = vmatmul.bf16.gmra.mxu0 %v2371
  %v2479 = vpop.f32.mrf.mxu0
  %v2480 = vadd.f32 %v2349, %v2479
  %v2481 = vpop.f32.mrf.mxu0
  %v2482 = vadd.f32 %v2349, %v2481
  %2483 = vmatmul.bf16.gmra.mxu0 %v2374
  %v2484 = vpop.f32.mrf.mxu0
  %v2485 = vadd.f32 %v2349, %v2484
  %v2486 = vpop.f32.mrf.mxu0
  %v2487 = vadd.f32 %v2349, %v2486
  %2488 = vmatmul.bf16.gmra.mxu0 %v2377
  %v2489 = vpop.f32.mrf.mxu0
  %v2490 = vadd.f32 %v2349, %v2489
  %v2491 = vpop.f32.mrf.mxu0
  %v2492 = vadd.f32 %v2349, %v2491
  %2493 = vmatmul.bf16.gmra.mxu0 %v2380
  %v2494 = vpop.f32.mrf.mxu0
  %v2495 = vadd.f32 %v2349, %v2494
  %v2496 = vpop.f32.mrf.mxu0
  %v2497 = vadd.f32 %v2349, %v2496
  %2498 = vmatmul.bf16.gmra.mxu0 %v2383
  %v2499 = vpop.f32.mrf.mxu0
  %v2500 = vadd.f32 %v2349, %v2499
  %v2501 = vpop.f32.mrf.mxu0
  %v2502 = vadd.f32 %v2349, %v2501
  %2503 = vmatmul.bf16.gmra.mxu0 %v2386
  %v2504 = vpop.f32.mrf.mxu0
  %v2505 = vadd.f32 %v2349, %v2504
  %v2506 = vpop.f32.mrf.mxu0
  %v2507 = vadd.f32 %v2349, %v2506
  %2508 = vmatmul.bf16.gmra.mxu0 %v2389
  %v2509 = vpop.f32.mrf.mxu0
  %v2510 = vadd.f32 %v2349, %v2509
  %v2511 = vpop.f32.mrf.mxu0
  %v2512 = vadd.f32 %v2349, %v2511
  %2513 = vmatmul.bf16.gmra.mxu0 %v2392
  %v2514 = vpop.f32.mrf.mxu0
  %v2515 = vadd.f32 %v2349, %v2514
  %v2516 = vpop.f32.mrf.mxu0
  %v2517 = vadd.f32 %v2349, %v2516
  %2518 = vmatmul.bf16.gmra.mxu0 %v2395
  %v2519 = vpop.f32.mrf.mxu0
  %v2520 = vadd.f32 %v2349, %v2519
  %v2521 = vpop.f32.mrf.mxu0
  %v2522 = vadd.f32 %v2349, %v2521
  %2523 = vmatmul.bf16.gmra.mxu0 %v2398
  %v2524 = vpop.f32.mrf.mxu0
  %v2525 = vadd.f32 %v2349, %v2524
  %v2526 = vpop.f32.mrf.mxu0
  %v2527 = vadd.f32 %v2349, %v2526
  %2528 = vmatmul.bf16.gmra.mxu0 %v2401
  %v2529 = vpop.f32.mrf.mxu0
  %v2530 = vadd.f32 %v2349, %v2529
  %v2531 = vpop.f32.mrf.mxu0
  %v2532 = vadd.f32 %v2349, %v2531
  %2533 = vmatmul.bf16.gmra.mxu0 %v2404
  %v2534 = vpop.f32.mrf.mxu0
  %v2535 = vadd.f32 %v2349, %v2534
  %v2536 = vpop.f32.mrf.mxu0
  %v2537 = vadd.f32 %v2349, %v2536
  %2538 = vmatmul.bf16.gmra.mxu0 %v2407
  %v2539 = vpop.f32.mrf.mxu0
  %v2540 = vadd.f32 %v2349, %v2539
  %v2541 = vpop.f32.mrf.mxu0
  %v2542 = vadd.f32 %v2349, %v2541
  %2543 = vmatmul.bf16.gmra.mxu0 %v2410
  %v2544 = vpop.f32.mrf.mxu0
  %v2545 = vadd.f32 %v2349, %v2544
  %v2546 = vpop.f32.mrf.mxu0
  %v2547 = vadd.f32 %v2349, %v2546
  %2548 = vmatmul.bf16.gmra.mxu0 %v2413
  %v2549 = vpop.f32.mrf.mxu0
  %v2550 = vadd.f32 %v2349, %v2549
  %v2551 = vpop.f32.mrf.mxu0
  %v2552 = vadd.f32 %v2349, %v2551
  %2553 = vmatmul.bf16.gmra.mxu0 %v2416
  %v2554 = vpop.f32.mrf.mxu0
  %v2555 = vadd.f32 %v2349, %v2554
  %v2556 = vpop.f32.mrf.mxu0
  %v2557 = vadd.f32 %v2349, %v2556
  %2558 = vmatmul.bf16.gmra.mxu0 %v2419
  %v2559 = vpop.f32.mrf.mxu0
  %v2560 = vadd.f32 %v2349, %v2559
  %v2561 = vpop.f32.mrf.mxu0
  %v2562 = vadd.f32 %v2349, %v2561
  %2563 = vmatmul.bf16.gmra.mxu0 %v2422
  %v2564 = vpop.f32.mrf.mxu0
  %v2565 = vadd.f32 %v2349, %v2564
  %v2566 = vpop.f32.mrf.mxu0
  %v2567 = vadd.f32 %v2349, %v2566
  %2568 = vmatmul.bf16.gmra.mxu0 %v2425
  %v2569 = vpop.f32.mrf.mxu0
  %v2570 = vadd.f32 %v2349, %v2569
  %v2571 = vpop.f32.mrf.mxu0
  %v2572 = vadd.f32 %v2349, %v2571
  %2573 = vmatmul.bf16.gmra.mxu0 %v2428
  %v2574 = vpop.f32.mrf.mxu0
  %v2575 = vadd.f32 %v2349, %v2574
  %v2576 = vpop.f32.mrf.mxu0
  %v2577 = vadd.f32 %v2349, %v2576
  %2578 = vmatmul.bf16.gmra.mxu0 %v2431
  %v2579 = vpop.f32.mrf.mxu0
  %v2580 = vadd.f32 %v2349, %v2579
  %v2581 = vpop.f32.mrf.mxu0
  %v2582 = vadd.f32 %v2349, %v2581
  %2583 = vmatmul.bf16.gmra.mxu0 %v2434
  %v2584 = vpop.f32.mrf.mxu0
  %v2585 = vadd.f32 %v2349, %v2584
  %v2586 = vpop.f32.mrf.mxu0
  %v2587 = vadd.f32 %v2349, %v2586
  %2588 = vmatmul.bf16.gmra.mxu0 %v2437
  %v2589 = vpop.f32.mrf.mxu0
  %v2590 = vadd.f32 %v2349, %v2589
  %v2591 = vpop.f32.mrf.mxu0
  %v2592 = vadd.f32 %v2349, %v2591
  %2593 = vmatmul.bf16.gmra.mxu0 %v2440
  %v2594 = vpop.f32.mrf.mxu0
  %v2595 = vadd.f32 %v2349, %v2594
  %v2596 = vpop.f32.mrf.mxu0
  %v2597 = vadd.f32 %v2349, %v2596
  %2598 = vmatmul.bf16.gmra.mxu0 %v2443
  %v2599 = vpop.f32.mrf.mxu0
  %v2600 = vadd.f32 %v2349, %v2599
  %v2601 = vpop.f32.mrf.mxu0
  %v2602 = vadd.f32 %v2349, %v2601
  %2603 = vmatmul.bf16.gmra.mxu0 %v2446
  %v2604 = vpop.f32.mrf.mxu0
  %v2605 = vadd.f32 %v2349, %v2604
  %v2606 = vpop.f32.mrf.mxu0
  %v2607 = vadd.f32 %v2349, %v2606
  %2608 = vmatmul.bf16.gmra.mxu0 %v2449
  %v2609 = vpop.f32.mrf.mxu0
  %v2610 = vadd.f32 %v2349, %v2609
  %v2611 = vpop.f32.mrf.mxu0
  %v2612 = vadd.f32 %v2349, %v2611
  %2613 = vmatmul.bf16.gmra.mxu0 %v2452
  %v2614 = vpop.f32.mrf.mxu0
  %v2615 = vadd.f32 %v2349, %v2614
  %v2616 = vpop.f32.mrf.mxu0
  %v2617 = vadd.f32 %v2349, %v2616
  %2618 = vmatmul.bf16.gmra.mxu0 %v2455
  %v2619 = vpop.f32.mrf.mxu0
  %v2620 = vadd.f32 %v2349, %v2619
  %v2621 = vpop.f32.mrf.mxu0
  %v2622 = vadd.f32 %v2349, %v2621
  %2623 = vmatmul.bf16.gmra.mxu0 %v2458
  %v2624 = vpop.f32.mrf.mxu0
  %v2625 = vadd.f32 %v2349, %v2624
  %v2626 = vpop.f32.mrf.mxu0
  %v2627 = vadd.f32 %v2349, %v2626
  %2628 = vdwg.mxu0
  %v2629 = vxor.u32 %v2470, 2147483648
  %v2630 = vxor.u32 %v2472, 2147483648
  %v2631 = vxor.u32 %v2475, 2147483648
  %v2632 = vxor.u32 %v2477, 2147483648
  %v2633 = vxor.u32 %v2480, 2147483648
  %v2634 = vxor.u32 %v2482, 2147483648
  %v2635 = vxor.u32 %v2485, 2147483648
  %v2636 = vxor.u32 %v2487, 2147483648
  %v2637 = vxor.u32 %v2490, 2147483648
  %v2638 = vxor.u32 %v2492, 2147483648
  %v2639 = vxor.u32 %v2495, 2147483648
  %v2640 = vxor.u32 %v2497, 2147483648
  %v2641 = vxor.u32 %v2500, 2147483648
  %v2642 = vxor.u32 %v2502, 2147483648
  %v2643 = vxor.u32 %v2505, 2147483648
  %v2644 = vxor.u32 %v2507, 2147483648
  %v2645 = vxor.u32 %v2510, 2147483648
  %v2646 = vxor.u32 %v2512, 2147483648
  %v2647 = vxor.u32 %v2515, 2147483648
  %v2648 = vxor.u32 %v2517, 2147483648
  %v2649 = vxor.u32 %v2520, 2147483648
  %v2650 = vxor.u32 %v2522, 2147483648
  %v2651 = vxor.u32 %v2525, 2147483648
  %v2652 = vxor.u32 %v2527, 2147483648
  %v2653 = vxor.u32 %v2530, 2147483648
  %v2654 = vxor.u32 %v2532, 2147483648
  %v2655 = vxor.u32 %v2535, 2147483648
  %v2656 = vxor.u32 %v2537, 2147483648
  %v2657 = vxor.u32 %v2540, 2147483648
  %v2658 = vxor.u32 %v2542, 2147483648
  %v2659 = vxor.u32 %v2545, 2147483648
  %v2660 = vxor.u32 %v2547, 2147483648
  %v2661 = vxor.u32 %v2550, 2147483648
  %v2662 = vxor.u32 %v2552, 2147483648
  %v2663 = vxor.u32 %v2555, 2147483648
  %v2664 = vxor.u32 %v2557, 2147483648
  %v2665 = vxor.u32 %v2560, 2147483648
  %v2666 = vxor.u32 %v2562, 2147483648
  %v2667 = vxor.u32 %v2565, 2147483648
  %v2668 = vxor.u32 %v2567, 2147483648
  %v2669 = vxor.u32 %v2570, 2147483648
  %v2670 = vxor.u32 %v2572, 2147483648
  %v2671 = vxor.u32 %v2575, 2147483648
  %v2672 = vxor.u32 %v2577, 2147483648
  %v2673 = vxor.u32 %v2580, 2147483648
  %v2674 = vxor.u32 %v2582, 2147483648
  %v2675 = vxor.u32 %v2585, 2147483648
  %v2676 = vxor.u32 %v2587, 2147483648
  %v2677 = vxor.u32 %v2590, 2147483648
  %v2678 = vxor.u32 %v2592, 2147483648
  %v2679 = vxor.u32 %v2595, 2147483648
  %v2680 = vxor.u32 %v2597, 2147483648
  %v2681 = vxor.u32 %v2600, 2147483648
  %v2682 = vxor.u32 %v2602, 2147483648
  %v2683 = vxor.u32 %v2605, 2147483648
  %v2684 = vxor.u32 %v2607, 2147483648
  %v2685 = vxor.u32 %v2610, 2147483648
  %v2686 = vxor.u32 %v2612, 2147483648
  %v2687 = vxor.u32 %v2615, 2147483648
  %v2688 = vxor.u32 %v2617, 2147483648
  %v2689 = vxor.u32 %v2620, 2147483648
  %v2690 = vxor.u32 %v2622, 2147483648
  %v2691 = vxor.u32 %v2625, 2147483648
  %v2692 = vxor.u32 %v2627, 2147483648
  %v2693 = vmul.f32 %v2629, 1.442695
  %v2694 = vpow.pop %v2693
  %v2695 = vmul.f32 %v2630, 1.442695
  %v2696 = vpow.pop %v2695
  %v2697 = vmul.f32 %v2631, 1.442695
  %v2698 = vpow.pop %v2697
  %v2699 = vmul.f32 %v2632, 1.442695
  %v2700 = vpow.pop %v2699
  %v2701 = vmul.f32 %v2633, 1.442695
  %v2702 = vpow.pop %v2701
  %v2703 = vmul.f32 %v2634, 1.442695
  %v2704 = vpow.pop %v2703
  %v2705 = vmul.f32 %v2635, 1.442695
  %v2706 = vpow.pop %v2705
  %v2707 = vmul.f32 %v2636, 1.442695
  %v2708 = vpow.pop %v2707
  %v2709 = vmul.f32 %v2637, 1.442695
  %v2710 = vpow.pop %v2709
  %v2711 = vmul.f32 %v2638, 1.442695
  %v2712 = vpow.pop %v2711
  %v2713 = vmul.f32 %v2639, 1.442695
  %v2714 = vpow.pop %v2713
  %v2715 = vmul.f32 %v2640, 1.442695
  %v2716 = vpow.pop %v2715
  %v2717 = vmul.f32 %v2641, 1.442695
  %v2718 = vpow.pop %v2717
  %v2719 = vmul.f32 %v2642, 1.442695
  %v2720 = vpow.pop %v2719
  %v2721 = vmul.f32 %v2643, 1.442695
  %v2722 = vpow.pop %v2721
  %v2723 = vmul.f32 %v2644, 1.442695
  %v2724 = vpow.pop %v2723
  %v2725 = vmul.f32 %v2645, 1.442695
  %v2726 = vpow.pop %v2725
  %v2727 = vmul.f32 %v2646, 1.442695
  %v2728 = vpow.pop %v2727
  %v2729 = vmul.f32 %v2647, 1.442695
  %v2730 = vpow.pop %v2729
  %v2731 = vmul.f32 %v2648, 1.442695
  %v2732 = vpow.pop %v2731
  %v2733 = vmul.f32 %v2649, 1.442695
  %v2734 = vpow.pop %v2733
  %v2735 = vmul.f32 %v2650, 1.442695
  %v2736 = vpow.pop %v2735
  %v2737 = vmul.f32 %v2651, 1.442695
  %v2738 = vpow.pop %v2737
  %v2739 = vmul.f32 %v2652, 1.442695
  %v2740 = vpow.pop %v2739
  %v2741 = vmul.f32 %v2653, 1.442695
  %v2742 = vpow.pop %v2741
  %v2743 = vmul.f32 %v2654, 1.442695
  %v2744 = vpow.pop %v2743
  %v2745 = vmul.f32 %v2655, 1.442695
  %v2746 = vpow.pop %v2745
  %v2747 = vmul.f32 %v2656, 1.442695
  %v2748 = vpow.pop %v2747
  %v2749 = vmul.f32 %v2657, 1.442695
  %v2750 = vpow.pop %v2749
  %v2751 = vmul.f32 %v2658, 1.442695
  %v2752 = vpow.pop %v2751
  %v2753 = vmul.f32 %v2659, 1.442695
  %v2754 = vpow.pop %v2753
  %v2755 = vmul.f32 %v2660, 1.442695
  %v2756 = vpow.pop %v2755
  %v2757 = vmul.f32 %v2661, 1.442695
  %v2758 = vpow.pop %v2757
  %v2759 = vmul.f32 %v2662, 1.442695
  %v2760 = vpow.pop %v2759
  %v2761 = vmul.f32 %v2663, 1.442695
  %v2762 = vpow.pop %v2761
  %v2763 = vmul.f32 %v2664, 1.442695
  %v2764 = vpow.pop %v2763
  %v2765 = vmul.f32 %v2665, 1.442695
  %v2766 = vpow.pop %v2765
  %v2767 = vmul.f32 %v2666, 1.442695
  %v2768 = vpow.pop %v2767
  %v2769 = vmul.f32 %v2667, 1.442695
  %v2770 = vpow.pop %v2769
  %v2771 = vmul.f32 %v2668, 1.442695
  %v2772 = vpow.pop %v2771
  %v2773 = vmul.f32 %v2669, 1.442695
  %v2774 = vpow.pop %v2773
  %v2775 = vmul.f32 %v2670, 1.442695
  %v2776 = vpow.pop %v2775
  %v2777 = vmul.f32 %v2671, 1.442695
  %v2778 = vpow.pop %v2777
  %v2779 = vmul.f32 %v2672, 1.442695
  %v2780 = vpow.pop %v2779
  %v2781 = vmul.f32 %v2673, 1.442695
  %v2782 = vpow.pop %v2781
  %v2783 = vmul.f32 %v2674, 1.442695
  %v2784 = vpow.pop %v2783
  %v2785 = vmul.f32 %v2675, 1.442695
  %v2786 = vpow.pop %v2785
  %v2787 = vmul.f32 %v2676, 1.442695
  %v2788 = vpow.pop %v2787
  %v2789 = vmul.f32 %v2677, 1.442695
  %v2790 = vpow.pop %v2789
  %v2791 = vmul.f32 %v2678, 1.442695
  %v2792 = vpow.pop %v2791
  %v2793 = vmul.f32 %v2679, 1.442695
  %v2794 = vpow.pop %v2793
  %v2795 = vmul.f32 %v2680, 1.442695
  %v2796 = vpow.pop %v2795
  %v2797 = vmul.f32 %v2681, 1.442695
  %v2798 = vpow.pop %v2797
  %v2799 = vmul.f32 %v2682, 1.442695
  %v2800 = vpow.pop %v2799
  %v2801 = vmul.f32 %v2683, 1.442695
  %v2802 = vpow.pop %v2801
  %v2803 = vmul.f32 %v2684, 1.442695
  %v2804 = vpow.pop %v2803
  %v2805 = vmul.f32 %v2685, 1.442695
  %v2806 = vpow.pop %v2805
  %v2807 = vmul.f32 %v2686, 1.442695
  %v2808 = vpow.pop %v2807
  %v2809 = vmul.f32 %v2687, 1.442695
  %v2810 = vpow.pop %v2809
  %v2811 = vmul.f32 %v2688, 1.442695
  %v2812 = vpow.pop %v2811
  %v2813 = vmul.f32 %v2689, 1.442695
  %v2814 = vpow.pop %v2813
  %v2815 = vmul.f32 %v2690, 1.442695
  %v2816 = vpow.pop %v2815
  %v2817 = vmul.f32 %v2691, 1.442695
  %v2818 = vpow.pop %v2817
  %v2819 = vmul.f32 %v2692, 1.442695
  %v2820 = vpow.pop %v2819
  %v2821 = vadd.f32 %v2694, 1.0
  %v2822 = vadd.f32 %v2696, 1.0
  %v2823 = vadd.f32 %v2698, 1.0
  %v2824 = vadd.f32 %v2700, 1.0
  %v2825 = vadd.f32 %v2702, 1.0
  %v2826 = vadd.f32 %v2704, 1.0
  %v2827 = vadd.f32 %v2706, 1.0
  %v2828 = vadd.f32 %v2708, 1.0
  %v2829 = vadd.f32 %v2710, 1.0
  %v2830 = vadd.f32 %v2712, 1.0
  %v2831 = vadd.f32 %v2714, 1.0
  %v2832 = vadd.f32 %v2716, 1.0
  %v2833 = vadd.f32 %v2718, 1.0
  %v2834 = vadd.f32 %v2720, 1.0
  %v2835 = vadd.f32 %v2722, 1.0
  %v2836 = vadd.f32 %v2724, 1.0
  %v2837 = vadd.f32 %v2726, 1.0
  %v2838 = vadd.f32 %v2728, 1.0
  %v2839 = vadd.f32 %v2730, 1.0
  %v2840 = vadd.f32 %v2732, 1.0
  %v2841 = vadd.f32 %v2734, 1.0
  %v2842 = vadd.f32 %v2736, 1.0
  %v2843 = vadd.f32 %v2738, 1.0
  %v2844 = vadd.f32 %v2740, 1.0
  %v2845 = vadd.f32 %v2742, 1.0
  %v2846 = vadd.f32 %v2744, 1.0
  %v2847 = vadd.f32 %v2746, 1.0
  %v2848 = vadd.f32 %v2748, 1.0
  %v2849 = vadd.f32 %v2750, 1.0
  %v2850 = vadd.f32 %v2752, 1.0
  %v2851 = vadd.f32 %v2754, 1.0
  %v2852 = vadd.f32 %v2756, 1.0
  %v2853 = vadd.f32 %v2758, 1.0
  %v2854 = vadd.f32 %v2760, 1.0
  %v2855 = vadd.f32 %v2762, 1.0
  %v2856 = vadd.f32 %v2764, 1.0
  %v2857 = vadd.f32 %v2766, 1.0
  %v2858 = vadd.f32 %v2768, 1.0
  %v2859 = vadd.f32 %v2770, 1.0
  %v2860 = vadd.f32 %v2772, 1.0
  %v2861 = vadd.f32 %v2774, 1.0
  %v2862 = vadd.f32 %v2776, 1.0
  %v2863 = vadd.f32 %v2778, 1.0
  %v2864 = vadd.f32 %v2780, 1.0
  %v2865 = vadd.f32 %v2782, 1.0
  %v2866 = vadd.f32 %v2784, 1.0
  %v2867 = vadd.f32 %v2786, 1.0
  %v2868 = vadd.f32 %v2788, 1.0
  %v2869 = vadd.f32 %v2790, 1.0
  %v2870 = vadd.f32 %v2792, 1.0
  %v2871 = vadd.f32 %v2794, 1.0
  %v2872 = vadd.f32 %v2796, 1.0
  %v2873 = vadd.f32 %v2798, 1.0
  %v2874 = vadd.f32 %v2800, 1.0
  %v2875 = vadd.f32 %v2802, 1.0
  %v2876 = vadd.f32 %v2804, 1.0
  %v2877 = vadd.f32 %v2806, 1.0
  %v2878 = vadd.f32 %v2808, 1.0
  %v2879 = vadd.f32 %v2810, 1.0
  %v2880 = vadd.f32 %v2812, 1.0
  %v2881 = vadd.f32 %v2814, 1.0
  %v2882 = vadd.f32 %v2816, 1.0
  %v2883 = vadd.f32 %v2818, 1.0
  %v2884 = vadd.f32 %v2820, 1.0
  %v2885 = vrcp.pop %v2821
  %v2886 = vmul.f32 %v2821, %v2885
  %v2887 = vsub.f32 1.0, %v2886
  %v2888 = vmul.f32 %v2885, %v2887
  %v2889 = vadd.f32 %v2885, %v2888
  %vm2890 = vweird.f32 %v2821
  %vm2891 = vweird.f32 %v2885
  %vm2892 = vmor %vm2890, %vm2891
  %v2893 = vsel %vm2892, %v2885, %v2889
  %v2894 = vand.u32 2147483647, %v2821
  %vm2895 = vcmp.eq.f32.partialorder %v2894, 8.507059e+37
  %v2896 = vand.u32 %v2821, 2147483648
  %v2897 = vor.u32 1.1754944e-38, %v2896
  %v2898 = vsel %vm2895, %v2897, %v2893
  %v2899 = vmul.f32 1.0, %v2898
  %v2900 = vrcp.pop %v2822
  %v2901 = vmul.f32 %v2822, %v2900
  %v2902 = vsub.f32 1.0, %v2901
  %v2903 = vmul.f32 %v2900, %v2902
  %v2904 = vadd.f32 %v2900, %v2903
  %vm2905 = vweird.f32 %v2822
  %vm2906 = vweird.f32 %v2900
  %vm2907 = vmor %vm2905, %vm2906
  %v2908 = vsel %vm2907, %v2900, %v2904
  %v2909 = vand.u32 2147483647, %v2822
  %vm2910 = vcmp.eq.f32.partialorder %v2909, 8.507059e+37
  %v2911 = vand.u32 %v2822, 2147483648
  %v2912 = vor.u32 1.1754944e-38, %v2911
  %v2913 = vsel %vm2910, %v2912, %v2908
  %v2914 = vmul.f32 1.0, %v2913
  %v2915 = vrcp.pop %v2823
  %v2916 = vmul.f32 %v2823, %v2915
  %v2917 = vsub.f32 1.0, %v2916
  %v2918 = vmul.f32 %v2915, %v2917
  %v2919 = vadd.f32 %v2915, %v2918
  %vm2920 = vweird.f32 %v2823
  %vm2921 = vweird.f32 %v2915
  %vm2922 = vmor %vm2920, %vm2921
  %v2923 = vsel %vm2922, %v2915, %v2919
  %v2924 = vand.u32 2147483647, %v2823
  %vm2925 = vcmp.eq.f32.partialorder %v2924, 8.507059e+37
  %v2926 = vand.u32 %v2823, 2147483648
  %v2927 = vor.u32 1.1754944e-38, %v2926
  %v2928 = vsel %vm2925, %v2927, %v2923
  %v2929 = vmul.f32 1.0, %v2928
  %v2930 = vrcp.pop %v2824
  %v2931 = vmul.f32 %v2824, %v2930
  %v2932 = vsub.f32 1.0, %v2931
  %v2933 = vmul.f32 %v2930, %v2932
  %v2934 = vadd.f32 %v2930, %v2933
  %vm2935 = vweird.f32 %v2824
  %vm2936 = vweird.f32 %v2930
  %vm2937 = vmor %vm2935, %vm2936
  %v2938 = vsel %vm2937, %v2930, %v2934
  %v2939 = vand.u32 2147483647, %v2824
  %vm2940 = vcmp.eq.f32.partialorder %v2939, 8.507059e+37
  %v2941 = vand.u32 %v2824, 2147483648
  %v2942 = vor.u32 1.1754944e-38, %v2941
  %v2943 = vsel %vm2940, %v2942, %v2938
  %v2944 = vmul.f32 1.0, %v2943
  %v2945 = vrcp.pop %v2825
  %v2946 = vmul.f32 %v2825, %v2945
  %v2947 = vsub.f32 1.0, %v2946
  %v2948 = vmul.f32 %v2945, %v2947
  %v2949 = vadd.f32 %v2945, %v2948
  %vm2950 = vweird.f32 %v2825
  %vm2951 = vweird.f32 %v2945
  %vm2952 = vmor %vm2950, %vm2951
  %v2953 = vsel %vm2952, %v2945, %v2949
  %v2954 = vand.u32 2147483647, %v2825
  %vm2955 = vcmp.eq.f32.partialorder %v2954, 8.507059e+37
  %v2956 = vand.u32 %v2825, 2147483648
  %v2957 = vor.u32 1.1754944e-38, %v2956
  %v2958 = vsel %vm2955, %v2957, %v2953
  %v2959 = vmul.f32 1.0, %v2958
  %v2960 = vrcp.pop %v2826
  %v2961 = vmul.f32 %v2826, %v2960
  %v2962 = vsub.f32 1.0, %v2961
  %v2963 = vmul.f32 %v2960, %v2962
  %v2964 = vadd.f32 %v2960, %v2963
  %vm2965 = vweird.f32 %v2826
  %vm2966 = vweird.f32 %v2960
  %vm2967 = vmor %vm2965, %vm2966
  %v2968 = vsel %vm2967, %v2960, %v2964
  %v2969 = vand.u32 2147483647, %v2826
  %vm2970 = vcmp.eq.f32.partialorder %v2969, 8.507059e+37
  %v2971 = vand.u32 %v2826, 2147483648
  %v2972 = vor.u32 1.1754944e-38, %v2971
  %v2973 = vsel %vm2970, %v2972, %v2968
  %v2974 = vmul.f32 1.0, %v2973
  %v2975 = vrcp.pop %v2827
  %v2976 = vmul.f32 %v2827, %v2975
  %v2977 = vsub.f32 1.0, %v2976
  %v2978 = vmul.f32 %v2975, %v2977
  %v2979 = vadd.f32 %v2975, %v2978
  %vm2980 = vweird.f32 %v2827
  %vm2981 = vweird.f32 %v2975
  %vm2982 = vmor %vm2980, %vm2981
  %v2983 = vsel %vm2982, %v2975, %v2979
  %v2984 = vand.u32 2147483647, %v2827
  %vm2985 = vcmp.eq.f32.partialorder %v2984, 8.507059e+37
  %v2986 = vand.u32 %v2827, 2147483648
  %v2987 = vor.u32 1.1754944e-38, %v2986
  %v2988 = vsel %vm2985, %v2987, %v2983
  %v2989 = vmul.f32 1.0, %v2988
  %v2990 = vrcp.pop %v2828
  %v2991 = vmul.f32 %v2828, %v2990
  %v2992 = vsub.f32 1.0, %v2991
  %v2993 = vmul.f32 %v2990, %v2992
  %v2994 = vadd.f32 %v2990, %v2993
  %vm2995 = vweird.f32 %v2828
  %vm2996 = vweird.f32 %v2990
  %vm2997 = vmor %vm2995, %vm2996
  %v2998 = vsel %vm2997, %v2990, %v2994
  %v2999 = vand.u32 2147483647, %v2828
  %vm3000 = vcmp.eq.f32.partialorder %v2999, 8.507059e+37
  %v3001 = vand.u32 %v2828, 2147483648
  %v3002 = vor.u32 1.1754944e-38, %v3001
  %v3003 = vsel %vm3000, %v3002, %v2998
  %v3004 = vmul.f32 1.0, %v3003
  %v3005 = vrcp.pop %v2829
  %v3006 = vmul.f32 %v2829, %v3005
  %v3007 = vsub.f32 1.0, %v3006
  %v3008 = vmul.f32 %v3005, %v3007
  %v3009 = vadd.f32 %v3005, %v3008
  %vm3010 = vweird.f32 %v2829
  %vm3011 = vweird.f32 %v3005
  %vm3012 = vmor %vm3010, %vm3011
  %v3013 = vsel %vm3012, %v3005, %v3009
  %v3014 = vand.u32 2147483647, %v2829
  %vm3015 = vcmp.eq.f32.partialorder %v3014, 8.507059e+37
  %v3016 = vand.u32 %v2829, 2147483648
  %v3017 = vor.u32 1.1754944e-38, %v3016
  %v3018 = vsel %vm3015, %v3017, %v3013
  %v3019 = vmul.f32 1.0, %v3018
  %v3020 = vrcp.pop %v2830
  %v3021 = vmul.f32 %v2830, %v3020
  %v3022 = vsub.f32 1.0, %v3021
  %v3023 = vmul.f32 %v3020, %v3022
  %v3024 = vadd.f32 %v3020, %v3023
  %vm3025 = vweird.f32 %v2830
  %vm3026 = vweird.f32 %v3020
  %vm3027 = vmor %vm3025, %vm3026
  %v3028 = vsel %vm3027, %v3020, %v3024
  %v3029 = vand.u32 2147483647, %v2830
  %vm3030 = vcmp.eq.f32.partialorder %v3029, 8.507059e+37
  %v3031 = vand.u32 %v2830, 2147483648
  %v3032 = vor.u32 1.1754944e-38, %v3031
  %v3033 = vsel %vm3030, %v3032, %v3028
  %v3034 = vmul.f32 1.0, %v3033
  %v3035 = vrcp.pop %v2831
  %v3036 = vmul.f32 %v2831, %v3035
  %v3037 = vsub.f32 1.0, %v3036
  %v3038 = vmul.f32 %v3035, %v3037
  %v3039 = vadd.f32 %v3035, %v3038
  %vm3040 = vweird.f32 %v2831
  %vm3041 = vweird.f32 %v3035
  %vm3042 = vmor %vm3040, %vm3041
  %v3043 = vsel %vm3042, %v3035, %v3039
  %v3044 = vand.u32 2147483647, %v2831
  %vm3045 = vcmp.eq.f32.partialorder %v3044, 8.507059e+37
  %v3046 = vand.u32 %v2831, 2147483648
  %v3047 = vor.u32 1.1754944e-38, %v3046
  %v3048 = vsel %vm3045, %v3047, %v3043
  %v3049 = vmul.f32 1.0, %v3048
  %v3050 = vrcp.pop %v2832
  %v3051 = vmul.f32 %v2832, %v3050
  %v3052 = vsub.f32 1.0, %v3051
  %v3053 = vmul.f32 %v3050, %v3052
  %v3054 = vadd.f32 %v3050, %v3053
  %vm3055 = vweird.f32 %v2832
  %vm3056 = vweird.f32 %v3050
  %vm3057 = vmor %vm3055, %vm3056
  %v3058 = vsel %vm3057, %v3050, %v3054
  %v3059 = vand.u32 2147483647, %v2832
  %vm3060 = vcmp.eq.f32.partialorder %v3059, 8.507059e+37
  %v3061 = vand.u32 %v2832, 2147483648
  %v3062 = vor.u32 1.1754944e-38, %v3061
  %v3063 = vsel %vm3060, %v3062, %v3058
  %v3064 = vmul.f32 1.0, %v3063
  %v3065 = vrcp.pop %v2833
  %v3066 = vmul.f32 %v2833, %v3065
  %v3067 = vsub.f32 1.0, %v3066
  %v3068 = vmul.f32 %v3065, %v3067
  %v3069 = vadd.f32 %v3065, %v3068
  %vm3070 = vweird.f32 %v2833
  %vm3071 = vweird.f32 %v3065
  %vm3072 = vmor %vm3070, %vm3071
  %v3073 = vsel %vm3072, %v3065, %v3069
  %v3074 = vand.u32 2147483647, %v2833
  %vm3075 = vcmp.eq.f32.partialorder %v3074, 8.507059e+37
  %v3076 = vand.u32 %v2833, 2147483648
  %v3077 = vor.u32 1.1754944e-38, %v3076
  %v3078 = vsel %vm3075, %v3077, %v3073
  %v3079 = vmul.f32 1.0, %v3078
  %v3080 = vrcp.pop %v2834
  %v3081 = vmul.f32 %v2834, %v3080
  %v3082 = vsub.f32 1.0, %v3081
  %v3083 = vmul.f32 %v3080, %v3082
  %v3084 = vadd.f32 %v3080, %v3083
  %vm3085 = vweird.f32 %v2834
  %vm3086 = vweird.f32 %v3080
  %vm3087 = vmor %vm3085, %vm3086
  %v3088 = vsel %vm3087, %v3080, %v3084
  %v3089 = vand.u32 2147483647, %v2834
  %vm3090 = vcmp.eq.f32.partialorder %v3089, 8.507059e+37
  %v3091 = vand.u32 %v2834, 2147483648
  %v3092 = vor.u32 1.1754944e-38, %v3091
  %v3093 = vsel %vm3090, %v3092, %v3088
  %v3094 = vmul.f32 1.0, %v3093
  %v3095 = vrcp.pop %v2835
  %v3096 = vmul.f32 %v2835, %v3095
  %v3097 = vsub.f32 1.0, %v3096
  %v3098 = vmul.f32 %v3095, %v3097
  %v3099 = vadd.f32 %v3095, %v3098
  %vm3100 = vweird.f32 %v2835
  %vm3101 = vweird.f32 %v3095
  %vm3102 = vmor %vm3100, %vm3101
  %v3103 = vsel %vm3102, %v3095, %v3099
  %v3104 = vand.u32 2147483647, %v2835
  %vm3105 = vcmp.eq.f32.partialorder %v3104, 8.507059e+37
  %v3106 = vand.u32 %v2835, 2147483648
  %v3107 = vor.u32 1.1754944e-38, %v3106
  %v3108 = vsel %vm3105, %v3107, %v3103
  %v3109 = vmul.f32 1.0, %v3108
  %v3110 = vrcp.pop %v2836
  %v3111 = vmul.f32 %v2836, %v3110
  %v3112 = vsub.f32 1.0, %v3111
  %v3113 = vmul.f32 %v3110, %v3112
  %v3114 = vadd.f32 %v3110, %v3113
  %vm3115 = vweird.f32 %v2836
  %vm3116 = vweird.f32 %v3110
  %vm3117 = vmor %vm3115, %vm3116
  %v3118 = vsel %vm3117, %v3110, %v3114
  %v3119 = vand.u32 2147483647, %v2836
  %vm3120 = vcmp.eq.f32.partialorder %v3119, 8.507059e+37
  %v3121 = vand.u32 %v2836, 2147483648
  %v3122 = vor.u32 1.1754944e-38, %v3121
  %v3123 = vsel %vm3120, %v3122, %v3118
  %v3124 = vmul.f32 1.0, %v3123
  %v3125 = vrcp.pop %v2837
  %v3126 = vmul.f32 %v2837, %v3125
  %v3127 = vsub.f32 1.0, %v3126
  %v3128 = vmul.f32 %v3125, %v3127
  %v3129 = vadd.f32 %v3125, %v3128
  %vm3130 = vweird.f32 %v2837
  %vm3131 = vweird.f32 %v3125
  %vm3132 = vmor %vm3130, %vm3131
  %v3133 = vsel %vm3132, %v3125, %v3129
  %v3134 = vand.u32 2147483647, %v2837
  %vm3135 = vcmp.eq.f32.partialorder %v3134, 8.507059e+37
  %v3136 = vand.u32 %v2837, 2147483648
  %v3137 = vor.u32 1.1754944e-38, %v3136
  %v3138 = vsel %vm3135, %v3137, %v3133
  %v3139 = vmul.f32 1.0, %v3138
  %v3140 = vrcp.pop %v2838
  %v3141 = vmul.f32 %v2838, %v3140
  %v3142 = vsub.f32 1.0, %v3141
  %v3143 = vmul.f32 %v3140, %v3142
  %v3144 = vadd.f32 %v3140, %v3143
  %vm3145 = vweird.f32 %v2838
  %vm3146 = vweird.f32 %v3140
  %vm3147 = vmor %vm3145, %vm3146
  %v3148 = vsel %vm3147, %v3140, %v3144
  %v3149 = vand.u32 2147483647, %v2838
  %vm3150 = vcmp.eq.f32.partialorder %v3149, 8.507059e+37
  %v3151 = vand.u32 %v2838, 2147483648
  %v3152 = vor.u32 1.1754944e-38, %v3151
  %v3153 = vsel %vm3150, %v3152, %v3148
  %v3154 = vmul.f32 1.0, %v3153
  %v3155 = vrcp.pop %v2839
  %v3156 = vmul.f32 %v2839, %v3155
  %v3157 = vsub.f32 1.0, %v3156
  %v3158 = vmul.f32 %v3155, %v3157
  %v3159 = vadd.f32 %v3155, %v3158
  %vm3160 = vweird.f32 %v2839
  %vm3161 = vweird.f32 %v3155
  %vm3162 = vmor %vm3160, %vm3161
  %v3163 = vsel %vm3162, %v3155, %v3159
  %v3164 = vand.u32 2147483647, %v2839
  %vm3165 = vcmp.eq.f32.partialorder %v3164, 8.507059e+37
  %v3166 = vand.u32 %v2839, 2147483648
  %v3167 = vor.u32 1.1754944e-38, %v3166
  %v3168 = vsel %vm3165, %v3167, %v3163
  %v3169 = vmul.f32 1.0, %v3168
  %v3170 = vrcp.pop %v2840
  %v3171 = vmul.f32 %v2840, %v3170
  %v3172 = vsub.f32 1.0, %v3171
  %v3173 = vmul.f32 %v3170, %v3172
  %v3174 = vadd.f32 %v3170, %v3173
  %vm3175 = vweird.f32 %v2840
  %vm3176 = vweird.f32 %v3170
  %vm3177 = vmor %vm3175, %vm3176
  %v3178 = vsel %vm3177, %v3170, %v3174
  %v3179 = vand.u32 2147483647, %v2840
  %vm3180 = vcmp.eq.f32.partialorder %v3179, 8.507059e+37
  %v3181 = vand.u32 %v2840, 2147483648
  %v3182 = vor.u32 1.1754944e-38, %v3181
  %v3183 = vsel %vm3180, %v3182, %v3178
  %v3184 = vmul.f32 1.0, %v3183
  %v3185 = vrcp.pop %v2841
  %v3186 = vmul.f32 %v2841, %v3185
  %v3187 = vsub.f32 1.0, %v3186
  %v3188 = vmul.f32 %v3185, %v3187
  %v3189 = vadd.f32 %v3185, %v3188
  %vm3190 = vweird.f32 %v2841
  %vm3191 = vweird.f32 %v3185
  %vm3192 = vmor %vm3190, %vm3191
  %v3193 = vsel %vm3192, %v3185, %v3189
  %v3194 = vand.u32 2147483647, %v2841
  %vm3195 = vcmp.eq.f32.partialorder %v3194, 8.507059e+37
  %v3196 = vand.u32 %v2841, 2147483648
  %v3197 = vor.u32 1.1754944e-38, %v3196
  %v3198 = vsel %vm3195, %v3197, %v3193
  %v3199 = vmul.f32 1.0, %v3198
  %v3200 = vrcp.pop %v2842
  %v3201 = vmul.f32 %v2842, %v3200
  %v3202 = vsub.f32 1.0, %v3201
  %v3203 = vmul.f32 %v3200, %v3202
  %v3204 = vadd.f32 %v3200, %v3203
  %vm3205 = vweird.f32 %v2842
  %vm3206 = vweird.f32 %v3200
  %vm3207 = vmor %vm3205, %vm3206
  %v3208 = vsel %vm3207, %v3200, %v3204
  %v3209 = vand.u32 2147483647, %v2842
  %vm3210 = vcmp.eq.f32.partialorder %v3209, 8.507059e+37
  %v3211 = vand.u32 %v2842, 2147483648
  %v3212 = vor.u32 1.1754944e-38, %v3211
  %v3213 = vsel %vm3210, %v3212, %v3208
  %v3214 = vmul.f32 1.0, %v3213
  %v3215 = vrcp.pop %v2843
  %v3216 = vmul.f32 %v2843, %v3215
  %v3217 = vsub.f32 1.0, %v3216
  %v3218 = vmul.f32 %v3215, %v3217
  %v3219 = vadd.f32 %v3215, %v3218
  %vm3220 = vweird.f32 %v2843
  %vm3221 = vweird.f32 %v3215
  %vm3222 = vmor %vm3220, %vm3221
  %v3223 = vsel %vm3222, %v3215, %v3219
  %v3224 = vand.u32 2147483647, %v2843
  %vm3225 = vcmp.eq.f32.partialorder %v3224, 8.507059e+37
  %v3226 = vand.u32 %v2843, 2147483648
  %v3227 = vor.u32 1.1754944e-38, %v3226
  %v3228 = vsel %vm3225, %v3227, %v3223
  %v3229 = vmul.f32 1.0, %v3228
  %v3230 = vrcp.pop %v2844
  %v3231 = vmul.f32 %v2844, %v3230
  %v3232 = vsub.f32 1.0, %v3231
  %v3233 = vmul.f32 %v3230, %v3232
  %v3234 = vadd.f32 %v3230, %v3233
  %vm3235 = vweird.f32 %v2844
  %vm3236 = vweird.f32 %v3230
  %vm3237 = vmor %vm3235, %vm3236
  %v3238 = vsel %vm3237, %v3230, %v3234
  %v3239 = vand.u32 2147483647, %v2844
  %vm3240 = vcmp.eq.f32.partialorder %v3239, 8.507059e+37
  %v3241 = vand.u32 %v2844, 2147483648
  %v3242 = vor.u32 1.1754944e-38, %v3241
  %v3243 = vsel %vm3240, %v3242, %v3238
  %v3244 = vmul.f32 1.0, %v3243
  %v3245 = vrcp.pop %v2845
  %v3246 = vmul.f32 %v2845, %v3245
  %v3247 = vsub.f32 1.0, %v3246
  %v3248 = vmul.f32 %v3245, %v3247
  %v3249 = vadd.f32 %v3245, %v3248
  %vm3250 = vweird.f32 %v2845
  %vm3251 = vweird.f32 %v3245
  %vm3252 = vmor %vm3250, %vm3251
  %v3253 = vsel %vm3252, %v3245, %v3249
  %v3254 = vand.u32 2147483647, %v2845
  %vm3255 = vcmp.eq.f32.partialorder %v3254, 8.507059e+37
  %v3256 = vand.u32 %v2845, 2147483648
  %v3257 = vor.u32 1.1754944e-38, %v3256
  %v3258 = vsel %vm3255, %v3257, %v3253
  %v3259 = vmul.f32 1.0, %v3258
  %v3260 = vrcp.pop %v2846
  %v3261 = vmul.f32 %v2846, %v3260
  %v3262 = vsub.f32 1.0, %v3261
  %v3263 = vmul.f32 %v3260, %v3262
  %v3264 = vadd.f32 %v3260, %v3263
  %vm3265 = vweird.f32 %v2846
  %vm3266 = vweird.f32 %v3260
  %vm3267 = vmor %vm3265, %vm3266
  %v3268 = vsel %vm3267, %v3260, %v3264
  %v3269 = vand.u32 2147483647, %v2846
  %vm3270 = vcmp.eq.f32.partialorder %v3269, 8.507059e+37
  %v3271 = vand.u32 %v2846, 2147483648
  %v3272 = vor.u32 1.1754944e-38, %v3271
  %v3273 = vsel %vm3270, %v3272, %v3268
  %v3274 = vmul.f32 1.0, %v3273
  %v3275 = vrcp.pop %v2847
  %v3276 = vmul.f32 %v2847, %v3275
  %v3277 = vsub.f32 1.0, %v3276
  %v3278 = vmul.f32 %v3275, %v3277
  %v3279 = vadd.f32 %v3275, %v3278
  %vm3280 = vweird.f32 %v2847
  %vm3281 = vweird.f32 %v3275
  %vm3282 = vmor %vm3280, %vm3281
  %v3283 = vsel %vm3282, %v3275, %v3279
  %v3284 = vand.u32 2147483647, %v2847
  %vm3285 = vcmp.eq.f32.partialorder %v3284, 8.507059e+37
  %v3286 = vand.u32 %v2847, 2147483648
  %v3287 = vor.u32 1.1754944e-38, %v3286
  %v3288 = vsel %vm3285, %v3287, %v3283
  %v3289 = vmul.f32 1.0, %v3288
  %v3290 = vrcp.pop %v2848
  %v3291 = vmul.f32 %v2848, %v3290
  %v3292 = vsub.f32 1.0, %v3291
  %v3293 = vmul.f32 %v3290, %v3292
  %v3294 = vadd.f32 %v3290, %v3293
  %vm3295 = vweird.f32 %v2848
  %vm3296 = vweird.f32 %v3290
  %vm3297 = vmor %vm3295, %vm3296
  %v3298 = vsel %vm3297, %v3290, %v3294
  %v3299 = vand.u32 2147483647, %v2848
  %vm3300 = vcmp.eq.f32.partialorder %v3299, 8.507059e+37
  %v3301 = vand.u32 %v2848, 2147483648
  %v3302 = vor.u32 1.1754944e-38, %v3301
  %v3303 = vsel %vm3300, %v3302, %v3298
  %v3304 = vmul.f32 1.0, %v3303
  %v3305 = vrcp.pop %v2849
  %v3306 = vmul.f32 %v2849, %v3305
  %v3307 = vsub.f32 1.0, %v3306
  %v3308 = vmul.f32 %v3305, %v3307
  %v3309 = vadd.f32 %v3305, %v3308
  %vm3310 = vweird.f32 %v2849
  %vm3311 = vweird.f32 %v3305
  %vm3312 = vmor %vm3310, %vm3311
  %v3313 = vsel %vm3312, %v3305, %v3309
  %v3314 = vand.u32 2147483647, %v2849
  %vm3315 = vcmp.eq.f32.partialorder %v3314, 8.507059e+37
  %v3316 = vand.u32 %v2849, 2147483648
  %v3317 = vor.u32 1.1754944e-38, %v3316
  %v3318 = vsel %vm3315, %v3317, %v3313
  %v3319 = vmul.f32 1.0, %v3318
  %v3320 = vrcp.pop %v2850
  %v3321 = vmul.f32 %v2850, %v3320
  %v3322 = vsub.f32 1.0, %v3321
  %v3323 = vmul.f32 %v3320, %v3322
  %v3324 = vadd.f32 %v3320, %v3323
  %vm3325 = vweird.f32 %v2850
  %vm3326 = vweird.f32 %v3320
  %vm3327 = vmor %vm3325, %vm3326
  %v3328 = vsel %vm3327, %v3320, %v3324
  %v3329 = vand.u32 2147483647, %v2850
  %vm3330 = vcmp.eq.f32.partialorder %v3329, 8.507059e+37
  %v3331 = vand.u32 %v2850, 2147483648
  %v3332 = vor.u32 1.1754944e-38, %v3331
  %v3333 = vsel %vm3330, %v3332, %v3328
  %v3334 = vmul.f32 1.0, %v3333
  %v3335 = vrcp.pop %v2851
  %v3336 = vmul.f32 %v2851, %v3335
  %v3337 = vsub.f32 1.0, %v3336
  %v3338 = vmul.f32 %v3335, %v3337
  %v3339 = vadd.f32 %v3335, %v3338
  %vm3340 = vweird.f32 %v2851
  %vm3341 = vweird.f32 %v3335
  %vm3342 = vmor %vm3340, %vm3341
  %v3343 = vsel %vm3342, %v3335, %v3339
  %v3344 = vand.u32 2147483647, %v2851
  %vm3345 = vcmp.eq.f32.partialorder %v3344, 8.507059e+37
  %v3346 = vand.u32 %v2851, 2147483648
  %v3347 = vor.u32 1.1754944e-38, %v3346
  %v3348 = vsel %vm3345, %v3347, %v3343
  %v3349 = vmul.f32 1.0, %v3348
  %v3350 = vrcp.pop %v2852
  %v3351 = vmul.f32 %v2852, %v3350
  %v3352 = vsub.f32 1.0, %v3351
  %v3353 = vmul.f32 %v3350, %v3352
  %v3354 = vadd.f32 %v3350, %v3353
  %vm3355 = vweird.f32 %v2852
  %vm3356 = vweird.f32 %v3350
  %vm3357 = vmor %vm3355, %vm3356
  %v3358 = vsel %vm3357, %v3350, %v3354
  %v3359 = vand.u32 2147483647, %v2852
  %vm3360 = vcmp.eq.f32.partialorder %v3359, 8.507059e+37
  %v3361 = vand.u32 %v2852, 2147483648
  %v3362 = vor.u32 1.1754944e-38, %v3361
  %v3363 = vsel %vm3360, %v3362, %v3358
  %v3364 = vmul.f32 1.0, %v3363
  %v3365 = vrcp.pop %v2853
  %v3366 = vmul.f32 %v2853, %v3365
  %v3367 = vsub.f32 1.0, %v3366
  %v3368 = vmul.f32 %v3365, %v3367
  %v3369 = vadd.f32 %v3365, %v3368
  %vm3370 = vweird.f32 %v2853
  %vm3371 = vweird.f32 %v3365
  %vm3372 = vmor %vm3370, %vm3371
  %v3373 = vsel %vm3372, %v3365, %v3369
  %v3374 = vand.u32 2147483647, %v2853
  %vm3375 = vcmp.eq.f32.partialorder %v3374, 8.507059e+37
  %v3376 = vand.u32 %v2853, 2147483648
  %v3377 = vor.u32 1.1754944e-38, %v3376
  %v3378 = vsel %vm3375, %v3377, %v3373
  %v3379 = vmul.f32 1.0, %v3378
  %v3380 = vrcp.pop %v2854
  %v3381 = vmul.f32 %v2854, %v3380
  %v3382 = vsub.f32 1.0, %v3381
  %v3383 = vmul.f32 %v3380, %v3382
  %v3384 = vadd.f32 %v3380, %v3383
  %vm3385 = vweird.f32 %v2854
  %vm3386 = vweird.f32 %v3380
  %vm3387 = vmor %vm3385, %vm3386
  %v3388 = vsel %vm3387, %v3380, %v3384
  %v3389 = vand.u32 2147483647, %v2854
  %vm3390 = vcmp.eq.f32.partialorder %v3389, 8.507059e+37
  %v3391 = vand.u32 %v2854, 2147483648
  %v3392 = vor.u32 1.1754944e-38, %v3391
  %v3393 = vsel %vm3390, %v3392, %v3388
  %v3394 = vmul.f32 1.0, %v3393
  %v3395 = vrcp.pop %v2855
  %v3396 = vmul.f32 %v2855, %v3395
  %v3397 = vsub.f32 1.0, %v3396
  %v3398 = vmul.f32 %v3395, %v3397
  %v3399 = vadd.f32 %v3395, %v3398
  %vm3400 = vweird.f32 %v2855
  %vm3401 = vweird.f32 %v3395
  %vm3402 = vmor %vm3400, %vm3401
  %v3403 = vsel %vm3402, %v3395, %v3399
  %v3404 = vand.u32 2147483647, %v2855
  %vm3405 = vcmp.eq.f32.partialorder %v3404, 8.507059e+37
  %v3406 = vand.u32 %v2855, 2147483648
  %v3407 = vor.u32 1.1754944e-38, %v3406
  %v3408 = vsel %vm3405, %v3407, %v3403
  %v3409 = vmul.f32 1.0, %v3408
  %v3410 = vrcp.pop %v2856
  %v3411 = vmul.f32 %v2856, %v3410
  %v3412 = vsub.f32 1.0, %v3411
  %v3413 = vmul.f32 %v3410, %v3412
  %v3414 = vadd.f32 %v3410, %v3413
  %vm3415 = vweird.f32 %v2856
  %vm3416 = vweird.f32 %v3410
  %vm3417 = vmor %vm3415, %vm3416
  %v3418 = vsel %vm3417, %v3410, %v3414
  %v3419 = vand.u32 2147483647, %v2856
  %vm3420 = vcmp.eq.f32.partialorder %v3419, 8.507059e+37
  %v3421 = vand.u32 %v2856, 2147483648
  %v3422 = vor.u32 1.1754944e-38, %v3421
  %v3423 = vsel %vm3420, %v3422, %v3418
  %v3424 = vmul.f32 1.0, %v3423
  %v3425 = vrcp.pop %v2857
  %v3426 = vmul.f32 %v2857, %v3425
  %v3427 = vsub.f32 1.0, %v3426
  %v3428 = vmul.f32 %v3425, %v3427
  %v3429 = vadd.f32 %v3425, %v3428
  %vm3430 = vweird.f32 %v2857
  %vm3431 = vweird.f32 %v3425
  %vm3432 = vmor %vm3430, %vm3431
  %v3433 = vsel %vm3432, %v3425, %v3429
  %v3434 = vand.u32 2147483647, %v2857
  %vm3435 = vcmp.eq.f32.partialorder %v3434, 8.507059e+37
  %v3436 = vand.u32 %v2857, 2147483648
  %v3437 = vor.u32 1.1754944e-38, %v3436
  %v3438 = vsel %vm3435, %v3437, %v3433
  %v3439 = vmul.f32 1.0, %v3438
  %v3440 = vrcp.pop %v2858
  %v3441 = vmul.f32 %v2858, %v3440
  %v3442 = vsub.f32 1.0, %v3441
  %v3443 = vmul.f32 %v3440, %v3442
  %v3444 = vadd.f32 %v3440, %v3443
  %vm3445 = vweird.f32 %v2858
  %vm3446 = vweird.f32 %v3440
  %vm3447 = vmor %vm3445, %vm3446
  %v3448 = vsel %vm3447, %v3440, %v3444
  %v3449 = vand.u32 2147483647, %v2858
  %vm3450 = vcmp.eq.f32.partialorder %v3449, 8.507059e+37
  %v3451 = vand.u32 %v2858, 2147483648
  %v3452 = vor.u32 1.1754944e-38, %v3451
  %v3453 = vsel %vm3450, %v3452, %v3448
  %v3454 = vmul.f32 1.0, %v3453
  %v3455 = vrcp.pop %v2859
  %v3456 = vmul.f32 %v2859, %v3455
  %v3457 = vsub.f32 1.0, %v3456
  %v3458 = vmul.f32 %v3455, %v3457
  %v3459 = vadd.f32 %v3455, %v3458
  %vm3460 = vweird.f32 %v2859
  %vm3461 = vweird.f32 %v3455
  %vm3462 = vmor %vm3460, %vm3461
  %v3463 = vsel %vm3462, %v3455, %v3459
  %v3464 = vand.u32 2147483647, %v2859
  %vm3465 = vcmp.eq.f32.partialorder %v3464, 8.507059e+37
  %v3466 = vand.u32 %v2859, 2147483648
  %v3467 = vor.u32 1.1754944e-38, %v3466
  %v3468 = vsel %vm3465, %v3467, %v3463
  %v3469 = vmul.f32 1.0, %v3468
  %v3470 = vrcp.pop %v2860
  %v3471 = vmul.f32 %v2860, %v3470
  %v3472 = vsub.f32 1.0, %v3471
  %v3473 = vmul.f32 %v3470, %v3472
  %v3474 = vadd.f32 %v3470, %v3473
  %vm3475 = vweird.f32 %v2860
  %vm3476 = vweird.f32 %v3470
  %vm3477 = vmor %vm3475, %vm3476
  %v3478 = vsel %vm3477, %v3470, %v3474
  %v3479 = vand.u32 2147483647, %v2860
  %vm3480 = vcmp.eq.f32.partialorder %v3479, 8.507059e+37
  %v3481 = vand.u32 %v2860, 2147483648
  %v3482 = vor.u32 1.1754944e-38, %v3481
  %v3483 = vsel %vm3480, %v3482, %v3478
  %v3484 = vmul.f32 1.0, %v3483
  %v3485 = vrcp.pop %v2861
  %v3486 = vmul.f32 %v2861, %v3485
  %v3487 = vsub.f32 1.0, %v3486
  %v3488 = vmul.f32 %v3485, %v3487
  %v3489 = vadd.f32 %v3485, %v3488
  %vm3490 = vweird.f32 %v2861
  %vm3491 = vweird.f32 %v3485
  %vm3492 = vmor %vm3490, %vm3491
  %v3493 = vsel %vm3492, %v3485, %v3489
  %v3494 = vand.u32 2147483647, %v2861
  %vm3495 = vcmp.eq.f32.partialorder %v3494, 8.507059e+37
  %v3496 = vand.u32 %v2861, 2147483648
  %v3497 = vor.u32 1.1754944e-38, %v3496
  %v3498 = vsel %vm3495, %v3497, %v3493
  %v3499 = vmul.f32 1.0, %v3498
  %v3500 = vrcp.pop %v2862
  %v3501 = vmul.f32 %v2862, %v3500
  %v3502 = vsub.f32 1.0, %v3501
  %v3503 = vmul.f32 %v3500, %v3502
  %v3504 = vadd.f32 %v3500, %v3503
  %vm3505 = vweird.f32 %v2862
  %vm3506 = vweird.f32 %v3500
  %vm3507 = vmor %vm3505, %vm3506
  %v3508 = vsel %vm3507, %v3500, %v3504
  %v3509 = vand.u32 2147483647, %v2862
  %vm3510 = vcmp.eq.f32.partialorder %v3509, 8.507059e+37
  %v3511 = vand.u32 %v2862, 2147483648
  %v3512 = vor.u32 1.1754944e-38, %v3511
  %v3513 = vsel %vm3510, %v3512, %v3508
  %v3514 = vmul.f32 1.0, %v3513
  %v3515 = vrcp.pop %v2863
  %v3516 = vmul.f32 %v2863, %v3515
  %v3517 = vsub.f32 1.0, %v3516
  %v3518 = vmul.f32 %v3515, %v3517
  %v3519 = vadd.f32 %v3515, %v3518
  %vm3520 = vweird.f32 %v2863
  %vm3521 = vweird.f32 %v3515
  %vm3522 = vmor %vm3520, %vm3521
  %v3523 = vsel %vm3522, %v3515, %v3519
  %v3524 = vand.u32 2147483647, %v2863
  %vm3525 = vcmp.eq.f32.partialorder %v3524, 8.507059e+37
  %v3526 = vand.u32 %v2863, 2147483648
  %v3527 = vor.u32 1.1754944e-38, %v3526
  %v3528 = vsel %vm3525, %v3527, %v3523
  %v3529 = vmul.f32 1.0, %v3528
  %v3530 = vrcp.pop %v2864
  %v3531 = vmul.f32 %v2864, %v3530
  %v3532 = vsub.f32 1.0, %v3531
  %v3533 = vmul.f32 %v3530, %v3532
  %v3534 = vadd.f32 %v3530, %v3533
  %vm3535 = vweird.f32 %v2864
  %vm3536 = vweird.f32 %v3530
  %vm3537 = vmor %vm3535, %vm3536
  %v3538 = vsel %vm3537, %v3530, %v3534
  %v3539 = vand.u32 2147483647, %v2864
  %vm3540 = vcmp.eq.f32.partialorder %v3539, 8.507059e+37
  %v3541 = vand.u32 %v2864, 2147483648
  %v3542 = vor.u32 1.1754944e-38, %v3541
  %v3543 = vsel %vm3540, %v3542, %v3538
  %v3544 = vmul.f32 1.0, %v3543
  %v3545 = vrcp.pop %v2865
  %v3546 = vmul.f32 %v2865, %v3545
  %v3547 = vsub.f32 1.0, %v3546
  %v3548 = vmul.f32 %v3545, %v3547
  %v3549 = vadd.f32 %v3545, %v3548
  %vm3550 = vweird.f32 %v2865
  %vm3551 = vweird.f32 %v3545
  %vm3552 = vmor %vm3550, %vm3551
  %v3553 = vsel %vm3552, %v3545, %v3549
  %v3554 = vand.u32 2147483647, %v2865
  %vm3555 = vcmp.eq.f32.partialorder %v3554, 8.507059e+37
  %v3556 = vand.u32 %v2865, 2147483648
  %v3557 = vor.u32 1.1754944e-38, %v3556
  %v3558 = vsel %vm3555, %v3557, %v3553
  %v3559 = vmul.f32 1.0, %v3558
  %v3560 = vrcp.pop %v2866
  %v3561 = vmul.f32 %v2866, %v3560
  %v3562 = vsub.f32 1.0, %v3561
  %v3563 = vmul.f32 %v3560, %v3562
  %v3564 = vadd.f32 %v3560, %v3563
  %vm3565 = vweird.f32 %v2866
  %vm3566 = vweird.f32 %v3560
  %vm3567 = vmor %vm3565, %vm3566
  %v3568 = vsel %vm3567, %v3560, %v3564
  %v3569 = vand.u32 2147483647, %v2866
  %vm3570 = vcmp.eq.f32.partialorder %v3569, 8.507059e+37
  %v3571 = vand.u32 %v2866, 2147483648
  %v3572 = vor.u32 1.1754944e-38, %v3571
  %v3573 = vsel %vm3570, %v3572, %v3568
  %v3574 = vmul.f32 1.0, %v3573
  %v3575 = vrcp.pop %v2867
  %v3576 = vmul.f32 %v2867, %v3575
  %v3577 = vsub.f32 1.0, %v3576
  %v3578 = vmul.f32 %v3575, %v3577
  %v3579 = vadd.f32 %v3575, %v3578
  %vm3580 = vweird.f32 %v2867
  %vm3581 = vweird.f32 %v3575
  %vm3582 = vmor %vm3580, %vm3581
  %v3583 = vsel %vm3582, %v3575, %v3579
  %v3584 = vand.u32 2147483647, %v2867
  %vm3585 = vcmp.eq.f32.partialorder %v3584, 8.507059e+37
  %v3586 = vand.u32 %v2867, 2147483648
  %v3587 = vor.u32 1.1754944e-38, %v3586
  %v3588 = vsel %vm3585, %v3587, %v3583
  %v3589 = vmul.f32 1.0, %v3588
  %v3590 = vrcp.pop %v2868
  %v3591 = vmul.f32 %v2868, %v3590
  %v3592 = vsub.f32 1.0, %v3591
  %v3593 = vmul.f32 %v3590, %v3592
  %v3594 = vadd.f32 %v3590, %v3593
  %vm3595 = vweird.f32 %v2868
  %vm3596 = vweird.f32 %v3590
  %vm3597 = vmor %vm3595, %vm3596
  %v3598 = vsel %vm3597, %v3590, %v3594
  %v3599 = vand.u32 2147483647, %v2868
  %vm3600 = vcmp.eq.f32.partialorder %v3599, 8.507059e+37
  %v3601 = vand.u32 %v2868, 2147483648
  %v3602 = vor.u32 1.1754944e-38, %v3601
  %v3603 = vsel %vm3600, %v3602, %v3598
  %v3604 = vmul.f32 1.0, %v3603
  %v3605 = vrcp.pop %v2869
  %v3606 = vmul.f32 %v2869, %v3605
  %v3607 = vsub.f32 1.0, %v3606
  %v3608 = vmul.f32 %v3605, %v3607
  %v3609 = vadd.f32 %v3605, %v3608
  %vm3610 = vweird.f32 %v2869
  %vm3611 = vweird.f32 %v3605
  %vm3612 = vmor %vm3610, %vm3611
  %v3613 = vsel %vm3612, %v3605, %v3609
  %v3614 = vand.u32 2147483647, %v2869
  %vm3615 = vcmp.eq.f32.partialorder %v3614, 8.507059e+37
  %v3616 = vand.u32 %v2869, 2147483648
  %v3617 = vor.u32 1.1754944e-38, %v3616
  %v3618 = vsel %vm3615, %v3617, %v3613
  %v3619 = vmul.f32 1.0, %v3618
  %v3620 = vrcp.pop %v2870
  %v3621 = vmul.f32 %v2870, %v3620
  %v3622 = vsub.f32 1.0, %v3621
  %v3623 = vmul.f32 %v3620, %v3622
  %v3624 = vadd.f32 %v3620, %v3623
  %vm3625 = vweird.f32 %v2870
  %vm3626 = vweird.f32 %v3620
  %vm3627 = vmor %vm3625, %vm3626
  %v3628 = vsel %vm3627, %v3620, %v3624
  %v3629 = vand.u32 2147483647, %v2870
  %vm3630 = vcmp.eq.f32.partialorder %v3629, 8.507059e+37
  %v3631 = vand.u32 %v2870, 2147483648
  %v3632 = vor.u32 1.1754944e-38, %v3631
  %v3633 = vsel %vm3630, %v3632, %v3628
  %v3634 = vmul.f32 1.0, %v3633
  %v3635 = vrcp.pop %v2871
  %v3636 = vmul.f32 %v2871, %v3635
  %v3637 = vsub.f32 1.0, %v3636
  %v3638 = vmul.f32 %v3635, %v3637
  %v3639 = vadd.f32 %v3635, %v3638
  %vm3640 = vweird.f32 %v2871
  %vm3641 = vweird.f32 %v3635
  %vm3642 = vmor %vm3640, %vm3641
  %v3643 = vsel %vm3642, %v3635, %v3639
  %v3644 = vand.u32 2147483647, %v2871
  %vm3645 = vcmp.eq.f32.partialorder %v3644, 8.507059e+37
  %v3646 = vand.u32 %v2871, 2147483648
  %v3647 = vor.u32 1.1754944e-38, %v3646
  %v3648 = vsel %vm3645, %v3647, %v3643
  %v3649 = vmul.f32 1.0, %v3648
  %v3650 = vrcp.pop %v2872
  %v3651 = vmul.f32 %v2872, %v3650
  %v3652 = vsub.f32 1.0, %v3651
  %v3653 = vmul.f32 %v3650, %v3652
  %v3654 = vadd.f32 %v3650, %v3653
  %vm3655 = vweird.f32 %v2872
  %vm3656 = vweird.f32 %v3650
  %vm3657 = vmor %vm3655, %vm3656
  %v3658 = vsel %vm3657, %v3650, %v3654
  %v3659 = vand.u32 2147483647, %v2872
  %vm3660 = vcmp.eq.f32.partialorder %v3659, 8.507059e+37
  %v3661 = vand.u32 %v2872, 2147483648
  %v3662 = vor.u32 1.1754944e-38, %v3661
  %v3663 = vsel %vm3660, %v3662, %v3658
  %v3664 = vmul.f32 1.0, %v3663
  %v3665 = vrcp.pop %v2873
  %v3666 = vmul.f32 %v2873, %v3665
  %v3667 = vsub.f32 1.0, %v3666
  %v3668 = vmul.f32 %v3665, %v3667
  %v3669 = vadd.f32 %v3665, %v3668
  %vm3670 = vweird.f32 %v2873
  %vm3671 = vweird.f32 %v3665
  %vm3672 = vmor %vm3670, %vm3671
  %v3673 = vsel %vm3672, %v3665, %v3669
  %v3674 = vand.u32 2147483647, %v2873
  %vm3675 = vcmp.eq.f32.partialorder %v3674, 8.507059e+37
  %v3676 = vand.u32 %v2873, 2147483648
  %v3677 = vor.u32 1.1754944e-38, %v3676
  %v3678 = vsel %vm3675, %v3677, %v3673
  %v3679 = vmul.f32 1.0, %v3678
  %v3680 = vrcp.pop %v2874
  %v3681 = vmul.f32 %v2874, %v3680
  %v3682 = vsub.f32 1.0, %v3681
  %v3683 = vmul.f32 %v3680, %v3682
  %v3684 = vadd.f32 %v3680, %v3683
  %vm3685 = vweird.f32 %v2874
  %vm3686 = vweird.f32 %v3680
  %vm3687 = vmor %vm3685, %vm3686
  %v3688 = vsel %vm3687, %v3680, %v3684
  %v3689 = vand.u32 2147483647, %v2874
  %vm3690 = vcmp.eq.f32.partialorder %v3689, 8.507059e+37
  %v3691 = vand.u32 %v2874, 2147483648
  %v3692 = vor.u32 1.1754944e-38, %v3691
  %v3693 = vsel %vm3690, %v3692, %v3688
  %v3694 = vmul.f32 1.0, %v3693
  %v3695 = vrcp.pop %v2875
  %v3696 = vmul.f32 %v2875, %v3695
  %v3697 = vsub.f32 1.0, %v3696
  %v3698 = vmul.f32 %v3695, %v3697
  %v3699 = vadd.f32 %v3695, %v3698
  %vm3700 = vweird.f32 %v2875
  %vm3701 = vweird.f32 %v3695
  %vm3702 = vmor %vm3700, %vm3701
  %v3703 = vsel %vm3702, %v3695, %v3699
  %v3704 = vand.u32 2147483647, %v2875
  %vm3705 = vcmp.eq.f32.partialorder %v3704, 8.507059e+37
  %v3706 = vand.u32 %v2875, 2147483648
  %v3707 = vor.u32 1.1754944e-38, %v3706
  %v3708 = vsel %vm3705, %v3707, %v3703
  %v3709 = vmul.f32 1.0, %v3708
  %v3710 = vrcp.pop %v2876
  %v3711 = vmul.f32 %v2876, %v3710
  %v3712 = vsub.f32 1.0, %v3711
  %v3713 = vmul.f32 %v3710, %v3712
  %v3714 = vadd.f32 %v3710, %v3713
  %vm3715 = vweird.f32 %v2876
  %vm3716 = vweird.f32 %v3710
  %vm3717 = vmor %vm3715, %vm3716
  %v3718 = vsel %vm3717, %v3710, %v3714
  %v3719 = vand.u32 2147483647, %v2876
  %vm3720 = vcmp.eq.f32.partialorder %v3719, 8.507059e+37
  %v3721 = vand.u32 %v2876, 2147483648
  %v3722 = vor.u32 1.1754944e-38, %v3721
  %v3723 = vsel %vm3720, %v3722, %v3718
  %v3724 = vmul.f32 1.0, %v3723
  %v3725 = vrcp.pop %v2877
  %v3726 = vmul.f32 %v2877, %v3725
  %v3727 = vsub.f32 1.0, %v3726
  %v3728 = vmul.f32 %v3725, %v3727
  %v3729 = vadd.f32 %v3725, %v3728
  %vm3730 = vweird.f32 %v2877
  %vm3731 = vweird.f32 %v3725
  %vm3732 = vmor %vm3730, %vm3731
  %v3733 = vsel %vm3732, %v3725, %v3729
  %v3734 = vand.u32 2147483647, %v2877
  %vm3735 = vcmp.eq.f32.partialorder %v3734, 8.507059e+37
  %v3736 = vand.u32 %v2877, 2147483648
  %v3737 = vor.u32 1.1754944e-38, %v3736
  %v3738 = vsel %vm3735, %v3737, %v3733
  %v3739 = vmul.f32 1.0, %v3738
  %v3740 = vrcp.pop %v2878
  %v3741 = vmul.f32 %v2878, %v3740
  %v3742 = vsub.f32 1.0, %v3741
  %v3743 = vmul.f32 %v3740, %v3742
  %v3744 = vadd.f32 %v3740, %v3743
  %vm3745 = vweird.f32 %v2878
  %vm3746 = vweird.f32 %v3740
  %vm3747 = vmor %vm3745, %vm3746
  %v3748 = vsel %vm3747, %v3740, %v3744
  %v3749 = vand.u32 2147483647, %v2878
  %vm3750 = vcmp.eq.f32.partialorder %v3749, 8.507059e+37
  %v3751 = vand.u32 %v2878, 2147483648
  %v3752 = vor.u32 1.1754944e-38, %v3751
  %v3753 = vsel %vm3750, %v3752, %v3748
  %v3754 = vmul.f32 1.0, %v3753
  %v3755 = vrcp.pop %v2879
  %v3756 = vmul.f32 %v2879, %v3755
  %v3757 = vsub.f32 1.0, %v3756
  %v3758 = vmul.f32 %v3755, %v3757
  %v3759 = vadd.f32 %v3755, %v3758
  %vm3760 = vweird.f32 %v2879
  %vm3761 = vweird.f32 %v3755
  %vm3762 = vmor %vm3760, %vm3761
  %v3763 = vsel %vm3762, %v3755, %v3759
  %v3764 = vand.u32 2147483647, %v2879
  %vm3765 = vcmp.eq.f32.partialorder %v3764, 8.507059e+37
  %v3766 = vand.u32 %v2879, 2147483648
  %v3767 = vor.u32 1.1754944e-38, %v3766
  %v3768 = vsel %vm3765, %v3767, %v3763
  %v3769 = vmul.f32 1.0, %v3768
  %v3770 = vrcp.pop %v2880
  %v3771 = vmul.f32 %v2880, %v3770
  %v3772 = vsub.f32 1.0, %v3771
  %v3773 = vmul.f32 %v3770, %v3772
  %v3774 = vadd.f32 %v3770, %v3773
  %vm3775 = vweird.f32 %v2880
  %vm3776 = vweird.f32 %v3770
  %vm3777 = vmor %vm3775, %vm3776
  %v3778 = vsel %vm3777, %v3770, %v3774
  %v3779 = vand.u32 2147483647, %v2880
  %vm3780 = vcmp.eq.f32.partialorder %v3779, 8.507059e+37
  %v3781 = vand.u32 %v2880, 2147483648
  %v3782 = vor.u32 1.1754944e-38, %v3781
  %v3783 = vsel %vm3780, %v3782, %v3778
  %v3784 = vmul.f32 1.0, %v3783
  %v3785 = vrcp.pop %v2881
  %v3786 = vmul.f32 %v2881, %v3785
  %v3787 = vsub.f32 1.0, %v3786
  %v3788 = vmul.f32 %v3785, %v3787
  %v3789 = vadd.f32 %v3785, %v3788
  %vm3790 = vweird.f32 %v2881
  %vm3791 = vweird.f32 %v3785
  %vm3792 = vmor %vm3790, %vm3791
  %v3793 = vsel %vm3792, %v3785, %v3789
  %v3794 = vand.u32 2147483647, %v2881
  %vm3795 = vcmp.eq.f32.partialorder %v3794, 8.507059e+37
  %v3796 = vand.u32 %v2881, 2147483648
  %v3797 = vor.u32 1.1754944e-38, %v3796
  %v3798 = vsel %vm3795, %v3797, %v3793
  %v3799 = vmul.f32 1.0, %v3798
  %v3800 = vrcp.pop %v2882
  %v3801 = vmul.f32 %v2882, %v3800
  %v3802 = vsub.f32 1.0, %v3801
  %v3803 = vmul.f32 %v3800, %v3802
  %v3804 = vadd.f32 %v3800, %v3803
  %vm3805 = vweird.f32 %v2882
  %vm3806 = vweird.f32 %v3800
  %vm3807 = vmor %vm3805, %vm3806
  %v3808 = vsel %vm3807, %v3800, %v3804
  %v3809 = vand.u32 2147483647, %v2882
  %vm3810 = vcmp.eq.f32.partialorder %v3809, 8.507059e+37
  %v3811 = vand.u32 %v2882, 2147483648
  %v3812 = vor.u32 1.1754944e-38, %v3811
  %v3813 = vsel %vm3810, %v3812, %v3808
  %v3814 = vmul.f32 1.0, %v3813
  %v3815 = vrcp.pop %v2883
  %v3816 = vmul.f32 %v2883, %v3815
  %v3817 = vsub.f32 1.0, %v3816
  %v3818 = vmul.f32 %v3815, %v3817
  %v3819 = vadd.f32 %v3815, %v3818
  %vm3820 = vweird.f32 %v2883
  %vm3821 = vweird.f32 %v3815
  %vm3822 = vmor %vm3820, %vm3821
  %v3823 = vsel %vm3822, %v3815, %v3819
  %v3824 = vand.u32 2147483647, %v2883
  %vm3825 = vcmp.eq.f32.partialorder %v3824, 8.507059e+37
  %v3826 = vand.u32 %v2883, 2147483648
  %v3827 = vor.u32 1.1754944e-38, %v3826
  %v3828 = vsel %vm3825, %v3827, %v3823
  %v3829 = vmul.f32 1.0, %v3828
  %v3830 = vrcp.pop %v2884
  %v3831 = vmul.f32 %v2884, %v3830
  %v3832 = vsub.f32 1.0, %v3831
  %v3833 = vmul.f32 %v3830, %v3832
  %v3834 = vadd.f32 %v3830, %v3833
  %vm3835 = vweird.f32 %v2884
  %vm3836 = vweird.f32 %v3830
  %vm3837 = vmor %vm3835, %vm3836
  %v3838 = vsel %vm3837, %v3830, %v3834
  %v3839 = vand.u32 2147483647, %v2884
  %vm3840 = vcmp.eq.f32.partialorder %v3839, 8.507059e+37
  %v3841 = vand.u32 %v2884, 2147483648
  %v3842 = vor.u32 1.1754944e-38, %v3841
  %v3843 = vsel %vm3840, %v3842, %v3838
  %v3844 = vmul.f32 1.0, %v3843
  %vm3845 = vcmask 15360
  %3846 = vst.msk [vmem:[%s5] sm:$0xff] %vm3845, %v2899
  %3847 = vst.msk [vmem:[%s5 + $0x8] sm:$0xff] %vm3845, %v2914
  %3848 = vst.msk [vmem:[%s5 + $0x10] sm:$0xff] %vm3845, %v2929
  %3849 = vst.msk [vmem:[%s5 + $0x18] sm:$0xff] %vm3845, %v2944
  %3850 = vst.msk [vmem:[%s5 + $0x20] sm:$0xff] %vm3845, %v2959
  %3851 = vst.msk [vmem:[%s5 + $0x28] sm:$0xff] %vm3845, %v2974
  %3852 = vst.msk [vmem:[%s5 + $0x30] sm:$0xff] %vm3845, %v2989
  %3853 = vst.msk [vmem:[%s5 + $0x38] sm:$0xff] %vm3845, %v3004
  %3854 = vst.msk [vmem:[%s5 + $0x40] sm:$0xff] %vm3845, %v3019
  %3855 = vst.msk [vmem:[%s5 + $0x48] sm:$0xff] %vm3845, %v3034
  %3856 = vst.msk [vmem:[%s5 + $0x50] sm:$0xff] %vm3845, %v3049
  %3857 = vst.msk [vmem:[%s5 + $0x58] sm:$0xff] %vm3845, %v3064
  %3858 = vst.msk [vmem:[%s5 + $0x60] sm:$0xff] %vm3845, %v3079
  %3859 = vst.msk [vmem:[%s5 + $0x68] sm:$0xff] %vm3845, %v3094
  %3860 = vst.msk [vmem:[%s5 + $0x70] sm:$0xff] %vm3845, %v3109
  %3861 = vst.msk [vmem:[%s5 + $0x78] sm:$0xff] %vm3845, %v3124
  %3862 = vst.msk [vmem:[%s5 + $0x80] sm:$0xff] %vm3845, %v3139
  %3863 = vst.msk [vmem:[%s5 + $0x88] sm:$0xff] %vm3845, %v3154
  %3864 = vst.msk [vmem:[%s5 + $0x90] sm:$0xff] %vm3845, %v3169
  %3865 = vst.msk [vmem:[%s5 + $0x98] sm:$0xff] %vm3845, %v3184
  %3866 = vst.msk [vmem:[%s5 + $0xa0] sm:$0xff] %vm3845, %v3199
  %3867 = vst.msk [vmem:[%s5 + $0xa8] sm:$0xff] %vm3845, %v3214
  %3868 = vst.msk [vmem:[%s5 + $0xb0] sm:$0xff] %vm3845, %v3229
  %3869 = vst.msk [vmem:[%s5 + $0xb8] sm:$0xff] %vm3845, %v3244
  %3870 = vst.msk [vmem:[%s5 + $0xc0] sm:$0xff] %vm3845, %v3259
  %3871 = vst.msk [vmem:[%s5 + $0xc8] sm:$0xff] %vm3845, %v3274
  %3872 = vst.msk [vmem:[%s5 + $0xd0] sm:$0xff] %vm3845, %v3289
  %3873 = vst.msk [vmem:[%s5 + $0xd8] sm:$0xff] %vm3845, %v3304
  %3874 = vst.msk [vmem:[%s5 + $0xe0] sm:$0xff] %vm3845, %v3319
  %3875 = vst.msk [vmem:[%s5 + $0xe8] sm:$0xff] %vm3845, %v3334
  %3876 = vst.msk [vmem:[%s5 + $0xf0] sm:$0xff] %vm3845, %v3349
  %3877 = vst.msk [vmem:[%s5 + $0xf8] sm:$0xff] %vm3845, %v3364
  %3878 = vst.msk [vmem:[%s5 + $0x100] sm:$0xff] %vm3845, %v3379
  %3879 = vst.msk [vmem:[%s5 + $0x108] sm:$0xff] %vm3845, %v3394
  %3880 = vst.msk [vmem:[%s5 + $0x110] sm:$0xff] %vm3845, %v3409
  %3881 = vst.msk [vmem:[%s5 + $0x118] sm:$0xff] %vm3845, %v3424
  %3882 = vst.msk [vmem:[%s5 + $0x120] sm:$0xff] %vm3845, %v3439
  %3883 = vst.msk [vmem:[%s5 + $0x128] sm:$0xff] %vm3845, %v3454
  %3884 = vst.msk [vmem:[%s5 + $0x130] sm:$0xff] %vm3845, %v3469
  %3885 = vst.msk [vmem:[%s5 + $0x138] sm:$0xff] %vm3845, %v3484
  %3886 = vst.msk [vmem:[%s5 + $0x140] sm:$0xff] %vm3845, %v3499
  %3887 = vst.msk [vmem:[%s5 + $0x148] sm:$0xff] %vm3845, %v3514
  %3888 = vst.msk [vmem:[%s5 + $0x150] sm:$0xff] %vm3845, %v3529
  %3889 = vst.msk [vmem:[%s5 + $0x158] sm:$0xff] %vm3845, %v3544
  %3890 = vst.msk [vmem:[%s5 + $0x160] sm:$0xff] %vm3845, %v3559
  %3891 = vst.msk [vmem:[%s5 + $0x168] sm:$0xff] %vm3845, %v3574
  %3892 = vst.msk [vmem:[%s5 + $0x170] sm:$0xff] %vm3845, %v3589
  %3893 = vst.msk [vmem:[%s5 + $0x178] sm:$0xff] %vm3845, %v3604
  %3894 = vst.msk [vmem:[%s5 + $0x180] sm:$0xff] %vm3845, %v3619
  %3895 = vst.msk [vmem:[%s5 + $0x188] sm:$0xff] %vm3845, %v3634
  %3896 = vst.msk [vmem:[%s5 + $0x190] sm:$0xff] %vm3845, %v3649
  %3897 = vst.msk [vmem:[%s5 + $0x198] sm:$0xff] %vm3845, %v3664
  %3898 = vst.msk [vmem:[%s5 + $0x1a0] sm:$0xff] %vm3845, %v3679
  %3899 = vst.msk [vmem:[%s5 + $0x1a8] sm:$0xff] %vm3845, %v3694
  %3900 = vst.msk [vmem:[%s5 + $0x1b0] sm:$0xff] %vm3845, %v3709
  %3901 = vst.msk [vmem:[%s5 + $0x1b8] sm:$0xff] %vm3845, %v3724
  %3902 = vst.msk [vmem:[%s5 + $0x1c0] sm:$0xff] %vm3845, %v3739
  %3903 = vst.msk [vmem:[%s5 + $0x1c8] sm:$0xff] %vm3845, %v3754
  %3904 = vst.msk [vmem:[%s5 + $0x1d0] sm:$0xff] %vm3845, %v3769
  %3905 = vst.msk [vmem:[%s5 + $0x1d8] sm:$0xff] %vm3845, %v3784
  %3906 = vst.msk [vmem:[%s5 + $0x1e0] sm:$0xff] %vm3845, %v3799
  %3907 = vst.msk [vmem:[%s5 + $0x1e8] sm:$0xff] %vm3845, %v3814
  %3908 = vst.msk [vmem:[%s5 + $0x1f0] sm:$0xff] %vm3845, %v3829
  %3909 = vst.msk [vmem:[%s5 + $0x1f8] sm:$0xff] %vm3845, %v3844
  // Predicated region
  $region22: #{dbcism_forward.18} parent=0 // pred_check
    _
  $region23: #{dbcism_forward.18} parent=0 // pred_check_branch
    %3911 = sbr.rel (0) target = $region25
  $region24: #{dbcism_forward.18} parent=0 // pred_region
    _
  $region25: #{dbcism_forward.18} parent=0 // pred_fallthru
    _
  // Predicated region
  $region26: #{dbcism_forward.18} parent=0 // pred_check
    _
  $region27: #{dbcism_forward.18} parent=0 // pred_check_branch
    %3913 = sbr.rel (0) target = $region29
  $region28: #{dbcism_forward.18} parent=0 // pred_region
    _
  $region29: #{dbcism_forward.18} parent=0 // pred_fallthru
    _

// kernel: dbcism_forward.19
$region0: #{dbcism_forward.19}
  #allocation0 [shape = 'u32[]', space=smem, size = 0x4, offset = 0x4, fixed_abs, tag = 'smem constant byte address 0x4 - core index']
  #allocation1 [shape = 'u32[72,128]{1,0:T(1,128)}', space=vmem, size = 0x9000, scoped, tag = 'internal scratch']
  %s0 = inlined_call_operand.vmem [shape: f32[4,16,16], index: 0, kind: input, shape index: {}]
  %s1 = inlined_call_operand.vmem [shape: f32[32,16], index: 1, kind: input, shape index: {}]
  %s2 = inlined_call_operand.vmem [shape: f32[16,32], index: 2, kind: input, shape index: {}]
  %s3 = inlined_call_operand.vmem [shape: f32[4,32,32], index: 3, kind: output, shape index: {}]
  %s4 = sld [smem:[#allocation0]]
  $region45: #{dbcism_forward.19} parent=0
    _
  %s6 = ssub.s32 1, %s4
  %s7 = scalar_select 0, %s6, %s4
  loop: start=0, step=1, limit=6
  $region2: #{dbcism_forward.19} parent=0 // loop_pre_header
    _
  $region3: #{dbcism_forward.19} parent=0 // loop_header
    %s9 = sphi 0, %s13
    %p10 = scmp.ge.s32.totalorder %s9, 6
    %s19 = sphi 0, %s21
    %s22 = sphi 0, %s19
    %s23 = sphi 0, %s22
    %s39 = sphi 0, %s23
    %s43 = sphi 0, %s43
    %s45 = sphi 0, %s43
    %s46 = sphi 0, %s45
    %s60 = sphi 0, %s46
    %s64 = sphi 0, %s64
    %s66 = sphi 0, %s64
    %s67 = sphi 0, %s66
    %s81 = sphi 0, %s67
    %s87 = sphi 0, %s89
    %s90 = sphi 0, %s87
    %s91 = sphi 0, %s90
    %s107 = sphi 0, %s91
  $region4: #{dbcism_forward.19} parent=0 // loop_header_branch
    %12 = sbr.rel (%p10) target = $region8
  $region5: #{dbcism_forward.19} parent=0 // loop_body
    %s14 = ssub.s32 %s9, 1
    %s15 = ssub.s32 %s9, 2
    %s16 = sadd.s32 %s9, 1
    %s17 = ssub.s32 %s9, %s16
    %p18 = scmp.eq.s32.totalorder %s17, 0
    %s20 = sadd.s32 %s19, 1
    %s21 = scalar_select %p18, %s19, %s20
    %p24 = pneg %p18
    %p25 = scmp.eq.s32.totalorder %s9, 3
    %p26 = por %p24, %p25
    %p27 = scmp.ne.s32.totalorder %s19, %s22
    %p28 = scmp.eq.s32.totalorder %s9, 0
    %p29 = por %p27, %p28
    %p30 = scmp.ne.s32.totalorder %s19, %s22
    %p31 = scmp.eq.s32.totalorder %s14, 3
    %p32 = por %p30, %p31
    %p33 = scmp.ne.s32.totalorder %s22, %s23
    %p34 = scmp.eq.s32.totalorder %s14, 0
    %p35 = por %p33, %p34
    %p36 = scmp.ne.s32.totalorder %s22, %s23
    %p37 = scmp.eq.s32.totalorder %s15, 3
    %p38 = por %p36, %p37
    %p40 = scmp.ne.s32.totalorder %s23, %s39
    %p41 = scmp.eq.s32.totalorder %s15, 0
    %p42 = por %p40, %p41
    %s44 = sadd.s32 %s43, 1
    %p47 = scmp.eq.s32.totalorder %s9, 3
    %p48 = scmp.ne.s32.totalorder %s43, %s45
    %p49 = scmp.eq.s32.totalorder %s9, 0
    %p50 = por %p48, %p49
    %p51 = scmp.ne.s32.totalorder %s43, %s45
    %p52 = scmp.eq.s32.totalorder %s14, 3
    %p53 = por %p51, %p52
    %p54 = scmp.ne.s32.totalorder %s45, %s46
    %p55 = scmp.eq.s32.totalorder %s14, 0
    %p56 = por %p54, %p55
    %p57 = scmp.ne.s32.totalorder %s45, %s46
    %p58 = scmp.eq.s32.totalorder %s15, 3
    %p59 = por %p57, %p58
    %p61 = scmp.ne.s32.totalorder %s46, %s60
    %p62 = scmp.eq.s32.totalorder %s15, 0
    %p63 = por %p61, %p62
    %s65 = sadd.s32 %s64, 1
    %p68 = scmp.eq.s32.totalorder %s9, 3
    %p69 = scmp.ne.s32.totalorder %s64, %s66
    %p70 = scmp.eq.s32.totalorder %s9, 0
    %p71 = por %p69, %p70
    %p72 = scmp.ne.s32.totalorder %s64, %s66
    %p73 = scmp.eq.s32.totalorder %s14, 3
    %p74 = por %p72, %p73
    %p75 = scmp.ne.s32.totalorder %s66, %s67
    %p76 = scmp.eq.s32.totalorder %s14, 0
    %p77 = por %p75, %p76
    %p78 = scmp.ne.s32.totalorder %s66, %s67
    %p79 = scmp.eq.s32.totalorder %s15, 3
    %p80 = por %p78, %p79
    %p82 = scmp.ne.s32.totalorder %s67, %s81
    %p83 = scmp.eq.s32.totalorder %s15, 0
    %p84 = por %p82, %p83
    %s85 = ssub.s32 %s9, %s16
    %p86 = scmp.eq.s32.totalorder %s85, 0
    %s88 = sadd.s32 %s87, 1
    %s89 = scalar_select %p86, %s87, %s88
    %p92 = pneg %p86
    %p93 = scmp.eq.s32.totalorder %s9, 3
    %p94 = por %p92, %p93
    %p95 = scmp.ne.s32.totalorder %s87, %s90
    %p96 = scmp.eq.s32.totalorder %s9, 0
    %p97 = por %p95, %p96
    %p98 = scmp.ne.s32.totalorder %s87, %s90
    %p99 = scmp.eq.s32.totalorder %s14, 3
    %p100 = por %p98, %p99
    %p101 = scmp.ne.s32.totalorder %s90, %s91
    %p102 = scmp.eq.s32.totalorder %s14, 0
    %p103 = por %p101, %p102
    %p104 = scmp.ne.s32.totalorder %s90, %s91
    %p105 = scmp.eq.s32.totalorder %s15, 3
    %p106 = por %p104, %p105
    %p108 = scmp.ne.s32.totalorder %s91, %s107
    %p109 = scmp.eq.s32.totalorder %s15, 0
    %p110 = por %p108, %p109
    %p111 = scmp.le.s32.totalorder 1, %s9
    %p112 = scmp.lt.s32.totalorder %s9, 5
    %p113 = pnand %p111, %p112
    %p114 = pneg %p113
    // Predicated region
    $region9: #{dbcism_forward.19} parent=5 // pred_check
      _
    $region10: #{dbcism_forward.19} parent=5 // pred_check_branch
      %116 = sbr.rel (%p113) target = $region12
    $region11: #{dbcism_forward.19} parent=5 // pred_region
      %s117 = ssub.s32 %s9, 1
      // Predicated region
      $region13: #{dbcism_forward.19} parent=11 // pred_check
        %p118 = pneg %p56
      $region14: #{dbcism_forward.19} parent=11 // pred_check_branch
        %120 = sbr.rel (%p118) target = $region16
      $region15: #{dbcism_forward.19} parent=11 // pred_region
        _
      $region16: #{dbcism_forward.19} parent=11 // pred_fallthru
        _
      // Predicated region
      $region17: #{dbcism_forward.19} parent=11 // pred_check
        %p121 = pneg %p77
      $region18: #{dbcism_forward.19} parent=11 // pred_check_branch
        %123 = sbr.rel (%p121) target = $region20
      $region19: #{dbcism_forward.19} parent=11 // pred_region
        _
      $region20: #{dbcism_forward.19} parent=11 // pred_fallthru
        _
    $region12: #{dbcism_forward.19} parent=5 // pred_fallthru
      _
    %p124 = scmp.lt.s32.totalorder %s9, 4
    // Predicated region
    $region21: #{dbcism_forward.19} parent=5 // pred_check
      %p125 = pneg %p124
    $region22: #{dbcism_forward.19} parent=5 // pred_check_branch
      %127 = sbr.rel (%p125) target = $region24
    $region23: #{dbcism_forward.19} parent=5 // pred_region
      // Predicated region
      $region25: #{dbcism_forward.19} parent=23 // pred_check
        %p128 = pneg %p29
      $region26: #{dbcism_forward.19} parent=23 // pred_check_branch
        %130 = sbr.rel (%p128) target = $region28
      $region27: #{dbcism_forward.19} parent=23 // pred_region
        %p131 = scmp.lt.s32.totalorder %s9, 3
        %s132 = scalar_select %p131, %s9, 3
        %s133 = smul.addr %s132, 2
        %s134 = smul.addr %s133, 8
        %s135 = scalar_lea.vmem %s0, %s134
      $region28: #{dbcism_forward.19} parent=23 // pred_fallthru
        _
    $region24: #{dbcism_forward.19} parent=5 // pred_fallthru
      _
    %p136 = scmp.le.s32.totalorder 1, %s9
    %p137 = scmp.lt.s32.totalorder %s9, 5
    %p138 = pnand %p136, %p137
    %p139 = pneg %p138
    // Predicated region
    $region29: #{dbcism_forward.19} parent=5 // pred_check
      _
    $region30: #{dbcism_forward.19} parent=5 // pred_check_branch
      %141 = sbr.rel (%p138) target = $region32
    $region31: #{dbcism_forward.19} parent=5 // pred_region
      %s142 = ssub.s32 %s9, 1
      %p143 = scmp.lt.s32.totalorder %s14, 3
      %s144 = scalar_select %p143, %s14, 3
      %s145 = smul.addr %s144, 2
      %s146 = smul.addr %s145, 8
      %s147 = scalar_lea.vmem %s0, %s146
      %p148 = pneg %p35
      %p149 = pneg %p32
      %p150 = pneg %p56
      %p151 = pneg %p53
      %p152 = pneg %p77
      %p153 = pneg %p74
      %p154 = pneg %p103
      %p155 = pneg %p100
      %p156 = scmp.lt.s32.totalorder %s14, 3
      %s157 = scalar_select %p156, %s14, 3
      %s158 = smul.addr %s157, 4
      %s159 = smul.addr %s158, 8
      %s160 = scalar_lea.vmem %s3, %s159
      %p161 = scmp.lt.s32.totalorder %s14, 3
      %s162 = scalar_select %p161, %s14, 3
      %s163 = smul.addr %s162, 2
      %s164 = smul.addr %s163, 8
      %s165 = scalar_lea.vmem %s0, %s164
      %p166 = scmp.lt.s32.totalorder %s14, 3
      %s167 = scalar_select %p166, %s14, 3
      %s168 = smul.addr %s167, 4
      %s169 = smul.addr %s168, 8
      %s170 = scalar_lea.vmem %s3, %s169
      %v171 = vld [vmem:[%s165] sm:$0xff]
      %v172 = vld [vmem:[%s165 + $0x8] sm:$0xff]
      %v173 = vld [vmem:[%s2] sm:$0xff]
      %v174 = vld [vmem:[%s2 + $0x8] sm:$0xff]
      %vm175 = vcmask 130048
      %v177 = vsel %vm175, %v171, 0
      %v180 = vsel %vm175, %v172, 0
      %182 = vmatpush.msra.mxu0 0.0
      %183 = vmatpush.msra.mxu0 0.0
      %184 = vmatpush.msra.mxu0 0.0
      %185 = vmatpush.msra.mxu0 0.0
      %186 = vmatpush.msra.mxu0 0.0
      %187 = vmatpush.msra.mxu0 0.0
      %188 = vmatpush.msra.mxu0 0.0
      %189 = vmatpush.msra.mxu0 0.0
      %190 = vmatpush.msra.mxu0 0.0
      %191 = vmatpush.msra.mxu0 0.0
      %192 = vmatpush.msra.mxu0 0.0
      %193 = vmatpush.msra.mxu0 0.0
      %194 = vmatpush.msra.mxu0 0.0
      %195 = vmatpush.msra.mxu0 0.0
      %196 = vmatpush.msra.mxu0 %v174
      %197 = vmatpush.msra.mxu0 %v173
      %198 = vmatmul.f32.gmra.mxu0 %v177
      %v199 = vpop.f32.mrf.mxu0
      %v200 = vadd.f32 0.0, %v199
      %201 = vmatmul.f32.gmra.mxu0 %v180
      %v202 = vpop.f32.mrf.mxu0
      %v203 = vadd.f32 0.0, %v202
      %204 = vdwg.mxu0
      %v205 = vld [vmem:[%s1] sm:$0xff]
      %v206 = vld [vmem:[%s1 + $0x8] sm:$0xff]
      %v207 = vld [vmem:[%s1 + $0x10] sm:$0xff]
      %v208 = vld [vmem:[%s1 + $0x18] sm:$0xff]
      %v210 = vsel %vm175, %v205, 0
      %v213 = vsel %vm175, %v206, 0
      %v216 = vsel %vm175, %v207, 0
      %v219 = vsel %vm175, %v208, 0
      %221 = vmatpush.msra.mxu0 0.0
      %222 = vmatpush.msra.mxu0 0.0
      %223 = vmatpush.msra.mxu0 0.0
      %224 = vmatpush.msra.mxu0 0.0
      %225 = vmatpush.msra.mxu0 0.0
      %226 = vmatpush.msra.mxu0 0.0
      %227 = vmatpush.msra.mxu0 0.0
      %228 = vmatpush.msra.mxu0 0.0
      %229 = vmatpush.msra.mxu0 0.0
      %230 = vmatpush.msra.mxu0 0.0
      %231 = vmatpush.msra.mxu0 0.0
      %232 = vmatpush.msra.mxu0 0.0
      %233 = vmatpush.msra.mxu0 0.0
      %234 = vmatpush.msra.mxu0 0.0
      %235 = vmatpush.msra.mxu0 %v203
      %236 = vmatpush.msra.mxu0 %v200
      %237 = vmatmul.f32.gmra.mxu0 %v210
      %v238 = vpop.f32.mrf.mxu0
      %v239 = vadd.f32 0.0, %v238
      %240 = vmatmul.f32.gmra.mxu0 %v213
      %v241 = vpop.f32.mrf.mxu0
      %v242 = vadd.f32 0.0, %v241
      %243 = vmatmul.f32.gmra.mxu0 %v216
      %v244 = vpop.f32.mrf.mxu0
      %v245 = vadd.f32 0.0, %v244
      %246 = vmatmul.f32.gmra.mxu0 %v219
      %v247 = vpop.f32.mrf.mxu0
      %v248 = vadd.f32 0.0, %v247
      %249 = vdwg.mxu0
      %vm250 = vcmask 261120
      %251 = vst.msk [vmem:[%s170] sm:$0xff] %vm250, %v239
      %252 = vst.msk [vmem:[%s170 + $0x8] sm:$0xff] %vm250, %v242
      %253 = vst.msk [vmem:[%s170 + $0x10] sm:$0xff] %vm250, %v245
      %254 = vst.msk [vmem:[%s170 + $0x18] sm:$0xff] %vm250, %v248
      %p255 = scmp.lt.s32.totalorder %s14, 3
      %s256 = scalar_select %p255, %s14, 3
      %s257 = smul.addr %s256, 4
      %s258 = smul.addr %s257, 8
      %s259 = scalar_lea.vmem %s3, %s258
      // Predicated region
      $region33: #{dbcism_forward.19} parent=31 // pred_check
        %p260 = pneg %p100
      $region34: #{dbcism_forward.19} parent=31 // pred_check_branch
        %262 = sbr.rel (%p260) target = $region36
      $region35: #{dbcism_forward.19} parent=31 // pred_region
        _
      $region36: #{dbcism_forward.19} parent=31 // pred_fallthru
        _
    $region32: #{dbcism_forward.19} parent=5 // pred_fallthru
      _
    %p263 = scmp.le.s32.totalorder 2, %s9
    // Predicated region
    $region37: #{dbcism_forward.19} parent=5 // pred_check
      %p264 = pneg %p263
    $region38: #{dbcism_forward.19} parent=5 // pred_check_branch
      %266 = sbr.rel (%p264) target = $region40
    $region39: #{dbcism_forward.19} parent=5 // pred_region
      %s267 = ssub.s32 %s9, 2
      // Predicated region
      $region41: #{dbcism_forward.19} parent=39 // pred_check
        %p268 = pneg %p106
      $region42: #{dbcism_forward.19} parent=39 // pred_check_branch
        %270 = sbr.rel (%p268) target = $region44
      $region43: #{dbcism_forward.19} parent=39 // pred_region
        %p271 = scmp.lt.s32.totalorder %s15, 3
        %s272 = scalar_select %p271, %s15, 3
        %s273 = smul.addr %s272, 4
        %s274 = smul.addr %s273, 8
        %s275 = scalar_lea.vmem %s3, %s274
      $region44: #{dbcism_forward.19} parent=39 // pred_fallthru
        _
    $region40: #{dbcism_forward.19} parent=5 // pred_fallthru
      _
  $region6: #{dbcism_forward.19} parent=0 // loop_footer
    %s13 = sadd.s32 1, %s9
  $region7: #{dbcism_forward.19} parent=0 // loop_footer_branch
    %8 = sbr.rel target = $region3
  $region8: #{dbcism_forward.19} parent=0 // loop_exit
    _

</llo_original>
